<compile_context>
chip_gen: v7x
topology: tpu7x:2x2x1
jax: 0.10.0
libtpu: 0.0.40
codegen_flags: <defaults>
</compile_context>

<pallas_src>
import functools

import jax
import jax.numpy as jnp
from jax.experimental import pallas as pl
from jax.experimental.pallas import tpu as pltpu

INPUT_SIZE = 2
CL_DIM = 8            # stand-in for ToyDataset.CL_DIM
D_IN = INPUT_SIZE + CL_DIM
HIDDEN = 1024
FEAT_PAD = 128        # padded (input_size + cl_dim) for lane alignment
NEG_SLOPE = 0.01      # nn.LeakyReLU default


def _round_up(x, m):
    return (x + m - 1) // m * m


def _leaky_relu(h):
    return jnp.where(h > 0, h, NEG_SLOPE * h)


def _mlp_kernel(feats_ref, w1_ref, b1_ref, w2_ref, b2_ref, w3_ref, b3_ref,
                w4_ref, b4_ref, o_ref):
    # Layer 1: (tile, 128) bf16 @ (128, 1024) bf16 -> f32 acc, then bias + act.
    h = jnp.dot(feats_ref[...], w1_ref[...], preferred_element_type=jnp.float32)
    h = _leaky_relu(h + b1_ref[...])
    # Layer 2 (bf16 matmul, f32 epilogue).
    h = jnp.dot(h.astype(jnp.bfloat16), w2_ref[...],
                preferred_element_type=jnp.float32)
    h = _leaky_relu(h + b2_ref[...])
    # Layer 3.
    h = jnp.dot(h.astype(jnp.bfloat16), w3_ref[...],
                preferred_element_type=jnp.float32)
    h = _leaky_relu(h + b3_ref[...])
    # Final fc (out_features=1): VPU multiply + lane reduction instead of an
    # N=1 MXU matmul.  w4_ref is the (1, 1024) weight row in f32.
    o_ref[...] = jnp.sum(h * w4_ref[...], axis=-1, keepdims=True) + b4_ref[...]


def _resident(i):
    # Weights / biases: same block for every batch tile -> loaded once, kept
    # resident in VMEM across the whole grid.
    return (0, 0)


def _batch_tile(i):
    return (i, 0)


@functools.partial(jax.jit, static_argnames=("block_b",))
def discriminator_forward(x, cl, params, block_b=512):
    """Pallas implementation of LargerToyDiscriminator._forward_conditional."""
    B = x.shape[0]
    w1, b1, w2, b2, w3, b3, w4, b4 = params

    # Batch tile: up to block_b rows, multiple of 8 sublanes.
    tile = min(block_b, _round_up(B, 8))
    b_pad = _round_up(B, tile)

    # torch.cat((x, cl), 1), cast to bf16 for the MXU, zero-pad rows/lanes.
    # TODO(synk): for very large B the (B,128) feats materialization could be
    # avoided by building the padded tile inside the kernel from x/cl directly.
    feats = jnp.concatenate([x, cl], axis=1).astype(jnp.bfloat16)
    feats = jnp.pad(feats, ((0, b_pad - B), (0, FEAT_PAD - feats.shape[1])))

    grid = (b_pad // tile,)
    out = pl.pallas_call(
        _mlp_kernel,
        out_shape=jax.ShapeDtypeStruct((b_pad, 1), jnp.float32),
        grid=grid,
        in_specs=[
            pl.BlockSpec((tile, FEAT_PAD), _batch_tile),      # feats (bf16)
            pl.BlockSpec((FEAT_PAD, HIDDEN), _resident),      # w1 (bf16)
            pl.BlockSpec((1, HIDDEN), _resident),             # b1 (f32)
            pl.BlockSpec((HIDDEN, HIDDEN), _resident),        # w2 (bf16)
            pl.BlockSpec((1, HIDDEN), _resident),             # b2 (f32)
            pl.BlockSpec((HIDDEN, HIDDEN), _resident),        # w3 (bf16)
            pl.BlockSpec((1, HIDDEN), _resident),             # b3 (f32)
            pl.BlockSpec((1, HIDDEN), _resident),             # w4 row (f32)
            pl.BlockSpec((1, 1), _resident),                  # b4 (f32)
        ],
        out_specs=pl.BlockSpec((tile, 1), _batch_tile),
        compiler_params=pltpu.CompilerParams(
            dimension_semantics=("parallel",),
            vmem_limit_bytes=32 << 20,
        ),
    )(feats, w1, b1, w2, b2, w3, b3, w4, b4)

    # out_dc.view(-1)  (drop any batch padding rows)
    return out[:B, 0]


def init_params(key):
    """Deterministic synthetic parameters (shapes from the module __init__).

    Weights are stored transposed vs torch.nn.Linear (i.e. (in, out)) so the
    kernel can do x @ W directly.  w1/w2/w3 are bf16; w1 rows beyond
    (input_size + cl_dim) are zero so the padded lanes contribute nothing.
    w4 is kept as a (1, 1024) f32 row for the VPU epilogue.
    """
    keys = jax.random.split(key, 8)

    def dense(k, fan_in, shape):
        return jax.random.normal(k, shape, jnp.float32) / jnp.sqrt(fan_in)

    w1 = dense(keys[0], D_IN, (D_IN, HIDDEN))
    w1 = jnp.pad(w1, ((0, FEAT_PAD - D_IN), (0, 0))).astype(jnp.bfloat16)
    b1 = dense(keys[1], HIDDEN, (1, HIDDEN))

    w2 = dense(keys[2], HIDDEN, (HIDDEN, HIDDEN)).astype(jnp.bfloat16)
    b2 = dense(keys[3], HIDDEN, (1, HIDDEN))

    w3 = dense(keys[4], HIDDEN, (HIDDEN, HIDDEN)).astype(jnp.bfloat16)
    b3 = dense(keys[5], HIDDEN, (1, HIDDEN))

    w4 = dense(keys[6], HIDDEN, (1, HIDDEN))          # fc weight row, f32
    b4 = dense(keys[7], 1, (1, 1))

    return (w1, b1, w2, b2, w3, b3, w4, b4)


def _ref_forward(x, cl, params):
    """Pure-JAX reference emulating the kernel's bf16 weight/activation rounding."""
    w1, b1, w2, b2, w3, b3, w4, b4 = params
    f32 = lambda a: a.astype(jnp.float32)
    hi = jax.lax.Precision.HIGHEST

    feats = jnp.concatenate([x, cl], axis=1).astype(jnp.bfloat16)
    feats = jnp.pad(feats, ((0, 0), (0, FEAT_PAD - feats.shape[1])))

    h = jnp.dot(f32(feats), f32(w1), precision=hi) + b1
    h = jnp.where(h > 0, h, NEG_SLOPE * h)
    h = jnp.dot(f32(h.astype(jnp.bfloat16)), f32(w2), precision=hi) + b2
    h = jnp.where(h > 0, h, NEG_SLOPE * h)
    h = jnp.dot(f32(h.astype(jnp.bfloat16)), f32(w3), precision=hi) + b3
    h = jnp.where(h > 0, h, NEG_SLOPE * h)
    out = jnp.sum(h * w4, axis=-1, keepdims=True) + b4
    return out.reshape(-1)


if __name__ == "__main__":
    key = jax.random.PRNGKey(0)
    k_x, k_cl, k_p = jax.random.split(key, 3)

    B = 8
    x = jax.random.normal(k_x, (B, INPUT_SIZE), jnp.float32)
    cl = jax.random.normal(k_cl, (B, CL_DIM), jnp.float32)
    params = init_params(k_p)

    out = discriminator_forward(x, cl, params)
    out = jax.block_until_ready(out)
    assert out.shape == (B,), out.shape

    ref = _ref_forward(x, cl, params)
    assert jnp.allclose(out, ref, atol=1e-3, rtol=1e-2), (out, ref)

    print("KERNEL_OK")
</pallas_src>

<mosaic_0001>
module attributes {stable_mosaic.version = 11 : i64} {
  func.func @_mlp_kernel(%arg0: i32, %arg1: memref<8x128xbf16, #tpu.memory_space<vmem>>, %arg2: memref<128x1024xbf16, #tpu.memory_space<vmem>>, %arg3: memref<1x1024xf32, #tpu.memory_space<vmem>>, %arg4: memref<1024x1024xbf16, #tpu.memory_space<vmem>>, %arg5: memref<1x1024xf32, #tpu.memory_space<vmem>>, %arg6: memref<1024x1024xbf16, #tpu.memory_space<vmem>>, %arg7: memref<1x1024xf32, #tpu.memory_space<vmem>>, %arg8: memref<1x1024xf32, #tpu.memory_space<vmem>>, %arg9: memref<1x1xf32, #tpu.memory_space<vmem>>, %arg10: memref<8x1xf32, #tpu.memory_space<vmem>>) attributes {dimension_semantics = [#tpu.dimension_semantics<parallel>], iteration_bounds = array<i64: 1>, scalar_prefetch = 0 : i64, scratch_operands = 0 : i64, tpu.core_type = #tpu.core_type<tc>, window_params = [{transform_indices = @transform_0, window_bounds = array<i64: 8, 128>}, {pipeline_mode = #tpu.pipeline_mode<synchronous>, transform_indices = @transform_1, window_bounds = array<i64: 128, 1024>}, {pipeline_mode = #tpu.pipeline_mode<synchronous>, transform_indices = @transform_2, window_bounds = array<i64: 1, 1024>}, {pipeline_mode = #tpu.pipeline_mode<synchronous>, transform_indices = @transform_3, window_bounds = array<i64: 1024, 1024>}, {pipeline_mode = #tpu.pipeline_mode<synchronous>, transform_indices = @transform_4, window_bounds = array<i64: 1, 1024>}, {pipeline_mode = #tpu.pipeline_mode<synchronous>, transform_indices = @transform_5, window_bounds = array<i64: 1024, 1024>}, {pipeline_mode = #tpu.pipeline_mode<synchronous>, transform_indices = @transform_6, window_bounds = array<i64: 1, 1024>}, {pipeline_mode = #tpu.pipeline_mode<synchronous>, transform_indices = @transform_7, window_bounds = array<i64: 1, 1024>}, {pipeline_mode = #tpu.pipeline_mode<synchronous>, transform_indices = @transform_8, window_bounds = array<i64: 1, 1>}, {transform_indices = @transform_9, window_bounds = array<i64: 8, 1>}]} {
    %c0 = arith.constant 0 : index
    %c0_0 = arith.constant 0 : index
    %0 = vector.load %arg1[%c0, %c0_0] : memref<8x128xbf16, #tpu.memory_space<vmem>>, vector<8x128xbf16>
    %c0_1 = arith.constant 0 : index
    %c0_2 = arith.constant 0 : index
    %1 = vector.load %arg2[%c0_1, %c0_2] : memref<128x1024xbf16, #tpu.memory_space<vmem>>, vector<128x1024xbf16>
    %cst = arith.constant dense<0.000000e+00> : vector<8x1024xf32>
    %2 = tpu.matmul %0, %1, %cst {dimension_numbers = #tpu.dot_dimension_numbers<[1], [0], [0], [1], [0, 0, 1, 1], [], []>} : vector<8x128xbf16>, vector<128x1024xbf16>, vector<8x1024xf32> -> vector<8x1024xf32>
    %c0_3 = arith.constant 0 : index
    %c0_4 = arith.constant 0 : index
    %3 = vector.load %arg3[%c0_3, %c0_4] : memref<1x1024xf32, #tpu.memory_space<vmem>>, vector<1x1024xf32>
    %4 = vector.broadcast %3 : vector<1x1024xf32> to vector<8x1024xf32>
    %5 = arith.addf %2, %4 : vector<8x1024xf32>
    %cst_5 = arith.constant 0.000000e+00 : f32
    %6 = vector.broadcast %cst_5 : f32 to vector<8x1024xf32>
    %7 = arith.cmpf ogt, %5, %6 : vector<8x1024xf32>
    %cst_6 = arith.constant 0.00999999977 : f32
    %8 = vector.broadcast %cst_6 : f32 to vector<8x1024xf32>
    %9 = arith.mulf %8, %5 : vector<8x1024xf32>
    %10 = arith.select %7, %5, %9 : vector<8x1024xi1>, vector<8x1024xf32>
    %11 = arith.truncf %10 : vector<8x1024xf32> to vector<8x1024xbf16>
    %c0_7 = arith.constant 0 : index
    %c0_8 = arith.constant 0 : index
    %12 = vector.load %arg4[%c0_7, %c0_8] : memref<1024x1024xbf16, #tpu.memory_space<vmem>>, vector<1024x1024xbf16>
    %cst_9 = arith.constant dense<0.000000e+00> : vector<8x1024xf32>
    %13 = tpu.matmul %11, %12, %cst_9 {dimension_numbers = #tpu.dot_dimension_numbers<[1], [0], [0], [1], [0, 0, 1, 1], [], []>} : vector<8x1024xbf16>, vector<1024x1024xbf16>, vector<8x1024xf32> -> vector<8x1024xf32>
    %c0_10 = arith.constant 0 : index
    %c0_11 = arith.constant 0 : index
    %14 = vector.load %arg5[%c0_10, %c0_11] : memref<1x1024xf32, #tpu.memory_space<vmem>>, vector<1x1024xf32>
    %15 = vector.broadcast %14 : vector<1x1024xf32> to vector<8x1024xf32>
    %16 = arith.addf %13, %15 : vector<8x1024xf32>
    %cst_12 = arith.constant 0.000000e+00 : f32
    %17 = vector.broadcast %cst_12 : f32 to vector<8x1024xf32>
    %18 = arith.cmpf ogt, %16, %17 : vector<8x1024xf32>
    %cst_13 = arith.constant 0.00999999977 : f32
    %19 = vector.broadcast %cst_13 : f32 to vector<8x1024xf32>
    %20 = arith.mulf %19, %16 : vector<8x1024xf32>
    %21 = arith.select %18, %16, %20 : vector<8x1024xi1>, vector<8x1024xf32>
    %22 = arith.truncf %21 : vector<8x1024xf32> to vector<8x1024xbf16>
    %c0_14 = arith.constant 0 : index
    %c0_15 = arith.constant 0 : index
    %23 = vector.load %arg6[%c0_14, %c0_15] : memref<1024x1024xbf16, #tpu.memory_space<vmem>>, vector<1024x1024xbf16>
    %cst_16 = arith.constant dense<0.000000e+00> : vector<8x1024xf32>
    %24 = tpu.matmul %22, %23, %cst_16 {dimension_numbers = #tpu.dot_dimension_numbers<[1], [0], [0], [1], [0, 0, 1, 1], [], []>} : vector<8x1024xbf16>, vector<1024x1024xbf16>, vector<8x1024xf32> -> vector<8x1024xf32>
    %c0_17 = arith.constant 0 : index
    %c0_18 = arith.constant 0 : index
    %25 = vector.load %arg7[%c0_17, %c0_18] : memref<1x1024xf32, #tpu.memory_space<vmem>>, vector<1x1024xf32>
    %26 = vector.broadcast %25 : vector<1x1024xf32> to vector<8x1024xf32>
    %27 = arith.addf %24, %26 : vector<8x1024xf32>
    %cst_19 = arith.constant 0.000000e+00 : f32
    %28 = vector.broadcast %cst_19 : f32 to vector<8x1024xf32>
    %29 = arith.cmpf ogt, %27, %28 : vector<8x1024xf32>
    %cst_20 = arith.constant 0.00999999977 : f32
    %30 = vector.broadcast %cst_20 : f32 to vector<8x1024xf32>
    %31 = arith.mulf %30, %27 : vector<8x1024xf32>
    %32 = arith.select %29, %27, %31 : vector<8x1024xi1>, vector<8x1024xf32>
    %c0_21 = arith.constant 0 : index
    %c0_22 = arith.constant 0 : index
    %33 = vector.load %arg8[%c0_21, %c0_22] : memref<1x1024xf32, #tpu.memory_space<vmem>>, vector<1x1024xf32>
    %34 = vector.broadcast %33 : vector<1x1024xf32> to vector<8x1024xf32>
    %35 = arith.mulf %32, %34 : vector<8x1024xf32>
    %cst_23 = arith.constant dense<0.000000e+00> : vector<8xf32>
    %36 = vector.multi_reduction <add>, %35, %cst_23 [1] : vector<8x1024xf32> to vector<8xf32>
    %37 = vector.shape_cast %36 : vector<8xf32> to vector<8x1xf32>
    %c0_24 = arith.constant 0 : index
    %c0_25 = arith.constant 0 : index
    %38 = vector.load %arg9[%c0_24, %c0_25] : memref<1x1xf32, #tpu.memory_space<vmem>>, vector<1x1xf32>
    %39 = vector.broadcast %38 : vector<1x1xf32> to vector<8x1xf32>
    %40 = arith.addf %37, %39 : vector<8x1xf32>
    %c0_26 = arith.constant 0 : index
    %c0_27 = arith.constant 0 : index
    %41 = vector.load %arg10[%c0_26, %c0_27] : memref<8x1xf32, #tpu.memory_space<vmem>>, vector<8x1xf32>
    tpu.vector_store %arg10[%c0_26, %c0_27], %40 {strides = array<i32>} : memref<8x1xf32, #tpu.memory_space<vmem>>, vector<8x1xf32>,
    return
  }
  func.func @transform_0(%arg0: i32) -> (i32, i32) {
    %c0_i32 = arith.constant 0 : i32
    %c0_i32_0 = arith.constant 0 : i32
    return %arg0, %c0_i32 : i32, i32
  }
  func.func @transform_1(%arg0: i32) -> (i32, i32) {
    %c0_i32 = arith.constant 0 : i32
    %c0_i32_0 = arith.constant 0 : i32
    %c0_i32_1 = arith.constant 0 : i32
    return %c0_i32, %c0_i32_0 : i32, i32
  }
  func.func @transform_2(%arg0: i32) -> (i32, i32) {
    %c0_i32 = arith.constant 0 : i32
    %c0_i32_0 = arith.constant 0 : i32
    %c0_i32_1 = arith.constant 0 : i32
    return %c0_i32, %c0_i32_0 : i32, i32
  }
  func.func @transform_3(%arg0: i32) -> (i32, i32) {
    %c0_i32 = arith.constant 0 : i32
    %c0_i32_0 = arith.constant 0 : i32
    %c0_i32_1 = arith.constant 0 : i32
    return %c0_i32, %c0_i32_0 : i32, i32
  }
  func.func @transform_4(%arg0: i32) -> (i32, i32) {
    %c0_i32 = arith.constant 0 : i32
    %c0_i32_0 = arith.constant 0 : i32
    %c0_i32_1 = arith.constant 0 : i32
    return %c0_i32, %c0_i32_0 : i32, i32
  }
  func.func @transform_5(%arg0: i32) -> (i32, i32) {
    %c0_i32 = arith.constant 0 : i32
    %c0_i32_0 = arith.constant 0 : i32
    %c0_i32_1 = arith.constant 0 : i32
    return %c0_i32, %c0_i32_0 : i32, i32
  }
  func.func @transform_6(%arg0: i32) -> (i32, i32) {
    %c0_i32 = arith.constant 0 : i32
    %c0_i32_0 = arith.constant 0 : i32
    %c0_i32_1 = arith.constant 0 : i32
    return %c0_i32, %c0_i32_0 : i32, i32
  }
  func.func @transform_7(%arg0: i32) -> (i32, i32) {
    %c0_i32 = arith.constant 0 : i32
    %c0_i32_0 = arith.constant 0 : i32
    %c0_i32_1 = arith.constant 0 : i32
    return %c0_i32, %c0_i32_0 : i32, i32
  }
  func.func @transform_8(%arg0: i32) -> (i32, i32) {
    %c0_i32 = arith.constant 0 : i32
    %c0_i32_0 = arith.constant 0 : i32
    %c0_i32_1 = arith.constant 0 : i32
    return %c0_i32, %c0_i32_0 : i32, i32
  }
  func.func @transform_9(%arg0: i32) -> (i32, i32) {
    %c0_i32 = arith.constant 0 : i32
    %c0_i32_0 = arith.constant 0 : i32
    return %arg0, %c0_i32 : i32, i32
  }
}

</mosaic_0001>

<llo_original>
// kernel: discriminator_forward.1
$region0: #{discriminator_forward.1}
  #allocation0 [shape = 'u32[]', space=smem, size = 0x4, offset = 0x4, fixed_abs, tag = 'smem constant byte address 0x4 - core index']
  #allocation1 [shape = 'u32[144,128]{1,0:T(1,128)}', space=vmem, size = 0x12000, scoped, tag = 'internal scratch']
  #allocation2 [shape = 'f32[1,1]{1,0:T(1,128)S(1)}', space=vmem, size = 0x200, scoped, tag = 'scoped memory for discriminator_forward.1']
  %s0 = inlined_call_operand.vmem [shape: bf16[8,128], index: 0, kind: input, shape index: {}]
  %s1 = inlined_call_operand.hbm [shape: bf16[128,1024], index: 1, kind: input, shape index: {}]
  %s2 = inlined_call_operand.hbm [shape: f32[1,1024], index: 2, kind: input, shape index: {}]
  %s3 = inlined_call_operand.hbm [shape: bf16[1024,1024], index: 3, kind: input, shape index: {}]
  %s4 = inlined_call_operand.hbm [shape: f32[1,1024], index: 4, kind: input, shape index: {}]
  %s5 = inlined_call_operand.hbm [shape: bf16[1024,1024], index: 5, kind: input, shape index: {}]
  %s6 = inlined_call_operand.hbm [shape: f32[1,1024], index: 6, kind: input, shape index: {}]
  %s7 = inlined_call_operand.hbm [shape: f32[1,1024], index: 7, kind: input, shape index: {}]
  %s8 = inlined_call_operand.<no memory space> [shape: f32[1,1], index: 8, kind: input, shape index: {}]
  %s9 = inlined_call_operand.vmem [shape: f32[8,1], index: 9, kind: output, shape index: {}]
  %s10 = sld [smem:[#allocation0]]
  $region74: #{discriminator_forward.1} parent=0
    _
  %s12 = ssub.s32 1, %s10
  %s13 = scalar_select 0, %s12, %s10
  %v14 = vstv %s8
  %15 = vst [vmem:[#allocation2] sm:$0x1] %v14
  $region1: #{discriminator_forward.1} parent=0
    #allocation3 [shape = 'u8[262144]{0}', space=vmem, size = 0x40000, scoped, tag = 'input window, operand 1, single buffered']
    #allocation4 [shape = 's32[1]{0}', space=sflag, size = 0x4, scoped, tag = 'scoped memory for discriminator_forward.1']
    #allocation5 [shape = 'u8[4096]{0}', space=vmem, size = 0x1000, scoped, tag = 'input window, operand 2, single buffered']
    #allocation6 [shape = 's32[1]{0}', space=sflag, size = 0x4, scoped, tag = 'scoped memory for discriminator_forward.1']
    #allocation7 [shape = 'u8[2097152]{0}', space=vmem, size = 0x200000, scoped, tag = 'input window, operand 3, single buffered']
    #allocation8 [shape = 'u8[4096]{0}', space=vmem, size = 0x1000, scoped, tag = 'input window, operand 4, single buffered']
    #allocation9 [shape = 's32[1]{0}', space=sflag, size = 0x4, scoped, tag = 'scoped memory for discriminator_forward.1']
    #allocation10 [shape = 'u8[2097152]{0}', space=vmem, size = 0x200000, scoped, tag = 'input window, operand 5, single buffered']
    #allocation11 [shape = 'u8[4096]{0}', space=vmem, size = 0x1000, scoped, tag = 'input window, operand 6, single buffered']
    #allocation12 [shape = 's32[1]{0}', space=sflag, size = 0x4, scoped, tag = 'scoped memory for discriminator_forward.1']
    #allocation13 [shape = 'u8[4096]{0}', space=vmem, size = 0x1000, scoped, tag = 'input window, operand 7, single buffered']
    %16 = vsyncpa [#allocation4], 0
    %17 = vsyncpa [#allocation6], 0
    %18 = vsyncpa [#allocation9], 0
    %19 = vsyncpa [#allocation12], 0
    // Predicated region
    $region2: #{discriminator_forward.1} parent=1 // pred_check
      _
    $region3: #{discriminator_forward.1} parent=1 // pred_check_branch
      %21 = sbr.rel (0) target = $region5
    $region4: #{discriminator_forward.1} parent=1 // pred_region
      _
    $region5: #{discriminator_forward.1} parent=1 // pred_fallthru
      _
    // Predicated region
    $region6: #{discriminator_forward.1} parent=1 // pred_check
      _
    $region7: #{discriminator_forward.1} parent=1 // pred_check_branch
      %23 = sbr.rel (0) target = $region9
    $region8: #{discriminator_forward.1} parent=1 // pred_region
      %s25 = ssub.s32 8192, 8192
      %26 = vsyncadd [#allocation4], %s25
      %s27 = sshll.u32 [#allocation3], 4
      %s28 = int_to_ptr.vmem [resolvable:$true] %s27
      %33 = dma.hbm_to_vmem [thread:$0]  %s1, 8192, %s28, [#allocation4], 512, 512, 32
    $region9: #{discriminator_forward.1} parent=1 // pred_fallthru
      _
    // Predicated region
    $region10: #{discriminator_forward.1} parent=1 // pred_check
      _
    $region11: #{discriminator_forward.1} parent=1 // pred_check_branch
      %35 = sbr.rel (0) target = $region13
    $region12: #{discriminator_forward.1} parent=1 // pred_region
      %s37 = ssub.s32 128, 128
      %38 = vsyncadd [#allocation6], %s37
      %s40 = sshll.u32 [#allocation5], 4
      %s41 = int_to_ptr.vmem [resolvable:$true] %s40
      %43 = dma.hbm_to_vmem [thread:$0]  %s2, 128, %s41, [#allocation6]
    $region13: #{discriminator_forward.1} parent=1 // pred_fallthru
      _
    // Predicated region
    $region14: #{discriminator_forward.1} parent=1 // pred_check
      _
    $region15: #{discriminator_forward.1} parent=1 // pred_check_branch
      %45 = sbr.rel (0) target = $region17
    $region16: #{discriminator_forward.1} parent=1 // pred_region
      %s47 = ssub.s32 65536, 65536
      %48 = vsyncadd [#allocation6], %s47
      %s49 = sshll.u32 [#allocation7], 4
      %s50 = int_to_ptr.vmem [resolvable:$true] %s49
      %55 = dma.hbm_to_vmem [thread:$0]  %s3, 65536, %s50, [#allocation6], 512, 512, 32
    $region17: #{discriminator_forward.1} parent=1 // pred_fallthru
      _
    // Predicated region
    $region18: #{discriminator_forward.1} parent=1 // pred_check
      _
    $region19: #{discriminator_forward.1} parent=1 // pred_check_branch
      %57 = sbr.rel (0) target = $region21
    $region20: #{discriminator_forward.1} parent=1 // pred_region
      %s59 = ssub.s32 128, 128
      %60 = vsyncadd [#allocation9], %s59
      %s62 = sshll.u32 [#allocation8], 4
      %s63 = int_to_ptr.vmem [resolvable:$true] %s62
      %65 = dma.hbm_to_vmem [thread:$0]  %s4, 128, %s63, [#allocation9]
    $region21: #{discriminator_forward.1} parent=1 // pred_fallthru
      _
    // Predicated region
    $region22: #{discriminator_forward.1} parent=1 // pred_check
      _
    $region23: #{discriminator_forward.1} parent=1 // pred_check_branch
      %67 = sbr.rel (0) target = $region25
    $region24: #{discriminator_forward.1} parent=1 // pred_region
      %s69 = ssub.s32 65536, 65536
      %70 = vsyncadd [#allocation9], %s69
      %s71 = sshll.u32 [#allocation10], 4
      %s72 = int_to_ptr.vmem [resolvable:$true] %s71
      %77 = dma.hbm_to_vmem [thread:$0]  %s5, 65536, %s72, [#allocation9], 512, 512, 32
    $region25: #{discriminator_forward.1} parent=1 // pred_fallthru
      _
    // Predicated region
    $region26: #{discriminator_forward.1} parent=1 // pred_check
      _
    $region27: #{discriminator_forward.1} parent=1 // pred_check_branch
      %79 = sbr.rel (0) target = $region29
    $region28: #{discriminator_forward.1} parent=1 // pred_region
      %s81 = ssub.s32 128, 128
      %82 = vsyncadd [#allocation12], %s81
      %s84 = sshll.u32 [#allocation11], 4
      %s85 = int_to_ptr.vmem [resolvable:$true] %s84
      %87 = dma.hbm_to_vmem [thread:$0]  %s6, 128, %s85, [#allocation12]
    $region29: #{discriminator_forward.1} parent=1 // pred_fallthru
      _
    // Predicated region
    $region30: #{discriminator_forward.1} parent=1 // pred_check
      _
    $region31: #{discriminator_forward.1} parent=1 // pred_check_branch
      %89 = sbr.rel (0) target = $region33
    $region32: #{discriminator_forward.1} parent=1 // pred_region
      %s91 = ssub.s32 128, 128
      %92 = vsyncadd [#allocation12], %s91
      %s94 = sshll.u32 [#allocation13], 4
      %s95 = int_to_ptr.vmem [resolvable:$true] %s94
      %97 = dma.hbm_to_vmem [thread:$0]  %s7, 128, %s95, [#allocation12]
    $region33: #{discriminator_forward.1} parent=1 // pred_fallthru
      _
    // Predicated region
    $region34: #{discriminator_forward.1} parent=1 // pred_check
      _
    $region35: #{discriminator_forward.1} parent=1 // pred_check_branch
      %99 = sbr.rel (0) target = $region37
    $region36: #{discriminator_forward.1} parent=1 // pred_region
      _
    $region37: #{discriminator_forward.1} parent=1 // pred_fallthru
      _
    // Predicated region
    $region38: #{discriminator_forward.1} parent=1 // pred_check
      _
    $region39: #{discriminator_forward.1} parent=1 // pred_check_branch
      %101 = sbr.rel (0) target = $region41
    $region40: #{discriminator_forward.1} parent=1 // pred_region
      %102 = dma.done [#allocation4], 8192
    $region41: #{discriminator_forward.1} parent=1 // pred_fallthru
      _
    // Predicated region
    $region42: #{discriminator_forward.1} parent=1 // pred_check
      _
    $region43: #{discriminator_forward.1} parent=1 // pred_check_branch
      %104 = sbr.rel (0) target = $region45
    $region44: #{discriminator_forward.1} parent=1 // pred_region
      %105 = dma.done [#allocation6], 128
    $region45: #{discriminator_forward.1} parent=1 // pred_fallthru
      _
    // Predicated region
    $region46: #{discriminator_forward.1} parent=1 // pred_check
      _
    $region47: #{discriminator_forward.1} parent=1 // pred_check_branch
      %107 = sbr.rel (0) target = $region49
    $region48: #{discriminator_forward.1} parent=1 // pred_region
      %108 = dma.done [#allocation6], 65536
    $region49: #{discriminator_forward.1} parent=1 // pred_fallthru
      _
    // Predicated region
    $region50: #{discriminator_forward.1} parent=1 // pred_check
      _
    $region51: #{discriminator_forward.1} parent=1 // pred_check_branch
      %110 = sbr.rel (0) target = $region53
    $region52: #{discriminator_forward.1} parent=1 // pred_region
      %111 = dma.done [#allocation9], 128
    $region53: #{discriminator_forward.1} parent=1 // pred_fallthru
      _
    // Predicated region
    $region54: #{discriminator_forward.1} parent=1 // pred_check
      _
    $region55: #{discriminator_forward.1} parent=1 // pred_check_branch
      %113 = sbr.rel (0) target = $region57
    $region56: #{discriminator_forward.1} parent=1 // pred_region
      %114 = dma.done [#allocation9], 65536
    $region57: #{discriminator_forward.1} parent=1 // pred_fallthru
      _
    // Predicated region
    $region58: #{discriminator_forward.1} parent=1 // pred_check
      _
    $region59: #{discriminator_forward.1} parent=1 // pred_check_branch
      %116 = sbr.rel (0) target = $region61
    $region60: #{discriminator_forward.1} parent=1 // pred_region
      %117 = dma.done [#allocation12], 128
    $region61: #{discriminator_forward.1} parent=1 // pred_fallthru
      _
    // Predicated region
    $region62: #{discriminator_forward.1} parent=1 // pred_check
      _
    $region63: #{discriminator_forward.1} parent=1 // pred_check_branch
      %119 = sbr.rel (0) target = $region65
    $region64: #{discriminator_forward.1} parent=1 // pred_region
      %120 = dma.done [#allocation12], 128
    $region65: #{discriminator_forward.1} parent=1 // pred_fallthru
      _
    %v122 = vld [vmem:[%s0] sm:$0xf]
    %v123 = vld [vmem:[#allocation3] sm:$0xff]
    %v124 = vld [vmem:[#allocation3 + $0x8] sm:$0xff]
    %v125 = vld [vmem:[#allocation3 + $0x10] sm:$0xff]
    %v126 = vld [vmem:[#allocation3 + $0x18] sm:$0xff]
    %v127 = vld [vmem:[#allocation3 + $0x20] sm:$0xff]
    %v128 = vld [vmem:[#allocation3 + $0x28] sm:$0xff]
    %v129 = vld [vmem:[#allocation3 + $0x30] sm:$0xff]
    %v130 = vld [vmem:[#allocation3 + $0x38] sm:$0xff]
    %v131 = vld [vmem:[#allocation3 + $0x40] sm:$0xff]
    %v132 = vld [vmem:[#allocation3 + $0x48] sm:$0xff]
    %v133 = vld [vmem:[#allocation3 + $0x50] sm:$0xff]
    %v134 = vld [vmem:[#allocation3 + $0x58] sm:$0xff]
    %v135 = vld [vmem:[#allocation3 + $0x60] sm:$0xff]
    %v136 = vld [vmem:[#allocation3 + $0x68] sm:$0xff]
    %v137 = vld [vmem:[#allocation3 + $0x70] sm:$0xff]
    %v138 = vld [vmem:[#allocation3 + $0x78] sm:$0xff]
    %v139 = vld [vmem:[#allocation3 + $0x80] sm:$0xff]
    %v140 = vld [vmem:[#allocation3 + $0x88] sm:$0xff]
    %v141 = vld [vmem:[#allocation3 + $0x90] sm:$0xff]
    %v142 = vld [vmem:[#allocation3 + $0x98] sm:$0xff]
    %v143 = vld [vmem:[#allocation3 + $0xa0] sm:$0xff]
    %v144 = vld [vmem:[#allocation3 + $0xa8] sm:$0xff]
    %v145 = vld [vmem:[#allocation3 + $0xb0] sm:$0xff]
    %v146 = vld [vmem:[#allocation3 + $0xb8] sm:$0xff]
    %v147 = vld [vmem:[#allocation3 + $0xc0] sm:$0xff]
    %v148 = vld [vmem:[#allocation3 + $0xc8] sm:$0xff]
    %v149 = vld [vmem:[#allocation3 + $0xd0] sm:$0xff]
    %v150 = vld [vmem:[#allocation3 + $0xd8] sm:$0xff]
    %v151 = vld [vmem:[#allocation3 + $0xe0] sm:$0xff]
    %v152 = vld [vmem:[#allocation3 + $0xe8] sm:$0xff]
    %v153 = vld [vmem:[#allocation3 + $0xf0] sm:$0xff]
    %v154 = vld [vmem:[#allocation3 + $0xf8] sm:$0xff]
    %v155 = vld [vmem:[#allocation3 + $0x100] sm:$0xff]
    %v156 = vld [vmem:[#allocation3 + $0x108] sm:$0xff]
    %v157 = vld [vmem:[#allocation3 + $0x110] sm:$0xff]
    %v158 = vld [vmem:[#allocation3 + $0x118] sm:$0xff]
    %v159 = vld [vmem:[#allocation3 + $0x120] sm:$0xff]
    %v160 = vld [vmem:[#allocation3 + $0x128] sm:$0xff]
    %v161 = vld [vmem:[#allocation3 + $0x130] sm:$0xff]
    %v162 = vld [vmem:[#allocation3 + $0x138] sm:$0xff]
    %v163 = vld [vmem:[#allocation3 + $0x140] sm:$0xff]
    %v164 = vld [vmem:[#allocation3 + $0x148] sm:$0xff]
    %v165 = vld [vmem:[#allocation3 + $0x150] sm:$0xff]
    %v166 = vld [vmem:[#allocation3 + $0x158] sm:$0xff]
    %v167 = vld [vmem:[#allocation3 + $0x160] sm:$0xff]
    %v168 = vld [vmem:[#allocation3 + $0x168] sm:$0xff]
    %v169 = vld [vmem:[#allocation3 + $0x170] sm:$0xff]
    %v170 = vld [vmem:[#allocation3 + $0x178] sm:$0xff]
    %v171 = vld [vmem:[#allocation3 + $0x180] sm:$0xff]
    %v172 = vld [vmem:[#allocation3 + $0x188] sm:$0xff]
    %v173 = vld [vmem:[#allocation3 + $0x190] sm:$0xff]
    %v174 = vld [vmem:[#allocation3 + $0x198] sm:$0xff]
    %v175 = vld [vmem:[#allocation3 + $0x1a0] sm:$0xff]
    %v176 = vld [vmem:[#allocation3 + $0x1a8] sm:$0xff]
    %v177 = vld [vmem:[#allocation3 + $0x1b0] sm:$0xff]
    %v178 = vld [vmem:[#allocation3 + $0x1b8] sm:$0xff]
    %v179 = vld [vmem:[#allocation3 + $0x1c0] sm:$0xff]
    %v180 = vld [vmem:[#allocation3 + $0x1c8] sm:$0xff]
    %v181 = vld [vmem:[#allocation3 + $0x1d0] sm:$0xff]
    %v182 = vld [vmem:[#allocation3 + $0x1d8] sm:$0xff]
    %v183 = vld [vmem:[#allocation3 + $0x1e0] sm:$0xff]
    %v184 = vld [vmem:[#allocation3 + $0x1e8] sm:$0xff]
    %v185 = vld [vmem:[#allocation3 + $0x1f0] sm:$0xff]
    %v186 = vld [vmem:[#allocation3 + $0x1f8] sm:$0xff]
    %v187 = vld [vmem:[#allocation5] sm:$0xff]
    %v189 = vlaneseq
    %v190 = vshrl.u32 %v189, 7
    %v191 = vsub.s32 0, %v190
    %v192 = vrot.slane %v187, %v191
    %v193 = vlaneseq
    %v194 = vshrl.u32 %v193, 7
    %v195 = vsub.s32 1, %v194
    %v196 = vrot.slane %v187, %v195
    %v197 = vlaneseq
    %v198 = vshrl.u32 %v197, 7
    %v199 = vsub.s32 2, %v198
    %v200 = vrot.slane %v187, %v199
    %v201 = vlaneseq
    %v202 = vshrl.u32 %v201, 7
    %v203 = vsub.s32 3, %v202
    %v204 = vrot.slane %v187, %v203
    %v205 = vlaneseq
    %v206 = vshrl.u32 %v205, 7
    %v207 = vsub.s32 4, %v206
    %v208 = vrot.slane %v187, %v207
    %v209 = vlaneseq
    %v210 = vshrl.u32 %v209, 7
    %v211 = vsub.s32 5, %v210
    %v212 = vrot.slane %v187, %v211
    %v213 = vlaneseq
    %v214 = vshrl.u32 %v213, 7
    %v215 = vsub.s32 6, %v214
    %v216 = vrot.slane %v187, %v215
    %v217 = vlaneseq
    %v218 = vshrl.u32 %v217, 7
    %v219 = vsub.s32 7, %v218
    %v220 = vrot.slane %v187, %v219
    %v293 = vunpack.c.l.b16 %v123
    %v294 = vunpack.c.h.b16 %v123
    %v295 = vunpack.c.l.b16 %v124
    %v296 = vunpack.c.h.b16 %v124
    %v297 = vunpack.c.l.b16 %v125
    %v298 = vunpack.c.h.b16 %v125
    %v299 = vunpack.c.l.b16 %v126
    %v300 = vunpack.c.h.b16 %v126
    %v301 = vunpack.c.l.b16 %v127
    %v302 = vunpack.c.h.b16 %v127
    %v303 = vunpack.c.l.b16 %v128
    %v304 = vunpack.c.h.b16 %v128
    %v305 = vunpack.c.l.b16 %v129
    %v306 = vunpack.c.h.b16 %v129
    %v307 = vunpack.c.l.b16 %v130
    %v308 = vunpack.c.h.b16 %v130
    %v309 = vunpack.c.l.b16 %v131
    %v310 = vunpack.c.h.b16 %v131
    %v311 = vunpack.c.l.b16 %v132
    %v312 = vunpack.c.h.b16 %v132
    %v313 = vunpack.c.l.b16 %v133
    %v314 = vunpack.c.h.b16 %v133
    %v315 = vunpack.c.l.b16 %v134
    %v316 = vunpack.c.h.b16 %v134
    %v317 = vunpack.c.l.b16 %v135
    %v318 = vunpack.c.h.b16 %v135
    %v319 = vunpack.c.l.b16 %v136
    %v320 = vunpack.c.h.b16 %v136
    %v321 = vunpack.c.l.b16 %v137
    %v322 = vunpack.c.h.b16 %v137
    %v323 = vunpack.c.l.b16 %v138
    %v324 = vunpack.c.h.b16 %v138
    %v325 = vunpack.c.l.b16 %v139
    %v326 = vunpack.c.h.b16 %v139
    %v327 = vunpack.c.l.b16 %v140
    %v328 = vunpack.c.h.b16 %v140
    %v329 = vunpack.c.l.b16 %v141
    %v330 = vunpack.c.h.b16 %v141
    %v331 = vunpack.c.l.b16 %v142
    %v332 = vunpack.c.h.b16 %v142
    %v333 = vunpack.c.l.b16 %v143
    %v334 = vunpack.c.h.b16 %v143
    %v335 = vunpack.c.l.b16 %v144
    %v336 = vunpack.c.h.b16 %v144
    %v337 = vunpack.c.l.b16 %v145
    %v338 = vunpack.c.h.b16 %v145
    %v339 = vunpack.c.l.b16 %v146
    %v340 = vunpack.c.h.b16 %v146
    %v341 = vunpack.c.l.b16 %v147
    %v342 = vunpack.c.h.b16 %v147
    %v343 = vunpack.c.l.b16 %v148
    %v344 = vunpack.c.h.b16 %v148
    %v345 = vunpack.c.l.b16 %v149
    %v346 = vunpack.c.h.b16 %v149
    %v347 = vunpack.c.l.b16 %v150
    %v348 = vunpack.c.h.b16 %v150
    %v349 = vunpack.c.l.b16 %v151
    %v350 = vunpack.c.h.b16 %v151
    %v351 = vunpack.c.l.b16 %v152
    %v352 = vunpack.c.h.b16 %v152
    %v353 = vunpack.c.l.b16 %v153
    %v354 = vunpack.c.h.b16 %v153
    %v355 = vunpack.c.l.b16 %v154
    %v356 = vunpack.c.h.b16 %v154
    %v357 = vunpack.c.l.b16 %v155
    %v358 = vunpack.c.h.b16 %v155
    %v359 = vunpack.c.l.b16 %v156
    %v360 = vunpack.c.h.b16 %v156
    %v361 = vunpack.c.l.b16 %v157
    %v362 = vunpack.c.h.b16 %v157
    %v363 = vunpack.c.l.b16 %v158
    %v364 = vunpack.c.h.b16 %v158
    %v365 = vunpack.c.l.b16 %v159
    %v366 = vunpack.c.h.b16 %v159
    %v367 = vunpack.c.l.b16 %v160
    %v368 = vunpack.c.h.b16 %v160
    %v369 = vunpack.c.l.b16 %v161
    %v370 = vunpack.c.h.b16 %v161
    %v371 = vunpack.c.l.b16 %v162
    %v372 = vunpack.c.h.b16 %v162
    %v373 = vunpack.c.l.b16 %v163
    %v374 = vunpack.c.h.b16 %v163
    %v375 = vunpack.c.l.b16 %v164
    %v376 = vunpack.c.h.b16 %v164
    %v377 = vunpack.c.l.b16 %v165
    %v378 = vunpack.c.h.b16 %v165
    %v379 = vunpack.c.l.b16 %v166
    %v380 = vunpack.c.h.b16 %v166
    %v381 = vunpack.c.l.b16 %v167
    %v382 = vunpack.c.h.b16 %v167
    %v383 = vunpack.c.l.b16 %v168
    %v384 = vunpack.c.h.b16 %v168
    %v385 = vunpack.c.l.b16 %v169
    %v386 = vunpack.c.h.b16 %v169
    %v387 = vunpack.c.l.b16 %v170
    %v388 = vunpack.c.h.b16 %v170
    %v389 = vunpack.c.l.b16 %v171
    %v390 = vunpack.c.h.b16 %v171
    %v391 = vunpack.c.l.b16 %v172
    %v392 = vunpack.c.h.b16 %v172
    %v393 = vunpack.c.l.b16 %v173
    %v394 = vunpack.c.h.b16 %v173
    %v395 = vunpack.c.l.b16 %v174
    %v396 = vunpack.c.h.b16 %v174
    %v397 = vunpack.c.l.b16 %v175
    %v398 = vunpack.c.h.b16 %v175
    %v399 = vunpack.c.l.b16 %v176
    %v400 = vunpack.c.h.b16 %v176
    %v401 = vunpack.c.l.b16 %v177
    %v402 = vunpack.c.h.b16 %v177
    %v403 = vunpack.c.l.b16 %v178
    %v404 = vunpack.c.h.b16 %v178
    %v405 = vunpack.c.l.b16 %v179
    %v406 = vunpack.c.h.b16 %v179
    %v407 = vunpack.c.l.b16 %v180
    %v408 = vunpack.c.h.b16 %v180
    %v409 = vunpack.c.l.b16 %v181
    %v410 = vunpack.c.h.b16 %v181
    %v411 = vunpack.c.l.b16 %v182
    %v412 = vunpack.c.h.b16 %v182
    %v413 = vunpack.c.l.b16 %v183
    %v414 = vunpack.c.h.b16 %v183
    %v415 = vunpack.c.l.b16 %v184
    %v416 = vunpack.c.h.b16 %v184
    %v417 = vunpack.c.l.b16 %v185
    %v418 = vunpack.c.h.b16 %v185
    %v419 = vunpack.c.l.b16 %v186
    %v420 = vunpack.c.h.b16 %v186
    %v421 = vpack.c.b16 %v301, %v293
    %v422 = vpack.c.b16 %v302, %v294
    %v423 = vpack.c.b16 %v303, %v295
    %v424 = vpack.c.b16 %v304, %v296
    %v425 = vpack.c.b16 %v305, %v297
    %v426 = vpack.c.b16 %v306, %v298
    %v427 = vpack.c.b16 %v307, %v299
    %v428 = vpack.c.b16 %v308, %v300
    %v429 = vpack.c.b16 %v317, %v309
    %v430 = vpack.c.b16 %v318, %v310
    %v431 = vpack.c.b16 %v319, %v311
    %v432 = vpack.c.b16 %v320, %v312
    %v433 = vpack.c.b16 %v321, %v313
    %v434 = vpack.c.b16 %v322, %v314
    %v435 = vpack.c.b16 %v323, %v315
    %v436 = vpack.c.b16 %v324, %v316
    %v437 = vpack.c.b16 %v333, %v325
    %v438 = vpack.c.b16 %v334, %v326
    %v439 = vpack.c.b16 %v335, %v327
    %v440 = vpack.c.b16 %v336, %v328
    %v441 = vpack.c.b16 %v337, %v329
    %v442 = vpack.c.b16 %v338, %v330
    %v443 = vpack.c.b16 %v339, %v331
    %v444 = vpack.c.b16 %v340, %v332
    %v445 = vpack.c.b16 %v349, %v341
    %v446 = vpack.c.b16 %v350, %v342
    %v447 = vpack.c.b16 %v351, %v343
    %v448 = vpack.c.b16 %v352, %v344
    %v449 = vpack.c.b16 %v353, %v345
    %v450 = vpack.c.b16 %v354, %v346
    %v451 = vpack.c.b16 %v355, %v347
    %v452 = vpack.c.b16 %v356, %v348
    %v453 = vpack.c.b16 %v365, %v357
    %v454 = vpack.c.b16 %v366, %v358
    %v455 = vpack.c.b16 %v367, %v359
    %v456 = vpack.c.b16 %v368, %v360
    %v457 = vpack.c.b16 %v369, %v361
    %v458 = vpack.c.b16 %v370, %v362
    %v459 = vpack.c.b16 %v371, %v363
    %v460 = vpack.c.b16 %v372, %v364
    %v461 = vpack.c.b16 %v381, %v373
    %v462 = vpack.c.b16 %v382, %v374
    %v463 = vpack.c.b16 %v383, %v375
    %v464 = vpack.c.b16 %v384, %v376
    %v465 = vpack.c.b16 %v385, %v377
    %v466 = vpack.c.b16 %v386, %v378
    %v467 = vpack.c.b16 %v387, %v379
    %v468 = vpack.c.b16 %v388, %v380
    %v469 = vpack.c.b16 %v397, %v389
    %v470 = vpack.c.b16 %v398, %v390
    %v471 = vpack.c.b16 %v399, %v391
    %v472 = vpack.c.b16 %v400, %v392
    %v473 = vpack.c.b16 %v401, %v393
    %v474 = vpack.c.b16 %v402, %v394
    %v475 = vpack.c.b16 %v403, %v395
    %v476 = vpack.c.b16 %v404, %v396
    %v477 = vpack.c.b16 %v413, %v405
    %v478 = vpack.c.b16 %v414, %v406
    %v479 = vpack.c.b16 %v415, %v407
    %v480 = vpack.c.b16 %v416, %v408
    %v481 = vpack.c.b16 %v417, %v409
    %v482 = vpack.c.b16 %v418, %v410
    %v483 = vpack.c.b16 %v419, %v411
    %v484 = vpack.c.b16 %v420, %v412
    %549 = vmatprep.subr.bf16.mxu0 %v422
    %550 = vmatpush1.bf16.msra.mxu0 %v421
    %551 = vmatprep.subr.bf16.mxu0 %v430
    %552 = vmatpush1.bf16.msra.mxu0 %v429
    %553 = vmatprep.subr.bf16.mxu0 %v438
    %554 = vmatpush1.bf16.msra.mxu0 %v437
    %555 = vmatprep.subr.bf16.mxu0 %v446
    %556 = vmatpush1.bf16.msra.mxu0 %v445
    %557 = vmatprep.subr.bf16.mxu0 %v454
    %558 = vmatpush1.bf16.msra.mxu0 %v453
    %559 = vmatprep.subr.bf16.mxu0 %v462
    %560 = vmatpush1.bf16.msra.mxu0 %v461
    %561 = vmatprep.subr.bf16.mxu0 %v470
    %562 = vmatpush1.bf16.msra.mxu0 %v469
    %563 = vmatprep.subr.bf16.mxu0 %v478
    %564 = vmatpush1.bf16.msra.mxu0 %v477
    %565 = vmatprep.subr.bf16.mxu0 0
    %566 = vmatpush1.bf16.msra.mxu0 0
    %567 = vmatprep.subr.bf16.mxu0 0
    %568 = vmatpush1.bf16.msra.mxu0 0
    %569 = vmatprep.subr.bf16.mxu0 0
    %570 = vmatpush1.bf16.msra.mxu0 0
    %571 = vmatprep.subr.bf16.mxu0 0
    %572 = vmatpush1.bf16.msra.mxu0 0
    %573 = vmatprep.subr.bf16.mxu0 0
    %574 = vmatpush1.bf16.msra.mxu0 0
    %575 = vmatprep.subr.bf16.mxu0 0
    %576 = vmatpush1.bf16.msra.mxu0 0
    %577 = vmatprep.subr.bf16.mxu0 0
    %578 = vmatpush1.bf16.msra.mxu0 0
    %579 = vmatprep.subr.bf16.mxu0 0
    %580 = vmatpush1.bf16.msra.mxu0 0
    %581 = vmatprep.mubr.bf16.mxu0 0
    %582 = vmatmul.mubr.bf16.gmra.mrb[0].mxu0 %v122
    %v583 = vpop.f32.mrb[0].mxu0
    %v584 = vadd.f32 %v192, %v583
    %v585 = vpop.f32.mrb[0].mxu0
    %v586 = vadd.f32 %v196, %v585
    %v587 = vpop.f32.mrb[0].mxu0
    %v588 = vpop.f32.mrb[0].mxu0
    %589 = vdwg.mxu0
    %590 = vmatprep.subr.bf16.mxu0 %v424
    %591 = vmatpush1.bf16.msra.mxu0 %v423
    %592 = vmatprep.subr.bf16.mxu0 %v432
    %593 = vmatpush1.bf16.msra.mxu0 %v431
    %594 = vmatprep.subr.bf16.mxu0 %v440
    %595 = vmatpush1.bf16.msra.mxu0 %v439
    %596 = vmatprep.subr.bf16.mxu0 %v448
    %597 = vmatpush1.bf16.msra.mxu0 %v447
    %598 = vmatprep.subr.bf16.mxu0 %v456
    %599 = vmatpush1.bf16.msra.mxu0 %v455
    %600 = vmatprep.subr.bf16.mxu0 %v464
    %601 = vmatpush1.bf16.msra.mxu0 %v463
    %602 = vmatprep.subr.bf16.mxu0 %v472
    %603 = vmatpush1.bf16.msra.mxu0 %v471
    %604 = vmatprep.subr.bf16.mxu0 %v480
    %605 = vmatpush1.bf16.msra.mxu0 %v479
    %606 = vmatprep.subr.bf16.mxu0 0
    %607 = vmatpush1.bf16.msra.mxu0 0
    %608 = vmatprep.subr.bf16.mxu0 0
    %609 = vmatpush1.bf16.msra.mxu0 0
    %610 = vmatprep.subr.bf16.mxu0 0
    %611 = vmatpush1.bf16.msra.mxu0 0
    %612 = vmatprep.subr.bf16.mxu0 0
    %613 = vmatpush1.bf16.msra.mxu0 0
    %614 = vmatprep.subr.bf16.mxu0 0
    %615 = vmatpush1.bf16.msra.mxu0 0
    %616 = vmatprep.subr.bf16.mxu0 0
    %617 = vmatpush1.bf16.msra.mxu0 0
    %618 = vmatprep.subr.bf16.mxu0 0
    %619 = vmatpush1.bf16.msra.mxu0 0
    %620 = vmatprep.subr.bf16.mxu0 0
    %621 = vmatpush1.bf16.msra.mxu0 0
    %622 = vmatprep.mubr.bf16.mxu0 0
    %623 = vmatmul.mubr.bf16.gmra.mrb[0].mxu0 %v122
    %v624 = vpop.f32.mrb[0].mxu0
    %v625 = vadd.f32 %v200, %v624
    %v626 = vpop.f32.mrb[0].mxu0
    %v627 = vadd.f32 %v204, %v626
    %v628 = vpop.f32.mrb[0].mxu0
    %v629 = vpop.f32.mrb[0].mxu0
    %630 = vdwg.mxu0
    %631 = vmatprep.subr.bf16.mxu0 %v426
    %632 = vmatpush1.bf16.msra.mxu0 %v425
    %633 = vmatprep.subr.bf16.mxu0 %v434
    %634 = vmatpush1.bf16.msra.mxu0 %v433
    %635 = vmatprep.subr.bf16.mxu0 %v442
    %636 = vmatpush1.bf16.msra.mxu0 %v441
    %637 = vmatprep.subr.bf16.mxu0 %v450
    %638 = vmatpush1.bf16.msra.mxu0 %v449
    %639 = vmatprep.subr.bf16.mxu0 %v458
    %640 = vmatpush1.bf16.msra.mxu0 %v457
    %641 = vmatprep.subr.bf16.mxu0 %v466
    %642 = vmatpush1.bf16.msra.mxu0 %v465
    %643 = vmatprep.subr.bf16.mxu0 %v474
    %644 = vmatpush1.bf16.msra.mxu0 %v473
    %645 = vmatprep.subr.bf16.mxu0 %v482
    %646 = vmatpush1.bf16.msra.mxu0 %v481
    %647 = vmatprep.subr.bf16.mxu0 0
    %648 = vmatpush1.bf16.msra.mxu0 0
    %649 = vmatprep.subr.bf16.mxu0 0
    %650 = vmatpush1.bf16.msra.mxu0 0
    %651 = vmatprep.subr.bf16.mxu0 0
    %652 = vmatpush1.bf16.msra.mxu0 0
    %653 = vmatprep.subr.bf16.mxu0 0
    %654 = vmatpush1.bf16.msra.mxu0 0
    %655 = vmatprep.subr.bf16.mxu0 0
    %656 = vmatpush1.bf16.msra.mxu0 0
    %657 = vmatprep.subr.bf16.mxu0 0
    %658 = vmatpush1.bf16.msra.mxu0 0
    %659 = vmatprep.subr.bf16.mxu0 0
    %660 = vmatpush1.bf16.msra.mxu0 0
    %661 = vmatprep.subr.bf16.mxu0 0
    %662 = vmatpush1.bf16.msra.mxu0 0
    %663 = vmatprep.mubr.bf16.mxu0 0
    %664 = vmatmul.mubr.bf16.gmra.mrb[0].mxu0 %v122
    %v665 = vpop.f32.mrb[0].mxu0
    %v666 = vadd.f32 %v208, %v665
    %v667 = vpop.f32.mrb[0].mxu0
    %v668 = vadd.f32 %v212, %v667
    %v669 = vpop.f32.mrb[0].mxu0
    %v670 = vpop.f32.mrb[0].mxu0
    %671 = vdwg.mxu0
    %672 = vmatprep.subr.bf16.mxu0 %v428
    %673 = vmatpush1.bf16.msra.mxu0 %v427
    %674 = vmatprep.subr.bf16.mxu0 %v436
    %675 = vmatpush1.bf16.msra.mxu0 %v435
    %676 = vmatprep.subr.bf16.mxu0 %v444
    %677 = vmatpush1.bf16.msra.mxu0 %v443
    %678 = vmatprep.subr.bf16.mxu0 %v452
    %679 = vmatpush1.bf16.msra.mxu0 %v451
    %680 = vmatprep.subr.bf16.mxu0 %v460
    %681 = vmatpush1.bf16.msra.mxu0 %v459
    %682 = vmatprep.subr.bf16.mxu0 %v468
    %683 = vmatpush1.bf16.msra.mxu0 %v467
    %684 = vmatprep.subr.bf16.mxu0 %v476
    %685 = vmatpush1.bf16.msra.mxu0 %v475
    %686 = vmatprep.subr.bf16.mxu0 %v484
    %687 = vmatpush1.bf16.msra.mxu0 %v483
    %688 = vmatprep.subr.bf16.mxu0 0
    %689 = vmatpush1.bf16.msra.mxu0 0
    %690 = vmatprep.subr.bf16.mxu0 0
    %691 = vmatpush1.bf16.msra.mxu0 0
    %692 = vmatprep.subr.bf16.mxu0 0
    %693 = vmatpush1.bf16.msra.mxu0 0
    %694 = vmatprep.subr.bf16.mxu0 0
    %695 = vmatpush1.bf16.msra.mxu0 0
    %696 = vmatprep.subr.bf16.mxu0 0
    %697 = vmatpush1.bf16.msra.mxu0 0
    %698 = vmatprep.subr.bf16.mxu0 0
    %699 = vmatpush1.bf16.msra.mxu0 0
    %700 = vmatprep.subr.bf16.mxu0 0
    %701 = vmatpush1.bf16.msra.mxu0 0
    %702 = vmatprep.subr.bf16.mxu0 0
    %703 = vmatpush1.bf16.msra.mxu0 0
    %704 = vmatprep.mubr.bf16.mxu0 0
    %705 = vmatmul.mubr.bf16.gmra.mrb[0].mxu0 %v122
    %v706 = vpop.f32.mrb[0].mxu0
    %v707 = vadd.f32 %v216, %v706
    %v708 = vpop.f32.mrb[0].mxu0
    %v709 = vadd.f32 %v220, %v708
    %v710 = vpop.f32.mrb[0].mxu0
    %v711 = vpop.f32.mrb[0].mxu0
    %712 = vdwg.mxu0
    %vm713 = vcmp.gt.f32.partialorder %v584, 0.0
    %vm714 = vcmp.gt.f32.partialorder %v586, 0.0
    %vm715 = vcmp.gt.f32.partialorder %v625, 0.0
    %vm716 = vcmp.gt.f32.partialorder %v627, 0.0
    %vm717 = vcmp.gt.f32.partialorder %v666, 0.0
    %vm718 = vcmp.gt.f32.partialorder %v668, 0.0
    %vm719 = vcmp.gt.f32.partialorder %v707, 0.0
    %vm720 = vcmp.gt.f32.partialorder %v709, 0.0
    %v721 = vmul.f32 %v584, 0.01
    %v722 = vmul.f32 %v586, 0.01
    %v723 = vmul.f32 %v625, 0.01
    %v724 = vmul.f32 %v627, 0.01
    %v725 = vmul.f32 %v666, 0.01
    %v726 = vmul.f32 %v668, 0.01
    %v727 = vmul.f32 %v707, 0.01
    %v728 = vmul.f32 %v709, 0.01
    %v729 = vsel %vm713, %v584, %v721
    %v730 = vsel %vm714, %v586, %v722
    %v731 = vsel %vm715, %v625, %v723
    %v732 = vsel %vm716, %v627, %v724
    %v733 = vsel %vm717, %v666, %v725
    %v734 = vsel %vm718, %v668, %v726
    %v735 = vsel %vm719, %v707, %v727
    %v736 = vsel %vm720, %v709, %v728
    %v737 = vpack.c.bf16 %v729, %v729
    %v738 = vpack.c.bf16 %v730, %v730
    %v739 = vpack.c.bf16 %v731, %v731
    %v740 = vpack.c.bf16 %v732, %v732
    %v741 = vpack.c.bf16 %v733, %v733
    %v742 = vpack.c.bf16 %v734, %v734
    %v743 = vpack.c.bf16 %v735, %v735
    %v744 = vpack.c.bf16 %v736, %v736
    %v745 = vld [vmem:[#allocation7] sm:$0xff]
    %v746 = vld [vmem:[#allocation7 + $0x8] sm:$0xff]
    %v747 = vld [vmem:[#allocation7 + $0x10] sm:$0xff]
    %v748 = vld [vmem:[#allocation7 + $0x18] sm:$0xff]
    %v749 = vld [vmem:[#allocation7 + $0x20] sm:$0xff]
    %v750 = vld [vmem:[#allocation7 + $0x28] sm:$0xff]
    %v751 = vld [vmem:[#allocation7 + $0x30] sm:$0xff]
    %v752 = vld [vmem:[#allocation7 + $0x38] sm:$0xff]
    %v753 = vld [vmem:[#allocation7 + $0x40] sm:$0xff]
    %v754 = vld [vmem:[#allocation7 + $0x48] sm:$0xff]
    %v755 = vld [vmem:[#allocation7 + $0x50] sm:$0xff]
    %v756 = vld [vmem:[#allocation7 + $0x58] sm:$0xff]
    %v757 = vld [vmem:[#allocation7 + $0x60] sm:$0xff]
    %v758 = vld [vmem:[#allocation7 + $0x68] sm:$0xff]
    %v759 = vld [vmem:[#allocation7 + $0x70] sm:$0xff]
    %v760 = vld [vmem:[#allocation7 + $0x78] sm:$0xff]
    %v761 = vld [vmem:[#allocation7 + $0x80] sm:$0xff]
    %v762 = vld [vmem:[#allocation7 + $0x88] sm:$0xff]
    %v763 = vld [vmem:[#allocation7 + $0x90] sm:$0xff]
    %v764 = vld [vmem:[#allocation7 + $0x98] sm:$0xff]
    %v765 = vld [vmem:[#allocation7 + $0xa0] sm:$0xff]
    %v766 = vld [vmem:[#allocation7 + $0xa8] sm:$0xff]
    %v767 = vld [vmem:[#allocation7 + $0xb0] sm:$0xff]
    %v768 = vld [vmem:[#allocation7 + $0xb8] sm:$0xff]
    %v769 = vld [vmem:[#allocation7 + $0xc0] sm:$0xff]
    %v770 = vld [vmem:[#allocation7 + $0xc8] sm:$0xff]
    %v771 = vld [vmem:[#allocation7 + $0xd0] sm:$0xff]
    %v772 = vld [vmem:[#allocation7 + $0xd8] sm:$0xff]
    %v773 = vld [vmem:[#allocation7 + $0xe0] sm:$0xff]
    %v774 = vld [vmem:[#allocation7 + $0xe8] sm:$0xff]
    %v775 = vld [vmem:[#allocation7 + $0xf0] sm:$0xff]
    %v776 = vld [vmem:[#allocation7 + $0xf8] sm:$0xff]
    %v777 = vld [vmem:[#allocation7 + $0x100] sm:$0xff]
    %v778 = vld [vmem:[#allocation7 + $0x108] sm:$0xff]
    %v779 = vld [vmem:[#allocation7 + $0x110] sm:$0xff]
    %v780 = vld [vmem:[#allocation7 + $0x118] sm:$0xff]
    %v781 = vld [vmem:[#allocation7 + $0x120] sm:$0xff]
    %v782 = vld [vmem:[#allocation7 + $0x128] sm:$0xff]
    %v783 = vld [vmem:[#allocation7 + $0x130] sm:$0xff]
    %v784 = vld [vmem:[#allocation7 + $0x138] sm:$0xff]
    %v785 = vld [vmem:[#allocation7 + $0x140] sm:$0xff]
    %v786 = vld [vmem:[#allocation7 + $0x148] sm:$0xff]
    %v787 = vld [vmem:[#allocation7 + $0x150] sm:$0xff]
    %v788 = vld [vmem:[#allocation7 + $0x158] sm:$0xff]
    %v789 = vld [vmem:[#allocation7 + $0x160] sm:$0xff]
    %v790 = vld [vmem:[#allocation7 + $0x168] sm:$0xff]
    %v791 = vld [vmem:[#allocation7 + $0x170] sm:$0xff]
    %v792 = vld [vmem:[#allocation7 + $0x178] sm:$0xff]
    %v793 = vld [vmem:[#allocation7 + $0x180] sm:$0xff]
    %v794 = vld [vmem:[#allocation7 + $0x188] sm:$0xff]
    %v795 = vld [vmem:[#allocation7 + $0x190] sm:$0xff]
    %v796 = vld [vmem:[#allocation7 + $0x198] sm:$0xff]
    %v797 = vld [vmem:[#allocation7 + $0x1a0] sm:$0xff]
    %v798 = vld [vmem:[#allocation7 + $0x1a8] sm:$0xff]
    %v799 = vld [vmem:[#allocation7 + $0x1b0] sm:$0xff]
    %v800 = vld [vmem:[#allocation7 + $0x1b8] sm:$0xff]
    %v801 = vld [vmem:[#allocation7 + $0x1c0] sm:$0xff]
    %v802 = vld [vmem:[#allocation7 + $0x1c8] sm:$0xff]
    %v803 = vld [vmem:[#allocation7 + $0x1d0] sm:$0xff]
    %v804 = vld [vmem:[#allocation7 + $0x1d8] sm:$0xff]
    %v805 = vld [vmem:[#allocation7 + $0x1e0] sm:$0xff]
    %v806 = vld [vmem:[#allocation7 + $0x1e8] sm:$0xff]
    %v807 = vld [vmem:[#allocation7 + $0x1f0] sm:$0xff]
    %v808 = vld [vmem:[#allocation7 + $0x1f8] sm:$0xff]
    %v809 = vld [vmem:[#allocation7 + $0x200] sm:$0xff]
    %v810 = vld [vmem:[#allocation7 + $0x208] sm:$0xff]
    %v811 = vld [vmem:[#allocation7 + $0x210] sm:$0xff]
    %v812 = vld [vmem:[#allocation7 + $0x218] sm:$0xff]
    %v813 = vld [vmem:[#allocation7 + $0x220] sm:$0xff]
    %v814 = vld [vmem:[#allocation7 + $0x228] sm:$0xff]
    %v815 = vld [vmem:[#allocation7 + $0x230] sm:$0xff]
    %v816 = vld [vmem:[#allocation7 + $0x238] sm:$0xff]
    %v817 = vld [vmem:[#allocation7 + $0x240] sm:$0xff]
    %v818 = vld [vmem:[#allocation7 + $0x248] sm:$0xff]
    %v819 = vld [vmem:[#allocation7 + $0x250] sm:$0xff]
    %v820 = vld [vmem:[#allocation7 + $0x258] sm:$0xff]
    %v821 = vld [vmem:[#allocation7 + $0x260] sm:$0xff]
    %v822 = vld [vmem:[#allocation7 + $0x268] sm:$0xff]
    %v823 = vld [vmem:[#allocation7 + $0x270] sm:$0xff]
    %v824 = vld [vmem:[#allocation7 + $0x278] sm:$0xff]
    %v825 = vld [vmem:[#allocation7 + $0x280] sm:$0xff]
    %v826 = vld [vmem:[#allocation7 + $0x288] sm:$0xff]
    %v827 = vld [vmem:[#allocation7 + $0x290] sm:$0xff]
    %v828 = vld [vmem:[#allocation7 + $0x298] sm:$0xff]
    %v829 = vld [vmem:[#allocation7 + $0x2a0] sm:$0xff]
    %v830 = vld [vmem:[#allocation7 + $0x2a8] sm:$0xff]
    %v831 = vld [vmem:[#allocation7 + $0x2b0] sm:$0xff]
    %v832 = vld [vmem:[#allocation7 + $0x2b8] sm:$0xff]
    %v833 = vld [vmem:[#allocation7 + $0x2c0] sm:$0xff]
    %v834 = vld [vmem:[#allocation7 + $0x2c8] sm:$0xff]
    %v835 = vld [vmem:[#allocation7 + $0x2d0] sm:$0xff]
    %v836 = vld [vmem:[#allocation7 + $0x2d8] sm:$0xff]
    %v837 = vld [vmem:[#allocation7 + $0x2e0] sm:$0xff]
    %v838 = vld [vmem:[#allocation7 + $0x2e8] sm:$0xff]
    %v839 = vld [vmem:[#allocation7 + $0x2f0] sm:$0xff]
    %v840 = vld [vmem:[#allocation7 + $0x2f8] sm:$0xff]
    %v841 = vld [vmem:[#allocation7 + $0x300] sm:$0xff]
    %v842 = vld [vmem:[#allocation7 + $0x308] sm:$0xff]
    %v843 = vld [vmem:[#allocation7 + $0x310] sm:$0xff]
    %v844 = vld [vmem:[#allocation7 + $0x318] sm:$0xff]
    %v845 = vld [vmem:[#allocation7 + $0x320] sm:$0xff]
    %v846 = vld [vmem:[#allocation7 + $0x328] sm:$0xff]
    %v847 = vld [vmem:[#allocation7 + $0x330] sm:$0xff]
    %v848 = vld [vmem:[#allocation7 + $0x338] sm:$0xff]
    %v849 = vld [vmem:[#allocation7 + $0x340] sm:$0xff]
    %v850 = vld [vmem:[#allocation7 + $0x348] sm:$0xff]
    %v851 = vld [vmem:[#allocation7 + $0x350] sm:$0xff]
    %v852 = vld [vmem:[#allocation7 + $0x358] sm:$0xff]
    %v853 = vld [vmem:[#allocation7 + $0x360] sm:$0xff]
    %v854 = vld [vmem:[#allocation7 + $0x368] sm:$0xff]
    %v855 = vld [vmem:[#allocation7 + $0x370] sm:$0xff]
    %v856 = vld [vmem:[#allocation7 + $0x378] sm:$0xff]
    %v857 = vld [vmem:[#allocation7 + $0x380] sm:$0xff]
    %v858 = vld [vmem:[#allocation7 + $0x388] sm:$0xff]
    %v859 = vld [vmem:[#allocation7 + $0x390] sm:$0xff]
    %v860 = vld [vmem:[#allocation7 + $0x398] sm:$0xff]
    %v861 = vld [vmem:[#allocation7 + $0x3a0] sm:$0xff]
    %v862 = vld [vmem:[#allocation7 + $0x3a8] sm:$0xff]
    %v863 = vld [vmem:[#allocation7 + $0x3b0] sm:$0xff]
    %v864 = vld [vmem:[#allocation7 + $0x3b8] sm:$0xff]
    %v865 = vld [vmem:[#allocation7 + $0x3c0] sm:$0xff]
    %v866 = vld [vmem:[#allocation7 + $0x3c8] sm:$0xff]
    %v867 = vld [vmem:[#allocation7 + $0x3d0] sm:$0xff]
    %v868 = vld [vmem:[#allocation7 + $0x3d8] sm:$0xff]
    %v869 = vld [vmem:[#allocation7 + $0x3e0] sm:$0xff]
    %v870 = vld [vmem:[#allocation7 + $0x3e8] sm:$0xff]
    %v871 = vld [vmem:[#allocation7 + $0x3f0] sm:$0xff]
    %v872 = vld [vmem:[#allocation7 + $0x3f8] sm:$0xff]
    %v873 = vld [vmem:[#allocation7 + $0x400] sm:$0xff]
    %v874 = vld [vmem:[#allocation7 + $0x408] sm:$0xff]
    %v875 = vld [vmem:[#allocation7 + $0x410] sm:$0xff]
    %v876 = vld [vmem:[#allocation7 + $0x418] sm:$0xff]
    %v877 = vld [vmem:[#allocation7 + $0x420] sm:$0xff]
    %v878 = vld [vmem:[#allocation7 + $0x428] sm:$0xff]
    %v879 = vld [vmem:[#allocation7 + $0x430] sm:$0xff]
    %v880 = vld [vmem:[#allocation7 + $0x438] sm:$0xff]
    %v881 = vld [vmem:[#allocation7 + $0x440] sm:$0xff]
    %v882 = vld [vmem:[#allocation7 + $0x448] sm:$0xff]
    %v883 = vld [vmem:[#allocation7 + $0x450] sm:$0xff]
    %v884 = vld [vmem:[#allocation7 + $0x458] sm:$0xff]
    %v885 = vld [vmem:[#allocation7 + $0x460] sm:$0xff]
    %v886 = vld [vmem:[#allocation7 + $0x468] sm:$0xff]
    %v887 = vld [vmem:[#allocation7 + $0x470] sm:$0xff]
    %v888 = vld [vmem:[#allocation7 + $0x478] sm:$0xff]
    %v889 = vld [vmem:[#allocation7 + $0x480] sm:$0xff]
    %v890 = vld [vmem:[#allocation7 + $0x488] sm:$0xff]
    %v891 = vld [vmem:[#allocation7 + $0x490] sm:$0xff]
    %v892 = vld [vmem:[#allocation7 + $0x498] sm:$0xff]
    %v893 = vld [vmem:[#allocation7 + $0x4a0] sm:$0xff]
    %v894 = vld [vmem:[#allocation7 + $0x4a8] sm:$0xff]
    %v895 = vld [vmem:[#allocation7 + $0x4b0] sm:$0xff]
    %v896 = vld [vmem:[#allocation7 + $0x4b8] sm:$0xff]
    %v897 = vld [vmem:[#allocation7 + $0x4c0] sm:$0xff]
    %v898 = vld [vmem:[#allocation7 + $0x4c8] sm:$0xff]
    %v899 = vld [vmem:[#allocation7 + $0x4d0] sm:$0xff]
    %v900 = vld [vmem:[#allocation7 + $0x4d8] sm:$0xff]
    %v901 = vld [vmem:[#allocation7 + $0x4e0] sm:$0xff]
    %v902 = vld [vmem:[#allocation7 + $0x4e8] sm:$0xff]
    %v903 = vld [vmem:[#allocation7 + $0x4f0] sm:$0xff]
    %v904 = vld [vmem:[#allocation7 + $0x4f8] sm:$0xff]
    %v905 = vld [vmem:[#allocation7 + $0x500] sm:$0xff]
    %v906 = vld [vmem:[#allocation7 + $0x508] sm:$0xff]
    %v907 = vld [vmem:[#allocation7 + $0x510] sm:$0xff]
    %v908 = vld [vmem:[#allocation7 + $0x518] sm:$0xff]
    %v909 = vld [vmem:[#allocation7 + $0x520] sm:$0xff]
    %v910 = vld [vmem:[#allocation7 + $0x528] sm:$0xff]
    %v911 = vld [vmem:[#allocation7 + $0x530] sm:$0xff]
    %v912 = vld [vmem:[#allocation7 + $0x538] sm:$0xff]
    %v913 = vld [vmem:[#allocation7 + $0x540] sm:$0xff]
    %v914 = vld [vmem:[#allocation7 + $0x548] sm:$0xff]
    %v915 = vld [vmem:[#allocation7 + $0x550] sm:$0xff]
    %v916 = vld [vmem:[#allocation7 + $0x558] sm:$0xff]
    %v917 = vld [vmem:[#allocation7 + $0x560] sm:$0xff]
    %v918 = vld [vmem:[#allocation7 + $0x568] sm:$0xff]
    %v919 = vld [vmem:[#allocation7 + $0x570] sm:$0xff]
    %v920 = vld [vmem:[#allocation7 + $0x578] sm:$0xff]
    %v921 = vld [vmem:[#allocation7 + $0x580] sm:$0xff]
    %v922 = vld [vmem:[#allocation7 + $0x588] sm:$0xff]
    %v923 = vld [vmem:[#allocation7 + $0x590] sm:$0xff]
    %v924 = vld [vmem:[#allocation7 + $0x598] sm:$0xff]
    %v925 = vld [vmem:[#allocation7 + $0x5a0] sm:$0xff]
    %v926 = vld [vmem:[#allocation7 + $0x5a8] sm:$0xff]
    %v927 = vld [vmem:[#allocation7 + $0x5b0] sm:$0xff]
    %v928 = vld [vmem:[#allocation7 + $0x5b8] sm:$0xff]
    %v929 = vld [vmem:[#allocation7 + $0x5c0] sm:$0xff]
    %v930 = vld [vmem:[#allocation7 + $0x5c8] sm:$0xff]
    %v931 = vld [vmem:[#allocation7 + $0x5d0] sm:$0xff]
    %v932 = vld [vmem:[#allocation7 + $0x5d8] sm:$0xff]
    %v933 = vld [vmem:[#allocation7 + $0x5e0] sm:$0xff]
    %v934 = vld [vmem:[#allocation7 + $0x5e8] sm:$0xff]
    %v935 = vld [vmem:[#allocation7 + $0x5f0] sm:$0xff]
    %v936 = vld [vmem:[#allocation7 + $0x5f8] sm:$0xff]
    %v937 = vld [vmem:[#allocation7 + $0x600] sm:$0xff]
    %v938 = vld [vmem:[#allocation7 + $0x608] sm:$0xff]
    %v939 = vld [vmem:[#allocation7 + $0x610] sm:$0xff]
    %v940 = vld [vmem:[#allocation7 + $0x618] sm:$0xff]
    %v941 = vld [vmem:[#allocation7 + $0x620] sm:$0xff]
    %v942 = vld [vmem:[#allocation7 + $0x628] sm:$0xff]
    %v943 = vld [vmem:[#allocation7 + $0x630] sm:$0xff]
    %v944 = vld [vmem:[#allocation7 + $0x638] sm:$0xff]
    %v945 = vld [vmem:[#allocation7 + $0x640] sm:$0xff]
    %v946 = vld [vmem:[#allocation7 + $0x648] sm:$0xff]
    %v947 = vld [vmem:[#allocation7 + $0x650] sm:$0xff]
    %v948 = vld [vmem:[#allocation7 + $0x658] sm:$0xff]
    %v949 = vld [vmem:[#allocation7 + $0x660] sm:$0xff]
    %v950 = vld [vmem:[#allocation7 + $0x668] sm:$0xff]
    %v951 = vld [vmem:[#allocation7 + $0x670] sm:$0xff]
    %v952 = vld [vmem:[#allocation7 + $0x678] sm:$0xff]
    %v953 = vld [vmem:[#allocation7 + $0x680] sm:$0xff]
    %v954 = vld [vmem:[#allocation7 + $0x688] sm:$0xff]
    %v955 = vld [vmem:[#allocation7 + $0x690] sm:$0xff]
    %v956 = vld [vmem:[#allocation7 + $0x698] sm:$0xff]
    %v957 = vld [vmem:[#allocation7 + $0x6a0] sm:$0xff]
    %v958 = vld [vmem:[#allocation7 + $0x6a8] sm:$0xff]
    %v959 = vld [vmem:[#allocation7 + $0x6b0] sm:$0xff]
    %v960 = vld [vmem:[#allocation7 + $0x6b8] sm:$0xff]
    %v961 = vld [vmem:[#allocation7 + $0x6c0] sm:$0xff]
    %v962 = vld [vmem:[#allocation7 + $0x6c8] sm:$0xff]
    %v963 = vld [vmem:[#allocation7 + $0x6d0] sm:$0xff]
    %v964 = vld [vmem:[#allocation7 + $0x6d8] sm:$0xff]
    %v965 = vld [vmem:[#allocation7 + $0x6e0] sm:$0xff]
    %v966 = vld [vmem:[#allocation7 + $0x6e8] sm:$0xff]
    %v967 = vld [vmem:[#allocation7 + $0x6f0] sm:$0xff]
    %v968 = vld [vmem:[#allocation7 + $0x6f8] sm:$0xff]
    %v969 = vld [vmem:[#allocation7 + $0x700] sm:$0xff]
    %v970 = vld [vmem:[#allocation7 + $0x708] sm:$0xff]
    %v971 = vld [vmem:[#allocation7 + $0x710] sm:$0xff]
    %v972 = vld [vmem:[#allocation7 + $0x718] sm:$0xff]
    %v973 = vld [vmem:[#allocation7 + $0x720] sm:$0xff]
    %v974 = vld [vmem:[#allocation7 + $0x728] sm:$0xff]
    %v975 = vld [vmem:[#allocation7 + $0x730] sm:$0xff]
    %v976 = vld [vmem:[#allocation7 + $0x738] sm:$0xff]
    %v977 = vld [vmem:[#allocation7 + $0x740] sm:$0xff]
    %v978 = vld [vmem:[#allocation7 + $0x748] sm:$0xff]
    %v979 = vld [vmem:[#allocation7 + $0x750] sm:$0xff]
    %v980 = vld [vmem:[#allocation7 + $0x758] sm:$0xff]
    %v981 = vld [vmem:[#allocation7 + $0x760] sm:$0xff]
    %v982 = vld [vmem:[#allocation7 + $0x768] sm:$0xff]
    %v983 = vld [vmem:[#allocation7 + $0x770] sm:$0xff]
    %v984 = vld [vmem:[#allocation7 + $0x778] sm:$0xff]
    %v985 = vld [vmem:[#allocation7 + $0x780] sm:$0xff]
    %v986 = vld [vmem:[#allocation7 + $0x788] sm:$0xff]
    %v987 = vld [vmem:[#allocation7 + $0x790] sm:$0xff]
    %v988 = vld [vmem:[#allocation7 + $0x798] sm:$0xff]
    %v989 = vld [vmem:[#allocation7 + $0x7a0] sm:$0xff]
    %v990 = vld [vmem:[#allocation7 + $0x7a8] sm:$0xff]
    %v991 = vld [vmem:[#allocation7 + $0x7b0] sm:$0xff]
    %v992 = vld [vmem:[#allocation7 + $0x7b8] sm:$0xff]
    %v993 = vld [vmem:[#allocation7 + $0x7c0] sm:$0xff]
    %v994 = vld [vmem:[#allocation7 + $0x7c8] sm:$0xff]
    %v995 = vld [vmem:[#allocation7 + $0x7d0] sm:$0xff]
    %v996 = vld [vmem:[#allocation7 + $0x7d8] sm:$0xff]
    %v997 = vld [vmem:[#allocation7 + $0x7e0] sm:$0xff]
    %v998 = vld [vmem:[#allocation7 + $0x7e8] sm:$0xff]
    %v999 = vld [vmem:[#allocation7 + $0x7f0] sm:$0xff]
    %v1000 = vld [vmem:[#allocation7 + $0x7f8] sm:$0xff]
    %v1001 = vld [vmem:[#allocation7 + $0x800] sm:$0xff]
    %v1002 = vld [vmem:[#allocation7 + $0x808] sm:$0xff]
    %v1003 = vld [vmem:[#allocation7 + $0x810] sm:$0xff]
    %v1004 = vld [vmem:[#allocation7 + $0x818] sm:$0xff]
    %v1005 = vld [vmem:[#allocation7 + $0x820] sm:$0xff]
    %v1006 = vld [vmem:[#allocation7 + $0x828] sm:$0xff]
    %v1007 = vld [vmem:[#allocation7 + $0x830] sm:$0xff]
    %v1008 = vld [vmem:[#allocation7 + $0x838] sm:$0xff]
    %v1009 = vld [vmem:[#allocation7 + $0x840] sm:$0xff]
    %v1010 = vld [vmem:[#allocation7 + $0x848] sm:$0xff]
    %v1011 = vld [vmem:[#allocation7 + $0x850] sm:$0xff]
    %v1012 = vld [vmem:[#allocation7 + $0x858] sm:$0xff]
    %v1013 = vld [vmem:[#allocation7 + $0x860] sm:$0xff]
    %v1014 = vld [vmem:[#allocation7 + $0x868] sm:$0xff]
    %v1015 = vld [vmem:[#allocation7 + $0x870] sm:$0xff]
    %v1016 = vld [vmem:[#allocation7 + $0x878] sm:$0xff]
    %v1017 = vld [vmem:[#allocation7 + $0x880] sm:$0xff]
    %v1018 = vld [vmem:[#allocation7 + $0x888] sm:$0xff]
    %v1019 = vld [vmem:[#allocation7 + $0x890] sm:$0xff]
    %v1020 = vld [vmem:[#allocation7 + $0x898] sm:$0xff]
    %v1021 = vld [vmem:[#allocation7 + $0x8a0] sm:$0xff]
    %v1022 = vld [vmem:[#allocation7 + $0x8a8] sm:$0xff]
    %v1023 = vld [vmem:[#allocation7 + $0x8b0] sm:$0xff]
    %v1024 = vld [vmem:[#allocation7 + $0x8b8] sm:$0xff]
    %v1025 = vld [vmem:[#allocation7 + $0x8c0] sm:$0xff]
    %v1026 = vld [vmem:[#allocation7 + $0x8c8] sm:$0xff]
    %v1027 = vld [vmem:[#allocation7 + $0x8d0] sm:$0xff]
    %v1028 = vld [vmem:[#allocation7 + $0x8d8] sm:$0xff]
    %v1029 = vld [vmem:[#allocation7 + $0x8e0] sm:$0xff]
    %v1030 = vld [vmem:[#allocation7 + $0x8e8] sm:$0xff]
    %v1031 = vld [vmem:[#allocation7 + $0x8f0] sm:$0xff]
    %v1032 = vld [vmem:[#allocation7 + $0x8f8] sm:$0xff]
    %v1033 = vld [vmem:[#allocation7 + $0x900] sm:$0xff]
    %v1034 = vld [vmem:[#allocation7 + $0x908] sm:$0xff]
    %v1035 = vld [vmem:[#allocation7 + $0x910] sm:$0xff]
    %v1036 = vld [vmem:[#allocation7 + $0x918] sm:$0xff]
    %v1037 = vld [vmem:[#allocation7 + $0x920] sm:$0xff]
    %v1038 = vld [vmem:[#allocation7 + $0x928] sm:$0xff]
    %v1039 = vld [vmem:[#allocation7 + $0x930] sm:$0xff]
    %v1040 = vld [vmem:[#allocation7 + $0x938] sm:$0xff]
    %v1041 = vld [vmem:[#allocation7 + $0x940] sm:$0xff]
    %v1042 = vld [vmem:[#allocation7 + $0x948] sm:$0xff]
    %v1043 = vld [vmem:[#allocation7 + $0x950] sm:$0xff]
    %v1044 = vld [vmem:[#allocation7 + $0x958] sm:$0xff]
    %v1045 = vld [vmem:[#allocation7 + $0x960] sm:$0xff]
    %v1046 = vld [vmem:[#allocation7 + $0x968] sm:$0xff]
    %v1047 = vld [vmem:[#allocation7 + $0x970] sm:$0xff]
    %v1048 = vld [vmem:[#allocation7 + $0x978] sm:$0xff]
    %v1049 = vld [vmem:[#allocation7 + $0x980] sm:$0xff]
    %v1050 = vld [vmem:[#allocation7 + $0x988] sm:$0xff]
    %v1051 = vld [vmem:[#allocation7 + $0x990] sm:$0xff]
    %v1052 = vld [vmem:[#allocation7 + $0x998] sm:$0xff]
    %v1053 = vld [vmem:[#allocation7 + $0x9a0] sm:$0xff]
    %v1054 = vld [vmem:[#allocation7 + $0x9a8] sm:$0xff]
    %v1055 = vld [vmem:[#allocation7 + $0x9b0] sm:$0xff]
    %v1056 = vld [vmem:[#allocation7 + $0x9b8] sm:$0xff]
    %v1057 = vld [vmem:[#allocation7 + $0x9c0] sm:$0xff]
    %v1058 = vld [vmem:[#allocation7 + $0x9c8] sm:$0xff]
    %v1059 = vld [vmem:[#allocation7 + $0x9d0] sm:$0xff]
    %v1060 = vld [vmem:[#allocation7 + $0x9d8] sm:$0xff]
    %v1061 = vld [vmem:[#allocation7 + $0x9e0] sm:$0xff]
    %v1062 = vld [vmem:[#allocation7 + $0x9e8] sm:$0xff]
    %v1063 = vld [vmem:[#allocation7 + $0x9f0] sm:$0xff]
    %v1064 = vld [vmem:[#allocation7 + $0x9f8] sm:$0xff]
    %v1065 = vld [vmem:[#allocation7 + $0xa00] sm:$0xff]
    %v1066 = vld [vmem:[#allocation7 + $0xa08] sm:$0xff]
    %v1067 = vld [vmem:[#allocation7 + $0xa10] sm:$0xff]
    %v1068 = vld [vmem:[#allocation7 + $0xa18] sm:$0xff]
    %v1069 = vld [vmem:[#allocation7 + $0xa20] sm:$0xff]
    %v1070 = vld [vmem:[#allocation7 + $0xa28] sm:$0xff]
    %v1071 = vld [vmem:[#allocation7 + $0xa30] sm:$0xff]
    %v1072 = vld [vmem:[#allocation7 + $0xa38] sm:$0xff]
    %v1073 = vld [vmem:[#allocation7 + $0xa40] sm:$0xff]
    %v1074 = vld [vmem:[#allocation7 + $0xa48] sm:$0xff]
    %v1075 = vld [vmem:[#allocation7 + $0xa50] sm:$0xff]
    %v1076 = vld [vmem:[#allocation7 + $0xa58] sm:$0xff]
    %v1077 = vld [vmem:[#allocation7 + $0xa60] sm:$0xff]
    %v1078 = vld [vmem:[#allocation7 + $0xa68] sm:$0xff]
    %v1079 = vld [vmem:[#allocation7 + $0xa70] sm:$0xff]
    %v1080 = vld [vmem:[#allocation7 + $0xa78] sm:$0xff]
    %v1081 = vld [vmem:[#allocation7 + $0xa80] sm:$0xff]
    %v1082 = vld [vmem:[#allocation7 + $0xa88] sm:$0xff]
    %v1083 = vld [vmem:[#allocation7 + $0xa90] sm:$0xff]
    %v1084 = vld [vmem:[#allocation7 + $0xa98] sm:$0xff]
    %v1085 = vld [vmem:[#allocation7 + $0xaa0] sm:$0xff]
    %v1086 = vld [vmem:[#allocation7 + $0xaa8] sm:$0xff]
    %v1087 = vld [vmem:[#allocation7 + $0xab0] sm:$0xff]
    %v1088 = vld [vmem:[#allocation7 + $0xab8] sm:$0xff]
    %v1089 = vld [vmem:[#allocation7 + $0xac0] sm:$0xff]
    %v1090 = vld [vmem:[#allocation7 + $0xac8] sm:$0xff]
    %v1091 = vld [vmem:[#allocation7 + $0xad0] sm:$0xff]
    %v1092 = vld [vmem:[#allocation7 + $0xad8] sm:$0xff]
    %v1093 = vld [vmem:[#allocation7 + $0xae0] sm:$0xff]
    %v1094 = vld [vmem:[#allocation7 + $0xae8] sm:$0xff]
    %v1095 = vld [vmem:[#allocation7 + $0xaf0] sm:$0xff]
    %v1096 = vld [vmem:[#allocation7 + $0xaf8] sm:$0xff]
    %v1097 = vld [vmem:[#allocation7 + $0xb00] sm:$0xff]
    %v1098 = vld [vmem:[#allocation7 + $0xb08] sm:$0xff]
    %v1099 = vld [vmem:[#allocation7 + $0xb10] sm:$0xff]
    %v1100 = vld [vmem:[#allocation7 + $0xb18] sm:$0xff]
    %v1101 = vld [vmem:[#allocation7 + $0xb20] sm:$0xff]
    %v1102 = vld [vmem:[#allocation7 + $0xb28] sm:$0xff]
    %v1103 = vld [vmem:[#allocation7 + $0xb30] sm:$0xff]
    %v1104 = vld [vmem:[#allocation7 + $0xb38] sm:$0xff]
    %v1105 = vld [vmem:[#allocation7 + $0xb40] sm:$0xff]
    %v1106 = vld [vmem:[#allocation7 + $0xb48] sm:$0xff]
    %v1107 = vld [vmem:[#allocation7 + $0xb50] sm:$0xff]
    %v1108 = vld [vmem:[#allocation7 + $0xb58] sm:$0xff]
    %v1109 = vld [vmem:[#allocation7 + $0xb60] sm:$0xff]
    %v1110 = vld [vmem:[#allocation7 + $0xb68] sm:$0xff]
    %v1111 = vld [vmem:[#allocation7 + $0xb70] sm:$0xff]
    %v1112 = vld [vmem:[#allocation7 + $0xb78] sm:$0xff]
    %v1113 = vld [vmem:[#allocation7 + $0xb80] sm:$0xff]
    %v1114 = vld [vmem:[#allocation7 + $0xb88] sm:$0xff]
    %v1115 = vld [vmem:[#allocation7 + $0xb90] sm:$0xff]
    %v1116 = vld [vmem:[#allocation7 + $0xb98] sm:$0xff]
    %v1117 = vld [vmem:[#allocation7 + $0xba0] sm:$0xff]
    %v1118 = vld [vmem:[#allocation7 + $0xba8] sm:$0xff]
    %v1119 = vld [vmem:[#allocation7 + $0xbb0] sm:$0xff]
    %v1120 = vld [vmem:[#allocation7 + $0xbb8] sm:$0xff]
    %v1121 = vld [vmem:[#allocation7 + $0xbc0] sm:$0xff]
    %v1122 = vld [vmem:[#allocation7 + $0xbc8] sm:$0xff]
    %v1123 = vld [vmem:[#allocation7 + $0xbd0] sm:$0xff]
    %v1124 = vld [vmem:[#allocation7 + $0xbd8] sm:$0xff]
    %v1125 = vld [vmem:[#allocation7 + $0xbe0] sm:$0xff]
    %v1126 = vld [vmem:[#allocation7 + $0xbe8] sm:$0xff]
    %v1127 = vld [vmem:[#allocation7 + $0xbf0] sm:$0xff]
    %v1128 = vld [vmem:[#allocation7 + $0xbf8] sm:$0xff]
    %v1129 = vld [vmem:[#allocation7 + $0xc00] sm:$0xff]
    %v1130 = vld [vmem:[#allocation7 + $0xc08] sm:$0xff]
    %v1131 = vld [vmem:[#allocation7 + $0xc10] sm:$0xff]
    %v1132 = vld [vmem:[#allocation7 + $0xc18] sm:$0xff]
    %v1133 = vld [vmem:[#allocation7 + $0xc20] sm:$0xff]
    %v1134 = vld [vmem:[#allocation7 + $0xc28] sm:$0xff]
    %v1135 = vld [vmem:[#allocation7 + $0xc30] sm:$0xff]
    %v1136 = vld [vmem:[#allocation7 + $0xc38] sm:$0xff]
    %v1137 = vld [vmem:[#allocation7 + $0xc40] sm:$0xff]
    %v1138 = vld [vmem:[#allocation7 + $0xc48] sm:$0xff]
    %v1139 = vld [vmem:[#allocation7 + $0xc50] sm:$0xff]
    %v1140 = vld [vmem:[#allocation7 + $0xc58] sm:$0xff]
    %v1141 = vld [vmem:[#allocation7 + $0xc60] sm:$0xff]
    %v1142 = vld [vmem:[#allocation7 + $0xc68] sm:$0xff]
    %v1143 = vld [vmem:[#allocation7 + $0xc70] sm:$0xff]
    %v1144 = vld [vmem:[#allocation7 + $0xc78] sm:$0xff]
    %v1145 = vld [vmem:[#allocation7 + $0xc80] sm:$0xff]
    %v1146 = vld [vmem:[#allocation7 + $0xc88] sm:$0xff]
    %v1147 = vld [vmem:[#allocation7 + $0xc90] sm:$0xff]
    %v1148 = vld [vmem:[#allocation7 + $0xc98] sm:$0xff]
    %v1149 = vld [vmem:[#allocation7 + $0xca0] sm:$0xff]
    %v1150 = vld [vmem:[#allocation7 + $0xca8] sm:$0xff]
    %v1151 = vld [vmem:[#allocation7 + $0xcb0] sm:$0xff]
    %v1152 = vld [vmem:[#allocation7 + $0xcb8] sm:$0xff]
    %v1153 = vld [vmem:[#allocation7 + $0xcc0] sm:$0xff]
    %v1154 = vld [vmem:[#allocation7 + $0xcc8] sm:$0xff]
    %v1155 = vld [vmem:[#allocation7 + $0xcd0] sm:$0xff]
    %v1156 = vld [vmem:[#allocation7 + $0xcd8] sm:$0xff]
    %v1157 = vld [vmem:[#allocation7 + $0xce0] sm:$0xff]
    %v1158 = vld [vmem:[#allocation7 + $0xce8] sm:$0xff]
    %v1159 = vld [vmem:[#allocation7 + $0xcf0] sm:$0xff]
    %v1160 = vld [vmem:[#allocation7 + $0xcf8] sm:$0xff]
    %v1161 = vld [vmem:[#allocation7 + $0xd00] sm:$0xff]
    %v1162 = vld [vmem:[#allocation7 + $0xd08] sm:$0xff]
    %v1163 = vld [vmem:[#allocation7 + $0xd10] sm:$0xff]
    %v1164 = vld [vmem:[#allocation7 + $0xd18] sm:$0xff]
    %v1165 = vld [vmem:[#allocation7 + $0xd20] sm:$0xff]
    %v1166 = vld [vmem:[#allocation7 + $0xd28] sm:$0xff]
    %v1167 = vld [vmem:[#allocation7 + $0xd30] sm:$0xff]
    %v1168 = vld [vmem:[#allocation7 + $0xd38] sm:$0xff]
    %v1169 = vld [vmem:[#allocation7 + $0xd40] sm:$0xff]
    %v1170 = vld [vmem:[#allocation7 + $0xd48] sm:$0xff]
    %v1171 = vld [vmem:[#allocation7 + $0xd50] sm:$0xff]
    %v1172 = vld [vmem:[#allocation7 + $0xd58] sm:$0xff]
    %v1173 = vld [vmem:[#allocation7 + $0xd60] sm:$0xff]
    %v1174 = vld [vmem:[#allocation7 + $0xd68] sm:$0xff]
    %v1175 = vld [vmem:[#allocation7 + $0xd70] sm:$0xff]
    %v1176 = vld [vmem:[#allocation7 + $0xd78] sm:$0xff]
    %v1177 = vld [vmem:[#allocation7 + $0xd80] sm:$0xff]
    %v1178 = vld [vmem:[#allocation7 + $0xd88] sm:$0xff]
    %v1179 = vld [vmem:[#allocation7 + $0xd90] sm:$0xff]
    %v1180 = vld [vmem:[#allocation7 + $0xd98] sm:$0xff]
    %v1181 = vld [vmem:[#allocation7 + $0xda0] sm:$0xff]
    %v1182 = vld [vmem:[#allocation7 + $0xda8] sm:$0xff]
    %v1183 = vld [vmem:[#allocation7 + $0xdb0] sm:$0xff]
    %v1184 = vld [vmem:[#allocation7 + $0xdb8] sm:$0xff]
    %v1185 = vld [vmem:[#allocation7 + $0xdc0] sm:$0xff]
    %v1186 = vld [vmem:[#allocation7 + $0xdc8] sm:$0xff]
    %v1187 = vld [vmem:[#allocation7 + $0xdd0] sm:$0xff]
    %v1188 = vld [vmem:[#allocation7 + $0xdd8] sm:$0xff]
    %v1189 = vld [vmem:[#allocation7 + $0xde0] sm:$0xff]
    %v1190 = vld [vmem:[#allocation7 + $0xde8] sm:$0xff]
    %v1191 = vld [vmem:[#allocation7 + $0xdf0] sm:$0xff]
    %v1192 = vld [vmem:[#allocation7 + $0xdf8] sm:$0xff]
    %v1193 = vld [vmem:[#allocation7 + $0xe00] sm:$0xff]
    %v1194 = vld [vmem:[#allocation7 + $0xe08] sm:$0xff]
    %v1195 = vld [vmem:[#allocation7 + $0xe10] sm:$0xff]
    %v1196 = vld [vmem:[#allocation7 + $0xe18] sm:$0xff]
    %v1197 = vld [vmem:[#allocation7 + $0xe20] sm:$0xff]
    %v1198 = vld [vmem:[#allocation7 + $0xe28] sm:$0xff]
    %v1199 = vld [vmem:[#allocation7 + $0xe30] sm:$0xff]
    %v1200 = vld [vmem:[#allocation7 + $0xe38] sm:$0xff]
    %v1201 = vld [vmem:[#allocation7 + $0xe40] sm:$0xff]
    %v1202 = vld [vmem:[#allocation7 + $0xe48] sm:$0xff]
    %v1203 = vld [vmem:[#allocation7 + $0xe50] sm:$0xff]
    %v1204 = vld [vmem:[#allocation7 + $0xe58] sm:$0xff]
    %v1205 = vld [vmem:[#allocation7 + $0xe60] sm:$0xff]
    %v1206 = vld [vmem:[#allocation7 + $0xe68] sm:$0xff]
    %v1207 = vld [vmem:[#allocation7 + $0xe70] sm:$0xff]
    %v1208 = vld [vmem:[#allocation7 + $0xe78] sm:$0xff]
    %v1209 = vld [vmem:[#allocation7 + $0xe80] sm:$0xff]
    %v1210 = vld [vmem:[#allocation7 + $0xe88] sm:$0xff]
    %v1211 = vld [vmem:[#allocation7 + $0xe90] sm:$0xff]
    %v1212 = vld [vmem:[#allocation7 + $0xe98] sm:$0xff]
    %v1213 = vld [vmem:[#allocation7 + $0xea0] sm:$0xff]
    %v1214 = vld [vmem:[#allocation7 + $0xea8] sm:$0xff]
    %v1215 = vld [vmem:[#allocation7 + $0xeb0] sm:$0xff]
    %v1216 = vld [vmem:[#allocation7 + $0xeb8] sm:$0xff]
    %v1217 = vld [vmem:[#allocation7 + $0xec0] sm:$0xff]
    %v1218 = vld [vmem:[#allocation7 + $0xec8] sm:$0xff]
    %v1219 = vld [vmem:[#allocation7 + $0xed0] sm:$0xff]
    %v1220 = vld [vmem:[#allocation7 + $0xed8] sm:$0xff]
    %v1221 = vld [vmem:[#allocation7 + $0xee0] sm:$0xff]
    %v1222 = vld [vmem:[#allocation7 + $0xee8] sm:$0xff]
    %v1223 = vld [vmem:[#allocation7 + $0xef0] sm:$0xff]
    %v1224 = vld [vmem:[#allocation7 + $0xef8] sm:$0xff]
    %v1225 = vld [vmem:[#allocation7 + $0xf00] sm:$0xff]
    %v1226 = vld [vmem:[#allocation7 + $0xf08] sm:$0xff]
    %v1227 = vld [vmem:[#allocation7 + $0xf10] sm:$0xff]
    %v1228 = vld [vmem:[#allocation7 + $0xf18] sm:$0xff]
    %v1229 = vld [vmem:[#allocation7 + $0xf20] sm:$0xff]
    %v1230 = vld [vmem:[#allocation7 + $0xf28] sm:$0xff]
    %v1231 = vld [vmem:[#allocation7 + $0xf30] sm:$0xff]
    %v1232 = vld [vmem:[#allocation7 + $0xf38] sm:$0xff]
    %v1233 = vld [vmem:[#allocation7 + $0xf40] sm:$0xff]
    %v1234 = vld [vmem:[#allocation7 + $0xf48] sm:$0xff]
    %v1235 = vld [vmem:[#allocation7 + $0xf50] sm:$0xff]
    %v1236 = vld [vmem:[#allocation7 + $0xf58] sm:$0xff]
    %v1237 = vld [vmem:[#allocation7 + $0xf60] sm:$0xff]
    %v1238 = vld [vmem:[#allocation7 + $0xf68] sm:$0xff]
    %v1239 = vld [vmem:[#allocation7 + $0xf70] sm:$0xff]
    %v1240 = vld [vmem:[#allocation7 + $0xf78] sm:$0xff]
    %v1241 = vld [vmem:[#allocation7 + $0xf80] sm:$0xff]
    %v1242 = vld [vmem:[#allocation7 + $0xf88] sm:$0xff]
    %v1243 = vld [vmem:[#allocation7 + $0xf90] sm:$0xff]
    %v1244 = vld [vmem:[#allocation7 + $0xf98] sm:$0xff]
    %v1245 = vld [vmem:[#allocation7 + $0xfa0] sm:$0xff]
    %v1246 = vld [vmem:[#allocation7 + $0xfa8] sm:$0xff]
    %v1247 = vld [vmem:[#allocation7 + $0xfb0] sm:$0xff]
    %v1248 = vld [vmem:[#allocation7 + $0xfb8] sm:$0xff]
    %v1249 = vld [vmem:[#allocation7 + $0xfc0] sm:$0xff]
    %v1250 = vld [vmem:[#allocation7 + $0xfc8] sm:$0xff]
    %v1251 = vld [vmem:[#allocation7 + $0xfd0] sm:$0xff]
    %v1252 = vld [vmem:[#allocation7 + $0xfd8] sm:$0xff]
    %v1253 = vld [vmem:[#allocation7 + $0xfe0] sm:$0xff]
    %v1254 = vld [vmem:[#allocation7 + $0xfe8] sm:$0xff]
    %v1255 = vld [vmem:[#allocation7 + $0xff0] sm:$0xff]
    %v1256 = vld [vmem:[#allocation7 + $0xff8] sm:$0xff]
    %v1257 = vld [vmem:[#allocation8] sm:$0xff]
    %v1259 = vlaneseq
    %v1260 = vshrl.u32 %v1259, 7
    %v1261 = vsub.s32 0, %v1260
    %v1262 = vrot.slane %v1257, %v1261
    %v1263 = vlaneseq
    %v1264 = vshrl.u32 %v1263, 7
    %v1265 = vsub.s32 1, %v1264
    %v1266 = vrot.slane %v1257, %v1265
    %v1267 = vlaneseq
    %v1268 = vshrl.u32 %v1267, 7
    %v1269 = vsub.s32 2, %v1268
    %v1270 = vrot.slane %v1257, %v1269
    %v1271 = vlaneseq
    %v1272 = vshrl.u32 %v1271, 7
    %v1273 = vsub.s32 3, %v1272
    %v1274 = vrot.slane %v1257, %v1273
    %v1275 = vlaneseq
    %v1276 = vshrl.u32 %v1275, 7
    %v1277 = vsub.s32 4, %v1276
    %v1278 = vrot.slane %v1257, %v1277
    %v1279 = vlaneseq
    %v1280 = vshrl.u32 %v1279, 7
    %v1281 = vsub.s32 5, %v1280
    %v1282 = vrot.slane %v1257, %v1281
    %v1283 = vlaneseq
    %v1284 = vshrl.u32 %v1283, 7
    %v1285 = vsub.s32 6, %v1284
    %v1286 = vrot.slane %v1257, %v1285
    %v1287 = vlaneseq
    %v1288 = vshrl.u32 %v1287, 7
    %v1289 = vsub.s32 7, %v1288
    %v1290 = vrot.slane %v1257, %v1289
    %v1811 = vunpack.c.l.b16 %v745
    %v1812 = vunpack.c.h.b16 %v745
    %v1813 = vunpack.c.l.b16 %v746
    %v1814 = vunpack.c.h.b16 %v746
    %v1815 = vunpack.c.l.b16 %v747
    %v1816 = vunpack.c.h.b16 %v747
    %v1817 = vunpack.c.l.b16 %v748
    %v1818 = vunpack.c.h.b16 %v748
    %v1819 = vunpack.c.l.b16 %v749
    %v1820 = vunpack.c.h.b16 %v749
    %v1821 = vunpack.c.l.b16 %v750
    %v1822 = vunpack.c.h.b16 %v750
    %v1823 = vunpack.c.l.b16 %v751
    %v1824 = vunpack.c.h.b16 %v751
    %v1825 = vunpack.c.l.b16 %v752
    %v1826 = vunpack.c.h.b16 %v752
    %v1827 = vunpack.c.l.b16 %v753
    %v1828 = vunpack.c.h.b16 %v753
    %v1829 = vunpack.c.l.b16 %v754
    %v1830 = vunpack.c.h.b16 %v754
    %v1831 = vunpack.c.l.b16 %v755
    %v1832 = vunpack.c.h.b16 %v755
    %v1833 = vunpack.c.l.b16 %v756
    %v1834 = vunpack.c.h.b16 %v756
    %v1835 = vunpack.c.l.b16 %v757
    %v1836 = vunpack.c.h.b16 %v757
    %v1837 = vunpack.c.l.b16 %v758
    %v1838 = vunpack.c.h.b16 %v758
    %v1839 = vunpack.c.l.b16 %v759
    %v1840 = vunpack.c.h.b16 %v759
    %v1841 = vunpack.c.l.b16 %v760
    %v1842 = vunpack.c.h.b16 %v760
    %v1843 = vunpack.c.l.b16 %v761
    %v1844 = vunpack.c.h.b16 %v761
    %v1845 = vunpack.c.l.b16 %v762
    %v1846 = vunpack.c.h.b16 %v762
    %v1847 = vunpack.c.l.b16 %v763
    %v1848 = vunpack.c.h.b16 %v763
    %v1849 = vunpack.c.l.b16 %v764
    %v1850 = vunpack.c.h.b16 %v764
    %v1851 = vunpack.c.l.b16 %v765
    %v1852 = vunpack.c.h.b16 %v765
    %v1853 = vunpack.c.l.b16 %v766
    %v1854 = vunpack.c.h.b16 %v766
    %v1855 = vunpack.c.l.b16 %v767
    %v1856 = vunpack.c.h.b16 %v767
    %v1857 = vunpack.c.l.b16 %v768
    %v1858 = vunpack.c.h.b16 %v768
    %v1859 = vunpack.c.l.b16 %v769
    %v1860 = vunpack.c.h.b16 %v769
    %v1861 = vunpack.c.l.b16 %v770
    %v1862 = vunpack.c.h.b16 %v770
    %v1863 = vunpack.c.l.b16 %v771
    %v1864 = vunpack.c.h.b16 %v771
    %v1865 = vunpack.c.l.b16 %v772
    %v1866 = vunpack.c.h.b16 %v772
    %v1867 = vunpack.c.l.b16 %v773
    %v1868 = vunpack.c.h.b16 %v773
    %v1869 = vunpack.c.l.b16 %v774
    %v1870 = vunpack.c.h.b16 %v774
    %v1871 = vunpack.c.l.b16 %v775
    %v1872 = vunpack.c.h.b16 %v775
    %v1873 = vunpack.c.l.b16 %v776
    %v1874 = vunpack.c.h.b16 %v776
    %v1875 = vunpack.c.l.b16 %v777
    %v1876 = vunpack.c.h.b16 %v777
    %v1877 = vunpack.c.l.b16 %v778
    %v1878 = vunpack.c.h.b16 %v778
    %v1879 = vunpack.c.l.b16 %v779
    %v1880 = vunpack.c.h.b16 %v779
    %v1881 = vunpack.c.l.b16 %v780
    %v1882 = vunpack.c.h.b16 %v780
    %v1883 = vunpack.c.l.b16 %v781
    %v1884 = vunpack.c.h.b16 %v781
    %v1885 = vunpack.c.l.b16 %v782
    %v1886 = vunpack.c.h.b16 %v782
    %v1887 = vunpack.c.l.b16 %v783
    %v1888 = vunpack.c.h.b16 %v783
    %v1889 = vunpack.c.l.b16 %v784
    %v1890 = vunpack.c.h.b16 %v784
    %v1891 = vunpack.c.l.b16 %v785
    %v1892 = vunpack.c.h.b16 %v785
    %v1893 = vunpack.c.l.b16 %v786
    %v1894 = vunpack.c.h.b16 %v786
    %v1895 = vunpack.c.l.b16 %v787
    %v1896 = vunpack.c.h.b16 %v787
    %v1897 = vunpack.c.l.b16 %v788
    %v1898 = vunpack.c.h.b16 %v788
    %v1899 = vunpack.c.l.b16 %v789
    %v1900 = vunpack.c.h.b16 %v789
    %v1901 = vunpack.c.l.b16 %v790
    %v1902 = vunpack.c.h.b16 %v790
    %v1903 = vunpack.c.l.b16 %v791
    %v1904 = vunpack.c.h.b16 %v791
    %v1905 = vunpack.c.l.b16 %v792
    %v1906 = vunpack.c.h.b16 %v792
    %v1907 = vunpack.c.l.b16 %v793
    %v1908 = vunpack.c.h.b16 %v793
    %v1909 = vunpack.c.l.b16 %v794
    %v1910 = vunpack.c.h.b16 %v794
    %v1911 = vunpack.c.l.b16 %v795
    %v1912 = vunpack.c.h.b16 %v795
    %v1913 = vunpack.c.l.b16 %v796
    %v1914 = vunpack.c.h.b16 %v796
    %v1915 = vunpack.c.l.b16 %v797
    %v1916 = vunpack.c.h.b16 %v797
    %v1917 = vunpack.c.l.b16 %v798
    %v1918 = vunpack.c.h.b16 %v798
    %v1919 = vunpack.c.l.b16 %v799
    %v1920 = vunpack.c.h.b16 %v799
    %v1921 = vunpack.c.l.b16 %v800
    %v1922 = vunpack.c.h.b16 %v800
    %v1923 = vunpack.c.l.b16 %v801
    %v1924 = vunpack.c.h.b16 %v801
    %v1925 = vunpack.c.l.b16 %v802
    %v1926 = vunpack.c.h.b16 %v802
    %v1927 = vunpack.c.l.b16 %v803
    %v1928 = vunpack.c.h.b16 %v803
    %v1929 = vunpack.c.l.b16 %v804
    %v1930 = vunpack.c.h.b16 %v804
    %v1931 = vunpack.c.l.b16 %v805
    %v1932 = vunpack.c.h.b16 %v805
    %v1933 = vunpack.c.l.b16 %v806
    %v1934 = vunpack.c.h.b16 %v806
    %v1935 = vunpack.c.l.b16 %v807
    %v1936 = vunpack.c.h.b16 %v807
    %v1937 = vunpack.c.l.b16 %v808
    %v1938 = vunpack.c.h.b16 %v808
    %v1939 = vunpack.c.l.b16 %v809
    %v1940 = vunpack.c.h.b16 %v809
    %v1941 = vunpack.c.l.b16 %v810
    %v1942 = vunpack.c.h.b16 %v810
    %v1943 = vunpack.c.l.b16 %v811
    %v1944 = vunpack.c.h.b16 %v811
    %v1945 = vunpack.c.l.b16 %v812
    %v1946 = vunpack.c.h.b16 %v812
    %v1947 = vunpack.c.l.b16 %v813
    %v1948 = vunpack.c.h.b16 %v813
    %v1949 = vunpack.c.l.b16 %v814
    %v1950 = vunpack.c.h.b16 %v814
    %v1951 = vunpack.c.l.b16 %v815
    %v1952 = vunpack.c.h.b16 %v815
    %v1953 = vunpack.c.l.b16 %v816
    %v1954 = vunpack.c.h.b16 %v816
    %v1955 = vunpack.c.l.b16 %v817
    %v1956 = vunpack.c.h.b16 %v817
    %v1957 = vunpack.c.l.b16 %v818
    %v1958 = vunpack.c.h.b16 %v818
    %v1959 = vunpack.c.l.b16 %v819
    %v1960 = vunpack.c.h.b16 %v819
    %v1961 = vunpack.c.l.b16 %v820
    %v1962 = vunpack.c.h.b16 %v820
    %v1963 = vunpack.c.l.b16 %v821
    %v1964 = vunpack.c.h.b16 %v821
    %v1965 = vunpack.c.l.b16 %v822
    %v1966 = vunpack.c.h.b16 %v822
    %v1967 = vunpack.c.l.b16 %v823
    %v1968 = vunpack.c.h.b16 %v823
    %v1969 = vunpack.c.l.b16 %v824
    %v1970 = vunpack.c.h.b16 %v824
    %v1971 = vunpack.c.l.b16 %v825
    %v1972 = vunpack.c.h.b16 %v825
    %v1973 = vunpack.c.l.b16 %v826
    %v1974 = vunpack.c.h.b16 %v826
    %v1975 = vunpack.c.l.b16 %v827
    %v1976 = vunpack.c.h.b16 %v827
    %v1977 = vunpack.c.l.b16 %v828
    %v1978 = vunpack.c.h.b16 %v828
    %v1979 = vunpack.c.l.b16 %v829
    %v1980 = vunpack.c.h.b16 %v829
    %v1981 = vunpack.c.l.b16 %v830
    %v1982 = vunpack.c.h.b16 %v830
    %v1983 = vunpack.c.l.b16 %v831
    %v1984 = vunpack.c.h.b16 %v831
    %v1985 = vunpack.c.l.b16 %v832
    %v1986 = vunpack.c.h.b16 %v832
    %v1987 = vunpack.c.l.b16 %v833
    %v1988 = vunpack.c.h.b16 %v833
    %v1989 = vunpack.c.l.b16 %v834
    %v1990 = vunpack.c.h.b16 %v834
    %v1991 = vunpack.c.l.b16 %v835
    %v1992 = vunpack.c.h.b16 %v835
    %v1993 = vunpack.c.l.b16 %v836
    %v1994 = vunpack.c.h.b16 %v836
    %v1995 = vunpack.c.l.b16 %v837
    %v1996 = vunpack.c.h.b16 %v837
    %v1997 = vunpack.c.l.b16 %v838
    %v1998 = vunpack.c.h.b16 %v838
    %v1999 = vunpack.c.l.b16 %v839
    %v2000 = vunpack.c.h.b16 %v839
    %v2001 = vunpack.c.l.b16 %v840
    %v2002 = vunpack.c.h.b16 %v840
    %v2003 = vunpack.c.l.b16 %v841
    %v2004 = vunpack.c.h.b16 %v841
    %v2005 = vunpack.c.l.b16 %v842
    %v2006 = vunpack.c.h.b16 %v842
    %v2007 = vunpack.c.l.b16 %v843
    %v2008 = vunpack.c.h.b16 %v843
    %v2009 = vunpack.c.l.b16 %v844
    %v2010 = vunpack.c.h.b16 %v844
    %v2011 = vunpack.c.l.b16 %v845
    %v2012 = vunpack.c.h.b16 %v845
    %v2013 = vunpack.c.l.b16 %v846
    %v2014 = vunpack.c.h.b16 %v846
    %v2015 = vunpack.c.l.b16 %v847
    %v2016 = vunpack.c.h.b16 %v847
    %v2017 = vunpack.c.l.b16 %v848
    %v2018 = vunpack.c.h.b16 %v848
    %v2019 = vunpack.c.l.b16 %v849
    %v2020 = vunpack.c.h.b16 %v849
    %v2021 = vunpack.c.l.b16 %v850
    %v2022 = vunpack.c.h.b16 %v850
    %v2023 = vunpack.c.l.b16 %v851
    %v2024 = vunpack.c.h.b16 %v851
    %v2025 = vunpack.c.l.b16 %v852
    %v2026 = vunpack.c.h.b16 %v852
    %v2027 = vunpack.c.l.b16 %v853
    %v2028 = vunpack.c.h.b16 %v853
    %v2029 = vunpack.c.l.b16 %v854
    %v2030 = vunpack.c.h.b16 %v854
    %v2031 = vunpack.c.l.b16 %v855
    %v2032 = vunpack.c.h.b16 %v855
    %v2033 = vunpack.c.l.b16 %v856
    %v2034 = vunpack.c.h.b16 %v856
    %v2035 = vunpack.c.l.b16 %v857
    %v2036 = vunpack.c.h.b16 %v857
    %v2037 = vunpack.c.l.b16 %v858
    %v2038 = vunpack.c.h.b16 %v858
    %v2039 = vunpack.c.l.b16 %v859
    %v2040 = vunpack.c.h.b16 %v859
    %v2041 = vunpack.c.l.b16 %v860
    %v2042 = vunpack.c.h.b16 %v860
    %v2043 = vunpack.c.l.b16 %v861
    %v2044 = vunpack.c.h.b16 %v861
    %v2045 = vunpack.c.l.b16 %v862
    %v2046 = vunpack.c.h.b16 %v862
    %v2047 = vunpack.c.l.b16 %v863
    %v2048 = vunpack.c.h.b16 %v863
    %v2049 = vunpack.c.l.b16 %v864
    %v2050 = vunpack.c.h.b16 %v864
    %v2051 = vunpack.c.l.b16 %v865
    %v2052 = vunpack.c.h.b16 %v865
    %v2053 = vunpack.c.l.b16 %v866
    %v2054 = vunpack.c.h.b16 %v866
    %v2055 = vunpack.c.l.b16 %v867
    %v2056 = vunpack.c.h.b16 %v867
    %v2057 = vunpack.c.l.b16 %v868
    %v2058 = vunpack.c.h.b16 %v868
    %v2059 = vunpack.c.l.b16 %v869
    %v2060 = vunpack.c.h.b16 %v869
    %v2061 = vunpack.c.l.b16 %v870
    %v2062 = vunpack.c.h.b16 %v870
    %v2063 = vunpack.c.l.b16 %v871
    %v2064 = vunpack.c.h.b16 %v871
    %v2065 = vunpack.c.l.b16 %v872
    %v2066 = vunpack.c.h.b16 %v872
    %v2067 = vunpack.c.l.b16 %v873
    %v2068 = vunpack.c.h.b16 %v873
    %v2069 = vunpack.c.l.b16 %v874
    %v2070 = vunpack.c.h.b16 %v874
    %v2071 = vunpack.c.l.b16 %v875
    %v2072 = vunpack.c.h.b16 %v875
    %v2073 = vunpack.c.l.b16 %v876
    %v2074 = vunpack.c.h.b16 %v876
    %v2075 = vunpack.c.l.b16 %v877
    %v2076 = vunpack.c.h.b16 %v877
    %v2077 = vunpack.c.l.b16 %v878
    %v2078 = vunpack.c.h.b16 %v878
    %v2079 = vunpack.c.l.b16 %v879
    %v2080 = vunpack.c.h.b16 %v879
    %v2081 = vunpack.c.l.b16 %v880
    %v2082 = vunpack.c.h.b16 %v880
    %v2083 = vunpack.c.l.b16 %v881
    %v2084 = vunpack.c.h.b16 %v881
    %v2085 = vunpack.c.l.b16 %v882
    %v2086 = vunpack.c.h.b16 %v882
    %v2087 = vunpack.c.l.b16 %v883
    %v2088 = vunpack.c.h.b16 %v883
    %v2089 = vunpack.c.l.b16 %v884
    %v2090 = vunpack.c.h.b16 %v884
    %v2091 = vunpack.c.l.b16 %v885
    %v2092 = vunpack.c.h.b16 %v885
    %v2093 = vunpack.c.l.b16 %v886
    %v2094 = vunpack.c.h.b16 %v886
    %v2095 = vunpack.c.l.b16 %v887
    %v2096 = vunpack.c.h.b16 %v887
    %v2097 = vunpack.c.l.b16 %v888
    %v2098 = vunpack.c.h.b16 %v888
    %v2099 = vunpack.c.l.b16 %v889
    %v2100 = vunpack.c.h.b16 %v889
    %v2101 = vunpack.c.l.b16 %v890
    %v2102 = vunpack.c.h.b16 %v890
    %v2103 = vunpack.c.l.b16 %v891
    %v2104 = vunpack.c.h.b16 %v891
    %v2105 = vunpack.c.l.b16 %v892
    %v2106 = vunpack.c.h.b16 %v892
    %v2107 = vunpack.c.l.b16 %v893
    %v2108 = vunpack.c.h.b16 %v893
    %v2109 = vunpack.c.l.b16 %v894
    %v2110 = vunpack.c.h.b16 %v894
    %v2111 = vunpack.c.l.b16 %v895
    %v2112 = vunpack.c.h.b16 %v895
    %v2113 = vunpack.c.l.b16 %v896
    %v2114 = vunpack.c.h.b16 %v896
    %v2115 = vunpack.c.l.b16 %v897
    %v2116 = vunpack.c.h.b16 %v897
    %v2117 = vunpack.c.l.b16 %v898
    %v2118 = vunpack.c.h.b16 %v898
    %v2119 = vunpack.c.l.b16 %v899
    %v2120 = vunpack.c.h.b16 %v899
    %v2121 = vunpack.c.l.b16 %v900
    %v2122 = vunpack.c.h.b16 %v900
    %v2123 = vunpack.c.l.b16 %v901
    %v2124 = vunpack.c.h.b16 %v901
    %v2125 = vunpack.c.l.b16 %v902
    %v2126 = vunpack.c.h.b16 %v902
    %v2127 = vunpack.c.l.b16 %v903
    %v2128 = vunpack.c.h.b16 %v903
    %v2129 = vunpack.c.l.b16 %v904
    %v2130 = vunpack.c.h.b16 %v904
    %v2131 = vunpack.c.l.b16 %v905
    %v2132 = vunpack.c.h.b16 %v905
    %v2133 = vunpack.c.l.b16 %v906
    %v2134 = vunpack.c.h.b16 %v906
    %v2135 = vunpack.c.l.b16 %v907
    %v2136 = vunpack.c.h.b16 %v907
    %v2137 = vunpack.c.l.b16 %v908
    %v2138 = vunpack.c.h.b16 %v908
    %v2139 = vunpack.c.l.b16 %v909
    %v2140 = vunpack.c.h.b16 %v909
    %v2141 = vunpack.c.l.b16 %v910
    %v2142 = vunpack.c.h.b16 %v910
    %v2143 = vunpack.c.l.b16 %v911
    %v2144 = vunpack.c.h.b16 %v911
    %v2145 = vunpack.c.l.b16 %v912
    %v2146 = vunpack.c.h.b16 %v912
    %v2147 = vunpack.c.l.b16 %v913
    %v2148 = vunpack.c.h.b16 %v913
    %v2149 = vunpack.c.l.b16 %v914
    %v2150 = vunpack.c.h.b16 %v914
    %v2151 = vunpack.c.l.b16 %v915
    %v2152 = vunpack.c.h.b16 %v915
    %v2153 = vunpack.c.l.b16 %v916
    %v2154 = vunpack.c.h.b16 %v916
    %v2155 = vunpack.c.l.b16 %v917
    %v2156 = vunpack.c.h.b16 %v917
    %v2157 = vunpack.c.l.b16 %v918
    %v2158 = vunpack.c.h.b16 %v918
    %v2159 = vunpack.c.l.b16 %v919
    %v2160 = vunpack.c.h.b16 %v919
    %v2161 = vunpack.c.l.b16 %v920
    %v2162 = vunpack.c.h.b16 %v920
    %v2163 = vunpack.c.l.b16 %v921
    %v2164 = vunpack.c.h.b16 %v921
    %v2165 = vunpack.c.l.b16 %v922
    %v2166 = vunpack.c.h.b16 %v922
    %v2167 = vunpack.c.l.b16 %v923
    %v2168 = vunpack.c.h.b16 %v923
    %v2169 = vunpack.c.l.b16 %v924
    %v2170 = vunpack.c.h.b16 %v924
    %v2171 = vunpack.c.l.b16 %v925
    %v2172 = vunpack.c.h.b16 %v925
    %v2173 = vunpack.c.l.b16 %v926
    %v2174 = vunpack.c.h.b16 %v926
    %v2175 = vunpack.c.l.b16 %v927
    %v2176 = vunpack.c.h.b16 %v927
    %v2177 = vunpack.c.l.b16 %v928
    %v2178 = vunpack.c.h.b16 %v928
    %v2179 = vunpack.c.l.b16 %v929
    %v2180 = vunpack.c.h.b16 %v929
    %v2181 = vunpack.c.l.b16 %v930
    %v2182 = vunpack.c.h.b16 %v930
    %v2183 = vunpack.c.l.b16 %v931
    %v2184 = vunpack.c.h.b16 %v931
    %v2185 = vunpack.c.l.b16 %v932
    %v2186 = vunpack.c.h.b16 %v932
    %v2187 = vunpack.c.l.b16 %v933
    %v2188 = vunpack.c.h.b16 %v933
    %v2189 = vunpack.c.l.b16 %v934
    %v2190 = vunpack.c.h.b16 %v934
    %v2191 = vunpack.c.l.b16 %v935
    %v2192 = vunpack.c.h.b16 %v935
    %v2193 = vunpack.c.l.b16 %v936
    %v2194 = vunpack.c.h.b16 %v936
    %v2195 = vunpack.c.l.b16 %v937
    %v2196 = vunpack.c.h.b16 %v937
    %v2197 = vunpack.c.l.b16 %v938
    %v2198 = vunpack.c.h.b16 %v938
    %v2199 = vunpack.c.l.b16 %v939
    %v2200 = vunpack.c.h.b16 %v939
    %v2201 = vunpack.c.l.b16 %v940
    %v2202 = vunpack.c.h.b16 %v940
    %v2203 = vunpack.c.l.b16 %v941
    %v2204 = vunpack.c.h.b16 %v941
    %v2205 = vunpack.c.l.b16 %v942
    %v2206 = vunpack.c.h.b16 %v942
    %v2207 = vunpack.c.l.b16 %v943
    %v2208 = vunpack.c.h.b16 %v943
    %v2209 = vunpack.c.l.b16 %v944
    %v2210 = vunpack.c.h.b16 %v944
    %v2211 = vunpack.c.l.b16 %v945
    %v2212 = vunpack.c.h.b16 %v945
    %v2213 = vunpack.c.l.b16 %v946
    %v2214 = vunpack.c.h.b16 %v946
    %v2215 = vunpack.c.l.b16 %v947
    %v2216 = vunpack.c.h.b16 %v947
    %v2217 = vunpack.c.l.b16 %v948
    %v2218 = vunpack.c.h.b16 %v948
    %v2219 = vunpack.c.l.b16 %v949
    %v2220 = vunpack.c.h.b16 %v949
    %v2221 = vunpack.c.l.b16 %v950
    %v2222 = vunpack.c.h.b16 %v950
    %v2223 = vunpack.c.l.b16 %v951
    %v2224 = vunpack.c.h.b16 %v951
    %v2225 = vunpack.c.l.b16 %v952
    %v2226 = vunpack.c.h.b16 %v952
    %v2227 = vunpack.c.l.b16 %v953
    %v2228 = vunpack.c.h.b16 %v953
    %v2229 = vunpack.c.l.b16 %v954
    %v2230 = vunpack.c.h.b16 %v954
    %v2231 = vunpack.c.l.b16 %v955
    %v2232 = vunpack.c.h.b16 %v955
    %v2233 = vunpack.c.l.b16 %v956
    %v2234 = vunpack.c.h.b16 %v956
    %v2235 = vunpack.c.l.b16 %v957
    %v2236 = vunpack.c.h.b16 %v957
    %v2237 = vunpack.c.l.b16 %v958
    %v2238 = vunpack.c.h.b16 %v958
    %v2239 = vunpack.c.l.b16 %v959
    %v2240 = vunpack.c.h.b16 %v959
    %v2241 = vunpack.c.l.b16 %v960
    %v2242 = vunpack.c.h.b16 %v960
    %v2243 = vunpack.c.l.b16 %v961
    %v2244 = vunpack.c.h.b16 %v961
    %v2245 = vunpack.c.l.b16 %v962
    %v2246 = vunpack.c.h.b16 %v962
    %v2247 = vunpack.c.l.b16 %v963
    %v2248 = vunpack.c.h.b16 %v963
    %v2249 = vunpack.c.l.b16 %v964
    %v2250 = vunpack.c.h.b16 %v964
    %v2251 = vunpack.c.l.b16 %v965
    %v2252 = vunpack.c.h.b16 %v965
    %v2253 = vunpack.c.l.b16 %v966
    %v2254 = vunpack.c.h.b16 %v966
    %v2255 = vunpack.c.l.b16 %v967
    %v2256 = vunpack.c.h.b16 %v967
    %v2257 = vunpack.c.l.b16 %v968
    %v2258 = vunpack.c.h.b16 %v968
    %v2259 = vunpack.c.l.b16 %v969
    %v2260 = vunpack.c.h.b16 %v969
    %v2261 = vunpack.c.l.b16 %v970
    %v2262 = vunpack.c.h.b16 %v970
    %v2263 = vunpack.c.l.b16 %v971
    %v2264 = vunpack.c.h.b16 %v971
    %v2265 = vunpack.c.l.b16 %v972
    %v2266 = vunpack.c.h.b16 %v972
    %v2267 = vunpack.c.l.b16 %v973
    %v2268 = vunpack.c.h.b16 %v973
    %v2269 = vunpack.c.l.b16 %v974
    %v2270 = vunpack.c.h.b16 %v974
    %v2271 = vunpack.c.l.b16 %v975
    %v2272 = vunpack.c.h.b16 %v975
    %v2273 = vunpack.c.l.b16 %v976
    %v2274 = vunpack.c.h.b16 %v976
    %v2275 = vunpack.c.l.b16 %v977
    %v2276 = vunpack.c.h.b16 %v977
    %v2277 = vunpack.c.l.b16 %v978
    %v2278 = vunpack.c.h.b16 %v978
    %v2279 = vunpack.c.l.b16 %v979
    %v2280 = vunpack.c.h.b16 %v979
    %v2281 = vunpack.c.l.b16 %v980
    %v2282 = vunpack.c.h.b16 %v980
    %v2283 = vunpack.c.l.b16 %v981
    %v2284 = vunpack.c.h.b16 %v981
    %v2285 = vunpack.c.l.b16 %v982
    %v2286 = vunpack.c.h.b16 %v982
    %v2287 = vunpack.c.l.b16 %v983
    %v2288 = vunpack.c.h.b16 %v983
    %v2289 = vunpack.c.l.b16 %v984
    %v2290 = vunpack.c.h.b16 %v984
    %v2291 = vunpack.c.l.b16 %v985
    %v2292 = vunpack.c.h.b16 %v985
    %v2293 = vunpack.c.l.b16 %v986
    %v2294 = vunpack.c.h.b16 %v986
    %v2295 = vunpack.c.l.b16 %v987
    %v2296 = vunpack.c.h.b16 %v987
    %v2297 = vunpack.c.l.b16 %v988
    %v2298 = vunpack.c.h.b16 %v988
    %v2299 = vunpack.c.l.b16 %v989
    %v2300 = vunpack.c.h.b16 %v989
    %v2301 = vunpack.c.l.b16 %v990
    %v2302 = vunpack.c.h.b16 %v990
    %v2303 = vunpack.c.l.b16 %v991
    %v2304 = vunpack.c.h.b16 %v991
    %v2305 = vunpack.c.l.b16 %v992
    %v2306 = vunpack.c.h.b16 %v992
    %v2307 = vunpack.c.l.b16 %v993
    %v2308 = vunpack.c.h.b16 %v993
    %v2309 = vunpack.c.l.b16 %v994
    %v2310 = vunpack.c.h.b16 %v994
    %v2311 = vunpack.c.l.b16 %v995
    %v2312 = vunpack.c.h.b16 %v995
    %v2313 = vunpack.c.l.b16 %v996
    %v2314 = vunpack.c.h.b16 %v996
    %v2315 = vunpack.c.l.b16 %v997
    %v2316 = vunpack.c.h.b16 %v997
    %v2317 = vunpack.c.l.b16 %v998
    %v2318 = vunpack.c.h.b16 %v998
    %v2319 = vunpack.c.l.b16 %v999
    %v2320 = vunpack.c.h.b16 %v999
    %v2321 = vunpack.c.l.b16 %v1000
    %v2322 = vunpack.c.h.b16 %v1000
    %v2323 = vunpack.c.l.b16 %v1001
    %v2324 = vunpack.c.h.b16 %v1001
    %v2325 = vunpack.c.l.b16 %v1002
    %v2326 = vunpack.c.h.b16 %v1002
    %v2327 = vunpack.c.l.b16 %v1003
    %v2328 = vunpack.c.h.b16 %v1003
    %v2329 = vunpack.c.l.b16 %v1004
    %v2330 = vunpack.c.h.b16 %v1004
    %v2331 = vunpack.c.l.b16 %v1005
    %v2332 = vunpack.c.h.b16 %v1005
    %v2333 = vunpack.c.l.b16 %v1006
    %v2334 = vunpack.c.h.b16 %v1006
    %v2335 = vunpack.c.l.b16 %v1007
    %v2336 = vunpack.c.h.b16 %v1007
    %v2337 = vunpack.c.l.b16 %v1008
    %v2338 = vunpack.c.h.b16 %v1008
    %v2339 = vunpack.c.l.b16 %v1009
    %v2340 = vunpack.c.h.b16 %v1009
    %v2341 = vunpack.c.l.b16 %v1010
    %v2342 = vunpack.c.h.b16 %v1010
    %v2343 = vunpack.c.l.b16 %v1011
    %v2344 = vunpack.c.h.b16 %v1011
    %v2345 = vunpack.c.l.b16 %v1012
    %v2346 = vunpack.c.h.b16 %v1012
    %v2347 = vunpack.c.l.b16 %v1013
    %v2348 = vunpack.c.h.b16 %v1013
    %v2349 = vunpack.c.l.b16 %v1014
    %v2350 = vunpack.c.h.b16 %v1014
    %v2351 = vunpack.c.l.b16 %v1015
    %v2352 = vunpack.c.h.b16 %v1015
    %v2353 = vunpack.c.l.b16 %v1016
    %v2354 = vunpack.c.h.b16 %v1016
    %v2355 = vunpack.c.l.b16 %v1017
    %v2356 = vunpack.c.h.b16 %v1017
    %v2357 = vunpack.c.l.b16 %v1018
    %v2358 = vunpack.c.h.b16 %v1018
    %v2359 = vunpack.c.l.b16 %v1019
    %v2360 = vunpack.c.h.b16 %v1019
    %v2361 = vunpack.c.l.b16 %v1020
    %v2362 = vunpack.c.h.b16 %v1020
    %v2363 = vunpack.c.l.b16 %v1021
    %v2364 = vunpack.c.h.b16 %v1021
    %v2365 = vunpack.c.l.b16 %v1022
    %v2366 = vunpack.c.h.b16 %v1022
    %v2367 = vunpack.c.l.b16 %v1023
    %v2368 = vunpack.c.h.b16 %v1023
    %v2369 = vunpack.c.l.b16 %v1024
    %v2370 = vunpack.c.h.b16 %v1024
    %v2371 = vunpack.c.l.b16 %v1025
    %v2372 = vunpack.c.h.b16 %v1025
    %v2373 = vunpack.c.l.b16 %v1026
    %v2374 = vunpack.c.h.b16 %v1026
    %v2375 = vunpack.c.l.b16 %v1027
    %v2376 = vunpack.c.h.b16 %v1027
    %v2377 = vunpack.c.l.b16 %v1028
    %v2378 = vunpack.c.h.b16 %v1028
    %v2379 = vunpack.c.l.b16 %v1029
    %v2380 = vunpack.c.h.b16 %v1029
    %v2381 = vunpack.c.l.b16 %v1030
    %v2382 = vunpack.c.h.b16 %v1030
    %v2383 = vunpack.c.l.b16 %v1031
    %v2384 = vunpack.c.h.b16 %v1031
    %v2385 = vunpack.c.l.b16 %v1032
    %v2386 = vunpack.c.h.b16 %v1032
    %v2387 = vunpack.c.l.b16 %v1033
    %v2388 = vunpack.c.h.b16 %v1033
    %v2389 = vunpack.c.l.b16 %v1034
    %v2390 = vunpack.c.h.b16 %v1034
    %v2391 = vunpack.c.l.b16 %v1035
    %v2392 = vunpack.c.h.b16 %v1035
    %v2393 = vunpack.c.l.b16 %v1036
    %v2394 = vunpack.c.h.b16 %v1036
    %v2395 = vunpack.c.l.b16 %v1037
    %v2396 = vunpack.c.h.b16 %v1037
    %v2397 = vunpack.c.l.b16 %v1038
    %v2398 = vunpack.c.h.b16 %v1038
    %v2399 = vunpack.c.l.b16 %v1039
    %v2400 = vunpack.c.h.b16 %v1039
    %v2401 = vunpack.c.l.b16 %v1040
    %v2402 = vunpack.c.h.b16 %v1040
    %v2403 = vunpack.c.l.b16 %v1041
    %v2404 = vunpack.c.h.b16 %v1041
    %v2405 = vunpack.c.l.b16 %v1042
    %v2406 = vunpack.c.h.b16 %v1042
    %v2407 = vunpack.c.l.b16 %v1043
    %v2408 = vunpack.c.h.b16 %v1043
    %v2409 = vunpack.c.l.b16 %v1044
    %v2410 = vunpack.c.h.b16 %v1044
    %v2411 = vunpack.c.l.b16 %v1045
    %v2412 = vunpack.c.h.b16 %v1045
    %v2413 = vunpack.c.l.b16 %v1046
    %v2414 = vunpack.c.h.b16 %v1046
    %v2415 = vunpack.c.l.b16 %v1047
    %v2416 = vunpack.c.h.b16 %v1047
    %v2417 = vunpack.c.l.b16 %v1048
    %v2418 = vunpack.c.h.b16 %v1048
    %v2419 = vunpack.c.l.b16 %v1049
    %v2420 = vunpack.c.h.b16 %v1049
    %v2421 = vunpack.c.l.b16 %v1050
    %v2422 = vunpack.c.h.b16 %v1050
    %v2423 = vunpack.c.l.b16 %v1051
    %v2424 = vunpack.c.h.b16 %v1051
    %v2425 = vunpack.c.l.b16 %v1052
    %v2426 = vunpack.c.h.b16 %v1052
    %v2427 = vunpack.c.l.b16 %v1053
    %v2428 = vunpack.c.h.b16 %v1053
    %v2429 = vunpack.c.l.b16 %v1054
    %v2430 = vunpack.c.h.b16 %v1054
    %v2431 = vunpack.c.l.b16 %v1055
    %v2432 = vunpack.c.h.b16 %v1055
    %v2433 = vunpack.c.l.b16 %v1056
    %v2434 = vunpack.c.h.b16 %v1056
    %v2435 = vunpack.c.l.b16 %v1057
    %v2436 = vunpack.c.h.b16 %v1057
    %v2437 = vunpack.c.l.b16 %v1058
    %v2438 = vunpack.c.h.b16 %v1058
    %v2439 = vunpack.c.l.b16 %v1059
    %v2440 = vunpack.c.h.b16 %v1059
    %v2441 = vunpack.c.l.b16 %v1060
    %v2442 = vunpack.c.h.b16 %v1060
    %v2443 = vunpack.c.l.b16 %v1061
    %v2444 = vunpack.c.h.b16 %v1061
    %v2445 = vunpack.c.l.b16 %v1062
    %v2446 = vunpack.c.h.b16 %v1062
    %v2447 = vunpack.c.l.b16 %v1063
    %v2448 = vunpack.c.h.b16 %v1063
    %v2449 = vunpack.c.l.b16 %v1064
    %v2450 = vunpack.c.h.b16 %v1064
    %v2451 = vunpack.c.l.b16 %v1065
    %v2452 = vunpack.c.h.b16 %v1065
    %v2453 = vunpack.c.l.b16 %v1066
    %v2454 = vunpack.c.h.b16 %v1066
    %v2455 = vunpack.c.l.b16 %v1067
    %v2456 = vunpack.c.h.b16 %v1067
    %v2457 = vunpack.c.l.b16 %v1068
    %v2458 = vunpack.c.h.b16 %v1068
    %v2459 = vunpack.c.l.b16 %v1069
    %v2460 = vunpack.c.h.b16 %v1069
    %v2461 = vunpack.c.l.b16 %v1070
    %v2462 = vunpack.c.h.b16 %v1070
    %v2463 = vunpack.c.l.b16 %v1071
    %v2464 = vunpack.c.h.b16 %v1071
    %v2465 = vunpack.c.l.b16 %v1072
    %v2466 = vunpack.c.h.b16 %v1072
    %v2467 = vunpack.c.l.b16 %v1073
    %v2468 = vunpack.c.h.b16 %v1073
    %v2469 = vunpack.c.l.b16 %v1074
    %v2470 = vunpack.c.h.b16 %v1074
    %v2471 = vunpack.c.l.b16 %v1075
    %v2472 = vunpack.c.h.b16 %v1075
    %v2473 = vunpack.c.l.b16 %v1076
    %v2474 = vunpack.c.h.b16 %v1076
    %v2475 = vunpack.c.l.b16 %v1077
    %v2476 = vunpack.c.h.b16 %v1077
    %v2477 = vunpack.c.l.b16 %v1078
    %v2478 = vunpack.c.h.b16 %v1078
    %v2479 = vunpack.c.l.b16 %v1079
    %v2480 = vunpack.c.h.b16 %v1079
    %v2481 = vunpack.c.l.b16 %v1080
    %v2482 = vunpack.c.h.b16 %v1080
    %v2483 = vunpack.c.l.b16 %v1081
    %v2484 = vunpack.c.h.b16 %v1081
    %v2485 = vunpack.c.l.b16 %v1082
    %v2486 = vunpack.c.h.b16 %v1082
    %v2487 = vunpack.c.l.b16 %v1083
    %v2488 = vunpack.c.h.b16 %v1083
    %v2489 = vunpack.c.l.b16 %v1084
    %v2490 = vunpack.c.h.b16 %v1084
    %v2491 = vunpack.c.l.b16 %v1085
    %v2492 = vunpack.c.h.b16 %v1085
    %v2493 = vunpack.c.l.b16 %v1086
    %v2494 = vunpack.c.h.b16 %v1086
    %v2495 = vunpack.c.l.b16 %v1087
    %v2496 = vunpack.c.h.b16 %v1087
    %v2497 = vunpack.c.l.b16 %v1088
    %v2498 = vunpack.c.h.b16 %v1088
    %v2499 = vunpack.c.l.b16 %v1089
    %v2500 = vunpack.c.h.b16 %v1089
    %v2501 = vunpack.c.l.b16 %v1090
    %v2502 = vunpack.c.h.b16 %v1090
    %v2503 = vunpack.c.l.b16 %v1091
    %v2504 = vunpack.c.h.b16 %v1091
    %v2505 = vunpack.c.l.b16 %v1092
    %v2506 = vunpack.c.h.b16 %v1092
    %v2507 = vunpack.c.l.b16 %v1093
    %v2508 = vunpack.c.h.b16 %v1093
    %v2509 = vunpack.c.l.b16 %v1094
    %v2510 = vunpack.c.h.b16 %v1094
    %v2511 = vunpack.c.l.b16 %v1095
    %v2512 = vunpack.c.h.b16 %v1095
    %v2513 = vunpack.c.l.b16 %v1096
    %v2514 = vunpack.c.h.b16 %v1096
    %v2515 = vunpack.c.l.b16 %v1097
    %v2516 = vunpack.c.h.b16 %v1097
    %v2517 = vunpack.c.l.b16 %v1098
    %v2518 = vunpack.c.h.b16 %v1098
    %v2519 = vunpack.c.l.b16 %v1099
    %v2520 = vunpack.c.h.b16 %v1099
    %v2521 = vunpack.c.l.b16 %v1100
    %v2522 = vunpack.c.h.b16 %v1100
    %v2523 = vunpack.c.l.b16 %v1101
    %v2524 = vunpack.c.h.b16 %v1101
    %v2525 = vunpack.c.l.b16 %v1102
    %v2526 = vunpack.c.h.b16 %v1102
    %v2527 = vunpack.c.l.b16 %v1103
    %v2528 = vunpack.c.h.b16 %v1103
    %v2529 = vunpack.c.l.b16 %v1104
    %v2530 = vunpack.c.h.b16 %v1104
    %v2531 = vunpack.c.l.b16 %v1105
    %v2532 = vunpack.c.h.b16 %v1105
    %v2533 = vunpack.c.l.b16 %v1106
    %v2534 = vunpack.c.h.b16 %v1106
    %v2535 = vunpack.c.l.b16 %v1107
    %v2536 = vunpack.c.h.b16 %v1107
    %v2537 = vunpack.c.l.b16 %v1108
    %v2538 = vunpack.c.h.b16 %v1108
    %v2539 = vunpack.c.l.b16 %v1109
    %v2540 = vunpack.c.h.b16 %v1109
    %v2541 = vunpack.c.l.b16 %v1110
    %v2542 = vunpack.c.h.b16 %v1110
    %v2543 = vunpack.c.l.b16 %v1111
    %v2544 = vunpack.c.h.b16 %v1111
    %v2545 = vunpack.c.l.b16 %v1112
    %v2546 = vunpack.c.h.b16 %v1112
    %v2547 = vunpack.c.l.b16 %v1113
    %v2548 = vunpack.c.h.b16 %v1113
    %v2549 = vunpack.c.l.b16 %v1114
    %v2550 = vunpack.c.h.b16 %v1114
    %v2551 = vunpack.c.l.b16 %v1115
    %v2552 = vunpack.c.h.b16 %v1115
    %v2553 = vunpack.c.l.b16 %v1116
    %v2554 = vunpack.c.h.b16 %v1116
    %v2555 = vunpack.c.l.b16 %v1117
    %v2556 = vunpack.c.h.b16 %v1117
    %v2557 = vunpack.c.l.b16 %v1118
    %v2558 = vunpack.c.h.b16 %v1118
    %v2559 = vunpack.c.l.b16 %v1119
    %v2560 = vunpack.c.h.b16 %v1119
    %v2561 = vunpack.c.l.b16 %v1120
    %v2562 = vunpack.c.h.b16 %v1120
    %v2563 = vunpack.c.l.b16 %v1121
    %v2564 = vunpack.c.h.b16 %v1121
    %v2565 = vunpack.c.l.b16 %v1122
    %v2566 = vunpack.c.h.b16 %v1122
    %v2567 = vunpack.c.l.b16 %v1123
    %v2568 = vunpack.c.h.b16 %v1123
    %v2569 = vunpack.c.l.b16 %v1124
    %v2570 = vunpack.c.h.b16 %v1124
    %v2571 = vunpack.c.l.b16 %v1125
    %v2572 = vunpack.c.h.b16 %v1125
    %v2573 = vunpack.c.l.b16 %v1126
    %v2574 = vunpack.c.h.b16 %v1126
    %v2575 = vunpack.c.l.b16 %v1127
    %v2576 = vunpack.c.h.b16 %v1127
    %v2577 = vunpack.c.l.b16 %v1128
    %v2578 = vunpack.c.h.b16 %v1128
    %v2579 = vunpack.c.l.b16 %v1129
    %v2580 = vunpack.c.h.b16 %v1129
    %v2581 = vunpack.c.l.b16 %v1130
    %v2582 = vunpack.c.h.b16 %v1130
    %v2583 = vunpack.c.l.b16 %v1131
    %v2584 = vunpack.c.h.b16 %v1131
    %v2585 = vunpack.c.l.b16 %v1132
    %v2586 = vunpack.c.h.b16 %v1132
    %v2587 = vunpack.c.l.b16 %v1133
    %v2588 = vunpack.c.h.b16 %v1133
    %v2589 = vunpack.c.l.b16 %v1134
    %v2590 = vunpack.c.h.b16 %v1134
    %v2591 = vunpack.c.l.b16 %v1135
    %v2592 = vunpack.c.h.b16 %v1135
    %v2593 = vunpack.c.l.b16 %v1136
    %v2594 = vunpack.c.h.b16 %v1136
    %v2595 = vunpack.c.l.b16 %v1137
    %v2596 = vunpack.c.h.b16 %v1137
    %v2597 = vunpack.c.l.b16 %v1138
    %v2598 = vunpack.c.h.b16 %v1138
    %v2599 = vunpack.c.l.b16 %v1139
    %v2600 = vunpack.c.h.b16 %v1139
    %v2601 = vunpack.c.l.b16 %v1140
    %v2602 = vunpack.c.h.b16 %v1140
    %v2603 = vunpack.c.l.b16 %v1141
    %v2604 = vunpack.c.h.b16 %v1141
    %v2605 = vunpack.c.l.b16 %v1142
    %v2606 = vunpack.c.h.b16 %v1142
    %v2607 = vunpack.c.l.b16 %v1143
    %v2608 = vunpack.c.h.b16 %v1143
    %v2609 = vunpack.c.l.b16 %v1144
    %v2610 = vunpack.c.h.b16 %v1144
    %v2611 = vunpack.c.l.b16 %v1145
    %v2612 = vunpack.c.h.b16 %v1145
    %v2613 = vunpack.c.l.b16 %v1146
    %v2614 = vunpack.c.h.b16 %v1146
    %v2615 = vunpack.c.l.b16 %v1147
    %v2616 = vunpack.c.h.b16 %v1147
    %v2617 = vunpack.c.l.b16 %v1148
    %v2618 = vunpack.c.h.b16 %v1148
    %v2619 = vunpack.c.l.b16 %v1149
    %v2620 = vunpack.c.h.b16 %v1149
    %v2621 = vunpack.c.l.b16 %v1150
    %v2622 = vunpack.c.h.b16 %v1150
    %v2623 = vunpack.c.l.b16 %v1151
    %v2624 = vunpack.c.h.b16 %v1151
    %v2625 = vunpack.c.l.b16 %v1152
    %v2626 = vunpack.c.h.b16 %v1152
    %v2627 = vunpack.c.l.b16 %v1153
    %v2628 = vunpack.c.h.b16 %v1153
    %v2629 = vunpack.c.l.b16 %v1154
    %v2630 = vunpack.c.h.b16 %v1154
    %v2631 = vunpack.c.l.b16 %v1155
    %v2632 = vunpack.c.h.b16 %v1155
    %v2633 = vunpack.c.l.b16 %v1156
    %v2634 = vunpack.c.h.b16 %v1156
    %v2635 = vunpack.c.l.b16 %v1157
    %v2636 = vunpack.c.h.b16 %v1157
    %v2637 = vunpack.c.l.b16 %v1158
    %v2638 = vunpack.c.h.b16 %v1158
    %v2639 = vunpack.c.l.b16 %v1159
    %v2640 = vunpack.c.h.b16 %v1159
    %v2641 = vunpack.c.l.b16 %v1160
    %v2642 = vunpack.c.h.b16 %v1160
    %v2643 = vunpack.c.l.b16 %v1161
    %v2644 = vunpack.c.h.b16 %v1161
    %v2645 = vunpack.c.l.b16 %v1162
    %v2646 = vunpack.c.h.b16 %v1162
    %v2647 = vunpack.c.l.b16 %v1163
    %v2648 = vunpack.c.h.b16 %v1163
    %v2649 = vunpack.c.l.b16 %v1164
    %v2650 = vunpack.c.h.b16 %v1164
    %v2651 = vunpack.c.l.b16 %v1165
    %v2652 = vunpack.c.h.b16 %v1165
    %v2653 = vunpack.c.l.b16 %v1166
    %v2654 = vunpack.c.h.b16 %v1166
    %v2655 = vunpack.c.l.b16 %v1167
    %v2656 = vunpack.c.h.b16 %v1167
    %v2657 = vunpack.c.l.b16 %v1168
    %v2658 = vunpack.c.h.b16 %v1168
    %v2659 = vunpack.c.l.b16 %v1169
    %v2660 = vunpack.c.h.b16 %v1169
    %v2661 = vunpack.c.l.b16 %v1170
    %v2662 = vunpack.c.h.b16 %v1170
    %v2663 = vunpack.c.l.b16 %v1171
    %v2664 = vunpack.c.h.b16 %v1171
    %v2665 = vunpack.c.l.b16 %v1172
    %v2666 = vunpack.c.h.b16 %v1172
    %v2667 = vunpack.c.l.b16 %v1173
    %v2668 = vunpack.c.h.b16 %v1173
    %v2669 = vunpack.c.l.b16 %v1174
    %v2670 = vunpack.c.h.b16 %v1174
    %v2671 = vunpack.c.l.b16 %v1175
    %v2672 = vunpack.c.h.b16 %v1175
    %v2673 = vunpack.c.l.b16 %v1176
    %v2674 = vunpack.c.h.b16 %v1176
    %v2675 = vunpack.c.l.b16 %v1177
    %v2676 = vunpack.c.h.b16 %v1177
    %v2677 = vunpack.c.l.b16 %v1178
    %v2678 = vunpack.c.h.b16 %v1178
    %v2679 = vunpack.c.l.b16 %v1179
    %v2680 = vunpack.c.h.b16 %v1179
    %v2681 = vunpack.c.l.b16 %v1180
    %v2682 = vunpack.c.h.b16 %v1180
    %v2683 = vunpack.c.l.b16 %v1181
    %v2684 = vunpack.c.h.b16 %v1181
    %v2685 = vunpack.c.l.b16 %v1182
    %v2686 = vunpack.c.h.b16 %v1182
    %v2687 = vunpack.c.l.b16 %v1183
    %v2688 = vunpack.c.h.b16 %v1183
    %v2689 = vunpack.c.l.b16 %v1184
    %v2690 = vunpack.c.h.b16 %v1184
    %v2691 = vunpack.c.l.b16 %v1185
    %v2692 = vunpack.c.h.b16 %v1185
    %v2693 = vunpack.c.l.b16 %v1186
    %v2694 = vunpack.c.h.b16 %v1186
    %v2695 = vunpack.c.l.b16 %v1187
    %v2696 = vunpack.c.h.b16 %v1187
    %v2697 = vunpack.c.l.b16 %v1188
    %v2698 = vunpack.c.h.b16 %v1188
    %v2699 = vunpack.c.l.b16 %v1189
    %v2700 = vunpack.c.h.b16 %v1189
    %v2701 = vunpack.c.l.b16 %v1190
    %v2702 = vunpack.c.h.b16 %v1190
    %v2703 = vunpack.c.l.b16 %v1191
    %v2704 = vunpack.c.h.b16 %v1191
    %v2705 = vunpack.c.l.b16 %v1192
    %v2706 = vunpack.c.h.b16 %v1192
    %v2707 = vunpack.c.l.b16 %v1193
    %v2708 = vunpack.c.h.b16 %v1193
    %v2709 = vunpack.c.l.b16 %v1194
    %v2710 = vunpack.c.h.b16 %v1194
    %v2711 = vunpack.c.l.b16 %v1195
    %v2712 = vunpack.c.h.b16 %v1195
    %v2713 = vunpack.c.l.b16 %v1196
    %v2714 = vunpack.c.h.b16 %v1196
    %v2715 = vunpack.c.l.b16 %v1197
    %v2716 = vunpack.c.h.b16 %v1197
    %v2717 = vunpack.c.l.b16 %v1198
    %v2718 = vunpack.c.h.b16 %v1198
    %v2719 = vunpack.c.l.b16 %v1199
    %v2720 = vunpack.c.h.b16 %v1199
    %v2721 = vunpack.c.l.b16 %v1200
    %v2722 = vunpack.c.h.b16 %v1200
    %v2723 = vunpack.c.l.b16 %v1201
    %v2724 = vunpack.c.h.b16 %v1201
    %v2725 = vunpack.c.l.b16 %v1202
    %v2726 = vunpack.c.h.b16 %v1202
    %v2727 = vunpack.c.l.b16 %v1203
    %v2728 = vunpack.c.h.b16 %v1203
    %v2729 = vunpack.c.l.b16 %v1204
    %v2730 = vunpack.c.h.b16 %v1204
    %v2731 = vunpack.c.l.b16 %v1205
    %v2732 = vunpack.c.h.b16 %v1205
    %v2733 = vunpack.c.l.b16 %v1206
    %v2734 = vunpack.c.h.b16 %v1206
    %v2735 = vunpack.c.l.b16 %v1207
    %v2736 = vunpack.c.h.b16 %v1207
    %v2737 = vunpack.c.l.b16 %v1208
    %v2738 = vunpack.c.h.b16 %v1208
    %v2739 = vunpack.c.l.b16 %v1209
    %v2740 = vunpack.c.h.b16 %v1209
    %v2741 = vunpack.c.l.b16 %v1210
    %v2742 = vunpack.c.h.b16 %v1210
    %v2743 = vunpack.c.l.b16 %v1211
    %v2744 = vunpack.c.h.b16 %v1211
    %v2745 = vunpack.c.l.b16 %v1212
    %v2746 = vunpack.c.h.b16 %v1212
    %v2747 = vunpack.c.l.b16 %v1213
    %v2748 = vunpack.c.h.b16 %v1213
    %v2749 = vunpack.c.l.b16 %v1214
    %v2750 = vunpack.c.h.b16 %v1214
    %v2751 = vunpack.c.l.b16 %v1215
    %v2752 = vunpack.c.h.b16 %v1215
    %v2753 = vunpack.c.l.b16 %v1216
    %v2754 = vunpack.c.h.b16 %v1216
    %v2755 = vunpack.c.l.b16 %v1217
    %v2756 = vunpack.c.h.b16 %v1217
    %v2757 = vunpack.c.l.b16 %v1218
    %v2758 = vunpack.c.h.b16 %v1218
    %v2759 = vunpack.c.l.b16 %v1219
    %v2760 = vunpack.c.h.b16 %v1219
    %v2761 = vunpack.c.l.b16 %v1220
    %v2762 = vunpack.c.h.b16 %v1220
    %v2763 = vunpack.c.l.b16 %v1221
    %v2764 = vunpack.c.h.b16 %v1221
    %v2765 = vunpack.c.l.b16 %v1222
    %v2766 = vunpack.c.h.b16 %v1222
    %v2767 = vunpack.c.l.b16 %v1223
    %v2768 = vunpack.c.h.b16 %v1223
    %v2769 = vunpack.c.l.b16 %v1224
    %v2770 = vunpack.c.h.b16 %v1224
    %v2771 = vunpack.c.l.b16 %v1225
    %v2772 = vunpack.c.h.b16 %v1225
    %v2773 = vunpack.c.l.b16 %v1226
    %v2774 = vunpack.c.h.b16 %v1226
    %v2775 = vunpack.c.l.b16 %v1227
    %v2776 = vunpack.c.h.b16 %v1227
    %v2777 = vunpack.c.l.b16 %v1228
    %v2778 = vunpack.c.h.b16 %v1228
    %v2779 = vunpack.c.l.b16 %v1229
    %v2780 = vunpack.c.h.b16 %v1229
    %v2781 = vunpack.c.l.b16 %v1230
    %v2782 = vunpack.c.h.b16 %v1230
    %v2783 = vunpack.c.l.b16 %v1231
    %v2784 = vunpack.c.h.b16 %v1231
    %v2785 = vunpack.c.l.b16 %v1232
    %v2786 = vunpack.c.h.b16 %v1232
    %v2787 = vunpack.c.l.b16 %v1233
    %v2788 = vunpack.c.h.b16 %v1233
    %v2789 = vunpack.c.l.b16 %v1234
    %v2790 = vunpack.c.h.b16 %v1234
    %v2791 = vunpack.c.l.b16 %v1235
    %v2792 = vunpack.c.h.b16 %v1235
    %v2793 = vunpack.c.l.b16 %v1236
    %v2794 = vunpack.c.h.b16 %v1236
    %v2795 = vunpack.c.l.b16 %v1237
    %v2796 = vunpack.c.h.b16 %v1237
    %v2797 = vunpack.c.l.b16 %v1238
    %v2798 = vunpack.c.h.b16 %v1238
    %v2799 = vunpack.c.l.b16 %v1239
    %v2800 = vunpack.c.h.b16 %v1239
    %v2801 = vunpack.c.l.b16 %v1240
    %v2802 = vunpack.c.h.b16 %v1240
    %v2803 = vunpack.c.l.b16 %v1241
    %v2804 = vunpack.c.h.b16 %v1241
    %v2805 = vunpack.c.l.b16 %v1242
    %v2806 = vunpack.c.h.b16 %v1242
    %v2807 = vunpack.c.l.b16 %v1243
    %v2808 = vunpack.c.h.b16 %v1243
    %v2809 = vunpack.c.l.b16 %v1244
    %v2810 = vunpack.c.h.b16 %v1244
    %v2811 = vunpack.c.l.b16 %v1245
    %v2812 = vunpack.c.h.b16 %v1245
    %v2813 = vunpack.c.l.b16 %v1246
    %v2814 = vunpack.c.h.b16 %v1246
    %v2815 = vunpack.c.l.b16 %v1247
    %v2816 = vunpack.c.h.b16 %v1247
    %v2817 = vunpack.c.l.b16 %v1248
    %v2818 = vunpack.c.h.b16 %v1248
    %v2819 = vunpack.c.l.b16 %v1249
    %v2820 = vunpack.c.h.b16 %v1249
    %v2821 = vunpack.c.l.b16 %v1250
    %v2822 = vunpack.c.h.b16 %v1250
    %v2823 = vunpack.c.l.b16 %v1251
    %v2824 = vunpack.c.h.b16 %v1251
    %v2825 = vunpack.c.l.b16 %v1252
    %v2826 = vunpack.c.h.b16 %v1252
    %v2827 = vunpack.c.l.b16 %v1253
    %v2828 = vunpack.c.h.b16 %v1253
    %v2829 = vunpack.c.l.b16 %v1254
    %v2830 = vunpack.c.h.b16 %v1254
    %v2831 = vunpack.c.l.b16 %v1255
    %v2832 = vunpack.c.h.b16 %v1255
    %v2833 = vunpack.c.l.b16 %v1256
    %v2834 = vunpack.c.h.b16 %v1256
    %v2835 = vpack.c.b16 %v1819, %v1811
    %v2836 = vpack.c.b16 %v1820, %v1812
    %v2837 = vpack.c.b16 %v1821, %v1813
    %v2838 = vpack.c.b16 %v1822, %v1814
    %v2839 = vpack.c.b16 %v1823, %v1815
    %v2840 = vpack.c.b16 %v1824, %v1816
    %v2841 = vpack.c.b16 %v1825, %v1817
    %v2842 = vpack.c.b16 %v1826, %v1818
    %v2843 = vpack.c.b16 %v1835, %v1827
    %v2844 = vpack.c.b16 %v1836, %v1828
    %v2845 = vpack.c.b16 %v1837, %v1829
    %v2846 = vpack.c.b16 %v1838, %v1830
    %v2847 = vpack.c.b16 %v1839, %v1831
    %v2848 = vpack.c.b16 %v1840, %v1832
    %v2849 = vpack.c.b16 %v1841, %v1833
    %v2850 = vpack.c.b16 %v1842, %v1834
    %v2851 = vpack.c.b16 %v1851, %v1843
    %v2852 = vpack.c.b16 %v1852, %v1844
    %v2853 = vpack.c.b16 %v1853, %v1845
    %v2854 = vpack.c.b16 %v1854, %v1846
    %v2855 = vpack.c.b16 %v1855, %v1847
    %v2856 = vpack.c.b16 %v1856, %v1848
    %v2857 = vpack.c.b16 %v1857, %v1849
    %v2858 = vpack.c.b16 %v1858, %v1850
    %v2859 = vpack.c.b16 %v1867, %v1859
    %v2860 = vpack.c.b16 %v1868, %v1860
    %v2861 = vpack.c.b16 %v1869, %v1861
    %v2862 = vpack.c.b16 %v1870, %v1862
    %v2863 = vpack.c.b16 %v1871, %v1863
    %v2864 = vpack.c.b16 %v1872, %v1864
    %v2865 = vpack.c.b16 %v1873, %v1865
    %v2866 = vpack.c.b16 %v1874, %v1866
    %v2867 = vpack.c.b16 %v1883, %v1875
    %v2868 = vpack.c.b16 %v1884, %v1876
    %v2869 = vpack.c.b16 %v1885, %v1877
    %v2870 = vpack.c.b16 %v1886, %v1878
    %v2871 = vpack.c.b16 %v1887, %v1879
    %v2872 = vpack.c.b16 %v1888, %v1880
    %v2873 = vpack.c.b16 %v1889, %v1881
    %v2874 = vpack.c.b16 %v1890, %v1882
    %v2875 = vpack.c.b16 %v1899, %v1891
    %v2876 = vpack.c.b16 %v1900, %v1892
    %v2877 = vpack.c.b16 %v1901, %v1893
    %v2878 = vpack.c.b16 %v1902, %v1894
    %v2879 = vpack.c.b16 %v1903, %v1895
    %v2880 = vpack.c.b16 %v1904, %v1896
    %v2881 = vpack.c.b16 %v1905, %v1897
    %v2882 = vpack.c.b16 %v1906, %v1898
    %v2883 = vpack.c.b16 %v1915, %v1907
    %v2884 = vpack.c.b16 %v1916, %v1908
    %v2885 = vpack.c.b16 %v1917, %v1909
    %v2886 = vpack.c.b16 %v1918, %v1910
    %v2887 = vpack.c.b16 %v1919, %v1911
    %v2888 = vpack.c.b16 %v1920, %v1912
    %v2889 = vpack.c.b16 %v1921, %v1913
    %v2890 = vpack.c.b16 %v1922, %v1914
    %v2891 = vpack.c.b16 %v1931, %v1923
    %v2892 = vpack.c.b16 %v1932, %v1924
    %v2893 = vpack.c.b16 %v1933, %v1925
    %v2894 = vpack.c.b16 %v1934, %v1926
    %v2895 = vpack.c.b16 %v1935, %v1927
    %v2896 = vpack.c.b16 %v1936, %v1928
    %v2897 = vpack.c.b16 %v1937, %v1929
    %v2898 = vpack.c.b16 %v1938, %v1930
    %v2899 = vpack.c.b16 %v1947, %v1939
    %v2900 = vpack.c.b16 %v1948, %v1940
    %v2901 = vpack.c.b16 %v1949, %v1941
    %v2902 = vpack.c.b16 %v1950, %v1942
    %v2903 = vpack.c.b16 %v1951, %v1943
    %v2904 = vpack.c.b16 %v1952, %v1944
    %v2905 = vpack.c.b16 %v1953, %v1945
    %v2906 = vpack.c.b16 %v1954, %v1946
    %v2907 = vpack.c.b16 %v1963, %v1955
    %v2908 = vpack.c.b16 %v1964, %v1956
    %v2909 = vpack.c.b16 %v1965, %v1957
    %v2910 = vpack.c.b16 %v1966, %v1958
    %v2911 = vpack.c.b16 %v1967, %v1959
    %v2912 = vpack.c.b16 %v1968, %v1960
    %v2913 = vpack.c.b16 %v1969, %v1961
    %v2914 = vpack.c.b16 %v1970, %v1962
    %v2915 = vpack.c.b16 %v1979, %v1971
    %v2916 = vpack.c.b16 %v1980, %v1972
    %v2917 = vpack.c.b16 %v1981, %v1973
    %v2918 = vpack.c.b16 %v1982, %v1974
    %v2919 = vpack.c.b16 %v1983, %v1975
    %v2920 = vpack.c.b16 %v1984, %v1976
    %v2921 = vpack.c.b16 %v1985, %v1977
    %v2922 = vpack.c.b16 %v1986, %v1978
    %v2923 = vpack.c.b16 %v1995, %v1987
    %v2924 = vpack.c.b16 %v1996, %v1988
    %v2925 = vpack.c.b16 %v1997, %v1989
    %v2926 = vpack.c.b16 %v1998, %v1990
    %v2927 = vpack.c.b16 %v1999, %v1991
    %v2928 = vpack.c.b16 %v2000, %v1992
    %v2929 = vpack.c.b16 %v2001, %v1993
    %v2930 = vpack.c.b16 %v2002, %v1994
    %v2931 = vpack.c.b16 %v2011, %v2003
    %v2932 = vpack.c.b16 %v2012, %v2004
    %v2933 = vpack.c.b16 %v2013, %v2005
    %v2934 = vpack.c.b16 %v2014, %v2006
    %v2935 = vpack.c.b16 %v2015, %v2007
    %v2936 = vpack.c.b16 %v2016, %v2008
    %v2937 = vpack.c.b16 %v2017, %v2009
    %v2938 = vpack.c.b16 %v2018, %v2010
    %v2939 = vpack.c.b16 %v2027, %v2019
    %v2940 = vpack.c.b16 %v2028, %v2020
    %v2941 = vpack.c.b16 %v2029, %v2021
    %v2942 = vpack.c.b16 %v2030, %v2022
    %v2943 = vpack.c.b16 %v2031, %v2023
    %v2944 = vpack.c.b16 %v2032, %v2024
    %v2945 = vpack.c.b16 %v2033, %v2025
    %v2946 = vpack.c.b16 %v2034, %v2026
    %v2947 = vpack.c.b16 %v2043, %v2035
    %v2948 = vpack.c.b16 %v2044, %v2036
    %v2949 = vpack.c.b16 %v2045, %v2037
    %v2950 = vpack.c.b16 %v2046, %v2038
    %v2951 = vpack.c.b16 %v2047, %v2039
    %v2952 = vpack.c.b16 %v2048, %v2040
    %v2953 = vpack.c.b16 %v2049, %v2041
    %v2954 = vpack.c.b16 %v2050, %v2042
    %v2955 = vpack.c.b16 %v2059, %v2051
    %v2956 = vpack.c.b16 %v2060, %v2052
    %v2957 = vpack.c.b16 %v2061, %v2053
    %v2958 = vpack.c.b16 %v2062, %v2054
    %v2959 = vpack.c.b16 %v2063, %v2055
    %v2960 = vpack.c.b16 %v2064, %v2056
    %v2961 = vpack.c.b16 %v2065, %v2057
    %v2962 = vpack.c.b16 %v2066, %v2058
    %v2963 = vpack.c.b16 %v2075, %v2067
    %v2964 = vpack.c.b16 %v2076, %v2068
    %v2965 = vpack.c.b16 %v2077, %v2069
    %v2966 = vpack.c.b16 %v2078, %v2070
    %v2967 = vpack.c.b16 %v2079, %v2071
    %v2968 = vpack.c.b16 %v2080, %v2072
    %v2969 = vpack.c.b16 %v2081, %v2073
    %v2970 = vpack.c.b16 %v2082, %v2074
    %v2971 = vpack.c.b16 %v2091, %v2083
    %v2972 = vpack.c.b16 %v2092, %v2084
    %v2973 = vpack.c.b16 %v2093, %v2085
    %v2974 = vpack.c.b16 %v2094, %v2086
    %v2975 = vpack.c.b16 %v2095, %v2087
    %v2976 = vpack.c.b16 %v2096, %v2088
    %v2977 = vpack.c.b16 %v2097, %v2089
    %v2978 = vpack.c.b16 %v2098, %v2090
    %v2979 = vpack.c.b16 %v2107, %v2099
    %v2980 = vpack.c.b16 %v2108, %v2100
    %v2981 = vpack.c.b16 %v2109, %v2101
    %v2982 = vpack.c.b16 %v2110, %v2102
    %v2983 = vpack.c.b16 %v2111, %v2103
    %v2984 = vpack.c.b16 %v2112, %v2104
    %v2985 = vpack.c.b16 %v2113, %v2105
    %v2986 = vpack.c.b16 %v2114, %v2106
    %v2987 = vpack.c.b16 %v2123, %v2115
    %v2988 = vpack.c.b16 %v2124, %v2116
    %v2989 = vpack.c.b16 %v2125, %v2117
    %v2990 = vpack.c.b16 %v2126, %v2118
    %v2991 = vpack.c.b16 %v2127, %v2119
    %v2992 = vpack.c.b16 %v2128, %v2120
    %v2993 = vpack.c.b16 %v2129, %v2121
    %v2994 = vpack.c.b16 %v2130, %v2122
    %v2995 = vpack.c.b16 %v2139, %v2131
    %v2996 = vpack.c.b16 %v2140, %v2132
    %v2997 = vpack.c.b16 %v2141, %v2133
    %v2998 = vpack.c.b16 %v2142, %v2134
    %v2999 = vpack.c.b16 %v2143, %v2135
    %v3000 = vpack.c.b16 %v2144, %v2136
    %v3001 = vpack.c.b16 %v2145, %v2137
    %v3002 = vpack.c.b16 %v2146, %v2138
    %v3003 = vpack.c.b16 %v2155, %v2147
    %v3004 = vpack.c.b16 %v2156, %v2148
    %v3005 = vpack.c.b16 %v2157, %v2149
    %v3006 = vpack.c.b16 %v2158, %v2150
    %v3007 = vpack.c.b16 %v2159, %v2151
    %v3008 = vpack.c.b16 %v2160, %v2152
    %v3009 = vpack.c.b16 %v2161, %v2153
    %v3010 = vpack.c.b16 %v2162, %v2154
    %v3011 = vpack.c.b16 %v2171, %v2163
    %v3012 = vpack.c.b16 %v2172, %v2164
    %v3013 = vpack.c.b16 %v2173, %v2165
    %v3014 = vpack.c.b16 %v2174, %v2166
    %v3015 = vpack.c.b16 %v2175, %v2167
    %v3016 = vpack.c.b16 %v2176, %v2168
    %v3017 = vpack.c.b16 %v2177, %v2169
    %v3018 = vpack.c.b16 %v2178, %v2170
    %v3019 = vpack.c.b16 %v2187, %v2179
    %v3020 = vpack.c.b16 %v2188, %v2180
    %v3021 = vpack.c.b16 %v2189, %v2181
    %v3022 = vpack.c.b16 %v2190, %v2182
    %v3023 = vpack.c.b16 %v2191, %v2183
    %v3024 = vpack.c.b16 %v2192, %v2184
    %v3025 = vpack.c.b16 %v2193, %v2185
    %v3026 = vpack.c.b16 %v2194, %v2186
    %v3027 = vpack.c.b16 %v2203, %v2195
    %v3028 = vpack.c.b16 %v2204, %v2196
    %v3029 = vpack.c.b16 %v2205, %v2197
    %v3030 = vpack.c.b16 %v2206, %v2198
    %v3031 = vpack.c.b16 %v2207, %v2199
    %v3032 = vpack.c.b16 %v2208, %v2200
    %v3033 = vpack.c.b16 %v2209, %v2201
    %v3034 = vpack.c.b16 %v2210, %v2202
    %v3035 = vpack.c.b16 %v2219, %v2211
    %v3036 = vpack.c.b16 %v2220, %v2212
    %v3037 = vpack.c.b16 %v2221, %v2213
    %v3038 = vpack.c.b16 %v2222, %v2214
    %v3039 = vpack.c.b16 %v2223, %v2215
    %v3040 = vpack.c.b16 %v2224, %v2216
    %v3041 = vpack.c.b16 %v2225, %v2217
    %v3042 = vpack.c.b16 %v2226, %v2218
    %v3043 = vpack.c.b16 %v2235, %v2227
    %v3044 = vpack.c.b16 %v2236, %v2228
    %v3045 = vpack.c.b16 %v2237, %v2229
    %v3046 = vpack.c.b16 %v2238, %v2230
    %v3047 = vpack.c.b16 %v2239, %v2231
    %v3048 = vpack.c.b16 %v2240, %v2232
    %v3049 = vpack.c.b16 %v2241, %v2233
    %v3050 = vpack.c.b16 %v2242, %v2234
    %v3051 = vpack.c.b16 %v2251, %v2243
    %v3052 = vpack.c.b16 %v2252, %v2244
    %v3053 = vpack.c.b16 %v2253, %v2245
    %v3054 = vpack.c.b16 %v2254, %v2246
    %v3055 = vpack.c.b16 %v2255, %v2247
    %v3056 = vpack.c.b16 %v2256, %v2248
    %v3057 = vpack.c.b16 %v2257, %v2249
    %v3058 = vpack.c.b16 %v2258, %v2250
    %v3059 = vpack.c.b16 %v2267, %v2259
    %v3060 = vpack.c.b16 %v2268, %v2260
    %v3061 = vpack.c.b16 %v2269, %v2261
    %v3062 = vpack.c.b16 %v2270, %v2262
    %v3063 = vpack.c.b16 %v2271, %v2263
    %v3064 = vpack.c.b16 %v2272, %v2264
    %v3065 = vpack.c.b16 %v2273, %v2265
    %v3066 = vpack.c.b16 %v2274, %v2266
    %v3067 = vpack.c.b16 %v2283, %v2275
    %v3068 = vpack.c.b16 %v2284, %v2276
    %v3069 = vpack.c.b16 %v2285, %v2277
    %v3070 = vpack.c.b16 %v2286, %v2278
    %v3071 = vpack.c.b16 %v2287, %v2279
    %v3072 = vpack.c.b16 %v2288, %v2280
    %v3073 = vpack.c.b16 %v2289, %v2281
    %v3074 = vpack.c.b16 %v2290, %v2282
    %v3075 = vpack.c.b16 %v2299, %v2291
    %v3076 = vpack.c.b16 %v2300, %v2292
    %v3077 = vpack.c.b16 %v2301, %v2293
    %v3078 = vpack.c.b16 %v2302, %v2294
    %v3079 = vpack.c.b16 %v2303, %v2295
    %v3080 = vpack.c.b16 %v2304, %v2296
    %v3081 = vpack.c.b16 %v2305, %v2297
    %v3082 = vpack.c.b16 %v2306, %v2298
    %v3083 = vpack.c.b16 %v2315, %v2307
    %v3084 = vpack.c.b16 %v2316, %v2308
    %v3085 = vpack.c.b16 %v2317, %v2309
    %v3086 = vpack.c.b16 %v2318, %v2310
    %v3087 = vpack.c.b16 %v2319, %v2311
    %v3088 = vpack.c.b16 %v2320, %v2312
    %v3089 = vpack.c.b16 %v2321, %v2313
    %v3090 = vpack.c.b16 %v2322, %v2314
    %v3091 = vpack.c.b16 %v2331, %v2323
    %v3092 = vpack.c.b16 %v2332, %v2324
    %v3093 = vpack.c.b16 %v2333, %v2325
    %v3094 = vpack.c.b16 %v2334, %v2326
    %v3095 = vpack.c.b16 %v2335, %v2327
    %v3096 = vpack.c.b16 %v2336, %v2328
    %v3097 = vpack.c.b16 %v2337, %v2329
    %v3098 = vpack.c.b16 %v2338, %v2330
    %v3099 = vpack.c.b16 %v2347, %v2339
    %v3100 = vpack.c.b16 %v2348, %v2340
    %v3101 = vpack.c.b16 %v2349, %v2341
    %v3102 = vpack.c.b16 %v2350, %v2342
    %v3103 = vpack.c.b16 %v2351, %v2343
    %v3104 = vpack.c.b16 %v2352, %v2344
    %v3105 = vpack.c.b16 %v2353, %v2345
    %v3106 = vpack.c.b16 %v2354, %v2346
    %v3107 = vpack.c.b16 %v2363, %v2355
    %v3108 = vpack.c.b16 %v2364, %v2356
    %v3109 = vpack.c.b16 %v2365, %v2357
    %v3110 = vpack.c.b16 %v2366, %v2358
    %v3111 = vpack.c.b16 %v2367, %v2359
    %v3112 = vpack.c.b16 %v2368, %v2360
    %v3113 = vpack.c.b16 %v2369, %v2361
    %v3114 = vpack.c.b16 %v2370, %v2362
    %v3115 = vpack.c.b16 %v2379, %v2371
    %v3116 = vpack.c.b16 %v2380, %v2372
    %v3117 = vpack.c.b16 %v2381, %v2373
    %v3118 = vpack.c.b16 %v2382, %v2374
    %v3119 = vpack.c.b16 %v2383, %v2375
    %v3120 = vpack.c.b16 %v2384, %v2376
    %v3121 = vpack.c.b16 %v2385, %v2377
    %v3122 = vpack.c.b16 %v2386, %v2378
    %v3123 = vpack.c.b16 %v2395, %v2387
    %v3124 = vpack.c.b16 %v2396, %v2388
    %v3125 = vpack.c.b16 %v2397, %v2389
    %v3126 = vpack.c.b16 %v2398, %v2390
    %v3127 = vpack.c.b16 %v2399, %v2391
    %v3128 = vpack.c.b16 %v2400, %v2392
    %v3129 = vpack.c.b16 %v2401, %v2393
    %v3130 = vpack.c.b16 %v2402, %v2394
    %v3131 = vpack.c.b16 %v2411, %v2403
    %v3132 = vpack.c.b16 %v2412, %v2404
    %v3133 = vpack.c.b16 %v2413, %v2405
    %v3134 = vpack.c.b16 %v2414, %v2406
    %v3135 = vpack.c.b16 %v2415, %v2407
    %v3136 = vpack.c.b16 %v2416, %v2408
    %v3137 = vpack.c.b16 %v2417, %v2409
    %v3138 = vpack.c.b16 %v2418, %v2410
    %v3139 = vpack.c.b16 %v2427, %v2419
    %v3140 = vpack.c.b16 %v2428, %v2420
    %v3141 = vpack.c.b16 %v2429, %v2421
    %v3142 = vpack.c.b16 %v2430, %v2422
    %v3143 = vpack.c.b16 %v2431, %v2423
    %v3144 = vpack.c.b16 %v2432, %v2424
    %v3145 = vpack.c.b16 %v2433, %v2425
    %v3146 = vpack.c.b16 %v2434, %v2426
    %v3147 = vpack.c.b16 %v2443, %v2435
    %v3148 = vpack.c.b16 %v2444, %v2436
    %v3149 = vpack.c.b16 %v2445, %v2437
    %v3150 = vpack.c.b16 %v2446, %v2438
    %v3151 = vpack.c.b16 %v2447, %v2439
    %v3152 = vpack.c.b16 %v2448, %v2440
    %v3153 = vpack.c.b16 %v2449, %v2441
    %v3154 = vpack.c.b16 %v2450, %v2442
    %v3155 = vpack.c.b16 %v2459, %v2451
    %v3156 = vpack.c.b16 %v2460, %v2452
    %v3157 = vpack.c.b16 %v2461, %v2453
    %v3158 = vpack.c.b16 %v2462, %v2454
    %v3159 = vpack.c.b16 %v2463, %v2455
    %v3160 = vpack.c.b16 %v2464, %v2456
    %v3161 = vpack.c.b16 %v2465, %v2457
    %v3162 = vpack.c.b16 %v2466, %v2458
    %v3163 = vpack.c.b16 %v2475, %v2467
    %v3164 = vpack.c.b16 %v2476, %v2468
    %v3165 = vpack.c.b16 %v2477, %v2469
    %v3166 = vpack.c.b16 %v2478, %v2470
    %v3167 = vpack.c.b16 %v2479, %v2471
    %v3168 = vpack.c.b16 %v2480, %v2472
    %v3169 = vpack.c.b16 %v2481, %v2473
    %v3170 = vpack.c.b16 %v2482, %v2474
    %v3171 = vpack.c.b16 %v2491, %v2483
    %v3172 = vpack.c.b16 %v2492, %v2484
    %v3173 = vpack.c.b16 %v2493, %v2485
    %v3174 = vpack.c.b16 %v2494, %v2486
    %v3175 = vpack.c.b16 %v2495, %v2487
    %v3176 = vpack.c.b16 %v2496, %v2488
    %v3177 = vpack.c.b16 %v2497, %v2489
    %v3178 = vpack.c.b16 %v2498, %v2490
    %v3179 = vpack.c.b16 %v2507, %v2499
    %v3180 = vpack.c.b16 %v2508, %v2500
    %v3181 = vpack.c.b16 %v2509, %v2501
    %v3182 = vpack.c.b16 %v2510, %v2502
    %v3183 = vpack.c.b16 %v2511, %v2503
    %v3184 = vpack.c.b16 %v2512, %v2504
    %v3185 = vpack.c.b16 %v2513, %v2505
    %v3186 = vpack.c.b16 %v2514, %v2506
    %v3187 = vpack.c.b16 %v2523, %v2515
    %v3188 = vpack.c.b16 %v2524, %v2516
    %v3189 = vpack.c.b16 %v2525, %v2517
    %v3190 = vpack.c.b16 %v2526, %v2518
    %v3191 = vpack.c.b16 %v2527, %v2519
    %v3192 = vpack.c.b16 %v2528, %v2520
    %v3193 = vpack.c.b16 %v2529, %v2521
    %v3194 = vpack.c.b16 %v2530, %v2522
    %v3195 = vpack.c.b16 %v2539, %v2531
    %v3196 = vpack.c.b16 %v2540, %v2532
    %v3197 = vpack.c.b16 %v2541, %v2533
    %v3198 = vpack.c.b16 %v2542, %v2534
    %v3199 = vpack.c.b16 %v2543, %v2535
    %v3200 = vpack.c.b16 %v2544, %v2536
    %v3201 = vpack.c.b16 %v2545, %v2537
    %v3202 = vpack.c.b16 %v2546, %v2538
    %v3203 = vpack.c.b16 %v2555, %v2547
    %v3204 = vpack.c.b16 %v2556, %v2548
    %v3205 = vpack.c.b16 %v2557, %v2549
    %v3206 = vpack.c.b16 %v2558, %v2550
    %v3207 = vpack.c.b16 %v2559, %v2551
    %v3208 = vpack.c.b16 %v2560, %v2552
    %v3209 = vpack.c.b16 %v2561, %v2553
    %v3210 = vpack.c.b16 %v2562, %v2554
    %v3211 = vpack.c.b16 %v2571, %v2563
    %v3212 = vpack.c.b16 %v2572, %v2564
    %v3213 = vpack.c.b16 %v2573, %v2565
    %v3214 = vpack.c.b16 %v2574, %v2566
    %v3215 = vpack.c.b16 %v2575, %v2567
    %v3216 = vpack.c.b16 %v2576, %v2568
    %v3217 = vpack.c.b16 %v2577, %v2569
    %v3218 = vpack.c.b16 %v2578, %v2570
    %v3219 = vpack.c.b16 %v2587, %v2579
    %v3220 = vpack.c.b16 %v2588, %v2580
    %v3221 = vpack.c.b16 %v2589, %v2581
    %v3222 = vpack.c.b16 %v2590, %v2582
    %v3223 = vpack.c.b16 %v2591, %v2583
    %v3224 = vpack.c.b16 %v2592, %v2584
    %v3225 = vpack.c.b16 %v2593, %v2585
    %v3226 = vpack.c.b16 %v2594, %v2586
    %v3227 = vpack.c.b16 %v2603, %v2595
    %v3228 = vpack.c.b16 %v2604, %v2596
    %v3229 = vpack.c.b16 %v2605, %v2597
    %v3230 = vpack.c.b16 %v2606, %v2598
    %v3231 = vpack.c.b16 %v2607, %v2599
    %v3232 = vpack.c.b16 %v2608, %v2600
    %v3233 = vpack.c.b16 %v2609, %v2601
    %v3234 = vpack.c.b16 %v2610, %v2602
    %v3235 = vpack.c.b16 %v2619, %v2611
    %v3236 = vpack.c.b16 %v2620, %v2612
    %v3237 = vpack.c.b16 %v2621, %v2613
    %v3238 = vpack.c.b16 %v2622, %v2614
    %v3239 = vpack.c.b16 %v2623, %v2615
    %v3240 = vpack.c.b16 %v2624, %v2616
    %v3241 = vpack.c.b16 %v2625, %v2617
    %v3242 = vpack.c.b16 %v2626, %v2618
    %v3243 = vpack.c.b16 %v2635, %v2627
    %v3244 = vpack.c.b16 %v2636, %v2628
    %v3245 = vpack.c.b16 %v2637, %v2629
    %v3246 = vpack.c.b16 %v2638, %v2630
    %v3247 = vpack.c.b16 %v2639, %v2631
    %v3248 = vpack.c.b16 %v2640, %v2632
    %v3249 = vpack.c.b16 %v2641, %v2633
    %v3250 = vpack.c.b16 %v2642, %v2634
    %v3251 = vpack.c.b16 %v2651, %v2643
    %v3252 = vpack.c.b16 %v2652, %v2644
    %v3253 = vpack.c.b16 %v2653, %v2645
    %v3254 = vpack.c.b16 %v2654, %v2646
    %v3255 = vpack.c.b16 %v2655, %v2647
    %v3256 = vpack.c.b16 %v2656, %v2648
    %v3257 = vpack.c.b16 %v2657, %v2649
    %v3258 = vpack.c.b16 %v2658, %v2650
    %v3259 = vpack.c.b16 %v2667, %v2659
    %v3260 = vpack.c.b16 %v2668, %v2660
    %v3261 = vpack.c.b16 %v2669, %v2661
    %v3262 = vpack.c.b16 %v2670, %v2662
    %v3263 = vpack.c.b16 %v2671, %v2663
    %v3264 = vpack.c.b16 %v2672, %v2664
    %v3265 = vpack.c.b16 %v2673, %v2665
    %v3266 = vpack.c.b16 %v2674, %v2666
    %v3267 = vpack.c.b16 %v2683, %v2675
    %v3268 = vpack.c.b16 %v2684, %v2676
    %v3269 = vpack.c.b16 %v2685, %v2677
    %v3270 = vpack.c.b16 %v2686, %v2678
    %v3271 = vpack.c.b16 %v2687, %v2679
    %v3272 = vpack.c.b16 %v2688, %v2680
    %v3273 = vpack.c.b16 %v2689, %v2681
    %v3274 = vpack.c.b16 %v2690, %v2682
    %v3275 = vpack.c.b16 %v2699, %v2691
    %v3276 = vpack.c.b16 %v2700, %v2692
    %v3277 = vpack.c.b16 %v2701, %v2693
    %v3278 = vpack.c.b16 %v2702, %v2694
    %v3279 = vpack.c.b16 %v2703, %v2695
    %v3280 = vpack.c.b16 %v2704, %v2696
    %v3281 = vpack.c.b16 %v2705, %v2697
    %v3282 = vpack.c.b16 %v2706, %v2698
    %v3283 = vpack.c.b16 %v2715, %v2707
    %v3284 = vpack.c.b16 %v2716, %v2708
    %v3285 = vpack.c.b16 %v2717, %v2709
    %v3286 = vpack.c.b16 %v2718, %v2710
    %v3287 = vpack.c.b16 %v2719, %v2711
    %v3288 = vpack.c.b16 %v2720, %v2712
    %v3289 = vpack.c.b16 %v2721, %v2713
    %v3290 = vpack.c.b16 %v2722, %v2714
    %v3291 = vpack.c.b16 %v2731, %v2723
    %v3292 = vpack.c.b16 %v2732, %v2724
    %v3293 = vpack.c.b16 %v2733, %v2725
    %v3294 = vpack.c.b16 %v2734, %v2726
    %v3295 = vpack.c.b16 %v2735, %v2727
    %v3296 = vpack.c.b16 %v2736, %v2728
    %v3297 = vpack.c.b16 %v2737, %v2729
    %v3298 = vpack.c.b16 %v2738, %v2730
    %v3299 = vpack.c.b16 %v2747, %v2739
    %v3300 = vpack.c.b16 %v2748, %v2740
    %v3301 = vpack.c.b16 %v2749, %v2741
    %v3302 = vpack.c.b16 %v2750, %v2742
    %v3303 = vpack.c.b16 %v2751, %v2743
    %v3304 = vpack.c.b16 %v2752, %v2744
    %v3305 = vpack.c.b16 %v2753, %v2745
    %v3306 = vpack.c.b16 %v2754, %v2746
    %v3307 = vpack.c.b16 %v2763, %v2755
    %v3308 = vpack.c.b16 %v2764, %v2756
    %v3309 = vpack.c.b16 %v2765, %v2757
    %v3310 = vpack.c.b16 %v2766, %v2758
    %v3311 = vpack.c.b16 %v2767, %v2759
    %v3312 = vpack.c.b16 %v2768, %v2760
    %v3313 = vpack.c.b16 %v2769, %v2761
    %v3314 = vpack.c.b16 %v2770, %v2762
    %v3315 = vpack.c.b16 %v2779, %v2771
    %v3316 = vpack.c.b16 %v2780, %v2772
    %v3317 = vpack.c.b16 %v2781, %v2773
    %v3318 = vpack.c.b16 %v2782, %v2774
    %v3319 = vpack.c.b16 %v2783, %v2775
    %v3320 = vpack.c.b16 %v2784, %v2776
    %v3321 = vpack.c.b16 %v2785, %v2777
    %v3322 = vpack.c.b16 %v2786, %v2778
    %v3323 = vpack.c.b16 %v2795, %v2787
    %v3324 = vpack.c.b16 %v2796, %v2788
    %v3325 = vpack.c.b16 %v2797, %v2789
    %v3326 = vpack.c.b16 %v2798, %v2790
    %v3327 = vpack.c.b16 %v2799, %v2791
    %v3328 = vpack.c.b16 %v2800, %v2792
    %v3329 = vpack.c.b16 %v2801, %v2793
    %v3330 = vpack.c.b16 %v2802, %v2794
    %v3331 = vpack.c.b16 %v2811, %v2803
    %v3332 = vpack.c.b16 %v2812, %v2804
    %v3333 = vpack.c.b16 %v2813, %v2805
    %v3334 = vpack.c.b16 %v2814, %v2806
    %v3335 = vpack.c.b16 %v2815, %v2807
    %v3336 = vpack.c.b16 %v2816, %v2808
    %v3337 = vpack.c.b16 %v2817, %v2809
    %v3338 = vpack.c.b16 %v2818, %v2810
    %v3339 = vpack.c.b16 %v2827, %v2819
    %v3340 = vpack.c.b16 %v2828, %v2820
    %v3341 = vpack.c.b16 %v2829, %v2821
    %v3342 = vpack.c.b16 %v2830, %v2822
    %v3343 = vpack.c.b16 %v2831, %v2823
    %v3344 = vpack.c.b16 %v2832, %v2824
    %v3345 = vpack.c.b16 %v2833, %v2825
    %v3346 = vpack.c.b16 %v2834, %v2826
    %3859 = vmatprep.subr.bf16.mxu0 %v2836
    %3860 = vmatpush1.bf16.msra.mxu0 %v2835
    %3861 = vmatprep.subr.bf16.mxu0 %v2844
    %3862 = vmatpush1.bf16.msra.mxu0 %v2843
    %3863 = vmatprep.subr.bf16.mxu0 %v2852
    %3864 = vmatpush1.bf16.msra.mxu0 %v2851
    %3865 = vmatprep.subr.bf16.mxu0 %v2860
    %3866 = vmatpush1.bf16.msra.mxu0 %v2859
    %3867 = vmatprep.subr.bf16.mxu0 %v2868
    %3868 = vmatpush1.bf16.msra.mxu0 %v2867
    %3869 = vmatprep.subr.bf16.mxu0 %v2876
    %3870 = vmatpush1.bf16.msra.mxu0 %v2875
    %3871 = vmatprep.subr.bf16.mxu0 %v2884
    %3872 = vmatpush1.bf16.msra.mxu0 %v2883
    %3873 = vmatprep.subr.bf16.mxu0 %v2892
    %3874 = vmatpush1.bf16.msra.mxu0 %v2891
    %3875 = vmatprep.subr.bf16.mxu0 %v2900
    %3876 = vmatpush1.bf16.msra.mxu0 %v2899
    %3877 = vmatprep.subr.bf16.mxu0 %v2908
    %3878 = vmatpush1.bf16.msra.mxu0 %v2907
    %3879 = vmatprep.subr.bf16.mxu0 %v2916
    %3880 = vmatpush1.bf16.msra.mxu0 %v2915
    %3881 = vmatprep.subr.bf16.mxu0 %v2924
    %3882 = vmatpush1.bf16.msra.mxu0 %v2923
    %3883 = vmatprep.subr.bf16.mxu0 %v2932
    %3884 = vmatpush1.bf16.msra.mxu0 %v2931
    %3885 = vmatprep.subr.bf16.mxu0 %v2940
    %3886 = vmatpush1.bf16.msra.mxu0 %v2939
    %3887 = vmatprep.subr.bf16.mxu0 %v2948
    %3888 = vmatpush1.bf16.msra.mxu0 %v2947
    %3889 = vmatprep.subr.bf16.mxu0 %v2956
    %3890 = vmatpush1.bf16.msra.mxu0 %v2955
    %3891 = vmatprep.mubr.bf16.mxu0 %v738
    %3892 = vmatmul.mubr.bf16.gmra.mrb[0].mxu0 %v737
    %v3893 = vpop.f32.mrb[0].mxu0
    %v3894 = vadd.f32 %v1262, %v3893
    %v3895 = vpop.f32.mrb[0].mxu0
    %v3896 = vadd.f32 %v1266, %v3895
    %v3897 = vpop.f32.mrb[0].mxu0
    %v3898 = vpop.f32.mrb[0].mxu0
    %3899 = vdwg.mxu0
    %3900 = vmatprep.subr.bf16.mxu0 %v2964
    %3901 = vmatpush1.bf16.msra.mxu0 %v2963
    %3902 = vmatprep.subr.bf16.mxu0 %v2972
    %3903 = vmatpush1.bf16.msra.mxu0 %v2971
    %3904 = vmatprep.subr.bf16.mxu0 %v2980
    %3905 = vmatpush1.bf16.msra.mxu0 %v2979
    %3906 = vmatprep.subr.bf16.mxu0 %v2988
    %3907 = vmatpush1.bf16.msra.mxu0 %v2987
    %3908 = vmatprep.subr.bf16.mxu0 %v2996
    %3909 = vmatpush1.bf16.msra.mxu0 %v2995
    %3910 = vmatprep.subr.bf16.mxu0 %v3004
    %3911 = vmatpush1.bf16.msra.mxu0 %v3003
    %3912 = vmatprep.subr.bf16.mxu0 %v3012
    %3913 = vmatpush1.bf16.msra.mxu0 %v3011
    %3914 = vmatprep.subr.bf16.mxu0 %v3020
    %3915 = vmatpush1.bf16.msra.mxu0 %v3019
    %3916 = vmatprep.subr.bf16.mxu0 %v3028
    %3917 = vmatpush1.bf16.msra.mxu0 %v3027
    %3918 = vmatprep.subr.bf16.mxu0 %v3036
    %3919 = vmatpush1.bf16.msra.mxu0 %v3035
    %3920 = vmatprep.subr.bf16.mxu0 %v3044
    %3921 = vmatpush1.bf16.msra.mxu0 %v3043
    %3922 = vmatprep.subr.bf16.mxu0 %v3052
    %3923 = vmatpush1.bf16.msra.mxu0 %v3051
    %3924 = vmatprep.subr.bf16.mxu0 %v3060
    %3925 = vmatpush1.bf16.msra.mxu0 %v3059
    %3926 = vmatprep.subr.bf16.mxu0 %v3068
    %3927 = vmatpush1.bf16.msra.mxu0 %v3067
    %3928 = vmatprep.subr.bf16.mxu0 %v3076
    %3929 = vmatpush1.bf16.msra.mxu0 %v3075
    %3930 = vmatprep.subr.bf16.mxu0 %v3084
    %3931 = vmatpush1.bf16.msra.mxu0 %v3083
    %3932 = vmatprep.mubr.bf16.mxu0 %v740
    %3933 = vmatmul.mubr.bf16.gmra.mrb[0].mxu0 %v739
    %v3934 = vpop.f32.mrb[0].mxu0
    %v3935 = vadd.f32 %v3894, %v3934
    %v3936 = vpop.f32.mrb[0].mxu0
    %v3937 = vadd.f32 %v3896, %v3936
    %v3938 = vpop.f32.mrb[0].mxu0
    %v3939 = vpop.f32.mrb[0].mxu0
    %3940 = vdwg.mxu0
    %3941 = vmatprep.subr.bf16.mxu0 %v3092
    %3942 = vmatpush1.bf16.msra.mxu0 %v3091
    %3943 = vmatprep.subr.bf16.mxu0 %v3100
    %3944 = vmatpush1.bf16.msra.mxu0 %v3099
    %3945 = vmatprep.subr.bf16.mxu0 %v3108
    %3946 = vmatpush1.bf16.msra.mxu0 %v3107
    %3947 = vmatprep.subr.bf16.mxu0 %v3116
    %3948 = vmatpush1.bf16.msra.mxu0 %v3115
    %3949 = vmatprep.subr.bf16.mxu0 %v3124
    %3950 = vmatpush1.bf16.msra.mxu0 %v3123
    %3951 = vmatprep.subr.bf16.mxu0 %v3132
    %3952 = vmatpush1.bf16.msra.mxu0 %v3131
    %3953 = vmatprep.subr.bf16.mxu0 %v3140
    %3954 = vmatpush1.bf16.msra.mxu0 %v3139
    %3955 = vmatprep.subr.bf16.mxu0 %v3148
    %3956 = vmatpush1.bf16.msra.mxu0 %v3147
    %3957 = vmatprep.subr.bf16.mxu0 %v3156
    %3958 = vmatpush1.bf16.msra.mxu0 %v3155
    %3959 = vmatprep.subr.bf16.mxu0 %v3164
    %3960 = vmatpush1.bf16.msra.mxu0 %v3163
    %3961 = vmatprep.subr.bf16.mxu0 %v3172
    %3962 = vmatpush1.bf16.msra.mxu0 %v3171
    %3963 = vmatprep.subr.bf16.mxu0 %v3180
    %3964 = vmatpush1.bf16.msra.mxu0 %v3179
    %3965 = vmatprep.subr.bf16.mxu0 %v3188
    %3966 = vmatpush1.bf16.msra.mxu0 %v3187
    %3967 = vmatprep.subr.bf16.mxu0 %v3196
    %3968 = vmatpush1.bf16.msra.mxu0 %v3195
    %3969 = vmatprep.subr.bf16.mxu0 %v3204
    %3970 = vmatpush1.bf16.msra.mxu0 %v3203
    %3971 = vmatprep.subr.bf16.mxu0 %v3212
    %3972 = vmatpush1.bf16.msra.mxu0 %v3211
    %3973 = vmatprep.mubr.bf16.mxu0 %v742
    %3974 = vmatmul.mubr.bf16.gmra.mrb[0].mxu0 %v741
    %v3975 = vpop.f32.mrb[0].mxu0
    %v3976 = vadd.f32 %v3935, %v3975
    %v3977 = vpop.f32.mrb[0].mxu0
    %v3978 = vadd.f32 %v3937, %v3977
    %v3979 = vpop.f32.mrb[0].mxu0
    %v3980 = vpop.f32.mrb[0].mxu0
    %3981 = vdwg.mxu0
    %3982 = vmatprep.subr.bf16.mxu0 %v3220
    %3983 = vmatpush1.bf16.msra.mxu0 %v3219
    %3984 = vmatprep.subr.bf16.mxu0 %v3228
    %3985 = vmatpush1.bf16.msra.mxu0 %v3227
    %3986 = vmatprep.subr.bf16.mxu0 %v3236
    %3987 = vmatpush1.bf16.msra.mxu0 %v3235
    %3988 = vmatprep.subr.bf16.mxu0 %v3244
    %3989 = vmatpush1.bf16.msra.mxu0 %v3243
    %3990 = vmatprep.subr.bf16.mxu0 %v3252
    %3991 = vmatpush1.bf16.msra.mxu0 %v3251
    %3992 = vmatprep.subr.bf16.mxu0 %v3260
    %3993 = vmatpush1.bf16.msra.mxu0 %v3259
    %3994 = vmatprep.subr.bf16.mxu0 %v3268
    %3995 = vmatpush1.bf16.msra.mxu0 %v3267
    %3996 = vmatprep.subr.bf16.mxu0 %v3276
    %3997 = vmatpush1.bf16.msra.mxu0 %v3275
    %3998 = vmatprep.subr.bf16.mxu0 %v3284
    %3999 = vmatpush1.bf16.msra.mxu0 %v3283
    %4000 = vmatprep.subr.bf16.mxu0 %v3292
    %4001 = vmatpush1.bf16.msra.mxu0 %v3291
    %4002 = vmatprep.subr.bf16.mxu0 %v3300
    %4003 = vmatpush1.bf16.msra.mxu0 %v3299
    %4004 = vmatprep.subr.bf16.mxu0 %v3308
    %4005 = vmatpush1.bf16.msra.mxu0 %v3307
    %4006 = vmatprep.subr.bf16.mxu0 %v3316
    %4007 = vmatpush1.bf16.msra.mxu0 %v3315
    %4008 = vmatprep.subr.bf16.mxu0 %v3324
    %4009 = vmatpush1.bf16.msra.mxu0 %v3323
    %4010 = vmatprep.subr.bf16.mxu0 %v3332
    %4011 = vmatpush1.bf16.msra.mxu0 %v3331
    %4012 = vmatprep.subr.bf16.mxu0 %v3340
    %4013 = vmatpush1.bf16.msra.mxu0 %v3339
    %4014 = vmatprep.mubr.bf16.mxu0 %v744
    %4015 = vmatmul.mubr.bf16.gmra.mrb[0].mxu0 %v743
    %v4016 = vpop.f32.mrb[0].mxu0
    %v4017 = vadd.f32 %v3976, %v4016
    %v4018 = vpop.f32.mrb[0].mxu0
    %v4019 = vadd.f32 %v3978, %v4018
    %v4020 = vpop.f32.mrb[0].mxu0
    %v4021 = vpop.f32.mrb[0].mxu0
    %4022 = vdwg.mxu0
    %4023 = vmatprep.subr.bf16.mxu0 %v2838
    %4024 = vmatpush1.bf16.msra.mxu0 %v2837
    %4025 = vmatprep.subr.bf16.mxu0 %v2846
    %4026 = vmatpush1.bf16.msra.mxu0 %v2845
    %4027 = vmatprep.subr.bf16.mxu0 %v2854
    %4028 = vmatpush1.bf16.msra.mxu0 %v2853
    %4029 = vmatprep.subr.bf16.mxu0 %v2862
    %4030 = vmatpush1.bf16.msra.mxu0 %v2861
    %4031 = vmatprep.subr.bf16.mxu0 %v2870
    %4032 = vmatpush1.bf16.msra.mxu0 %v2869
    %4033 = vmatprep.subr.bf16.mxu0 %v2878
    %4034 = vmatpush1.bf16.msra.mxu0 %v2877
    %4035 = vmatprep.subr.bf16.mxu0 %v2886
    %4036 = vmatpush1.bf16.msra.mxu0 %v2885
    %4037 = vmatprep.subr.bf16.mxu0 %v2894
    %4038 = vmatpush1.bf16.msra.mxu0 %v2893
    %4039 = vmatprep.subr.bf16.mxu0 %v2902
    %4040 = vmatpush1.bf16.msra.mxu0 %v2901
    %4041 = vmatprep.subr.bf16.mxu0 %v2910
    %4042 = vmatpush1.bf16.msra.mxu0 %v2909
    %4043 = vmatprep.subr.bf16.mxu0 %v2918
    %4044 = vmatpush1.bf16.msra.mxu0 %v2917
    %4045 = vmatprep.subr.bf16.mxu0 %v2926
    %4046 = vmatpush1.bf16.msra.mxu0 %v2925
    %4047 = vmatprep.subr.bf16.mxu0 %v2934
    %4048 = vmatpush1.bf16.msra.mxu0 %v2933
    %4049 = vmatprep.subr.bf16.mxu0 %v2942
    %4050 = vmatpush1.bf16.msra.mxu0 %v2941
    %4051 = vmatprep.subr.bf16.mxu0 %v2950
    %4052 = vmatpush1.bf16.msra.mxu0 %v2949
    %4053 = vmatprep.subr.bf16.mxu0 %v2958
    %4054 = vmatpush1.bf16.msra.mxu0 %v2957
    %4055 = vmatprep.mubr.bf16.mxu0 %v738
    %4056 = vmatmul.mubr.bf16.gmra.mrb[0].mxu0 %v737
    %v4057 = vpop.f32.mrb[0].mxu0
    %v4058 = vadd.f32 %v1270, %v4057
    %v4059 = vpop.f32.mrb[0].mxu0
    %v4060 = vadd.f32 %v1274, %v4059
    %v4061 = vpop.f32.mrb[0].mxu0
    %v4062 = vpop.f32.mrb[0].mxu0
    %4063 = vdwg.mxu0
    %4064 = vmatprep.subr.bf16.mxu0 %v2966
    %4065 = vmatpush1.bf16.msra.mxu0 %v2965
    %4066 = vmatprep.subr.bf16.mxu0 %v2974
    %4067 = vmatpush1.bf16.msra.mxu0 %v2973
    %4068 = vmatprep.subr.bf16.mxu0 %v2982
    %4069 = vmatpush1.bf16.msra.mxu0 %v2981
    %4070 = vmatprep.subr.bf16.mxu0 %v2990
    %4071 = vmatpush1.bf16.msra.mxu0 %v2989
    %4072 = vmatprep.subr.bf16.mxu0 %v2998
    %4073 = vmatpush1.bf16.msra.mxu0 %v2997
    %4074 = vmatprep.subr.bf16.mxu0 %v3006
    %4075 = vmatpush1.bf16.msra.mxu0 %v3005
    %4076 = vmatprep.subr.bf16.mxu0 %v3014
    %4077 = vmatpush1.bf16.msra.mxu0 %v3013
    %4078 = vmatprep.subr.bf16.mxu0 %v3022
    %4079 = vmatpush1.bf16.msra.mxu0 %v3021
    %4080 = vmatprep.subr.bf16.mxu0 %v3030
    %4081 = vmatpush1.bf16.msra.mxu0 %v3029
    %4082 = vmatprep.subr.bf16.mxu0 %v3038
    %4083 = vmatpush1.bf16.msra.mxu0 %v3037
    %4084 = vmatprep.subr.bf16.mxu0 %v3046
    %4085 = vmatpush1.bf16.msra.mxu0 %v3045
    %4086 = vmatprep.subr.bf16.mxu0 %v3054
    %4087 = vmatpush1.bf16.msra.mxu0 %v3053
    %4088 = vmatprep.subr.bf16.mxu0 %v3062
    %4089 = vmatpush1.bf16.msra.mxu0 %v3061
    %4090 = vmatprep.subr.bf16.mxu0 %v3070
    %4091 = vmatpush1.bf16.msra.mxu0 %v3069
    %4092 = vmatprep.subr.bf16.mxu0 %v3078
    %4093 = vmatpush1.bf16.msra.mxu0 %v3077
    %4094 = vmatprep.subr.bf16.mxu0 %v3086
    %4095 = vmatpush1.bf16.msra.mxu0 %v3085
    %4096 = vmatprep.mubr.bf16.mxu0 %v740
    %4097 = vmatmul.mubr.bf16.gmra.mrb[0].mxu0 %v739
    %v4098 = vpop.f32.mrb[0].mxu0
    %v4099 = vadd.f32 %v4058, %v4098
    %v4100 = vpop.f32.mrb[0].mxu0
    %v4101 = vadd.f32 %v4060, %v4100
    %v4102 = vpop.f32.mrb[0].mxu0
    %v4103 = vpop.f32.mrb[0].mxu0
    %4104 = vdwg.mxu0
    %4105 = vmatprep.subr.bf16.mxu0 %v3094
    %4106 = vmatpush1.bf16.msra.mxu0 %v3093
    %4107 = vmatprep.subr.bf16.mxu0 %v3102
    %4108 = vmatpush1.bf16.msra.mxu0 %v3101
    %4109 = vmatprep.subr.bf16.mxu0 %v3110
    %4110 = vmatpush1.bf16.msra.mxu0 %v3109
    %4111 = vmatprep.subr.bf16.mxu0 %v3118
    %4112 = vmatpush1.bf16.msra.mxu0 %v3117
    %4113 = vmatprep.subr.bf16.mxu0 %v3126
    %4114 = vmatpush1.bf16.msra.mxu0 %v3125
    %4115 = vmatprep.subr.bf16.mxu0 %v3134
    %4116 = vmatpush1.bf16.msra.mxu0 %v3133
    %4117 = vmatprep.subr.bf16.mxu0 %v3142
    %4118 = vmatpush1.bf16.msra.mxu0 %v3141
    %4119 = vmatprep.subr.bf16.mxu0 %v3150
    %4120 = vmatpush1.bf16.msra.mxu0 %v3149
    %4121 = vmatprep.subr.bf16.mxu0 %v3158
    %4122 = vmatpush1.bf16.msra.mxu0 %v3157
    %4123 = vmatprep.subr.bf16.mxu0 %v3166
    %4124 = vmatpush1.bf16.msra.mxu0 %v3165
    %4125 = vmatprep.subr.bf16.mxu0 %v3174
    %4126 = vmatpush1.bf16.msra.mxu0 %v3173
    %4127 = vmatprep.subr.bf16.mxu0 %v3182
    %4128 = vmatpush1.bf16.msra.mxu0 %v3181
    %4129 = vmatprep.subr.bf16.mxu0 %v3190
    %4130 = vmatpush1.bf16.msra.mxu0 %v3189
    %4131 = vmatprep.subr.bf16.mxu0 %v3198
    %4132 = vmatpush1.bf16.msra.mxu0 %v3197
    %4133 = vmatprep.subr.bf16.mxu0 %v3206
    %4134 = vmatpush1.bf16.msra.mxu0 %v3205
    %4135 = vmatprep.subr.bf16.mxu0 %v3214
    %4136 = vmatpush1.bf16.msra.mxu0 %v3213
    %4137 = vmatprep.mubr.bf16.mxu0 %v742
    %4138 = vmatmul.mubr.bf16.gmra.mrb[0].mxu0 %v741
    %v4139 = vpop.f32.mrb[0].mxu0
    %v4140 = vadd.f32 %v4099, %v4139
    %v4141 = vpop.f32.mrb[0].mxu0
    %v4142 = vadd.f32 %v4101, %v4141
    %v4143 = vpop.f32.mrb[0].mxu0
    %v4144 = vpop.f32.mrb[0].mxu0
    %4145 = vdwg.mxu0
    %4146 = vmatprep.subr.bf16.mxu0 %v3222
    %4147 = vmatpush1.bf16.msra.mxu0 %v3221
    %4148 = vmatprep.subr.bf16.mxu0 %v3230
    %4149 = vmatpush1.bf16.msra.mxu0 %v3229
    %4150 = vmatprep.subr.bf16.mxu0 %v3238
    %4151 = vmatpush1.bf16.msra.mxu0 %v3237
    %4152 = vmatprep.subr.bf16.mxu0 %v3246
    %4153 = vmatpush1.bf16.msra.mxu0 %v3245
    %4154 = vmatprep.subr.bf16.mxu0 %v3254
    %4155 = vmatpush1.bf16.msra.mxu0 %v3253
    %4156 = vmatprep.subr.bf16.mxu0 %v3262
    %4157 = vmatpush1.bf16.msra.mxu0 %v3261
    %4158 = vmatprep.subr.bf16.mxu0 %v3270
    %4159 = vmatpush1.bf16.msra.mxu0 %v3269
    %4160 = vmatprep.subr.bf16.mxu0 %v3278
    %4161 = vmatpush1.bf16.msra.mxu0 %v3277
    %4162 = vmatprep.subr.bf16.mxu0 %v3286
    %4163 = vmatpush1.bf16.msra.mxu0 %v3285
    %4164 = vmatprep.subr.bf16.mxu0 %v3294
    %4165 = vmatpush1.bf16.msra.mxu0 %v3293
    %4166 = vmatprep.subr.bf16.mxu0 %v3302
    %4167 = vmatpush1.bf16.msra.mxu0 %v3301
    %4168 = vmatprep.subr.bf16.mxu0 %v3310
    %4169 = vmatpush1.bf16.msra.mxu0 %v3309
    %4170 = vmatprep.subr.bf16.mxu0 %v3318
    %4171 = vmatpush1.bf16.msra.mxu0 %v3317
    %4172 = vmatprep.subr.bf16.mxu0 %v3326
    %4173 = vmatpush1.bf16.msra.mxu0 %v3325
    %4174 = vmatprep.subr.bf16.mxu0 %v3334
    %4175 = vmatpush1.bf16.msra.mxu0 %v3333
    %4176 = vmatprep.subr.bf16.mxu0 %v3342
    %4177 = vmatpush1.bf16.msra.mxu0 %v3341
    %4178 = vmatprep.mubr.bf16.mxu0 %v744
    %4179 = vmatmul.mubr.bf16.gmra.mrb[0].mxu0 %v743
    %v4180 = vpop.f32.mrb[0].mxu0
    %v4181 = vadd.f32 %v4140, %v4180
    %v4182 = vpop.f32.mrb[0].mxu0
    %v4183 = vadd.f32 %v4142, %v4182
    %v4184 = vpop.f32.mrb[0].mxu0
    %v4185 = vpop.f32.mrb[0].mxu0
    %4186 = vdwg.mxu0
    %4187 = vmatprep.subr.bf16.mxu0 %v2840
    %4188 = vmatpush1.bf16.msra.mxu0 %v2839
    %4189 = vmatprep.subr.bf16.mxu0 %v2848
    %4190 = vmatpush1.bf16.msra.mxu0 %v2847
    %4191 = vmatprep.subr.bf16.mxu0 %v2856
    %4192 = vmatpush1.bf16.msra.mxu0 %v2855
    %4193 = vmatprep.subr.bf16.mxu0 %v2864
    %4194 = vmatpush1.bf16.msra.mxu0 %v2863
    %4195 = vmatprep.subr.bf16.mxu0 %v2872
    %4196 = vmatpush1.bf16.msra.mxu0 %v2871
    %4197 = vmatprep.subr.bf16.mxu0 %v2880
    %4198 = vmatpush1.bf16.msra.mxu0 %v2879
    %4199 = vmatprep.subr.bf16.mxu0 %v2888
    %4200 = vmatpush1.bf16.msra.mxu0 %v2887
    %4201 = vmatprep.subr.bf16.mxu0 %v2896
    %4202 = vmatpush1.bf16.msra.mxu0 %v2895
    %4203 = vmatprep.subr.bf16.mxu0 %v2904
    %4204 = vmatpush1.bf16.msra.mxu0 %v2903
    %4205 = vmatprep.subr.bf16.mxu0 %v2912
    %4206 = vmatpush1.bf16.msra.mxu0 %v2911
    %4207 = vmatprep.subr.bf16.mxu0 %v2920
    %4208 = vmatpush1.bf16.msra.mxu0 %v2919
    %4209 = vmatprep.subr.bf16.mxu0 %v2928
    %4210 = vmatpush1.bf16.msra.mxu0 %v2927
    %4211 = vmatprep.subr.bf16.mxu0 %v2936
    %4212 = vmatpush1.bf16.msra.mxu0 %v2935
    %4213 = vmatprep.subr.bf16.mxu0 %v2944
    %4214 = vmatpush1.bf16.msra.mxu0 %v2943
    %4215 = vmatprep.subr.bf16.mxu0 %v2952
    %4216 = vmatpush1.bf16.msra.mxu0 %v2951
    %4217 = vmatprep.subr.bf16.mxu0 %v2960
    %4218 = vmatpush1.bf16.msra.mxu0 %v2959
    %4219 = vmatprep.mubr.bf16.mxu0 %v738
    %4220 = vmatmul.mubr.bf16.gmra.mrb[0].mxu0 %v737
    %v4221 = vpop.f32.mrb[0].mxu0
    %v4222 = vadd.f32 %v1278, %v4221
    %v4223 = vpop.f32.mrb[0].mxu0
    %v4224 = vadd.f32 %v1282, %v4223
    %v4225 = vpop.f32.mrb[0].mxu0
    %v4226 = vpop.f32.mrb[0].mxu0
    %4227 = vdwg.mxu0
    %4228 = vmatprep.subr.bf16.mxu0 %v2968
    %4229 = vmatpush1.bf16.msra.mxu0 %v2967
    %4230 = vmatprep.subr.bf16.mxu0 %v2976
    %4231 = vmatpush1.bf16.msra.mxu0 %v2975
    %4232 = vmatprep.subr.bf16.mxu0 %v2984
    %4233 = vmatpush1.bf16.msra.mxu0 %v2983
    %4234 = vmatprep.subr.bf16.mxu0 %v2992
    %4235 = vmatpush1.bf16.msra.mxu0 %v2991
    %4236 = vmatprep.subr.bf16.mxu0 %v3000
    %4237 = vmatpush1.bf16.msra.mxu0 %v2999
    %4238 = vmatprep.subr.bf16.mxu0 %v3008
    %4239 = vmatpush1.bf16.msra.mxu0 %v3007
    %4240 = vmatprep.subr.bf16.mxu0 %v3016
    %4241 = vmatpush1.bf16.msra.mxu0 %v3015
    %4242 = vmatprep.subr.bf16.mxu0 %v3024
    %4243 = vmatpush1.bf16.msra.mxu0 %v3023
    %4244 = vmatprep.subr.bf16.mxu0 %v3032
    %4245 = vmatpush1.bf16.msra.mxu0 %v3031
    %4246 = vmatprep.subr.bf16.mxu0 %v3040
    %4247 = vmatpush1.bf16.msra.mxu0 %v3039
    %4248 = vmatprep.subr.bf16.mxu0 %v3048
    %4249 = vmatpush1.bf16.msra.mxu0 %v3047
    %4250 = vmatprep.subr.bf16.mxu0 %v3056
    %4251 = vmatpush1.bf16.msra.mxu0 %v3055
    %4252 = vmatprep.subr.bf16.mxu0 %v3064
    %4253 = vmatpush1.bf16.msra.mxu0 %v3063
    %4254 = vmatprep.subr.bf16.mxu0 %v3072
    %4255 = vmatpush1.bf16.msra.mxu0 %v3071
    %4256 = vmatprep.subr.bf16.mxu0 %v3080
    %4257 = vmatpush1.bf16.msra.mxu0 %v3079
    %4258 = vmatprep.subr.bf16.mxu0 %v3088
    %4259 = vmatpush1.bf16.msra.mxu0 %v3087
    %4260 = vmatprep.mubr.bf16.mxu0 %v740
    %4261 = vmatmul.mubr.bf16.gmra.mrb[0].mxu0 %v739
    %v4262 = vpop.f32.mrb[0].mxu0
    %v4263 = vadd.f32 %v4222, %v4262
    %v4264 = vpop.f32.mrb[0].mxu0
    %v4265 = vadd.f32 %v4224, %v4264
    %v4266 = vpop.f32.mrb[0].mxu0
    %v4267 = vpop.f32.mrb[0].mxu0
    %4268 = vdwg.mxu0
    %4269 = vmatprep.subr.bf16.mxu0 %v3096
    %4270 = vmatpush1.bf16.msra.mxu0 %v3095
    %4271 = vmatprep.subr.bf16.mxu0 %v3104
    %4272 = vmatpush1.bf16.msra.mxu0 %v3103
    %4273 = vmatprep.subr.bf16.mxu0 %v3112
    %4274 = vmatpush1.bf16.msra.mxu0 %v3111
    %4275 = vmatprep.subr.bf16.mxu0 %v3120
    %4276 = vmatpush1.bf16.msra.mxu0 %v3119
    %4277 = vmatprep.subr.bf16.mxu0 %v3128
    %4278 = vmatpush1.bf16.msra.mxu0 %v3127
    %4279 = vmatprep.subr.bf16.mxu0 %v3136
    %4280 = vmatpush1.bf16.msra.mxu0 %v3135
    %4281 = vmatprep.subr.bf16.mxu0 %v3144
    %4282 = vmatpush1.bf16.msra.mxu0 %v3143
    %4283 = vmatprep.subr.bf16.mxu0 %v3152
    %4284 = vmatpush1.bf16.msra.mxu0 %v3151
    %4285 = vmatprep.subr.bf16.mxu0 %v3160
    %4286 = vmatpush1.bf16.msra.mxu0 %v3159
    %4287 = vmatprep.subr.bf16.mxu0 %v3168
    %4288 = vmatpush1.bf16.msra.mxu0 %v3167
    %4289 = vmatprep.subr.bf16.mxu0 %v3176
    %4290 = vmatpush1.bf16.msra.mxu0 %v3175
    %4291 = vmatprep.subr.bf16.mxu0 %v3184
    %4292 = vmatpush1.bf16.msra.mxu0 %v3183
    %4293 = vmatprep.subr.bf16.mxu0 %v3192
    %4294 = vmatpush1.bf16.msra.mxu0 %v3191
    %4295 = vmatprep.subr.bf16.mxu0 %v3200
    %4296 = vmatpush1.bf16.msra.mxu0 %v3199
    %4297 = vmatprep.subr.bf16.mxu0 %v3208
    %4298 = vmatpush1.bf16.msra.mxu0 %v3207
    %4299 = vmatprep.subr.bf16.mxu0 %v3216
    %4300 = vmatpush1.bf16.msra.mxu0 %v3215
    %4301 = vmatprep.mubr.bf16.mxu0 %v742
    %4302 = vmatmul.mubr.bf16.gmra.mrb[0].mxu0 %v741
    %v4303 = vpop.f32.mrb[0].mxu0
    %v4304 = vadd.f32 %v4263, %v4303
    %v4305 = vpop.f32.mrb[0].mxu0
    %v4306 = vadd.f32 %v4265, %v4305
    %v4307 = vpop.f32.mrb[0].mxu0
    %v4308 = vpop.f32.mrb[0].mxu0
    %4309 = vdwg.mxu0
    %4310 = vmatprep.subr.bf16.mxu0 %v3224
    %4311 = vmatpush1.bf16.msra.mxu0 %v3223
    %4312 = vmatprep.subr.bf16.mxu0 %v3232
    %4313 = vmatpush1.bf16.msra.mxu0 %v3231
    %4314 = vmatprep.subr.bf16.mxu0 %v3240
    %4315 = vmatpush1.bf16.msra.mxu0 %v3239
    %4316 = vmatprep.subr.bf16.mxu0 %v3248
    %4317 = vmatpush1.bf16.msra.mxu0 %v3247
    %4318 = vmatprep.subr.bf16.mxu0 %v3256
    %4319 = vmatpush1.bf16.msra.mxu0 %v3255
    %4320 = vmatprep.subr.bf16.mxu0 %v3264
    %4321 = vmatpush1.bf16.msra.mxu0 %v3263
    %4322 = vmatprep.subr.bf16.mxu0 %v3272
    %4323 = vmatpush1.bf16.msra.mxu0 %v3271
    %4324 = vmatprep.subr.bf16.mxu0 %v3280
    %4325 = vmatpush1.bf16.msra.mxu0 %v3279
    %4326 = vmatprep.subr.bf16.mxu0 %v3288
    %4327 = vmatpush1.bf16.msra.mxu0 %v3287
    %4328 = vmatprep.subr.bf16.mxu0 %v3296
    %4329 = vmatpush1.bf16.msra.mxu0 %v3295
    %4330 = vmatprep.subr.bf16.mxu0 %v3304
    %4331 = vmatpush1.bf16.msra.mxu0 %v3303
    %4332 = vmatprep.subr.bf16.mxu0 %v3312
    %4333 = vmatpush1.bf16.msra.mxu0 %v3311
    %4334 = vmatprep.subr.bf16.mxu0 %v3320
    %4335 = vmatpush1.bf16.msra.mxu0 %v3319
    %4336 = vmatprep.subr.bf16.mxu0 %v3328
    %4337 = vmatpush1.bf16.msra.mxu0 %v3327
    %4338 = vmatprep.subr.bf16.mxu0 %v3336
    %4339 = vmatpush1.bf16.msra.mxu0 %v3335
    %4340 = vmatprep.subr.bf16.mxu0 %v3344
    %4341 = vmatpush1.bf16.msra.mxu0 %v3343
    %4342 = vmatprep.mubr.bf16.mxu0 %v744
    %4343 = vmatmul.mubr.bf16.gmra.mrb[0].mxu0 %v743
    %v4344 = vpop.f32.mrb[0].mxu0
    %v4345 = vadd.f32 %v4304, %v4344
    %v4346 = vpop.f32.mrb[0].mxu0
    %v4347 = vadd.f32 %v4306, %v4346
    %v4348 = vpop.f32.mrb[0].mxu0
    %v4349 = vpop.f32.mrb[0].mxu0
    %4350 = vdwg.mxu0
    %4351 = vmatprep.subr.bf16.mxu0 %v2842
    %4352 = vmatpush1.bf16.msra.mxu0 %v2841
    %4353 = vmatprep.subr.bf16.mxu0 %v2850
    %4354 = vmatpush1.bf16.msra.mxu0 %v2849
    %4355 = vmatprep.subr.bf16.mxu0 %v2858
    %4356 = vmatpush1.bf16.msra.mxu0 %v2857
    %4357 = vmatprep.subr.bf16.mxu0 %v2866
    %4358 = vmatpush1.bf16.msra.mxu0 %v2865
    %4359 = vmatprep.subr.bf16.mxu0 %v2874
    %4360 = vmatpush1.bf16.msra.mxu0 %v2873
    %4361 = vmatprep.subr.bf16.mxu0 %v2882
    %4362 = vmatpush1.bf16.msra.mxu0 %v2881
    %4363 = vmatprep.subr.bf16.mxu0 %v2890
    %4364 = vmatpush1.bf16.msra.mxu0 %v2889
    %4365 = vmatprep.subr.bf16.mxu0 %v2898
    %4366 = vmatpush1.bf16.msra.mxu0 %v2897
    %4367 = vmatprep.subr.bf16.mxu0 %v2906
    %4368 = vmatpush1.bf16.msra.mxu0 %v2905
    %4369 = vmatprep.subr.bf16.mxu0 %v2914
    %4370 = vmatpush1.bf16.msra.mxu0 %v2913
    %4371 = vmatprep.subr.bf16.mxu0 %v2922
    %4372 = vmatpush1.bf16.msra.mxu0 %v2921
    %4373 = vmatprep.subr.bf16.mxu0 %v2930
    %4374 = vmatpush1.bf16.msra.mxu0 %v2929
    %4375 = vmatprep.subr.bf16.mxu0 %v2938
    %4376 = vmatpush1.bf16.msra.mxu0 %v2937
    %4377 = vmatprep.subr.bf16.mxu0 %v2946
    %4378 = vmatpush1.bf16.msra.mxu0 %v2945
    %4379 = vmatprep.subr.bf16.mxu0 %v2954
    %4380 = vmatpush1.bf16.msra.mxu0 %v2953
    %4381 = vmatprep.subr.bf16.mxu0 %v2962
    %4382 = vmatpush1.bf16.msra.mxu0 %v2961
    %4383 = vmatprep.mubr.bf16.mxu0 %v738
    %4384 = vmatmul.mubr.bf16.gmra.mrb[0].mxu0 %v737
    %v4385 = vpop.f32.mrb[0].mxu0
    %v4386 = vadd.f32 %v1286, %v4385
    %v4387 = vpop.f32.mrb[0].mxu0
    %v4388 = vadd.f32 %v1290, %v4387
    %v4389 = vpop.f32.mrb[0].mxu0
    %v4390 = vpop.f32.mrb[0].mxu0
    %4391 = vdwg.mxu0
    %4392 = vmatprep.subr.bf16.mxu0 %v2970
    %4393 = vmatpush1.bf16.msra.mxu0 %v2969
    %4394 = vmatprep.subr.bf16.mxu0 %v2978
    %4395 = vmatpush1.bf16.msra.mxu0 %v2977
    %4396 = vmatprep.subr.bf16.mxu0 %v2986
    %4397 = vmatpush1.bf16.msra.mxu0 %v2985
    %4398 = vmatprep.subr.bf16.mxu0 %v2994
    %4399 = vmatpush1.bf16.msra.mxu0 %v2993
    %4400 = vmatprep.subr.bf16.mxu0 %v3002
    %4401 = vmatpush1.bf16.msra.mxu0 %v3001
    %4402 = vmatprep.subr.bf16.mxu0 %v3010
    %4403 = vmatpush1.bf16.msra.mxu0 %v3009
    %4404 = vmatprep.subr.bf16.mxu0 %v3018
    %4405 = vmatpush1.bf16.msra.mxu0 %v3017
    %4406 = vmatprep.subr.bf16.mxu0 %v3026
    %4407 = vmatpush1.bf16.msra.mxu0 %v3025
    %4408 = vmatprep.subr.bf16.mxu0 %v3034
    %4409 = vmatpush1.bf16.msra.mxu0 %v3033
    %4410 = vmatprep.subr.bf16.mxu0 %v3042
    %4411 = vmatpush1.bf16.msra.mxu0 %v3041
    %4412 = vmatprep.subr.bf16.mxu0 %v3050
    %4413 = vmatpush1.bf16.msra.mxu0 %v3049
    %4414 = vmatprep.subr.bf16.mxu0 %v3058
    %4415 = vmatpush1.bf16.msra.mxu0 %v3057
    %4416 = vmatprep.subr.bf16.mxu0 %v3066
    %4417 = vmatpush1.bf16.msra.mxu0 %v3065
    %4418 = vmatprep.subr.bf16.mxu0 %v3074
    %4419 = vmatpush1.bf16.msra.mxu0 %v3073
    %4420 = vmatprep.subr.bf16.mxu0 %v3082
    %4421 = vmatpush1.bf16.msra.mxu0 %v3081
    %4422 = vmatprep.subr.bf16.mxu0 %v3090
    %4423 = vmatpush1.bf16.msra.mxu0 %v3089
    %4424 = vmatprep.mubr.bf16.mxu0 %v740
    %4425 = vmatmul.mubr.bf16.gmra.mrb[0].mxu0 %v739
    %v4426 = vpop.f32.mrb[0].mxu0
    %v4427 = vadd.f32 %v4386, %v4426
    %v4428 = vpop.f32.mrb[0].mxu0
    %v4429 = vadd.f32 %v4388, %v4428
    %v4430 = vpop.f32.mrb[0].mxu0
    %v4431 = vpop.f32.mrb[0].mxu0
    %4432 = vdwg.mxu0
    %4433 = vmatprep.subr.bf16.mxu0 %v3098
    %4434 = vmatpush1.bf16.msra.mxu0 %v3097
    %4435 = vmatprep.subr.bf16.mxu0 %v3106
    %4436 = vmatpush1.bf16.msra.mxu0 %v3105
    %4437 = vmatprep.subr.bf16.mxu0 %v3114
    %4438 = vmatpush1.bf16.msra.mxu0 %v3113
    %4439 = vmatprep.subr.bf16.mxu0 %v3122
    %4440 = vmatpush1.bf16.msra.mxu0 %v3121
    %4441 = vmatprep.subr.bf16.mxu0 %v3130
    %4442 = vmatpush1.bf16.msra.mxu0 %v3129
    %4443 = vmatprep.subr.bf16.mxu0 %v3138
    %4444 = vmatpush1.bf16.msra.mxu0 %v3137
    %4445 = vmatprep.subr.bf16.mxu0 %v3146
    %4446 = vmatpush1.bf16.msra.mxu0 %v3145
    %4447 = vmatprep.subr.bf16.mxu0 %v3154
    %4448 = vmatpush1.bf16.msra.mxu0 %v3153
    %4449 = vmatprep.subr.bf16.mxu0 %v3162
    %4450 = vmatpush1.bf16.msra.mxu0 %v3161
    %4451 = vmatprep.subr.bf16.mxu0 %v3170
    %4452 = vmatpush1.bf16.msra.mxu0 %v3169
    %4453 = vmatprep.subr.bf16.mxu0 %v3178
    %4454 = vmatpush1.bf16.msra.mxu0 %v3177
    %4455 = vmatprep.subr.bf16.mxu0 %v3186
    %4456 = vmatpush1.bf16.msra.mxu0 %v3185
    %4457 = vmatprep.subr.bf16.mxu0 %v3194
    %4458 = vmatpush1.bf16.msra.mxu0 %v3193
    %4459 = vmatprep.subr.bf16.mxu0 %v3202
    %4460 = vmatpush1.bf16.msra.mxu0 %v3201
    %4461 = vmatprep.subr.bf16.mxu0 %v3210
    %4462 = vmatpush1.bf16.msra.mxu0 %v3209
    %4463 = vmatprep.subr.bf16.mxu0 %v3218
    %4464 = vmatpush1.bf16.msra.mxu0 %v3217
    %4465 = vmatprep.mubr.bf16.mxu0 %v742
    %4466 = vmatmul.mubr.bf16.gmra.mrb[0].mxu0 %v741
    %v4467 = vpop.f32.mrb[0].mxu0
    %v4468 = vadd.f32 %v4427, %v4467
    %v4469 = vpop.f32.mrb[0].mxu0
    %v4470 = vadd.f32 %v4429, %v4469
    %v4471 = vpop.f32.mrb[0].mxu0
    %v4472 = vpop.f32.mrb[0].mxu0
    %4473 = vdwg.mxu0
    %4474 = vmatprep.subr.bf16.mxu0 %v3226
    %4475 = vmatpush1.bf16.msra.mxu0 %v3225
    %4476 = vmatprep.subr.bf16.mxu0 %v3234
    %4477 = vmatpush1.bf16.msra.mxu0 %v3233
    %4478 = vmatprep.subr.bf16.mxu0 %v3242
    %4479 = vmatpush1.bf16.msra.mxu0 %v3241
    %4480 = vmatprep.subr.bf16.mxu0 %v3250
    %4481 = vmatpush1.bf16.msra.mxu0 %v3249
    %4482 = vmatprep.subr.bf16.mxu0 %v3258
    %4483 = vmatpush1.bf16.msra.mxu0 %v3257
    %4484 = vmatprep.subr.bf16.mxu0 %v3266
    %4485 = vmatpush1.bf16.msra.mxu0 %v3265
    %4486 = vmatprep.subr.bf16.mxu0 %v3274
    %4487 = vmatpush1.bf16.msra.mxu0 %v3273
    %4488 = vmatprep.subr.bf16.mxu0 %v3282
    %4489 = vmatpush1.bf16.msra.mxu0 %v3281
    %4490 = vmatprep.subr.bf16.mxu0 %v3290
    %4491 = vmatpush1.bf16.msra.mxu0 %v3289
    %4492 = vmatprep.subr.bf16.mxu0 %v3298
    %4493 = vmatpush1.bf16.msra.mxu0 %v3297
    %4494 = vmatprep.subr.bf16.mxu0 %v3306
    %4495 = vmatpush1.bf16.msra.mxu0 %v3305
    %4496 = vmatprep.subr.bf16.mxu0 %v3314
    %4497 = vmatpush1.bf16.msra.mxu0 %v3313
    %4498 = vmatprep.subr.bf16.mxu0 %v3322
    %4499 = vmatpush1.bf16.msra.mxu0 %v3321
    %4500 = vmatprep.subr.bf16.mxu0 %v3330
    %4501 = vmatpush1.bf16.msra.mxu0 %v3329
    %4502 = vmatprep.subr.bf16.mxu0 %v3338
    %4503 = vmatpush1.bf16.msra.mxu0 %v3337
    %4504 = vmatprep.subr.bf16.mxu0 %v3346
    %4505 = vmatpush1.bf16.msra.mxu0 %v3345
    %4506 = vmatprep.mubr.bf16.mxu0 %v744
    %4507 = vmatmul.mubr.bf16.gmra.mrb[0].mxu0 %v743
    %v4508 = vpop.f32.mrb[0].mxu0
    %v4509 = vadd.f32 %v4468, %v4508
    %v4510 = vpop.f32.mrb[0].mxu0
    %v4511 = vadd.f32 %v4470, %v4510
    %v4512 = vpop.f32.mrb[0].mxu0
    %v4513 = vpop.f32.mrb[0].mxu0
    %4514 = vdwg.mxu0
    %vm4515 = vcmp.gt.f32.partialorder %v4017, 0.0
    %vm4516 = vcmp.gt.f32.partialorder %v4019, 0.0
    %vm4517 = vcmp.gt.f32.partialorder %v4181, 0.0
    %vm4518 = vcmp.gt.f32.partialorder %v4183, 0.0
    %vm4519 = vcmp.gt.f32.partialorder %v4345, 0.0
    %vm4520 = vcmp.gt.f32.partialorder %v4347, 0.0
    %vm4521 = vcmp.gt.f32.partialorder %v4509, 0.0
    %vm4522 = vcmp.gt.f32.partialorder %v4511, 0.0
    %v4523 = vmul.f32 %v4017, 0.01
    %v4524 = vmul.f32 %v4019, 0.01
    %v4525 = vmul.f32 %v4181, 0.01
    %v4526 = vmul.f32 %v4183, 0.01
    %v4527 = vmul.f32 %v4345, 0.01
    %v4528 = vmul.f32 %v4347, 0.01
    %v4529 = vmul.f32 %v4509, 0.01
    %v4530 = vmul.f32 %v4511, 0.01
    %v4531 = vsel %vm4515, %v4017, %v4523
    %v4532 = vsel %vm4516, %v4019, %v4524
    %v4533 = vsel %vm4517, %v4181, %v4525
    %v4534 = vsel %vm4518, %v4183, %v4526
    %v4535 = vsel %vm4519, %v4345, %v4527
    %v4536 = vsel %vm4520, %v4347, %v4528
    %v4537 = vsel %vm4521, %v4509, %v4529
    %v4538 = vsel %vm4522, %v4511, %v4530
    %v4539 = vpack.c.bf16 %v4531, %v4531
    %v4540 = vpack.c.bf16 %v4532, %v4532
    %v4541 = vpack.c.bf16 %v4533, %v4533
    %v4542 = vpack.c.bf16 %v4534, %v4534
    %v4543 = vpack.c.bf16 %v4535, %v4535
    %v4544 = vpack.c.bf16 %v4536, %v4536
    %v4545 = vpack.c.bf16 %v4537, %v4537
    %v4546 = vpack.c.bf16 %v4538, %v4538
    %v4547 = vld [vmem:[#allocation10] sm:$0xff]
    %v4548 = vld [vmem:[#allocation10 + $0x8] sm:$0xff]
    %v4549 = vld [vmem:[#allocation10 + $0x10] sm:$0xff]
    %v4550 = vld [vmem:[#allocation10 + $0x18] sm:$0xff]
    %v4551 = vld [vmem:[#allocation10 + $0x20] sm:$0xff]
    %v4552 = vld [vmem:[#allocation10 + $0x28] sm:$0xff]
    %v4553 = vld [vmem:[#allocation10 + $0x30] sm:$0xff]
    %v4554 = vld [vmem:[#allocation10 + $0x38] sm:$0xff]
    %v4555 = vld [vmem:[#allocation10 + $0x40] sm:$0xff]
    %v4556 = vld [vmem:[#allocation10 + $0x48] sm:$0xff]
    %v4557 = vld [vmem:[#allocation10 + $0x50] sm:$0xff]
    %v4558 = vld [vmem:[#allocation10 + $0x58] sm:$0xff]
    %v4559 = vld [vmem:[#allocation10 + $0x60] sm:$0xff]
    %v4560 = vld [vmem:[#allocation10 + $0x68] sm:$0xff]
    %v4561 = vld [vmem:[#allocation10 + $0x70] sm:$0xff]
    %v4562 = vld [vmem:[#allocation10 + $0x78] sm:$0xff]
    %v4563 = vld [vmem:[#allocation10 + $0x80] sm:$0xff]
    %v4564 = vld [vmem:[#allocation10 + $0x88] sm:$0xff]
    %v4565 = vld [vmem:[#allocation10 + $0x90] sm:$0xff]
    %v4566 = vld [vmem:[#allocation10 + $0x98] sm:$0xff]
    %v4567 = vld [vmem:[#allocation10 + $0xa0] sm:$0xff]
    %v4568 = vld [vmem:[#allocation10 + $0xa8] sm:$0xff]
    %v4569 = vld [vmem:[#allocation10 + $0xb0] sm:$0xff]
    %v4570 = vld [vmem:[#allocation10 + $0xb8] sm:$0xff]
    %v4571 = vld [vmem:[#allocation10 + $0xc0] sm:$0xff]
    %v4572 = vld [vmem:[#allocation10 + $0xc8] sm:$0xff]
    %v4573 = vld [vmem:[#allocation10 + $0xd0] sm:$0xff]
    %v4574 = vld [vmem:[#allocation10 + $0xd8] sm:$0xff]
    %v4575 = vld [vmem:[#allocation10 + $0xe0] sm:$0xff]
    %v4576 = vld [vmem:[#allocation10 + $0xe8] sm:$0xff]
    %v4577 = vld [vmem:[#allocation10 + $0xf0] sm:$0xff]
    %v4578 = vld [vmem:[#allocation10 + $0xf8] sm:$0xff]
    %v4579 = vld [vmem:[#allocation10 + $0x100] sm:$0xff]
    %v4580 = vld [vmem:[#allocation10 + $0x108] sm:$0xff]
    %v4581 = vld [vmem:[#allocation10 + $0x110] sm:$0xff]
    %v4582 = vld [vmem:[#allocation10 + $0x118] sm:$0xff]
    %v4583 = vld [vmem:[#allocation10 + $0x120] sm:$0xff]
    %v4584 = vld [vmem:[#allocation10 + $0x128] sm:$0xff]
    %v4585 = vld [vmem:[#allocation10 + $0x130] sm:$0xff]
    %v4586 = vld [vmem:[#allocation10 + $0x138] sm:$0xff]
    %v4587 = vld [vmem:[#allocation10 + $0x140] sm:$0xff]
    %v4588 = vld [vmem:[#allocation10 + $0x148] sm:$0xff]
    %v4589 = vld [vmem:[#allocation10 + $0x150] sm:$0xff]
    %v4590 = vld [vmem:[#allocation10 + $0x158] sm:$0xff]
    %v4591 = vld [vmem:[#allocation10 + $0x160] sm:$0xff]
    %v4592 = vld [vmem:[#allocation10 + $0x168] sm:$0xff]
    %v4593 = vld [vmem:[#allocation10 + $0x170] sm:$0xff]
    %v4594 = vld [vmem:[#allocation10 + $0x178] sm:$0xff]
    %v4595 = vld [vmem:[#allocation10 + $0x180] sm:$0xff]
    %v4596 = vld [vmem:[#allocation10 + $0x188] sm:$0xff]
    %v4597 = vld [vmem:[#allocation10 + $0x190] sm:$0xff]
    %v4598 = vld [vmem:[#allocation10 + $0x198] sm:$0xff]
    %v4599 = vld [vmem:[#allocation10 + $0x1a0] sm:$0xff]
    %v4600 = vld [vmem:[#allocation10 + $0x1a8] sm:$0xff]
    %v4601 = vld [vmem:[#allocation10 + $0x1b0] sm:$0xff]
    %v4602 = vld [vmem:[#allocation10 + $0x1b8] sm:$0xff]
    %v4603 = vld [vmem:[#allocation10 + $0x1c0] sm:$0xff]
    %v4604 = vld [vmem:[#allocation10 + $0x1c8] sm:$0xff]
    %v4605 = vld [vmem:[#allocation10 + $0x1d0] sm:$0xff]
    %v4606 = vld [vmem:[#allocation10 + $0x1d8] sm:$0xff]
    %v4607 = vld [vmem:[#allocation10 + $0x1e0] sm:$0xff]
    %v4608 = vld [vmem:[#allocation10 + $0x1e8] sm:$0xff]
    %v4609 = vld [vmem:[#allocation10 + $0x1f0] sm:$0xff]
    %v4610 = vld [vmem:[#allocation10 + $0x1f8] sm:$0xff]
    %v4611 = vld [vmem:[#allocation10 + $0x200] sm:$0xff]
    %v4612 = vld [vmem:[#allocation10 + $0x208] sm:$0xff]
    %v4613 = vld [vmem:[#allocation10 + $0x210] sm:$0xff]
    %v4614 = vld [vmem:[#allocation10 + $0x218] sm:$0xff]
    %v4615 = vld [vmem:[#allocation10 + $0x220] sm:$0xff]
    %v4616 = vld [vmem:[#allocation10 + $0x228] sm:$0xff]
    %v4617 = vld [vmem:[#allocation10 + $0x230] sm:$0xff]
    %v4618 = vld [vmem:[#allocation10 + $0x238] sm:$0xff]
    %v4619 = vld [vmem:[#allocation10 + $0x240] sm:$0xff]
    %v4620 = vld [vmem:[#allocation10 + $0x248] sm:$0xff]
    %v4621 = vld [vmem:[#allocation10 + $0x250] sm:$0xff]
    %v4622 = vld [vmem:[#allocation10 + $0x258] sm:$0xff]
    %v4623 = vld [vmem:[#allocation10 + $0x260] sm:$0xff]
    %v4624 = vld [vmem:[#allocation10 + $0x268] sm:$0xff]
    %v4625 = vld [vmem:[#allocation10 + $0x270] sm:$0xff]
    %v4626 = vld [vmem:[#allocation10 + $0x278] sm:$0xff]
    %v4627 = vld [vmem:[#allocation10 + $0x280] sm:$0xff]
    %v4628 = vld [vmem:[#allocation10 + $0x288] sm:$0xff]
    %v4629 = vld [vmem:[#allocation10 + $0x290] sm:$0xff]
    %v4630 = vld [vmem:[#allocation10 + $0x298] sm:$0xff]
    %v4631 = vld [vmem:[#allocation10 + $0x2a0] sm:$0xff]
    %v4632 = vld [vmem:[#allocation10 + $0x2a8] sm:$0xff]
    %v4633 = vld [vmem:[#allocation10 + $0x2b0] sm:$0xff]
    %v4634 = vld [vmem:[#allocation10 + $0x2b8] sm:$0xff]
    %v4635 = vld [vmem:[#allocation10 + $0x2c0] sm:$0xff]
    %v4636 = vld [vmem:[#allocation10 + $0x2c8] sm:$0xff]
    %v4637 = vld [vmem:[#allocation10 + $0x2d0] sm:$0xff]
    %v4638 = vld [vmem:[#allocation10 + $0x2d8] sm:$0xff]
    %v4639 = vld [vmem:[#allocation10 + $0x2e0] sm:$0xff]
    %v4640 = vld [vmem:[#allocation10 + $0x2e8] sm:$0xff]
    %v4641 = vld [vmem:[#allocation10 + $0x2f0] sm:$0xff]
    %v4642 = vld [vmem:[#allocation10 + $0x2f8] sm:$0xff]
    %v4643 = vld [vmem:[#allocation10 + $0x300] sm:$0xff]
    %v4644 = vld [vmem:[#allocation10 + $0x308] sm:$0xff]
    %v4645 = vld [vmem:[#allocation10 + $0x310] sm:$0xff]
    %v4646 = vld [vmem:[#allocation10 + $0x318] sm:$0xff]
    %v4647 = vld [vmem:[#allocation10 + $0x320] sm:$0xff]
    %v4648 = vld [vmem:[#allocation10 + $0x328] sm:$0xff]
    %v4649 = vld [vmem:[#allocation10 + $0x330] sm:$0xff]
    %v4650 = vld [vmem:[#allocation10 + $0x338] sm:$0xff]
    %v4651 = vld [vmem:[#allocation10 + $0x340] sm:$0xff]
    %v4652 = vld [vmem:[#allocation10 + $0x348] sm:$0xff]
    %v4653 = vld [vmem:[#allocation10 + $0x350] sm:$0xff]
    %v4654 = vld [vmem:[#allocation10 + $0x358] sm:$0xff]
    %v4655 = vld [vmem:[#allocation10 + $0x360] sm:$0xff]
    %v4656 = vld [vmem:[#allocation10 + $0x368] sm:$0xff]
    %v4657 = vld [vmem:[#allocation10 + $0x370] sm:$0xff]
    %v4658 = vld [vmem:[#allocation10 + $0x378] sm:$0xff]
    %v4659 = vld [vmem:[#allocation10 + $0x380] sm:$0xff]
    %v4660 = vld [vmem:[#allocation10 + $0x388] sm:$0xff]
    %v4661 = vld [vmem:[#allocation10 + $0x390] sm:$0xff]
    %v4662 = vld [vmem:[#allocation10 + $0x398] sm:$0xff]
    %v4663 = vld [vmem:[#allocation10 + $0x3a0] sm:$0xff]
    %v4664 = vld [vmem:[#allocation10 + $0x3a8] sm:$0xff]
    %v4665 = vld [vmem:[#allocation10 + $0x3b0] sm:$0xff]
    %v4666 = vld [vmem:[#allocation10 + $0x3b8] sm:$0xff]
    %v4667 = vld [vmem:[#allocation10 + $0x3c0] sm:$0xff]
    %v4668 = vld [vmem:[#allocation10 + $0x3c8] sm:$0xff]
    %v4669 = vld [vmem:[#allocation10 + $0x3d0] sm:$0xff]
    %v4670 = vld [vmem:[#allocation10 + $0x3d8] sm:$0xff]
    %v4671 = vld [vmem:[#allocation10 + $0x3e0] sm:$0xff]
    %v4672 = vld [vmem:[#allocation10 + $0x3e8] sm:$0xff]
    %v4673 = vld [vmem:[#allocation10 + $0x3f0] sm:$0xff]
    %v4674 = vld [vmem:[#allocation10 + $0x3f8] sm:$0xff]
    %v4675 = vld [vmem:[#allocation10 + $0x400] sm:$0xff]
    %v4676 = vld [vmem:[#allocation10 + $0x408] sm:$0xff]
    %v4677 = vld [vmem:[#allocation10 + $0x410] sm:$0xff]
    %v4678 = vld [vmem:[#allocation10 + $0x418] sm:$0xff]
    %v4679 = vld [vmem:[#allocation10 + $0x420] sm:$0xff]
    %v4680 = vld [vmem:[#allocation10 + $0x428] sm:$0xff]
    %v4681 = vld [vmem:[#allocation10 + $0x430] sm:$0xff]
    %v4682 = vld [vmem:[#allocation10 + $0x438] sm:$0xff]
    %v4683 = vld [vmem:[#allocation10 + $0x440] sm:$0xff]
    %v4684 = vld [vmem:[#allocation10 + $0x448] sm:$0xff]
    %v4685 = vld [vmem:[#allocation10 + $0x450] sm:$0xff]
    %v4686 = vld [vmem:[#allocation10 + $0x458] sm:$0xff]
    %v4687 = vld [vmem:[#allocation10 + $0x460] sm:$0xff]
    %v4688 = vld [vmem:[#allocation10 + $0x468] sm:$0xff]
    %v4689 = vld [vmem:[#allocation10 + $0x470] sm:$0xff]
    %v4690 = vld [vmem:[#allocation10 + $0x478] sm:$0xff]
    %v4691 = vld [vmem:[#allocation10 + $0x480] sm:$0xff]
    %v4692 = vld [vmem:[#allocation10 + $0x488] sm:$0xff]
    %v4693 = vld [vmem:[#allocation10 + $0x490] sm:$0xff]
    %v4694 = vld [vmem:[#allocation10 + $0x498] sm:$0xff]
    %v4695 = vld [vmem:[#allocation10 + $0x4a0] sm:$0xff]
    %v4696 = vld [vmem:[#allocation10 + $0x4a8] sm:$0xff]
    %v4697 = vld [vmem:[#allocation10 + $0x4b0] sm:$0xff]
    %v4698 = vld [vmem:[#allocation10 + $0x4b8] sm:$0xff]
    %v4699 = vld [vmem:[#allocation10 + $0x4c0] sm:$0xff]
    %v4700 = vld [vmem:[#allocation10 + $0x4c8] sm:$0xff]
    %v4701 = vld [vmem:[#allocation10 + $0x4d0] sm:$0xff]
    %v4702 = vld [vmem:[#allocation10 + $0x4d8] sm:$0xff]
    %v4703 = vld [vmem:[#allocation10 + $0x4e0] sm:$0xff]
    %v4704 = vld [vmem:[#allocation10 + $0x4e8] sm:$0xff]
    %v4705 = vld [vmem:[#allocation10 + $0x4f0] sm:$0xff]
    %v4706 = vld [vmem:[#allocation10 + $0x4f8] sm:$0xff]
    %v4707 = vld [vmem:[#allocation10 + $0x500] sm:$0xff]
    %v4708 = vld [vmem:[#allocation10 + $0x508] sm:$0xff]
    %v4709 = vld [vmem:[#allocation10 + $0x510] sm:$0xff]
    %v4710 = vld [vmem:[#allocation10 + $0x518] sm:$0xff]
    %v4711 = vld [vmem:[#allocation10 + $0x520] sm:$0xff]
    %v4712 = vld [vmem:[#allocation10 + $0x528] sm:$0xff]
    %v4713 = vld [vmem:[#allocation10 + $0x530] sm:$0xff]
    %v4714 = vld [vmem:[#allocation10 + $0x538] sm:$0xff]
    %v4715 = vld [vmem:[#allocation10 + $0x540] sm:$0xff]
    %v4716 = vld [vmem:[#allocation10 + $0x548] sm:$0xff]
    %v4717 = vld [vmem:[#allocation10 + $0x550] sm:$0xff]
    %v4718 = vld [vmem:[#allocation10 + $0x558] sm:$0xff]
    %v4719 = vld [vmem:[#allocation10 + $0x560] sm:$0xff]
    %v4720 = vld [vmem:[#allocation10 + $0x568] sm:$0xff]
    %v4721 = vld [vmem:[#allocation10 + $0x570] sm:$0xff]
    %v4722 = vld [vmem:[#allocation10 + $0x578] sm:$0xff]
    %v4723 = vld [vmem:[#allocation10 + $0x580] sm:$0xff]
    %v4724 = vld [vmem:[#allocation10 + $0x588] sm:$0xff]
    %v4725 = vld [vmem:[#allocation10 + $0x590] sm:$0xff]
    %v4726 = vld [vmem:[#allocation10 + $0x598] sm:$0xff]
    %v4727 = vld [vmem:[#allocation10 + $0x5a0] sm:$0xff]
    %v4728 = vld [vmem:[#allocation10 + $0x5a8] sm:$0xff]
    %v4729 = vld [vmem:[#allocation10 + $0x5b0] sm:$0xff]
    %v4730 = vld [vmem:[#allocation10 + $0x5b8] sm:$0xff]
    %v4731 = vld [vmem:[#allocation10 + $0x5c0] sm:$0xff]
    %v4732 = vld [vmem:[#allocation10 + $0x5c8] sm:$0xff]
    %v4733 = vld [vmem:[#allocation10 + $0x5d0] sm:$0xff]
    %v4734 = vld [vmem:[#allocation10 + $0x5d8] sm:$0xff]
    %v4735 = vld [vmem:[#allocation10 + $0x5e0] sm:$0xff]
    %v4736 = vld [vmem:[#allocation10 + $0x5e8] sm:$0xff]
    %v4737 = vld [vmem:[#allocation10 + $0x5f0] sm:$0xff]
    %v4738 = vld [vmem:[#allocation10 + $0x5f8] sm:$0xff]
    %v4739 = vld [vmem:[#allocation10 + $0x600] sm:$0xff]
    %v4740 = vld [vmem:[#allocation10 + $0x608] sm:$0xff]
    %v4741 = vld [vmem:[#allocation10 + $0x610] sm:$0xff]
    %v4742 = vld [vmem:[#allocation10 + $0x618] sm:$0xff]
    %v4743 = vld [vmem:[#allocation10 + $0x620] sm:$0xff]
    %v4744 = vld [vmem:[#allocation10 + $0x628] sm:$0xff]
    %v4745 = vld [vmem:[#allocation10 + $0x630] sm:$0xff]
    %v4746 = vld [vmem:[#allocation10 + $0x638] sm:$0xff]
    %v4747 = vld [vmem:[#allocation10 + $0x640] sm:$0xff]
    %v4748 = vld [vmem:[#allocation10 + $0x648] sm:$0xff]
    %v4749 = vld [vmem:[#allocation10 + $0x650] sm:$0xff]
    %v4750 = vld [vmem:[#allocation10 + $0x658] sm:$0xff]
    %v4751 = vld [vmem:[#allocation10 + $0x660] sm:$0xff]
    %v4752 = vld [vmem:[#allocation10 + $0x668] sm:$0xff]
    %v4753 = vld [vmem:[#allocation10 + $0x670] sm:$0xff]
    %v4754 = vld [vmem:[#allocation10 + $0x678] sm:$0xff]
    %v4755 = vld [vmem:[#allocation10 + $0x680] sm:$0xff]
    %v4756 = vld [vmem:[#allocation10 + $0x688] sm:$0xff]
    %v4757 = vld [vmem:[#allocation10 + $0x690] sm:$0xff]
    %v4758 = vld [vmem:[#allocation10 + $0x698] sm:$0xff]
    %v4759 = vld [vmem:[#allocation10 + $0x6a0] sm:$0xff]
    %v4760 = vld [vmem:[#allocation10 + $0x6a8] sm:$0xff]
    %v4761 = vld [vmem:[#allocation10 + $0x6b0] sm:$0xff]
    %v4762 = vld [vmem:[#allocation10 + $0x6b8] sm:$0xff]
    %v4763 = vld [vmem:[#allocation10 + $0x6c0] sm:$0xff]
    %v4764 = vld [vmem:[#allocation10 + $0x6c8] sm:$0xff]
    %v4765 = vld [vmem:[#allocation10 + $0x6d0] sm:$0xff]
    %v4766 = vld [vmem:[#allocation10 + $0x6d8] sm:$0xff]
    %v4767 = vld [vmem:[#allocation10 + $0x6e0] sm:$0xff]
    %v4768 = vld [vmem:[#allocation10 + $0x6e8] sm:$0xff]
    %v4769 = vld [vmem:[#allocation10 + $0x6f0] sm:$0xff]
    %v4770 = vld [vmem:[#allocation10 + $0x6f8] sm:$0xff]
    %v4771 = vld [vmem:[#allocation10 + $0x700] sm:$0xff]
    %v4772 = vld [vmem:[#allocation10 + $0x708] sm:$0xff]
    %v4773 = vld [vmem:[#allocation10 + $0x710] sm:$0xff]
    %v4774 = vld [vmem:[#allocation10 + $0x718] sm:$0xff]
    %v4775 = vld [vmem:[#allocation10 + $0x720] sm:$0xff]
    %v4776 = vld [vmem:[#allocation10 + $0x728] sm:$0xff]
    %v4777 = vld [vmem:[#allocation10 + $0x730] sm:$0xff]
    %v4778 = vld [vmem:[#allocation10 + $0x738] sm:$0xff]
    %v4779 = vld [vmem:[#allocation10 + $0x740] sm:$0xff]
    %v4780 = vld [vmem:[#allocation10 + $0x748] sm:$0xff]
    %v4781 = vld [vmem:[#allocation10 + $0x750] sm:$0xff]
    %v4782 = vld [vmem:[#allocation10 + $0x758] sm:$0xff]
    %v4783 = vld [vmem:[#allocation10 + $0x760] sm:$0xff]
    %v4784 = vld [vmem:[#allocation10 + $0x768] sm:$0xff]
    %v4785 = vld [vmem:[#allocation10 + $0x770] sm:$0xff]
    %v4786 = vld [vmem:[#allocation10 + $0x778] sm:$0xff]
    %v4787 = vld [vmem:[#allocation10 + $0x780] sm:$0xff]
    %v4788 = vld [vmem:[#allocation10 + $0x788] sm:$0xff]
    %v4789 = vld [vmem:[#allocation10 + $0x790] sm:$0xff]
    %v4790 = vld [vmem:[#allocation10 + $0x798] sm:$0xff]
    %v4791 = vld [vmem:[#allocation10 + $0x7a0] sm:$0xff]
    %v4792 = vld [vmem:[#allocation10 + $0x7a8] sm:$0xff]
    %v4793 = vld [vmem:[#allocation10 + $0x7b0] sm:$0xff]
    %v4794 = vld [vmem:[#allocation10 + $0x7b8] sm:$0xff]
    %v4795 = vld [vmem:[#allocation10 + $0x7c0] sm:$0xff]
    %v4796 = vld [vmem:[#allocation10 + $0x7c8] sm:$0xff]
    %v4797 = vld [vmem:[#allocation10 + $0x7d0] sm:$0xff]
    %v4798 = vld [vmem:[#allocation10 + $0x7d8] sm:$0xff]
    %v4799 = vld [vmem:[#allocation10 + $0x7e0] sm:$0xff]
    %v4800 = vld [vmem:[#allocation10 + $0x7e8] sm:$0xff]
    %v4801 = vld [vmem:[#allocation10 + $0x7f0] sm:$0xff]
    %v4802 = vld [vmem:[#allocation10 + $0x7f8] sm:$0xff]
    %v4803 = vld [vmem:[#allocation10 + $0x800] sm:$0xff]
    %v4804 = vld [vmem:[#allocation10 + $0x808] sm:$0xff]
    %v4805 = vld [vmem:[#allocation10 + $0x810] sm:$0xff]
    %v4806 = vld [vmem:[#allocation10 + $0x818] sm:$0xff]
    %v4807 = vld [vmem:[#allocation10 + $0x820] sm:$0xff]
    %v4808 = vld [vmem:[#allocation10 + $0x828] sm:$0xff]
    %v4809 = vld [vmem:[#allocation10 + $0x830] sm:$0xff]
    %v4810 = vld [vmem:[#allocation10 + $0x838] sm:$0xff]
    %v4811 = vld [vmem:[#allocation10 + $0x840] sm:$0xff]
    %v4812 = vld [vmem:[#allocation10 + $0x848] sm:$0xff]
    %v4813 = vld [vmem:[#allocation10 + $0x850] sm:$0xff]
    %v4814 = vld [vmem:[#allocation10 + $0x858] sm:$0xff]
    %v4815 = vld [vmem:[#allocation10 + $0x860] sm:$0xff]
    %v4816 = vld [vmem:[#allocation10 + $0x868] sm:$0xff]
    %v4817 = vld [vmem:[#allocation10 + $0x870] sm:$0xff]
    %v4818 = vld [vmem:[#allocation10 + $0x878] sm:$0xff]
    %v4819 = vld [vmem:[#allocation10 + $0x880] sm:$0xff]
    %v4820 = vld [vmem:[#allocation10 + $0x888] sm:$0xff]
    %v4821 = vld [vmem:[#allocation10 + $0x890] sm:$0xff]
    %v4822 = vld [vmem:[#allocation10 + $0x898] sm:$0xff]
    %v4823 = vld [vmem:[#allocation10 + $0x8a0] sm:$0xff]
    %v4824 = vld [vmem:[#allocation10 + $0x8a8] sm:$0xff]
    %v4825 = vld [vmem:[#allocation10 + $0x8b0] sm:$0xff]
    %v4826 = vld [vmem:[#allocation10 + $0x8b8] sm:$0xff]
    %v4827 = vld [vmem:[#allocation10 + $0x8c0] sm:$0xff]
    %v4828 = vld [vmem:[#allocation10 + $0x8c8] sm:$0xff]
    %v4829 = vld [vmem:[#allocation10 + $0x8d0] sm:$0xff]
    %v4830 = vld [vmem:[#allocation10 + $0x8d8] sm:$0xff]
    %v4831 = vld [vmem:[#allocation10 + $0x8e0] sm:$0xff]
    %v4832 = vld [vmem:[#allocation10 + $0x8e8] sm:$0xff]
    %v4833 = vld [vmem:[#allocation10 + $0x8f0] sm:$0xff]
    %v4834 = vld [vmem:[#allocation10 + $0x8f8] sm:$0xff]
    %v4835 = vld [vmem:[#allocation10 + $0x900] sm:$0xff]
    %v4836 = vld [vmem:[#allocation10 + $0x908] sm:$0xff]
    %v4837 = vld [vmem:[#allocation10 + $0x910] sm:$0xff]
    %v4838 = vld [vmem:[#allocation10 + $0x918] sm:$0xff]
    %v4839 = vld [vmem:[#allocation10 + $0x920] sm:$0xff]
    %v4840 = vld [vmem:[#allocation10 + $0x928] sm:$0xff]
    %v4841 = vld [vmem:[#allocation10 + $0x930] sm:$0xff]
    %v4842 = vld [vmem:[#allocation10 + $0x938] sm:$0xff]
    %v4843 = vld [vmem:[#allocation10 + $0x940] sm:$0xff]
    %v4844 = vld [vmem:[#allocation10 + $0x948] sm:$0xff]
    %v4845 = vld [vmem:[#allocation10 + $0x950] sm:$0xff]
    %v4846 = vld [vmem:[#allocation10 + $0x958] sm:$0xff]
    %v4847 = vld [vmem:[#allocation10 + $0x960] sm:$0xff]
    %v4848 = vld [vmem:[#allocation10 + $0x968] sm:$0xff]
    %v4849 = vld [vmem:[#allocation10 + $0x970] sm:$0xff]
    %v4850 = vld [vmem:[#allocation10 + $0x978] sm:$0xff]
    %v4851 = vld [vmem:[#allocation10 + $0x980] sm:$0xff]
    %v4852 = vld [vmem:[#allocation10 + $0x988] sm:$0xff]
    %v4853 = vld [vmem:[#allocation10 + $0x990] sm:$0xff]
    %v4854 = vld [vmem:[#allocation10 + $0x998] sm:$0xff]
    %v4855 = vld [vmem:[#allocation10 + $0x9a0] sm:$0xff]
    %v4856 = vld [vmem:[#allocation10 + $0x9a8] sm:$0xff]
    %v4857 = vld [vmem:[#allocation10 + $0x9b0] sm:$0xff]
    %v4858 = vld [vmem:[#allocation10 + $0x9b8] sm:$0xff]
    %v4859 = vld [vmem:[#allocation10 + $0x9c0] sm:$0xff]
    %v4860 = vld [vmem:[#allocation10 + $0x9c8] sm:$0xff]
    %v4861 = vld [vmem:[#allocation10 + $0x9d0] sm:$0xff]
    %v4862 = vld [vmem:[#allocation10 + $0x9d8] sm:$0xff]
    %v4863 = vld [vmem:[#allocation10 + $0x9e0] sm:$0xff]
    %v4864 = vld [vmem:[#allocation10 + $0x9e8] sm:$0xff]
    %v4865 = vld [vmem:[#allocation10 + $0x9f0] sm:$0xff]
    %v4866 = vld [vmem:[#allocation10 + $0x9f8] sm:$0xff]
    %v4867 = vld [vmem:[#allocation10 + $0xa00] sm:$0xff]
    %v4868 = vld [vmem:[#allocation10 + $0xa08] sm:$0xff]
    %v4869 = vld [vmem:[#allocation10 + $0xa10] sm:$0xff]
    %v4870 = vld [vmem:[#allocation10 + $0xa18] sm:$0xff]
    %v4871 = vld [vmem:[#allocation10 + $0xa20] sm:$0xff]
    %v4872 = vld [vmem:[#allocation10 + $0xa28] sm:$0xff]
    %v4873 = vld [vmem:[#allocation10 + $0xa30] sm:$0xff]
    %v4874 = vld [vmem:[#allocation10 + $0xa38] sm:$0xff]
    %v4875 = vld [vmem:[#allocation10 + $0xa40] sm:$0xff]
    %v4876 = vld [vmem:[#allocation10 + $0xa48] sm:$0xff]
    %v4877 = vld [vmem:[#allocation10 + $0xa50] sm:$0xff]
    %v4878 = vld [vmem:[#allocation10 + $0xa58] sm:$0xff]
    %v4879 = vld [vmem:[#allocation10 + $0xa60] sm:$0xff]
    %v4880 = vld [vmem:[#allocation10 + $0xa68] sm:$0xff]
    %v4881 = vld [vmem:[#allocation10 + $0xa70] sm:$0xff]
    %v4882 = vld [vmem:[#allocation10 + $0xa78] sm:$0xff]
    %v4883 = vld [vmem:[#allocation10 + $0xa80] sm:$0xff]
    %v4884 = vld [vmem:[#allocation10 + $0xa88] sm:$0xff]
    %v4885 = vld [vmem:[#allocation10 + $0xa90] sm:$0xff]
    %v4886 = vld [vmem:[#allocation10 + $0xa98] sm:$0xff]
    %v4887 = vld [vmem:[#allocation10 + $0xaa0] sm:$0xff]
    %v4888 = vld [vmem:[#allocation10 + $0xaa8] sm:$0xff]
    %v4889 = vld [vmem:[#allocation10 + $0xab0] sm:$0xff]
    %v4890 = vld [vmem:[#allocation10 + $0xab8] sm:$0xff]
    %v4891 = vld [vmem:[#allocation10 + $0xac0] sm:$0xff]
    %v4892 = vld [vmem:[#allocation10 + $0xac8] sm:$0xff]
    %v4893 = vld [vmem:[#allocation10 + $0xad0] sm:$0xff]
    %v4894 = vld [vmem:[#allocation10 + $0xad8] sm:$0xff]
    %v4895 = vld [vmem:[#allocation10 + $0xae0] sm:$0xff]
    %v4896 = vld [vmem:[#allocation10 + $0xae8] sm:$0xff]
    %v4897 = vld [vmem:[#allocation10 + $0xaf0] sm:$0xff]
    %v4898 = vld [vmem:[#allocation10 + $0xaf8] sm:$0xff]
    %v4899 = vld [vmem:[#allocation10 + $0xb00] sm:$0xff]
    %v4900 = vld [vmem:[#allocation10 + $0xb08] sm:$0xff]
    %v4901 = vld [vmem:[#allocation10 + $0xb10] sm:$0xff]
    %v4902 = vld [vmem:[#allocation10 + $0xb18] sm:$0xff]
    %v4903 = vld [vmem:[#allocation10 + $0xb20] sm:$0xff]
    %v4904 = vld [vmem:[#allocation10 + $0xb28] sm:$0xff]
    %v4905 = vld [vmem:[#allocation10 + $0xb30] sm:$0xff]
    %v4906 = vld [vmem:[#allocation10 + $0xb38] sm:$0xff]
    %v4907 = vld [vmem:[#allocation10 + $0xb40] sm:$0xff]
    %v4908 = vld [vmem:[#allocation10 + $0xb48] sm:$0xff]
    %v4909 = vld [vmem:[#allocation10 + $0xb50] sm:$0xff]
    %v4910 = vld [vmem:[#allocation10 + $0xb58] sm:$0xff]
    %v4911 = vld [vmem:[#allocation10 + $0xb60] sm:$0xff]
    %v4912 = vld [vmem:[#allocation10 + $0xb68] sm:$0xff]
    %v4913 = vld [vmem:[#allocation10 + $0xb70] sm:$0xff]
    %v4914 = vld [vmem:[#allocation10 + $0xb78] sm:$0xff]
    %v4915 = vld [vmem:[#allocation10 + $0xb80] sm:$0xff]
    %v4916 = vld [vmem:[#allocation10 + $0xb88] sm:$0xff]
    %v4917 = vld [vmem:[#allocation10 + $0xb90] sm:$0xff]
    %v4918 = vld [vmem:[#allocation10 + $0xb98] sm:$0xff]
    %v4919 = vld [vmem:[#allocation10 + $0xba0] sm:$0xff]
    %v4920 = vld [vmem:[#allocation10 + $0xba8] sm:$0xff]
    %v4921 = vld [vmem:[#allocation10 + $0xbb0] sm:$0xff]
    %v4922 = vld [vmem:[#allocation10 + $0xbb8] sm:$0xff]
    %v4923 = vld [vmem:[#allocation10 + $0xbc0] sm:$0xff]
    %v4924 = vld [vmem:[#allocation10 + $0xbc8] sm:$0xff]
    %v4925 = vld [vmem:[#allocation10 + $0xbd0] sm:$0xff]
    %v4926 = vld [vmem:[#allocation10 + $0xbd8] sm:$0xff]
    %v4927 = vld [vmem:[#allocation10 + $0xbe0] sm:$0xff]
    %v4928 = vld [vmem:[#allocation10 + $0xbe8] sm:$0xff]
    %v4929 = vld [vmem:[#allocation10 + $0xbf0] sm:$0xff]
    %v4930 = vld [vmem:[#allocation10 + $0xbf8] sm:$0xff]
    %v4931 = vld [vmem:[#allocation10 + $0xc00] sm:$0xff]
    %v4932 = vld [vmem:[#allocation10 + $0xc08] sm:$0xff]
    %v4933 = vld [vmem:[#allocation10 + $0xc10] sm:$0xff]
    %v4934 = vld [vmem:[#allocation10 + $0xc18] sm:$0xff]
    %v4935 = vld [vmem:[#allocation10 + $0xc20] sm:$0xff]
    %v4936 = vld [vmem:[#allocation10 + $0xc28] sm:$0xff]
    %v4937 = vld [vmem:[#allocation10 + $0xc30] sm:$0xff]
    %v4938 = vld [vmem:[#allocation10 + $0xc38] sm:$0xff]
    %v4939 = vld [vmem:[#allocation10 + $0xc40] sm:$0xff]
    %v4940 = vld [vmem:[#allocation10 + $0xc48] sm:$0xff]
    %v4941 = vld [vmem:[#allocation10 + $0xc50] sm:$0xff]
    %v4942 = vld [vmem:[#allocation10 + $0xc58] sm:$0xff]
    %v4943 = vld [vmem:[#allocation10 + $0xc60] sm:$0xff]
    %v4944 = vld [vmem:[#allocation10 + $0xc68] sm:$0xff]
    %v4945 = vld [vmem:[#allocation10 + $0xc70] sm:$0xff]
    %v4946 = vld [vmem:[#allocation10 + $0xc78] sm:$0xff]
    %v4947 = vld [vmem:[#allocation10 + $0xc80] sm:$0xff]
    %v4948 = vld [vmem:[#allocation10 + $0xc88] sm:$0xff]
    %v4949 = vld [vmem:[#allocation10 + $0xc90] sm:$0xff]
    %v4950 = vld [vmem:[#allocation10 + $0xc98] sm:$0xff]
    %v4951 = vld [vmem:[#allocation10 + $0xca0] sm:$0xff]
    %v4952 = vld [vmem:[#allocation10 + $0xca8] sm:$0xff]
    %v4953 = vld [vmem:[#allocation10 + $0xcb0] sm:$0xff]
    %v4954 = vld [vmem:[#allocation10 + $0xcb8] sm:$0xff]
    %v4955 = vld [vmem:[#allocation10 + $0xcc0] sm:$0xff]
    %v4956 = vld [vmem:[#allocation10 + $0xcc8] sm:$0xff]
    %v4957 = vld [vmem:[#allocation10 + $0xcd0] sm:$0xff]
    %v4958 = vld [vmem:[#allocation10 + $0xcd8] sm:$0xff]
    %v4959 = vld [vmem:[#allocation10 + $0xce0] sm:$0xff]
    %v4960 = vld [vmem:[#allocation10 + $0xce8] sm:$0xff]
    %v4961 = vld [vmem:[#allocation10 + $0xcf0] sm:$0xff]
    %v4962 = vld [vmem:[#allocation10 + $0xcf8] sm:$0xff]
    %v4963 = vld [vmem:[#allocation10 + $0xd00] sm:$0xff]
    %v4964 = vld [vmem:[#allocation10 + $0xd08] sm:$0xff]
    %v4965 = vld [vmem:[#allocation10 + $0xd10] sm:$0xff]
    %v4966 = vld [vmem:[#allocation10 + $0xd18] sm:$0xff]
    %v4967 = vld [vmem:[#allocation10 + $0xd20] sm:$0xff]
    %v4968 = vld [vmem:[#allocation10 + $0xd28] sm:$0xff]
    %v4969 = vld [vmem:[#allocation10 + $0xd30] sm:$0xff]
    %v4970 = vld [vmem:[#allocation10 + $0xd38] sm:$0xff]
    %v4971 = vld [vmem:[#allocation10 + $0xd40] sm:$0xff]
    %v4972 = vld [vmem:[#allocation10 + $0xd48] sm:$0xff]
    %v4973 = vld [vmem:[#allocation10 + $0xd50] sm:$0xff]
    %v4974 = vld [vmem:[#allocation10 + $0xd58] sm:$0xff]
    %v4975 = vld [vmem:[#allocation10 + $0xd60] sm:$0xff]
    %v4976 = vld [vmem:[#allocation10 + $0xd68] sm:$0xff]
    %v4977 = vld [vmem:[#allocation10 + $0xd70] sm:$0xff]
    %v4978 = vld [vmem:[#allocation10 + $0xd78] sm:$0xff]
    %v4979 = vld [vmem:[#allocation10 + $0xd80] sm:$0xff]
    %v4980 = vld [vmem:[#allocation10 + $0xd88] sm:$0xff]
    %v4981 = vld [vmem:[#allocation10 + $0xd90] sm:$0xff]
    %v4982 = vld [vmem:[#allocation10 + $0xd98] sm:$0xff]
    %v4983 = vld [vmem:[#allocation10 + $0xda0] sm:$0xff]
    %v4984 = vld [vmem:[#allocation10 + $0xda8] sm:$0xff]
    %v4985 = vld [vmem:[#allocation10 + $0xdb0] sm:$0xff]
    %v4986 = vld [vmem:[#allocation10 + $0xdb8] sm:$0xff]
    %v4987 = vld [vmem:[#allocation10 + $0xdc0] sm:$0xff]
    %v4988 = vld [vmem:[#allocation10 + $0xdc8] sm:$0xff]
    %v4989 = vld [vmem:[#allocation10 + $0xdd0] sm:$0xff]
    %v4990 = vld [vmem:[#allocation10 + $0xdd8] sm:$0xff]
    %v4991 = vld [vmem:[#allocation10 + $0xde0] sm:$0xff]
    %v4992 = vld [vmem:[#allocation10 + $0xde8] sm:$0xff]
    %v4993 = vld [vmem:[#allocation10 + $0xdf0] sm:$0xff]
    %v4994 = vld [vmem:[#allocation10 + $0xdf8] sm:$0xff]
    %v4995 = vld [vmem:[#allocation10 + $0xe00] sm:$0xff]
    %v4996 = vld [vmem:[#allocation10 + $0xe08] sm:$0xff]
    %v4997 = vld [vmem:[#allocation10 + $0xe10] sm:$0xff]
    %v4998 = vld [vmem:[#allocation10 + $0xe18] sm:$0xff]
    %v4999 = vld [vmem:[#allocation10 + $0xe20] sm:$0xff]
    %v5000 = vld [vmem:[#allocation10 + $0xe28] sm:$0xff]
    %v5001 = vld [vmem:[#allocation10 + $0xe30] sm:$0xff]
    %v5002 = vld [vmem:[#allocation10 + $0xe38] sm:$0xff]
    %v5003 = vld [vmem:[#allocation10 + $0xe40] sm:$0xff]
    %v5004 = vld [vmem:[#allocation10 + $0xe48] sm:$0xff]
    %v5005 = vld [vmem:[#allocation10 + $0xe50] sm:$0xff]
    %v5006 = vld [vmem:[#allocation10 + $0xe58] sm:$0xff]
    %v5007 = vld [vmem:[#allocation10 + $0xe60] sm:$0xff]
    %v5008 = vld [vmem:[#allocation10 + $0xe68] sm:$0xff]
    %v5009 = vld [vmem:[#allocation10 + $0xe70] sm:$0xff]
    %v5010 = vld [vmem:[#allocation10 + $0xe78] sm:$0xff]
    %v5011 = vld [vmem:[#allocation10 + $0xe80] sm:$0xff]
    %v5012 = vld [vmem:[#allocation10 + $0xe88] sm:$0xff]
    %v5013 = vld [vmem:[#allocation10 + $0xe90] sm:$0xff]
    %v5014 = vld [vmem:[#allocation10 + $0xe98] sm:$0xff]
    %v5015 = vld [vmem:[#allocation10 + $0xea0] sm:$0xff]
    %v5016 = vld [vmem:[#allocation10 + $0xea8] sm:$0xff]
    %v5017 = vld [vmem:[#allocation10 + $0xeb0] sm:$0xff]
    %v5018 = vld [vmem:[#allocation10 + $0xeb8] sm:$0xff]
    %v5019 = vld [vmem:[#allocation10 + $0xec0] sm:$0xff]
    %v5020 = vld [vmem:[#allocation10 + $0xec8] sm:$0xff]
    %v5021 = vld [vmem:[#allocation10 + $0xed0] sm:$0xff]
    %v5022 = vld [vmem:[#allocation10 + $0xed8] sm:$0xff]
    %v5023 = vld [vmem:[#allocation10 + $0xee0] sm:$0xff]
    %v5024 = vld [vmem:[#allocation10 + $0xee8] sm:$0xff]
    %v5025 = vld [vmem:[#allocation10 + $0xef0] sm:$0xff]
    %v5026 = vld [vmem:[#allocation10 + $0xef8] sm:$0xff]
    %v5027 = vld [vmem:[#allocation10 + $0xf00] sm:$0xff]
    %v5028 = vld [vmem:[#allocation10 + $0xf08] sm:$0xff]
    %v5029 = vld [vmem:[#allocation10 + $0xf10] sm:$0xff]
    %v5030 = vld [vmem:[#allocation10 + $0xf18] sm:$0xff]
    %v5031 = vld [vmem:[#allocation10 + $0xf20] sm:$0xff]
    %v5032 = vld [vmem:[#allocation10 + $0xf28] sm:$0xff]
    %v5033 = vld [vmem:[#allocation10 + $0xf30] sm:$0xff]
    %v5034 = vld [vmem:[#allocation10 + $0xf38] sm:$0xff]
    %v5035 = vld [vmem:[#allocation10 + $0xf40] sm:$0xff]
    %v5036 = vld [vmem:[#allocation10 + $0xf48] sm:$0xff]
    %v5037 = vld [vmem:[#allocation10 + $0xf50] sm:$0xff]
    %v5038 = vld [vmem:[#allocation10 + $0xf58] sm:$0xff]
    %v5039 = vld [vmem:[#allocation10 + $0xf60] sm:$0xff]
    %v5040 = vld [vmem:[#allocation10 + $0xf68] sm:$0xff]
    %v5041 = vld [vmem:[#allocation10 + $0xf70] sm:$0xff]
    %v5042 = vld [vmem:[#allocation10 + $0xf78] sm:$0xff]
    %v5043 = vld [vmem:[#allocation10 + $0xf80] sm:$0xff]
    %v5044 = vld [vmem:[#allocation10 + $0xf88] sm:$0xff]
    %v5045 = vld [vmem:[#allocation10 + $0xf90] sm:$0xff]
    %v5046 = vld [vmem:[#allocation10 + $0xf98] sm:$0xff]
    %v5047 = vld [vmem:[#allocation10 + $0xfa0] sm:$0xff]
    %v5048 = vld [vmem:[#allocation10 + $0xfa8] sm:$0xff]
    %v5049 = vld [vmem:[#allocation10 + $0xfb0] sm:$0xff]
    %v5050 = vld [vmem:[#allocation10 + $0xfb8] sm:$0xff]
    %v5051 = vld [vmem:[#allocation10 + $0xfc0] sm:$0xff]
    %v5052 = vld [vmem:[#allocation10 + $0xfc8] sm:$0xff]
    %v5053 = vld [vmem:[#allocation10 + $0xfd0] sm:$0xff]
    %v5054 = vld [vmem:[#allocation10 + $0xfd8] sm:$0xff]
    %v5055 = vld [vmem:[#allocation10 + $0xfe0] sm:$0xff]
    %v5056 = vld [vmem:[#allocation10 + $0xfe8] sm:$0xff]
    %v5057 = vld [vmem:[#allocation10 + $0xff0] sm:$0xff]
    %v5058 = vld [vmem:[#allocation10 + $0xff8] sm:$0xff]
    %v5059 = vld [vmem:[#allocation11] sm:$0xff]
    %v5061 = vlaneseq
    %v5062 = vshrl.u32 %v5061, 7
    %v5063 = vsub.s32 0, %v5062
    %v5064 = vrot.slane %v5059, %v5063
    %v5065 = vlaneseq
    %v5066 = vshrl.u32 %v5065, 7
    %v5067 = vsub.s32 1, %v5066
    %v5068 = vrot.slane %v5059, %v5067
    %v5069 = vlaneseq
    %v5070 = vshrl.u32 %v5069, 7
    %v5071 = vsub.s32 2, %v5070
    %v5072 = vrot.slane %v5059, %v5071
    %v5073 = vlaneseq
    %v5074 = vshrl.u32 %v5073, 7
    %v5075 = vsub.s32 3, %v5074
    %v5076 = vrot.slane %v5059, %v5075
    %v5077 = vlaneseq
    %v5078 = vshrl.u32 %v5077, 7
    %v5079 = vsub.s32 4, %v5078
    %v5080 = vrot.slane %v5059, %v5079
    %v5081 = vlaneseq
    %v5082 = vshrl.u32 %v5081, 7
    %v5083 = vsub.s32 5, %v5082
    %v5084 = vrot.slane %v5059, %v5083
    %v5085 = vlaneseq
    %v5086 = vshrl.u32 %v5085, 7
    %v5087 = vsub.s32 6, %v5086
    %v5088 = vrot.slane %v5059, %v5087
    %v5089 = vlaneseq
    %v5090 = vshrl.u32 %v5089, 7
    %v5091 = vsub.s32 7, %v5090
    %v5092 = vrot.slane %v5059, %v5091
    %v5613 = vunpack.c.l.b16 %v4547
    %v5614 = vunpack.c.h.b16 %v4547
    %v5615 = vunpack.c.l.b16 %v4548
    %v5616 = vunpack.c.h.b16 %v4548
    %v5617 = vunpack.c.l.b16 %v4549
    %v5618 = vunpack.c.h.b16 %v4549
    %v5619 = vunpack.c.l.b16 %v4550
    %v5620 = vunpack.c.h.b16 %v4550
    %v5621 = vunpack.c.l.b16 %v4551
    %v5622 = vunpack.c.h.b16 %v4551
    %v5623 = vunpack.c.l.b16 %v4552
    %v5624 = vunpack.c.h.b16 %v4552
    %v5625 = vunpack.c.l.b16 %v4553
    %v5626 = vunpack.c.h.b16 %v4553
    %v5627 = vunpack.c.l.b16 %v4554
    %v5628 = vunpack.c.h.b16 %v4554
    %v5629 = vunpack.c.l.b16 %v4555
    %v5630 = vunpack.c.h.b16 %v4555
    %v5631 = vunpack.c.l.b16 %v4556
    %v5632 = vunpack.c.h.b16 %v4556
    %v5633 = vunpack.c.l.b16 %v4557
    %v5634 = vunpack.c.h.b16 %v4557
    %v5635 = vunpack.c.l.b16 %v4558
    %v5636 = vunpack.c.h.b16 %v4558
    %v5637 = vunpack.c.l.b16 %v4559
    %v5638 = vunpack.c.h.b16 %v4559
    %v5639 = vunpack.c.l.b16 %v4560
    %v5640 = vunpack.c.h.b16 %v4560
    %v5641 = vunpack.c.l.b16 %v4561
    %v5642 = vunpack.c.h.b16 %v4561
    %v5643 = vunpack.c.l.b16 %v4562
    %v5644 = vunpack.c.h.b16 %v4562
    %v5645 = vunpack.c.l.b16 %v4563
    %v5646 = vunpack.c.h.b16 %v4563
    %v5647 = vunpack.c.l.b16 %v4564
    %v5648 = vunpack.c.h.b16 %v4564
    %v5649 = vunpack.c.l.b16 %v4565
    %v5650 = vunpack.c.h.b16 %v4565
    %v5651 = vunpack.c.l.b16 %v4566
    %v5652 = vunpack.c.h.b16 %v4566
    %v5653 = vunpack.c.l.b16 %v4567
    %v5654 = vunpack.c.h.b16 %v4567
    %v5655 = vunpack.c.l.b16 %v4568
    %v5656 = vunpack.c.h.b16 %v4568
    %v5657 = vunpack.c.l.b16 %v4569
    %v5658 = vunpack.c.h.b16 %v4569
    %v5659 = vunpack.c.l.b16 %v4570
    %v5660 = vunpack.c.h.b16 %v4570
    %v5661 = vunpack.c.l.b16 %v4571
    %v5662 = vunpack.c.h.b16 %v4571
    %v5663 = vunpack.c.l.b16 %v4572
    %v5664 = vunpack.c.h.b16 %v4572
    %v5665 = vunpack.c.l.b16 %v4573
    %v5666 = vunpack.c.h.b16 %v4573
    %v5667 = vunpack.c.l.b16 %v4574
    %v5668 = vunpack.c.h.b16 %v4574
    %v5669 = vunpack.c.l.b16 %v4575
    %v5670 = vunpack.c.h.b16 %v4575
    %v5671 = vunpack.c.l.b16 %v4576
    %v5672 = vunpack.c.h.b16 %v4576
    %v5673 = vunpack.c.l.b16 %v4577
    %v5674 = vunpack.c.h.b16 %v4577
    %v5675 = vunpack.c.l.b16 %v4578
    %v5676 = vunpack.c.h.b16 %v4578
    %v5677 = vunpack.c.l.b16 %v4579
    %v5678 = vunpack.c.h.b16 %v4579
    %v5679 = vunpack.c.l.b16 %v4580
    %v5680 = vunpack.c.h.b16 %v4580
    %v5681 = vunpack.c.l.b16 %v4581
    %v5682 = vunpack.c.h.b16 %v4581
    %v5683 = vunpack.c.l.b16 %v4582
    %v5684 = vunpack.c.h.b16 %v4582
    %v5685 = vunpack.c.l.b16 %v4583
    %v5686 = vunpack.c.h.b16 %v4583
    %v5687 = vunpack.c.l.b16 %v4584
    %v5688 = vunpack.c.h.b16 %v4584
    %v5689 = vunpack.c.l.b16 %v4585
    %v5690 = vunpack.c.h.b16 %v4585
    %v5691 = vunpack.c.l.b16 %v4586
    %v5692 = vunpack.c.h.b16 %v4586
    %v5693 = vunpack.c.l.b16 %v4587
    %v5694 = vunpack.c.h.b16 %v4587
    %v5695 = vunpack.c.l.b16 %v4588
    %v5696 = vunpack.c.h.b16 %v4588
    %v5697 = vunpack.c.l.b16 %v4589
    %v5698 = vunpack.c.h.b16 %v4589
    %v5699 = vunpack.c.l.b16 %v4590
    %v5700 = vunpack.c.h.b16 %v4590
    %v5701 = vunpack.c.l.b16 %v4591
    %v5702 = vunpack.c.h.b16 %v4591
    %v5703 = vunpack.c.l.b16 %v4592
    %v5704 = vunpack.c.h.b16 %v4592
    %v5705 = vunpack.c.l.b16 %v4593
    %v5706 = vunpack.c.h.b16 %v4593
    %v5707 = vunpack.c.l.b16 %v4594
    %v5708 = vunpack.c.h.b16 %v4594
    %v5709 = vunpack.c.l.b16 %v4595
    %v5710 = vunpack.c.h.b16 %v4595
    %v5711 = vunpack.c.l.b16 %v4596
    %v5712 = vunpack.c.h.b16 %v4596
    %v5713 = vunpack.c.l.b16 %v4597
    %v5714 = vunpack.c.h.b16 %v4597
    %v5715 = vunpack.c.l.b16 %v4598
    %v5716 = vunpack.c.h.b16 %v4598
    %v5717 = vunpack.c.l.b16 %v4599
    %v5718 = vunpack.c.h.b16 %v4599
    %v5719 = vunpack.c.l.b16 %v4600
    %v5720 = vunpack.c.h.b16 %v4600
    %v5721 = vunpack.c.l.b16 %v4601
    %v5722 = vunpack.c.h.b16 %v4601
    %v5723 = vunpack.c.l.b16 %v4602
    %v5724 = vunpack.c.h.b16 %v4602
    %v5725 = vunpack.c.l.b16 %v4603
    %v5726 = vunpack.c.h.b16 %v4603
    %v5727 = vunpack.c.l.b16 %v4604
    %v5728 = vunpack.c.h.b16 %v4604
    %v5729 = vunpack.c.l.b16 %v4605
    %v5730 = vunpack.c.h.b16 %v4605
    %v5731 = vunpack.c.l.b16 %v4606
    %v5732 = vunpack.c.h.b16 %v4606
    %v5733 = vunpack.c.l.b16 %v4607
    %v5734 = vunpack.c.h.b16 %v4607
    %v5735 = vunpack.c.l.b16 %v4608
    %v5736 = vunpack.c.h.b16 %v4608
    %v5737 = vunpack.c.l.b16 %v4609
    %v5738 = vunpack.c.h.b16 %v4609
    %v5739 = vunpack.c.l.b16 %v4610
    %v5740 = vunpack.c.h.b16 %v4610
    %v5741 = vunpack.c.l.b16 %v4611
    %v5742 = vunpack.c.h.b16 %v4611
    %v5743 = vunpack.c.l.b16 %v4612
    %v5744 = vunpack.c.h.b16 %v4612
    %v5745 = vunpack.c.l.b16 %v4613
    %v5746 = vunpack.c.h.b16 %v4613
    %v5747 = vunpack.c.l.b16 %v4614
    %v5748 = vunpack.c.h.b16 %v4614
    %v5749 = vunpack.c.l.b16 %v4615
    %v5750 = vunpack.c.h.b16 %v4615
    %v5751 = vunpack.c.l.b16 %v4616
    %v5752 = vunpack.c.h.b16 %v4616
    %v5753 = vunpack.c.l.b16 %v4617
    %v5754 = vunpack.c.h.b16 %v4617
    %v5755 = vunpack.c.l.b16 %v4618
    %v5756 = vunpack.c.h.b16 %v4618
    %v5757 = vunpack.c.l.b16 %v4619
    %v5758 = vunpack.c.h.b16 %v4619
    %v5759 = vunpack.c.l.b16 %v4620
    %v5760 = vunpack.c.h.b16 %v4620
    %v5761 = vunpack.c.l.b16 %v4621
    %v5762 = vunpack.c.h.b16 %v4621
    %v5763 = vunpack.c.l.b16 %v4622
    %v5764 = vunpack.c.h.b16 %v4622
    %v5765 = vunpack.c.l.b16 %v4623
    %v5766 = vunpack.c.h.b16 %v4623
    %v5767 = vunpack.c.l.b16 %v4624
    %v5768 = vunpack.c.h.b16 %v4624
    %v5769 = vunpack.c.l.b16 %v4625
    %v5770 = vunpack.c.h.b16 %v4625
    %v5771 = vunpack.c.l.b16 %v4626
    %v5772 = vunpack.c.h.b16 %v4626
    %v5773 = vunpack.c.l.b16 %v4627
    %v5774 = vunpack.c.h.b16 %v4627
    %v5775 = vunpack.c.l.b16 %v4628
    %v5776 = vunpack.c.h.b16 %v4628
    %v5777 = vunpack.c.l.b16 %v4629
    %v5778 = vunpack.c.h.b16 %v4629
    %v5779 = vunpack.c.l.b16 %v4630
    %v5780 = vunpack.c.h.b16 %v4630
    %v5781 = vunpack.c.l.b16 %v4631
    %v5782 = vunpack.c.h.b16 %v4631
    %v5783 = vunpack.c.l.b16 %v4632
    %v5784 = vunpack.c.h.b16 %v4632
    %v5785 = vunpack.c.l.b16 %v4633
    %v5786 = vunpack.c.h.b16 %v4633
    %v5787 = vunpack.c.l.b16 %v4634
    %v5788 = vunpack.c.h.b16 %v4634
    %v5789 = vunpack.c.l.b16 %v4635
    %v5790 = vunpack.c.h.b16 %v4635
    %v5791 = vunpack.c.l.b16 %v4636
    %v5792 = vunpack.c.h.b16 %v4636
    %v5793 = vunpack.c.l.b16 %v4637
    %v5794 = vunpack.c.h.b16 %v4637
    %v5795 = vunpack.c.l.b16 %v4638
    %v5796 = vunpack.c.h.b16 %v4638
    %v5797 = vunpack.c.l.b16 %v4639
    %v5798 = vunpack.c.h.b16 %v4639
    %v5799 = vunpack.c.l.b16 %v4640
    %v5800 = vunpack.c.h.b16 %v4640
    %v5801 = vunpack.c.l.b16 %v4641
    %v5802 = vunpack.c.h.b16 %v4641
    %v5803 = vunpack.c.l.b16 %v4642
    %v5804 = vunpack.c.h.b16 %v4642
    %v5805 = vunpack.c.l.b16 %v4643
    %v5806 = vunpack.c.h.b16 %v4643
    %v5807 = vunpack.c.l.b16 %v4644
    %v5808 = vunpack.c.h.b16 %v4644
    %v5809 = vunpack.c.l.b16 %v4645
    %v5810 = vunpack.c.h.b16 %v4645
    %v5811 = vunpack.c.l.b16 %v4646
    %v5812 = vunpack.c.h.b16 %v4646
    %v5813 = vunpack.c.l.b16 %v4647
    %v5814 = vunpack.c.h.b16 %v4647
    %v5815 = vunpack.c.l.b16 %v4648
    %v5816 = vunpack.c.h.b16 %v4648
    %v5817 = vunpack.c.l.b16 %v4649
    %v5818 = vunpack.c.h.b16 %v4649
    %v5819 = vunpack.c.l.b16 %v4650
    %v5820 = vunpack.c.h.b16 %v4650
    %v5821 = vunpack.c.l.b16 %v4651
    %v5822 = vunpack.c.h.b16 %v4651
    %v5823 = vunpack.c.l.b16 %v4652
    %v5824 = vunpack.c.h.b16 %v4652
    %v5825 = vunpack.c.l.b16 %v4653
    %v5826 = vunpack.c.h.b16 %v4653
    %v5827 = vunpack.c.l.b16 %v4654
    %v5828 = vunpack.c.h.b16 %v4654
    %v5829 = vunpack.c.l.b16 %v4655
    %v5830 = vunpack.c.h.b16 %v4655
    %v5831 = vunpack.c.l.b16 %v4656
    %v5832 = vunpack.c.h.b16 %v4656
    %v5833 = vunpack.c.l.b16 %v4657
    %v5834 = vunpack.c.h.b16 %v4657
    %v5835 = vunpack.c.l.b16 %v4658
    %v5836 = vunpack.c.h.b16 %v4658
    %v5837 = vunpack.c.l.b16 %v4659
    %v5838 = vunpack.c.h.b16 %v4659
    %v5839 = vunpack.c.l.b16 %v4660
    %v5840 = vunpack.c.h.b16 %v4660
    %v5841 = vunpack.c.l.b16 %v4661
    %v5842 = vunpack.c.h.b16 %v4661
    %v5843 = vunpack.c.l.b16 %v4662
    %v5844 = vunpack.c.h.b16 %v4662
    %v5845 = vunpack.c.l.b16 %v4663
    %v5846 = vunpack.c.h.b16 %v4663
    %v5847 = vunpack.c.l.b16 %v4664
    %v5848 = vunpack.c.h.b16 %v4664
    %v5849 = vunpack.c.l.b16 %v4665
    %v5850 = vunpack.c.h.b16 %v4665
    %v5851 = vunpack.c.l.b16 %v4666
    %v5852 = vunpack.c.h.b16 %v4666
    %v5853 = vunpack.c.l.b16 %v4667
    %v5854 = vunpack.c.h.b16 %v4667
    %v5855 = vunpack.c.l.b16 %v4668
    %v5856 = vunpack.c.h.b16 %v4668
    %v5857 = vunpack.c.l.b16 %v4669
    %v5858 = vunpack.c.h.b16 %v4669
    %v5859 = vunpack.c.l.b16 %v4670
    %v5860 = vunpack.c.h.b16 %v4670
    %v5861 = vunpack.c.l.b16 %v4671
    %v5862 = vunpack.c.h.b16 %v4671
    %v5863 = vunpack.c.l.b16 %v4672
    %v5864 = vunpack.c.h.b16 %v4672
    %v5865 = vunpack.c.l.b16 %v4673
    %v5866 = vunpack.c.h.b16 %v4673
    %v5867 = vunpack.c.l.b16 %v4674
    %v5868 = vunpack.c.h.b16 %v4674
    %v5869 = vunpack.c.l.b16 %v4675
    %v5870 = vunpack.c.h.b16 %v4675
    %v5871 = vunpack.c.l.b16 %v4676
    %v5872 = vunpack.c.h.b16 %v4676
    %v5873 = vunpack.c.l.b16 %v4677
    %v5874 = vunpack.c.h.b16 %v4677
    %v5875 = vunpack.c.l.b16 %v4678
    %v5876 = vunpack.c.h.b16 %v4678
    %v5877 = vunpack.c.l.b16 %v4679
    %v5878 = vunpack.c.h.b16 %v4679
    %v5879 = vunpack.c.l.b16 %v4680
    %v5880 = vunpack.c.h.b16 %v4680
    %v5881 = vunpack.c.l.b16 %v4681
    %v5882 = vunpack.c.h.b16 %v4681
    %v5883 = vunpack.c.l.b16 %v4682
    %v5884 = vunpack.c.h.b16 %v4682
    %v5885 = vunpack.c.l.b16 %v4683
    %v5886 = vunpack.c.h.b16 %v4683
    %v5887 = vunpack.c.l.b16 %v4684
    %v5888 = vunpack.c.h.b16 %v4684
    %v5889 = vunpack.c.l.b16 %v4685
    %v5890 = vunpack.c.h.b16 %v4685
    %v5891 = vunpack.c.l.b16 %v4686
    %v5892 = vunpack.c.h.b16 %v4686
    %v5893 = vunpack.c.l.b16 %v4687
    %v5894 = vunpack.c.h.b16 %v4687
    %v5895 = vunpack.c.l.b16 %v4688
    %v5896 = vunpack.c.h.b16 %v4688
    %v5897 = vunpack.c.l.b16 %v4689
    %v5898 = vunpack.c.h.b16 %v4689
    %v5899 = vunpack.c.l.b16 %v4690
    %v5900 = vunpack.c.h.b16 %v4690
    %v5901 = vunpack.c.l.b16 %v4691
    %v5902 = vunpack.c.h.b16 %v4691
    %v5903 = vunpack.c.l.b16 %v4692
    %v5904 = vunpack.c.h.b16 %v4692
    %v5905 = vunpack.c.l.b16 %v4693
    %v5906 = vunpack.c.h.b16 %v4693
    %v5907 = vunpack.c.l.b16 %v4694
    %v5908 = vunpack.c.h.b16 %v4694
    %v5909 = vunpack.c.l.b16 %v4695
    %v5910 = vunpack.c.h.b16 %v4695
    %v5911 = vunpack.c.l.b16 %v4696
    %v5912 = vunpack.c.h.b16 %v4696
    %v5913 = vunpack.c.l.b16 %v4697
    %v5914 = vunpack.c.h.b16 %v4697
    %v5915 = vunpack.c.l.b16 %v4698
    %v5916 = vunpack.c.h.b16 %v4698
    %v5917 = vunpack.c.l.b16 %v4699
    %v5918 = vunpack.c.h.b16 %v4699
    %v5919 = vunpack.c.l.b16 %v4700
    %v5920 = vunpack.c.h.b16 %v4700
    %v5921 = vunpack.c.l.b16 %v4701
    %v5922 = vunpack.c.h.b16 %v4701
    %v5923 = vunpack.c.l.b16 %v4702
    %v5924 = vunpack.c.h.b16 %v4702
    %v5925 = vunpack.c.l.b16 %v4703
    %v5926 = vunpack.c.h.b16 %v4703
    %v5927 = vunpack.c.l.b16 %v4704
    %v5928 = vunpack.c.h.b16 %v4704
    %v5929 = vunpack.c.l.b16 %v4705
    %v5930 = vunpack.c.h.b16 %v4705
    %v5931 = vunpack.c.l.b16 %v4706
    %v5932 = vunpack.c.h.b16 %v4706
    %v5933 = vunpack.c.l.b16 %v4707
    %v5934 = vunpack.c.h.b16 %v4707
    %v5935 = vunpack.c.l.b16 %v4708
    %v5936 = vunpack.c.h.b16 %v4708
    %v5937 = vunpack.c.l.b16 %v4709
    %v5938 = vunpack.c.h.b16 %v4709
    %v5939 = vunpack.c.l.b16 %v4710
    %v5940 = vunpack.c.h.b16 %v4710
    %v5941 = vunpack.c.l.b16 %v4711
    %v5942 = vunpack.c.h.b16 %v4711
    %v5943 = vunpack.c.l.b16 %v4712
    %v5944 = vunpack.c.h.b16 %v4712
    %v5945 = vunpack.c.l.b16 %v4713
    %v5946 = vunpack.c.h.b16 %v4713
    %v5947 = vunpack.c.l.b16 %v4714
    %v5948 = vunpack.c.h.b16 %v4714
    %v5949 = vunpack.c.l.b16 %v4715
    %v5950 = vunpack.c.h.b16 %v4715
    %v5951 = vunpack.c.l.b16 %v4716
    %v5952 = vunpack.c.h.b16 %v4716
    %v5953 = vunpack.c.l.b16 %v4717
    %v5954 = vunpack.c.h.b16 %v4717
    %v5955 = vunpack.c.l.b16 %v4718
    %v5956 = vunpack.c.h.b16 %v4718
    %v5957 = vunpack.c.l.b16 %v4719
    %v5958 = vunpack.c.h.b16 %v4719
    %v5959 = vunpack.c.l.b16 %v4720
    %v5960 = vunpack.c.h.b16 %v4720
    %v5961 = vunpack.c.l.b16 %v4721
    %v5962 = vunpack.c.h.b16 %v4721
    %v5963 = vunpack.c.l.b16 %v4722
    %v5964 = vunpack.c.h.b16 %v4722
    %v5965 = vunpack.c.l.b16 %v4723
    %v5966 = vunpack.c.h.b16 %v4723
    %v5967 = vunpack.c.l.b16 %v4724
    %v5968 = vunpack.c.h.b16 %v4724
    %v5969 = vunpack.c.l.b16 %v4725
    %v5970 = vunpack.c.h.b16 %v4725
    %v5971 = vunpack.c.l.b16 %v4726
    %v5972 = vunpack.c.h.b16 %v4726
    %v5973 = vunpack.c.l.b16 %v4727
    %v5974 = vunpack.c.h.b16 %v4727
    %v5975 = vunpack.c.l.b16 %v4728
    %v5976 = vunpack.c.h.b16 %v4728
    %v5977 = vunpack.c.l.b16 %v4729
    %v5978 = vunpack.c.h.b16 %v4729
    %v5979 = vunpack.c.l.b16 %v4730
    %v5980 = vunpack.c.h.b16 %v4730
    %v5981 = vunpack.c.l.b16 %v4731
    %v5982 = vunpack.c.h.b16 %v4731
    %v5983 = vunpack.c.l.b16 %v4732
    %v5984 = vunpack.c.h.b16 %v4732
    %v5985 = vunpack.c.l.b16 %v4733
    %v5986 = vunpack.c.h.b16 %v4733
    %v5987 = vunpack.c.l.b16 %v4734
    %v5988 = vunpack.c.h.b16 %v4734
    %v5989 = vunpack.c.l.b16 %v4735
    %v5990 = vunpack.c.h.b16 %v4735
    %v5991 = vunpack.c.l.b16 %v4736
    %v5992 = vunpack.c.h.b16 %v4736
    %v5993 = vunpack.c.l.b16 %v4737
    %v5994 = vunpack.c.h.b16 %v4737
    %v5995 = vunpack.c.l.b16 %v4738
    %v5996 = vunpack.c.h.b16 %v4738
    %v5997 = vunpack.c.l.b16 %v4739
    %v5998 = vunpack.c.h.b16 %v4739
    %v5999 = vunpack.c.l.b16 %v4740
    %v6000 = vunpack.c.h.b16 %v4740
    %v6001 = vunpack.c.l.b16 %v4741
    %v6002 = vunpack.c.h.b16 %v4741
    %v6003 = vunpack.c.l.b16 %v4742
    %v6004 = vunpack.c.h.b16 %v4742
    %v6005 = vunpack.c.l.b16 %v4743
    %v6006 = vunpack.c.h.b16 %v4743
    %v6007 = vunpack.c.l.b16 %v4744
    %v6008 = vunpack.c.h.b16 %v4744
    %v6009 = vunpack.c.l.b16 %v4745
    %v6010 = vunpack.c.h.b16 %v4745
    %v6011 = vunpack.c.l.b16 %v4746
    %v6012 = vunpack.c.h.b16 %v4746
    %v6013 = vunpack.c.l.b16 %v4747
    %v6014 = vunpack.c.h.b16 %v4747
    %v6015 = vunpack.c.l.b16 %v4748
    %v6016 = vunpack.c.h.b16 %v4748
    %v6017 = vunpack.c.l.b16 %v4749
    %v6018 = vunpack.c.h.b16 %v4749
    %v6019 = vunpack.c.l.b16 %v4750
    %v6020 = vunpack.c.h.b16 %v4750
    %v6021 = vunpack.c.l.b16 %v4751
    %v6022 = vunpack.c.h.b16 %v4751
    %v6023 = vunpack.c.l.b16 %v4752
    %v6024 = vunpack.c.h.b16 %v4752
    %v6025 = vunpack.c.l.b16 %v4753
    %v6026 = vunpack.c.h.b16 %v4753
    %v6027 = vunpack.c.l.b16 %v4754
    %v6028 = vunpack.c.h.b16 %v4754
    %v6029 = vunpack.c.l.b16 %v4755
    %v6030 = vunpack.c.h.b16 %v4755
    %v6031 = vunpack.c.l.b16 %v4756
    %v6032 = vunpack.c.h.b16 %v4756
    %v6033 = vunpack.c.l.b16 %v4757
    %v6034 = vunpack.c.h.b16 %v4757
    %v6035 = vunpack.c.l.b16 %v4758
    %v6036 = vunpack.c.h.b16 %v4758
    %v6037 = vunpack.c.l.b16 %v4759
    %v6038 = vunpack.c.h.b16 %v4759
    %v6039 = vunpack.c.l.b16 %v4760
    %v6040 = vunpack.c.h.b16 %v4760
    %v6041 = vunpack.c.l.b16 %v4761
    %v6042 = vunpack.c.h.b16 %v4761
    %v6043 = vunpack.c.l.b16 %v4762
    %v6044 = vunpack.c.h.b16 %v4762
    %v6045 = vunpack.c.l.b16 %v4763
    %v6046 = vunpack.c.h.b16 %v4763
    %v6047 = vunpack.c.l.b16 %v4764
    %v6048 = vunpack.c.h.b16 %v4764
    %v6049 = vunpack.c.l.b16 %v4765
    %v6050 = vunpack.c.h.b16 %v4765
    %v6051 = vunpack.c.l.b16 %v4766
    %v6052 = vunpack.c.h.b16 %v4766
    %v6053 = vunpack.c.l.b16 %v4767
    %v6054 = vunpack.c.h.b16 %v4767
    %v6055 = vunpack.c.l.b16 %v4768
    %v6056 = vunpack.c.h.b16 %v4768
    %v6057 = vunpack.c.l.b16 %v4769
    %v6058 = vunpack.c.h.b16 %v4769
    %v6059 = vunpack.c.l.b16 %v4770
    %v6060 = vunpack.c.h.b16 %v4770
    %v6061 = vunpack.c.l.b16 %v4771
    %v6062 = vunpack.c.h.b16 %v4771
    %v6063 = vunpack.c.l.b16 %v4772
    %v6064 = vunpack.c.h.b16 %v4772
    %v6065 = vunpack.c.l.b16 %v4773
    %v6066 = vunpack.c.h.b16 %v4773
    %v6067 = vunpack.c.l.b16 %v4774
    %v6068 = vunpack.c.h.b16 %v4774
    %v6069 = vunpack.c.l.b16 %v4775
    %v6070 = vunpack.c.h.b16 %v4775
    %v6071 = vunpack.c.l.b16 %v4776
    %v6072 = vunpack.c.h.b16 %v4776
    %v6073 = vunpack.c.l.b16 %v4777
    %v6074 = vunpack.c.h.b16 %v4777
    %v6075 = vunpack.c.l.b16 %v4778
    %v6076 = vunpack.c.h.b16 %v4778
    %v6077 = vunpack.c.l.b16 %v4779
    %v6078 = vunpack.c.h.b16 %v4779
    %v6079 = vunpack.c.l.b16 %v4780
    %v6080 = vunpack.c.h.b16 %v4780
    %v6081 = vunpack.c.l.b16 %v4781
    %v6082 = vunpack.c.h.b16 %v4781
    %v6083 = vunpack.c.l.b16 %v4782
    %v6084 = vunpack.c.h.b16 %v4782
    %v6085 = vunpack.c.l.b16 %v4783
    %v6086 = vunpack.c.h.b16 %v4783
    %v6087 = vunpack.c.l.b16 %v4784
    %v6088 = vunpack.c.h.b16 %v4784
    %v6089 = vunpack.c.l.b16 %v4785
    %v6090 = vunpack.c.h.b16 %v4785
    %v6091 = vunpack.c.l.b16 %v4786
    %v6092 = vunpack.c.h.b16 %v4786
    %v6093 = vunpack.c.l.b16 %v4787
    %v6094 = vunpack.c.h.b16 %v4787
    %v6095 = vunpack.c.l.b16 %v4788
    %v6096 = vunpack.c.h.b16 %v4788
    %v6097 = vunpack.c.l.b16 %v4789
    %v6098 = vunpack.c.h.b16 %v4789
    %v6099 = vunpack.c.l.b16 %v4790
    %v6100 = vunpack.c.h.b16 %v4790
    %v6101 = vunpack.c.l.b16 %v4791
    %v6102 = vunpack.c.h.b16 %v4791
    %v6103 = vunpack.c.l.b16 %v4792
    %v6104 = vunpack.c.h.b16 %v4792
    %v6105 = vunpack.c.l.b16 %v4793
    %v6106 = vunpack.c.h.b16 %v4793
    %v6107 = vunpack.c.l.b16 %v4794
    %v6108 = vunpack.c.h.b16 %v4794
    %v6109 = vunpack.c.l.b16 %v4795
    %v6110 = vunpack.c.h.b16 %v4795
    %v6111 = vunpack.c.l.b16 %v4796
    %v6112 = vunpack.c.h.b16 %v4796
    %v6113 = vunpack.c.l.b16 %v4797
    %v6114 = vunpack.c.h.b16 %v4797
    %v6115 = vunpack.c.l.b16 %v4798
    %v6116 = vunpack.c.h.b16 %v4798
    %v6117 = vunpack.c.l.b16 %v4799
    %v6118 = vunpack.c.h.b16 %v4799
    %v6119 = vunpack.c.l.b16 %v4800
    %v6120 = vunpack.c.h.b16 %v4800
    %v6121 = vunpack.c.l.b16 %v4801
    %v6122 = vunpack.c.h.b16 %v4801
    %v6123 = vunpack.c.l.b16 %v4802
    %v6124 = vunpack.c.h.b16 %v4802
    %v6125 = vunpack.c.l.b16 %v4803
    %v6126 = vunpack.c.h.b16 %v4803
    %v6127 = vunpack.c.l.b16 %v4804
    %v6128 = vunpack.c.h.b16 %v4804
    %v6129 = vunpack.c.l.b16 %v4805
    %v6130 = vunpack.c.h.b16 %v4805
    %v6131 = vunpack.c.l.b16 %v4806
    %v6132 = vunpack.c.h.b16 %v4806
    %v6133 = vunpack.c.l.b16 %v4807
    %v6134 = vunpack.c.h.b16 %v4807
    %v6135 = vunpack.c.l.b16 %v4808
    %v6136 = vunpack.c.h.b16 %v4808
    %v6137 = vunpack.c.l.b16 %v4809
    %v6138 = vunpack.c.h.b16 %v4809
    %v6139 = vunpack.c.l.b16 %v4810
    %v6140 = vunpack.c.h.b16 %v4810
    %v6141 = vunpack.c.l.b16 %v4811
    %v6142 = vunpack.c.h.b16 %v4811
    %v6143 = vunpack.c.l.b16 %v4812
    %v6144 = vunpack.c.h.b16 %v4812
    %v6145 = vunpack.c.l.b16 %v4813
    %v6146 = vunpack.c.h.b16 %v4813
    %v6147 = vunpack.c.l.b16 %v4814
    %v6148 = vunpack.c.h.b16 %v4814
    %v6149 = vunpack.c.l.b16 %v4815
    %v6150 = vunpack.c.h.b16 %v4815
    %v6151 = vunpack.c.l.b16 %v4816
    %v6152 = vunpack.c.h.b16 %v4816
    %v6153 = vunpack.c.l.b16 %v4817
    %v6154 = vunpack.c.h.b16 %v4817
    %v6155 = vunpack.c.l.b16 %v4818
    %v6156 = vunpack.c.h.b16 %v4818
    %v6157 = vunpack.c.l.b16 %v4819
    %v6158 = vunpack.c.h.b16 %v4819
    %v6159 = vunpack.c.l.b16 %v4820
    %v6160 = vunpack.c.h.b16 %v4820
    %v6161 = vunpack.c.l.b16 %v4821
    %v6162 = vunpack.c.h.b16 %v4821
    %v6163 = vunpack.c.l.b16 %v4822
    %v6164 = vunpack.c.h.b16 %v4822
    %v6165 = vunpack.c.l.b16 %v4823
    %v6166 = vunpack.c.h.b16 %v4823
    %v6167 = vunpack.c.l.b16 %v4824
    %v6168 = vunpack.c.h.b16 %v4824
    %v6169 = vunpack.c.l.b16 %v4825
    %v6170 = vunpack.c.h.b16 %v4825
    %v6171 = vunpack.c.l.b16 %v4826
    %v6172 = vunpack.c.h.b16 %v4826
    %v6173 = vunpack.c.l.b16 %v4827
    %v6174 = vunpack.c.h.b16 %v4827
    %v6175 = vunpack.c.l.b16 %v4828
    %v6176 = vunpack.c.h.b16 %v4828
    %v6177 = vunpack.c.l.b16 %v4829
    %v6178 = vunpack.c.h.b16 %v4829
    %v6179 = vunpack.c.l.b16 %v4830
    %v6180 = vunpack.c.h.b16 %v4830
    %v6181 = vunpack.c.l.b16 %v4831
    %v6182 = vunpack.c.h.b16 %v4831
    %v6183 = vunpack.c.l.b16 %v4832
    %v6184 = vunpack.c.h.b16 %v4832
    %v6185 = vunpack.c.l.b16 %v4833
    %v6186 = vunpack.c.h.b16 %v4833
    %v6187 = vunpack.c.l.b16 %v4834
    %v6188 = vunpack.c.h.b16 %v4834
    %v6189 = vunpack.c.l.b16 %v4835
    %v6190 = vunpack.c.h.b16 %v4835
    %v6191 = vunpack.c.l.b16 %v4836
    %v6192 = vunpack.c.h.b16 %v4836
    %v6193 = vunpack.c.l.b16 %v4837
    %v6194 = vunpack.c.h.b16 %v4837
    %v6195 = vunpack.c.l.b16 %v4838
    %v6196 = vunpack.c.h.b16 %v4838
    %v6197 = vunpack.c.l.b16 %v4839
    %v6198 = vunpack.c.h.b16 %v4839
    %v6199 = vunpack.c.l.b16 %v4840
    %v6200 = vunpack.c.h.b16 %v4840
    %v6201 = vunpack.c.l.b16 %v4841
    %v6202 = vunpack.c.h.b16 %v4841
    %v6203 = vunpack.c.l.b16 %v4842
    %v6204 = vunpack.c.h.b16 %v4842
    %v6205 = vunpack.c.l.b16 %v4843
    %v6206 = vunpack.c.h.b16 %v4843
    %v6207 = vunpack.c.l.b16 %v4844
    %v6208 = vunpack.c.h.b16 %v4844
    %v6209 = vunpack.c.l.b16 %v4845
    %v6210 = vunpack.c.h.b16 %v4845
    %v6211 = vunpack.c.l.b16 %v4846
    %v6212 = vunpack.c.h.b16 %v4846
    %v6213 = vunpack.c.l.b16 %v4847
    %v6214 = vunpack.c.h.b16 %v4847
    %v6215 = vunpack.c.l.b16 %v4848
    %v6216 = vunpack.c.h.b16 %v4848
    %v6217 = vunpack.c.l.b16 %v4849
    %v6218 = vunpack.c.h.b16 %v4849
    %v6219 = vunpack.c.l.b16 %v4850
    %v6220 = vunpack.c.h.b16 %v4850
    %v6221 = vunpack.c.l.b16 %v4851
    %v6222 = vunpack.c.h.b16 %v4851
    %v6223 = vunpack.c.l.b16 %v4852
    %v6224 = vunpack.c.h.b16 %v4852
    %v6225 = vunpack.c.l.b16 %v4853
    %v6226 = vunpack.c.h.b16 %v4853
    %v6227 = vunpack.c.l.b16 %v4854
    %v6228 = vunpack.c.h.b16 %v4854
    %v6229 = vunpack.c.l.b16 %v4855
    %v6230 = vunpack.c.h.b16 %v4855
    %v6231 = vunpack.c.l.b16 %v4856
    %v6232 = vunpack.c.h.b16 %v4856
    %v6233 = vunpack.c.l.b16 %v4857
    %v6234 = vunpack.c.h.b16 %v4857
    %v6235 = vunpack.c.l.b16 %v4858
    %v6236 = vunpack.c.h.b16 %v4858
    %v6237 = vunpack.c.l.b16 %v4859
    %v6238 = vunpack.c.h.b16 %v4859
    %v6239 = vunpack.c.l.b16 %v4860
    %v6240 = vunpack.c.h.b16 %v4860
    %v6241 = vunpack.c.l.b16 %v4861
    %v6242 = vunpack.c.h.b16 %v4861
    %v6243 = vunpack.c.l.b16 %v4862
    %v6244 = vunpack.c.h.b16 %v4862
    %v6245 = vunpack.c.l.b16 %v4863
    %v6246 = vunpack.c.h.b16 %v4863
    %v6247 = vunpack.c.l.b16 %v4864
    %v6248 = vunpack.c.h.b16 %v4864
    %v6249 = vunpack.c.l.b16 %v4865
    %v6250 = vunpack.c.h.b16 %v4865
    %v6251 = vunpack.c.l.b16 %v4866
    %v6252 = vunpack.c.h.b16 %v4866
    %v6253 = vunpack.c.l.b16 %v4867
    %v6254 = vunpack.c.h.b16 %v4867
    %v6255 = vunpack.c.l.b16 %v4868
    %v6256 = vunpack.c.h.b16 %v4868
    %v6257 = vunpack.c.l.b16 %v4869
    %v6258 = vunpack.c.h.b16 %v4869
    %v6259 = vunpack.c.l.b16 %v4870
    %v6260 = vunpack.c.h.b16 %v4870
    %v6261 = vunpack.c.l.b16 %v4871
    %v6262 = vunpack.c.h.b16 %v4871
    %v6263 = vunpack.c.l.b16 %v4872
    %v6264 = vunpack.c.h.b16 %v4872
    %v6265 = vunpack.c.l.b16 %v4873
    %v6266 = vunpack.c.h.b16 %v4873
    %v6267 = vunpack.c.l.b16 %v4874
    %v6268 = vunpack.c.h.b16 %v4874
    %v6269 = vunpack.c.l.b16 %v4875
    %v6270 = vunpack.c.h.b16 %v4875
    %v6271 = vunpack.c.l.b16 %v4876
    %v6272 = vunpack.c.h.b16 %v4876
    %v6273 = vunpack.c.l.b16 %v4877
    %v6274 = vunpack.c.h.b16 %v4877
    %v6275 = vunpack.c.l.b16 %v4878
    %v6276 = vunpack.c.h.b16 %v4878
    %v6277 = vunpack.c.l.b16 %v4879
    %v6278 = vunpack.c.h.b16 %v4879
    %v6279 = vunpack.c.l.b16 %v4880
    %v6280 = vunpack.c.h.b16 %v4880
    %v6281 = vunpack.c.l.b16 %v4881
    %v6282 = vunpack.c.h.b16 %v4881
    %v6283 = vunpack.c.l.b16 %v4882
    %v6284 = vunpack.c.h.b16 %v4882
    %v6285 = vunpack.c.l.b16 %v4883
    %v6286 = vunpack.c.h.b16 %v4883
    %v6287 = vunpack.c.l.b16 %v4884
    %v6288 = vunpack.c.h.b16 %v4884
    %v6289 = vunpack.c.l.b16 %v4885
    %v6290 = vunpack.c.h.b16 %v4885
    %v6291 = vunpack.c.l.b16 %v4886
    %v6292 = vunpack.c.h.b16 %v4886
    %v6293 = vunpack.c.l.b16 %v4887
    %v6294 = vunpack.c.h.b16 %v4887
    %v6295 = vunpack.c.l.b16 %v4888
    %v6296 = vunpack.c.h.b16 %v4888
    %v6297 = vunpack.c.l.b16 %v4889
    %v6298 = vunpack.c.h.b16 %v4889
    %v6299 = vunpack.c.l.b16 %v4890
    %v6300 = vunpack.c.h.b16 %v4890
    %v6301 = vunpack.c.l.b16 %v4891
    %v6302 = vunpack.c.h.b16 %v4891
    %v6303 = vunpack.c.l.b16 %v4892
    %v6304 = vunpack.c.h.b16 %v4892
    %v6305 = vunpack.c.l.b16 %v4893
    %v6306 = vunpack.c.h.b16 %v4893
    %v6307 = vunpack.c.l.b16 %v4894
    %v6308 = vunpack.c.h.b16 %v4894
    %v6309 = vunpack.c.l.b16 %v4895
    %v6310 = vunpack.c.h.b16 %v4895
    %v6311 = vunpack.c.l.b16 %v4896
    %v6312 = vunpack.c.h.b16 %v4896
    %v6313 = vunpack.c.l.b16 %v4897
    %v6314 = vunpack.c.h.b16 %v4897
    %v6315 = vunpack.c.l.b16 %v4898
    %v6316 = vunpack.c.h.b16 %v4898
    %v6317 = vunpack.c.l.b16 %v4899
    %v6318 = vunpack.c.h.b16 %v4899
    %v6319 = vunpack.c.l.b16 %v4900
    %v6320 = vunpack.c.h.b16 %v4900
    %v6321 = vunpack.c.l.b16 %v4901
    %v6322 = vunpack.c.h.b16 %v4901
    %v6323 = vunpack.c.l.b16 %v4902
    %v6324 = vunpack.c.h.b16 %v4902
    %v6325 = vunpack.c.l.b16 %v4903
    %v6326 = vunpack.c.h.b16 %v4903
    %v6327 = vunpack.c.l.b16 %v4904
    %v6328 = vunpack.c.h.b16 %v4904
    %v6329 = vunpack.c.l.b16 %v4905
    %v6330 = vunpack.c.h.b16 %v4905
    %v6331 = vunpack.c.l.b16 %v4906
    %v6332 = vunpack.c.h.b16 %v4906
    %v6333 = vunpack.c.l.b16 %v4907
    %v6334 = vunpack.c.h.b16 %v4907
    %v6335 = vunpack.c.l.b16 %v4908
    %v6336 = vunpack.c.h.b16 %v4908
    %v6337 = vunpack.c.l.b16 %v4909
    %v6338 = vunpack.c.h.b16 %v4909
    %v6339 = vunpack.c.l.b16 %v4910
    %v6340 = vunpack.c.h.b16 %v4910
    %v6341 = vunpack.c.l.b16 %v4911
    %v6342 = vunpack.c.h.b16 %v4911
    %v6343 = vunpack.c.l.b16 %v4912
    %v6344 = vunpack.c.h.b16 %v4912
    %v6345 = vunpack.c.l.b16 %v4913
    %v6346 = vunpack.c.h.b16 %v4913
    %v6347 = vunpack.c.l.b16 %v4914
    %v6348 = vunpack.c.h.b16 %v4914
    %v6349 = vunpack.c.l.b16 %v4915
    %v6350 = vunpack.c.h.b16 %v4915
    %v6351 = vunpack.c.l.b16 %v4916
    %v6352 = vunpack.c.h.b16 %v4916
    %v6353 = vunpack.c.l.b16 %v4917
    %v6354 = vunpack.c.h.b16 %v4917
    %v6355 = vunpack.c.l.b16 %v4918
    %v6356 = vunpack.c.h.b16 %v4918
    %v6357 = vunpack.c.l.b16 %v4919
    %v6358 = vunpack.c.h.b16 %v4919
    %v6359 = vunpack.c.l.b16 %v4920
    %v6360 = vunpack.c.h.b16 %v4920
    %v6361 = vunpack.c.l.b16 %v4921
    %v6362 = vunpack.c.h.b16 %v4921
    %v6363 = vunpack.c.l.b16 %v4922
    %v6364 = vunpack.c.h.b16 %v4922
    %v6365 = vunpack.c.l.b16 %v4923
    %v6366 = vunpack.c.h.b16 %v4923
    %v6367 = vunpack.c.l.b16 %v4924
    %v6368 = vunpack.c.h.b16 %v4924
    %v6369 = vunpack.c.l.b16 %v4925
    %v6370 = vunpack.c.h.b16 %v4925
    %v6371 = vunpack.c.l.b16 %v4926
    %v6372 = vunpack.c.h.b16 %v4926
    %v6373 = vunpack.c.l.b16 %v4927
    %v6374 = vunpack.c.h.b16 %v4927
    %v6375 = vunpack.c.l.b16 %v4928
    %v6376 = vunpack.c.h.b16 %v4928
    %v6377 = vunpack.c.l.b16 %v4929
    %v6378 = vunpack.c.h.b16 %v4929
    %v6379 = vunpack.c.l.b16 %v4930
    %v6380 = vunpack.c.h.b16 %v4930
    %v6381 = vunpack.c.l.b16 %v4931
    %v6382 = vunpack.c.h.b16 %v4931
    %v6383 = vunpack.c.l.b16 %v4932
    %v6384 = vunpack.c.h.b16 %v4932
    %v6385 = vunpack.c.l.b16 %v4933
    %v6386 = vunpack.c.h.b16 %v4933
    %v6387 = vunpack.c.l.b16 %v4934
    %v6388 = vunpack.c.h.b16 %v4934
    %v6389 = vunpack.c.l.b16 %v4935
    %v6390 = vunpack.c.h.b16 %v4935
    %v6391 = vunpack.c.l.b16 %v4936
    %v6392 = vunpack.c.h.b16 %v4936
    %v6393 = vunpack.c.l.b16 %v4937
    %v6394 = vunpack.c.h.b16 %v4937
    %v6395 = vunpack.c.l.b16 %v4938
    %v6396 = vunpack.c.h.b16 %v4938
    %v6397 = vunpack.c.l.b16 %v4939
    %v6398 = vunpack.c.h.b16 %v4939
    %v6399 = vunpack.c.l.b16 %v4940
    %v6400 = vunpack.c.h.b16 %v4940
    %v6401 = vunpack.c.l.b16 %v4941
    %v6402 = vunpack.c.h.b16 %v4941
    %v6403 = vunpack.c.l.b16 %v4942
    %v6404 = vunpack.c.h.b16 %v4942
    %v6405 = vunpack.c.l.b16 %v4943
    %v6406 = vunpack.c.h.b16 %v4943
    %v6407 = vunpack.c.l.b16 %v4944
    %v6408 = vunpack.c.h.b16 %v4944
    %v6409 = vunpack.c.l.b16 %v4945
    %v6410 = vunpack.c.h.b16 %v4945
    %v6411 = vunpack.c.l.b16 %v4946
    %v6412 = vunpack.c.h.b16 %v4946
    %v6413 = vunpack.c.l.b16 %v4947
    %v6414 = vunpack.c.h.b16 %v4947
    %v6415 = vunpack.c.l.b16 %v4948
    %v6416 = vunpack.c.h.b16 %v4948
    %v6417 = vunpack.c.l.b16 %v4949
    %v6418 = vunpack.c.h.b16 %v4949
    %v6419 = vunpack.c.l.b16 %v4950
    %v6420 = vunpack.c.h.b16 %v4950
    %v6421 = vunpack.c.l.b16 %v4951
    %v6422 = vunpack.c.h.b16 %v4951
    %v6423 = vunpack.c.l.b16 %v4952
    %v6424 = vunpack.c.h.b16 %v4952
    %v6425 = vunpack.c.l.b16 %v4953
    %v6426 = vunpack.c.h.b16 %v4953
    %v6427 = vunpack.c.l.b16 %v4954
    %v6428 = vunpack.c.h.b16 %v4954
    %v6429 = vunpack.c.l.b16 %v4955
    %v6430 = vunpack.c.h.b16 %v4955
    %v6431 = vunpack.c.l.b16 %v4956
    %v6432 = vunpack.c.h.b16 %v4956
    %v6433 = vunpack.c.l.b16 %v4957
    %v6434 = vunpack.c.h.b16 %v4957
    %v6435 = vunpack.c.l.b16 %v4958
    %v6436 = vunpack.c.h.b16 %v4958
    %v6437 = vunpack.c.l.b16 %v4959
    %v6438 = vunpack.c.h.b16 %v4959
    %v6439 = vunpack.c.l.b16 %v4960
    %v6440 = vunpack.c.h.b16 %v4960
    %v6441 = vunpack.c.l.b16 %v4961
    %v6442 = vunpack.c.h.b16 %v4961
    %v6443 = vunpack.c.l.b16 %v4962
    %v6444 = vunpack.c.h.b16 %v4962
    %v6445 = vunpack.c.l.b16 %v4963
    %v6446 = vunpack.c.h.b16 %v4963
    %v6447 = vunpack.c.l.b16 %v4964
    %v6448 = vunpack.c.h.b16 %v4964
    %v6449 = vunpack.c.l.b16 %v4965
    %v6450 = vunpack.c.h.b16 %v4965
    %v6451 = vunpack.c.l.b16 %v4966
    %v6452 = vunpack.c.h.b16 %v4966
    %v6453 = vunpack.c.l.b16 %v4967
    %v6454 = vunpack.c.h.b16 %v4967
    %v6455 = vunpack.c.l.b16 %v4968
    %v6456 = vunpack.c.h.b16 %v4968
    %v6457 = vunpack.c.l.b16 %v4969
    %v6458 = vunpack.c.h.b16 %v4969
    %v6459 = vunpack.c.l.b16 %v4970
    %v6460 = vunpack.c.h.b16 %v4970
    %v6461 = vunpack.c.l.b16 %v4971
    %v6462 = vunpack.c.h.b16 %v4971
    %v6463 = vunpack.c.l.b16 %v4972
    %v6464 = vunpack.c.h.b16 %v4972
    %v6465 = vunpack.c.l.b16 %v4973
    %v6466 = vunpack.c.h.b16 %v4973
    %v6467 = vunpack.c.l.b16 %v4974
    %v6468 = vunpack.c.h.b16 %v4974
    %v6469 = vunpack.c.l.b16 %v4975
    %v6470 = vunpack.c.h.b16 %v4975
    %v6471 = vunpack.c.l.b16 %v4976
    %v6472 = vunpack.c.h.b16 %v4976
    %v6473 = vunpack.c.l.b16 %v4977
    %v6474 = vunpack.c.h.b16 %v4977
    %v6475 = vunpack.c.l.b16 %v4978
    %v6476 = vunpack.c.h.b16 %v4978
    %v6477 = vunpack.c.l.b16 %v4979
    %v6478 = vunpack.c.h.b16 %v4979
    %v6479 = vunpack.c.l.b16 %v4980
    %v6480 = vunpack.c.h.b16 %v4980
    %v6481 = vunpack.c.l.b16 %v4981
    %v6482 = vunpack.c.h.b16 %v4981
    %v6483 = vunpack.c.l.b16 %v4982
    %v6484 = vunpack.c.h.b16 %v4982
    %v6485 = vunpack.c.l.b16 %v4983
    %v6486 = vunpack.c.h.b16 %v4983
    %v6487 = vunpack.c.l.b16 %v4984
    %v6488 = vunpack.c.h.b16 %v4984
    %v6489 = vunpack.c.l.b16 %v4985
    %v6490 = vunpack.c.h.b16 %v4985
    %v6491 = vunpack.c.l.b16 %v4986
    %v6492 = vunpack.c.h.b16 %v4986
    %v6493 = vunpack.c.l.b16 %v4987
    %v6494 = vunpack.c.h.b16 %v4987
    %v6495 = vunpack.c.l.b16 %v4988
    %v6496 = vunpack.c.h.b16 %v4988
    %v6497 = vunpack.c.l.b16 %v4989
    %v6498 = vunpack.c.h.b16 %v4989
    %v6499 = vunpack.c.l.b16 %v4990
    %v6500 = vunpack.c.h.b16 %v4990
    %v6501 = vunpack.c.l.b16 %v4991
    %v6502 = vunpack.c.h.b16 %v4991
    %v6503 = vunpack.c.l.b16 %v4992
    %v6504 = vunpack.c.h.b16 %v4992
    %v6505 = vunpack.c.l.b16 %v4993
    %v6506 = vunpack.c.h.b16 %v4993
    %v6507 = vunpack.c.l.b16 %v4994
    %v6508 = vunpack.c.h.b16 %v4994
    %v6509 = vunpack.c.l.b16 %v4995
    %v6510 = vunpack.c.h.b16 %v4995
    %v6511 = vunpack.c.l.b16 %v4996
    %v6512 = vunpack.c.h.b16 %v4996
    %v6513 = vunpack.c.l.b16 %v4997
    %v6514 = vunpack.c.h.b16 %v4997
    %v6515 = vunpack.c.l.b16 %v4998
    %v6516 = vunpack.c.h.b16 %v4998
    %v6517 = vunpack.c.l.b16 %v4999
    %v6518 = vunpack.c.h.b16 %v4999
    %v6519 = vunpack.c.l.b16 %v5000
    %v6520 = vunpack.c.h.b16 %v5000
    %v6521 = vunpack.c.l.b16 %v5001
    %v6522 = vunpack.c.h.b16 %v5001
    %v6523 = vunpack.c.l.b16 %v5002
    %v6524 = vunpack.c.h.b16 %v5002
    %v6525 = vunpack.c.l.b16 %v5003
    %v6526 = vunpack.c.h.b16 %v5003
    %v6527 = vunpack.c.l.b16 %v5004
    %v6528 = vunpack.c.h.b16 %v5004
    %v6529 = vunpack.c.l.b16 %v5005
    %v6530 = vunpack.c.h.b16 %v5005
    %v6531 = vunpack.c.l.b16 %v5006
    %v6532 = vunpack.c.h.b16 %v5006
    %v6533 = vunpack.c.l.b16 %v5007
    %v6534 = vunpack.c.h.b16 %v5007
    %v6535 = vunpack.c.l.b16 %v5008
    %v6536 = vunpack.c.h.b16 %v5008
    %v6537 = vunpack.c.l.b16 %v5009
    %v6538 = vunpack.c.h.b16 %v5009
    %v6539 = vunpack.c.l.b16 %v5010
    %v6540 = vunpack.c.h.b16 %v5010
    %v6541 = vunpack.c.l.b16 %v5011
    %v6542 = vunpack.c.h.b16 %v5011
    %v6543 = vunpack.c.l.b16 %v5012
    %v6544 = vunpack.c.h.b16 %v5012
    %v6545 = vunpack.c.l.b16 %v5013
    %v6546 = vunpack.c.h.b16 %v5013
    %v6547 = vunpack.c.l.b16 %v5014
    %v6548 = vunpack.c.h.b16 %v5014
    %v6549 = vunpack.c.l.b16 %v5015
    %v6550 = vunpack.c.h.b16 %v5015
    %v6551 = vunpack.c.l.b16 %v5016
    %v6552 = vunpack.c.h.b16 %v5016
    %v6553 = vunpack.c.l.b16 %v5017
    %v6554 = vunpack.c.h.b16 %v5017
    %v6555 = vunpack.c.l.b16 %v5018
    %v6556 = vunpack.c.h.b16 %v5018
    %v6557 = vunpack.c.l.b16 %v5019
    %v6558 = vunpack.c.h.b16 %v5019
    %v6559 = vunpack.c.l.b16 %v5020
    %v6560 = vunpack.c.h.b16 %v5020
    %v6561 = vunpack.c.l.b16 %v5021
    %v6562 = vunpack.c.h.b16 %v5021
    %v6563 = vunpack.c.l.b16 %v5022
    %v6564 = vunpack.c.h.b16 %v5022
    %v6565 = vunpack.c.l.b16 %v5023
    %v6566 = vunpack.c.h.b16 %v5023
    %v6567 = vunpack.c.l.b16 %v5024
    %v6568 = vunpack.c.h.b16 %v5024
    %v6569 = vunpack.c.l.b16 %v5025
    %v6570 = vunpack.c.h.b16 %v5025
    %v6571 = vunpack.c.l.b16 %v5026
    %v6572 = vunpack.c.h.b16 %v5026
    %v6573 = vunpack.c.l.b16 %v5027
    %v6574 = vunpack.c.h.b16 %v5027
    %v6575 = vunpack.c.l.b16 %v5028
    %v6576 = vunpack.c.h.b16 %v5028
    %v6577 = vunpack.c.l.b16 %v5029
    %v6578 = vunpack.c.h.b16 %v5029
    %v6579 = vunpack.c.l.b16 %v5030
    %v6580 = vunpack.c.h.b16 %v5030
    %v6581 = vunpack.c.l.b16 %v5031
    %v6582 = vunpack.c.h.b16 %v5031
    %v6583 = vunpack.c.l.b16 %v5032
    %v6584 = vunpack.c.h.b16 %v5032
    %v6585 = vunpack.c.l.b16 %v5033
    %v6586 = vunpack.c.h.b16 %v5033
    %v6587 = vunpack.c.l.b16 %v5034
    %v6588 = vunpack.c.h.b16 %v5034
    %v6589 = vunpack.c.l.b16 %v5035
    %v6590 = vunpack.c.h.b16 %v5035
    %v6591 = vunpack.c.l.b16 %v5036
    %v6592 = vunpack.c.h.b16 %v5036
    %v6593 = vunpack.c.l.b16 %v5037
    %v6594 = vunpack.c.h.b16 %v5037
    %v6595 = vunpack.c.l.b16 %v5038
    %v6596 = vunpack.c.h.b16 %v5038
    %v6597 = vunpack.c.l.b16 %v5039
    %v6598 = vunpack.c.h.b16 %v5039
    %v6599 = vunpack.c.l.b16 %v5040
    %v6600 = vunpack.c.h.b16 %v5040
    %v6601 = vunpack.c.l.b16 %v5041
    %v6602 = vunpack.c.h.b16 %v5041
    %v6603 = vunpack.c.l.b16 %v5042
    %v6604 = vunpack.c.h.b16 %v5042
    %v6605 = vunpack.c.l.b16 %v5043
    %v6606 = vunpack.c.h.b16 %v5043
    %v6607 = vunpack.c.l.b16 %v5044
    %v6608 = vunpack.c.h.b16 %v5044
    %v6609 = vunpack.c.l.b16 %v5045
    %v6610 = vunpack.c.h.b16 %v5045
    %v6611 = vunpack.c.l.b16 %v5046
    %v6612 = vunpack.c.h.b16 %v5046
    %v6613 = vunpack.c.l.b16 %v5047
    %v6614 = vunpack.c.h.b16 %v5047
    %v6615 = vunpack.c.l.b16 %v5048
    %v6616 = vunpack.c.h.b16 %v5048
    %v6617 = vunpack.c.l.b16 %v5049
    %v6618 = vunpack.c.h.b16 %v5049
    %v6619 = vunpack.c.l.b16 %v5050
    %v6620 = vunpack.c.h.b16 %v5050
    %v6621 = vunpack.c.l.b16 %v5051
    %v6622 = vunpack.c.h.b16 %v5051
    %v6623 = vunpack.c.l.b16 %v5052
    %v6624 = vunpack.c.h.b16 %v5052
    %v6625 = vunpack.c.l.b16 %v5053
    %v6626 = vunpack.c.h.b16 %v5053
    %v6627 = vunpack.c.l.b16 %v5054
    %v6628 = vunpack.c.h.b16 %v5054
    %v6629 = vunpack.c.l.b16 %v5055
    %v6630 = vunpack.c.h.b16 %v5055
    %v6631 = vunpack.c.l.b16 %v5056
    %v6632 = vunpack.c.h.b16 %v5056
    %v6633 = vunpack.c.l.b16 %v5057
    %v6634 = vunpack.c.h.b16 %v5057
    %v6635 = vunpack.c.l.b16 %v5058
    %v6636 = vunpack.c.h.b16 %v5058
    %v6637 = vpack.c.b16 %v5621, %v5613
    %v6638 = vpack.c.b16 %v5622, %v5614
    %v6639 = vpack.c.b16 %v5623, %v5615
    %v6640 = vpack.c.b16 %v5624, %v5616
    %v6641 = vpack.c.b16 %v5625, %v5617
    %v6642 = vpack.c.b16 %v5626, %v5618
    %v6643 = vpack.c.b16 %v5627, %v5619
    %v6644 = vpack.c.b16 %v5628, %v5620
    %v6645 = vpack.c.b16 %v5637, %v5629
    %v6646 = vpack.c.b16 %v5638, %v5630
    %v6647 = vpack.c.b16 %v5639, %v5631
    %v6648 = vpack.c.b16 %v5640, %v5632
    %v6649 = vpack.c.b16 %v5641, %v5633
    %v6650 = vpack.c.b16 %v5642, %v5634
    %v6651 = vpack.c.b16 %v5643, %v5635
    %v6652 = vpack.c.b16 %v5644, %v5636
    %v6653 = vpack.c.b16 %v5653, %v5645
    %v6654 = vpack.c.b16 %v5654, %v5646
    %v6655 = vpack.c.b16 %v5655, %v5647
    %v6656 = vpack.c.b16 %v5656, %v5648
    %v6657 = vpack.c.b16 %v5657, %v5649
    %v6658 = vpack.c.b16 %v5658, %v5650
    %v6659 = vpack.c.b16 %v5659, %v5651
    %v6660 = vpack.c.b16 %v5660, %v5652
    %v6661 = vpack.c.b16 %v5669, %v5661
    %v6662 = vpack.c.b16 %v5670, %v5662
    %v6663 = vpack.c.b16 %v5671, %v5663
    %v6664 = vpack.c.b16 %v5672, %v5664
    %v6665 = vpack.c.b16 %v5673, %v5665
    %v6666 = vpack.c.b16 %v5674, %v5666
    %v6667 = vpack.c.b16 %v5675, %v5667
    %v6668 = vpack.c.b16 %v5676, %v5668
    %v6669 = vpack.c.b16 %v5685, %v5677
    %v6670 = vpack.c.b16 %v5686, %v5678
    %v6671 = vpack.c.b16 %v5687, %v5679
    %v6672 = vpack.c.b16 %v5688, %v5680
    %v6673 = vpack.c.b16 %v5689, %v5681
    %v6674 = vpack.c.b16 %v5690, %v5682
    %v6675 = vpack.c.b16 %v5691, %v5683
    %v6676 = vpack.c.b16 %v5692, %v5684
    %v6677 = vpack.c.b16 %v5701, %v5693
    %v6678 = vpack.c.b16 %v5702, %v5694
    %v6679 = vpack.c.b16 %v5703, %v5695
    %v6680 = vpack.c.b16 %v5704, %v5696
    %v6681 = vpack.c.b16 %v5705, %v5697
    %v6682 = vpack.c.b16 %v5706, %v5698
    %v6683 = vpack.c.b16 %v5707, %v5699
    %v6684 = vpack.c.b16 %v5708, %v5700
    %v6685 = vpack.c.b16 %v5717, %v5709
    %v6686 = vpack.c.b16 %v5718, %v5710
    %v6687 = vpack.c.b16 %v5719, %v5711
    %v6688 = vpack.c.b16 %v5720, %v5712
    %v6689 = vpack.c.b16 %v5721, %v5713
    %v6690 = vpack.c.b16 %v5722, %v5714
    %v6691 = vpack.c.b16 %v5723, %v5715
    %v6692 = vpack.c.b16 %v5724, %v5716
    %v6693 = vpack.c.b16 %v5733, %v5725
    %v6694 = vpack.c.b16 %v5734, %v5726
    %v6695 = vpack.c.b16 %v5735, %v5727
    %v6696 = vpack.c.b16 %v5736, %v5728
    %v6697 = vpack.c.b16 %v5737, %v5729
    %v6698 = vpack.c.b16 %v5738, %v5730
    %v6699 = vpack.c.b16 %v5739, %v5731
    %v6700 = vpack.c.b16 %v5740, %v5732
    %v6701 = vpack.c.b16 %v5749, %v5741
    %v6702 = vpack.c.b16 %v5750, %v5742
    %v6703 = vpack.c.b16 %v5751, %v5743
    %v6704 = vpack.c.b16 %v5752, %v5744
    %v6705 = vpack.c.b16 %v5753, %v5745
    %v6706 = vpack.c.b16 %v5754, %v5746
    %v6707 = vpack.c.b16 %v5755, %v5747
    %v6708 = vpack.c.b16 %v5756, %v5748
    %v6709 = vpack.c.b16 %v5765, %v5757
    %v6710 = vpack.c.b16 %v5766, %v5758
    %v6711 = vpack.c.b16 %v5767, %v5759
    %v6712 = vpack.c.b16 %v5768, %v5760
    %v6713 = vpack.c.b16 %v5769, %v5761
    %v6714 = vpack.c.b16 %v5770, %v5762
    %v6715 = vpack.c.b16 %v5771, %v5763
    %v6716 = vpack.c.b16 %v5772, %v5764
    %v6717 = vpack.c.b16 %v5781, %v5773
    %v6718 = vpack.c.b16 %v5782, %v5774
    %v6719 = vpack.c.b16 %v5783, %v5775
    %v6720 = vpack.c.b16 %v5784, %v5776
    %v6721 = vpack.c.b16 %v5785, %v5777
    %v6722 = vpack.c.b16 %v5786, %v5778
    %v6723 = vpack.c.b16 %v5787, %v5779
    %v6724 = vpack.c.b16 %v5788, %v5780
    %v6725 = vpack.c.b16 %v5797, %v5789
    %v6726 = vpack.c.b16 %v5798, %v5790
    %v6727 = vpack.c.b16 %v5799, %v5791
    %v6728 = vpack.c.b16 %v5800, %v5792
    %v6729 = vpack.c.b16 %v5801, %v5793
    %v6730 = vpack.c.b16 %v5802, %v5794
    %v6731 = vpack.c.b16 %v5803, %v5795
    %v6732 = vpack.c.b16 %v5804, %v5796
    %v6733 = vpack.c.b16 %v5813, %v5805
    %v6734 = vpack.c.b16 %v5814, %v5806
    %v6735 = vpack.c.b16 %v5815, %v5807
    %v6736 = vpack.c.b16 %v5816, %v5808
    %v6737 = vpack.c.b16 %v5817, %v5809
    %v6738 = vpack.c.b16 %v5818, %v5810
    %v6739 = vpack.c.b16 %v5819, %v5811
    %v6740 = vpack.c.b16 %v5820, %v5812
    %v6741 = vpack.c.b16 %v5829, %v5821
    %v6742 = vpack.c.b16 %v5830, %v5822
    %v6743 = vpack.c.b16 %v5831, %v5823
    %v6744 = vpack.c.b16 %v5832, %v5824
    %v6745 = vpack.c.b16 %v5833, %v5825
    %v6746 = vpack.c.b16 %v5834, %v5826
    %v6747 = vpack.c.b16 %v5835, %v5827
    %v6748 = vpack.c.b16 %v5836, %v5828
    %v6749 = vpack.c.b16 %v5845, %v5837
    %v6750 = vpack.c.b16 %v5846, %v5838
    %v6751 = vpack.c.b16 %v5847, %v5839
    %v6752 = vpack.c.b16 %v5848, %v5840
    %v6753 = vpack.c.b16 %v5849, %v5841
    %v6754 = vpack.c.b16 %v5850, %v5842
    %v6755 = vpack.c.b16 %v5851, %v5843
    %v6756 = vpack.c.b16 %v5852, %v5844
    %v6757 = vpack.c.b16 %v5861, %v5853
    %v6758 = vpack.c.b16 %v5862, %v5854
    %v6759 = vpack.c.b16 %v5863, %v5855
    %v6760 = vpack.c.b16 %v5864, %v5856
    %v6761 = vpack.c.b16 %v5865, %v5857
    %v6762 = vpack.c.b16 %v5866, %v5858
    %v6763 = vpack.c.b16 %v5867, %v5859
    %v6764 = vpack.c.b16 %v5868, %v5860
    %v6765 = vpack.c.b16 %v5877, %v5869
    %v6766 = vpack.c.b16 %v5878, %v5870
    %v6767 = vpack.c.b16 %v5879, %v5871
    %v6768 = vpack.c.b16 %v5880, %v5872
    %v6769 = vpack.c.b16 %v5881, %v5873
    %v6770 = vpack.c.b16 %v5882, %v5874
    %v6771 = vpack.c.b16 %v5883, %v5875
    %v6772 = vpack.c.b16 %v5884, %v5876
    %v6773 = vpack.c.b16 %v5893, %v5885
    %v6774 = vpack.c.b16 %v5894, %v5886
    %v6775 = vpack.c.b16 %v5895, %v5887
    %v6776 = vpack.c.b16 %v5896, %v5888
    %v6777 = vpack.c.b16 %v5897, %v5889
    %v6778 = vpack.c.b16 %v5898, %v5890
    %v6779 = vpack.c.b16 %v5899, %v5891
    %v6780 = vpack.c.b16 %v5900, %v5892
    %v6781 = vpack.c.b16 %v5909, %v5901
    %v6782 = vpack.c.b16 %v5910, %v5902
    %v6783 = vpack.c.b16 %v5911, %v5903
    %v6784 = vpack.c.b16 %v5912, %v5904
    %v6785 = vpack.c.b16 %v5913, %v5905
    %v6786 = vpack.c.b16 %v5914, %v5906
    %v6787 = vpack.c.b16 %v5915, %v5907
    %v6788 = vpack.c.b16 %v5916, %v5908
    %v6789 = vpack.c.b16 %v5925, %v5917
    %v6790 = vpack.c.b16 %v5926, %v5918
    %v6791 = vpack.c.b16 %v5927, %v5919
    %v6792 = vpack.c.b16 %v5928, %v5920
    %v6793 = vpack.c.b16 %v5929, %v5921
    %v6794 = vpack.c.b16 %v5930, %v5922
    %v6795 = vpack.c.b16 %v5931, %v5923
    %v6796 = vpack.c.b16 %v5932, %v5924
    %v6797 = vpack.c.b16 %v5941, %v5933
    %v6798 = vpack.c.b16 %v5942, %v5934
    %v6799 = vpack.c.b16 %v5943, %v5935
    %v6800 = vpack.c.b16 %v5944, %v5936
    %v6801 = vpack.c.b16 %v5945, %v5937
    %v6802 = vpack.c.b16 %v5946, %v5938
    %v6803 = vpack.c.b16 %v5947, %v5939
    %v6804 = vpack.c.b16 %v5948, %v5940
    %v6805 = vpack.c.b16 %v5957, %v5949
    %v6806 = vpack.c.b16 %v5958, %v5950
    %v6807 = vpack.c.b16 %v5959, %v5951
    %v6808 = vpack.c.b16 %v5960, %v5952
    %v6809 = vpack.c.b16 %v5961, %v5953
    %v6810 = vpack.c.b16 %v5962, %v5954
    %v6811 = vpack.c.b16 %v5963, %v5955
    %v6812 = vpack.c.b16 %v5964, %v5956
    %v6813 = vpack.c.b16 %v5973, %v5965
    %v6814 = vpack.c.b16 %v5974, %v5966
    %v6815 = vpack.c.b16 %v5975, %v5967
    %v6816 = vpack.c.b16 %v5976, %v5968
    %v6817 = vpack.c.b16 %v5977, %v5969
    %v6818 = vpack.c.b16 %v5978, %v5970
    %v6819 = vpack.c.b16 %v5979, %v5971
    %v6820 = vpack.c.b16 %v5980, %v5972
    %v6821 = vpack.c.b16 %v5989, %v5981
    %v6822 = vpack.c.b16 %v5990, %v5982
    %v6823 = vpack.c.b16 %v5991, %v5983
    %v6824 = vpack.c.b16 %v5992, %v5984
    %v6825 = vpack.c.b16 %v5993, %v5985
    %v6826 = vpack.c.b16 %v5994, %v5986
    %v6827 = vpack.c.b16 %v5995, %v5987
    %v6828 = vpack.c.b16 %v5996, %v5988
    %v6829 = vpack.c.b16 %v6005, %v5997
    %v6830 = vpack.c.b16 %v6006, %v5998
    %v6831 = vpack.c.b16 %v6007, %v5999
    %v6832 = vpack.c.b16 %v6008, %v6000
    %v6833 = vpack.c.b16 %v6009, %v6001
    %v6834 = vpack.c.b16 %v6010, %v6002
    %v6835 = vpack.c.b16 %v6011, %v6003
    %v6836 = vpack.c.b16 %v6012, %v6004
    %v6837 = vpack.c.b16 %v6021, %v6013
    %v6838 = vpack.c.b16 %v6022, %v6014
    %v6839 = vpack.c.b16 %v6023, %v6015
    %v6840 = vpack.c.b16 %v6024, %v6016
    %v6841 = vpack.c.b16 %v6025, %v6017
    %v6842 = vpack.c.b16 %v6026, %v6018
    %v6843 = vpack.c.b16 %v6027, %v6019
    %v6844 = vpack.c.b16 %v6028, %v6020
    %v6845 = vpack.c.b16 %v6037, %v6029
    %v6846 = vpack.c.b16 %v6038, %v6030
    %v6847 = vpack.c.b16 %v6039, %v6031
    %v6848 = vpack.c.b16 %v6040, %v6032
    %v6849 = vpack.c.b16 %v6041, %v6033
    %v6850 = vpack.c.b16 %v6042, %v6034
    %v6851 = vpack.c.b16 %v6043, %v6035
    %v6852 = vpack.c.b16 %v6044, %v6036
    %v6853 = vpack.c.b16 %v6053, %v6045
    %v6854 = vpack.c.b16 %v6054, %v6046
    %v6855 = vpack.c.b16 %v6055, %v6047
    %v6856 = vpack.c.b16 %v6056, %v6048
    %v6857 = vpack.c.b16 %v6057, %v6049
    %v6858 = vpack.c.b16 %v6058, %v6050
    %v6859 = vpack.c.b16 %v6059, %v6051
    %v6860 = vpack.c.b16 %v6060, %v6052
    %v6861 = vpack.c.b16 %v6069, %v6061
    %v6862 = vpack.c.b16 %v6070, %v6062
    %v6863 = vpack.c.b16 %v6071, %v6063
    %v6864 = vpack.c.b16 %v6072, %v6064
    %v6865 = vpack.c.b16 %v6073, %v6065
    %v6866 = vpack.c.b16 %v6074, %v6066
    %v6867 = vpack.c.b16 %v6075, %v6067
    %v6868 = vpack.c.b16 %v6076, %v6068
    %v6869 = vpack.c.b16 %v6085, %v6077
    %v6870 = vpack.c.b16 %v6086, %v6078
    %v6871 = vpack.c.b16 %v6087, %v6079
    %v6872 = vpack.c.b16 %v6088, %v6080
    %v6873 = vpack.c.b16 %v6089, %v6081
    %v6874 = vpack.c.b16 %v6090, %v6082
    %v6875 = vpack.c.b16 %v6091, %v6083
    %v6876 = vpack.c.b16 %v6092, %v6084
    %v6877 = vpack.c.b16 %v6101, %v6093
    %v6878 = vpack.c.b16 %v6102, %v6094
    %v6879 = vpack.c.b16 %v6103, %v6095
    %v6880 = vpack.c.b16 %v6104, %v6096
    %v6881 = vpack.c.b16 %v6105, %v6097
    %v6882 = vpack.c.b16 %v6106, %v6098
    %v6883 = vpack.c.b16 %v6107, %v6099
    %v6884 = vpack.c.b16 %v6108, %v6100
    %v6885 = vpack.c.b16 %v6117, %v6109
    %v6886 = vpack.c.b16 %v6118, %v6110
    %v6887 = vpack.c.b16 %v6119, %v6111
    %v6888 = vpack.c.b16 %v6120, %v6112
    %v6889 = vpack.c.b16 %v6121, %v6113
    %v6890 = vpack.c.b16 %v6122, %v6114
    %v6891 = vpack.c.b16 %v6123, %v6115
    %v6892 = vpack.c.b16 %v6124, %v6116
    %v6893 = vpack.c.b16 %v6133, %v6125
    %v6894 = vpack.c.b16 %v6134, %v6126
    %v6895 = vpack.c.b16 %v6135, %v6127
    %v6896 = vpack.c.b16 %v6136, %v6128
    %v6897 = vpack.c.b16 %v6137, %v6129
    %v6898 = vpack.c.b16 %v6138, %v6130
    %v6899 = vpack.c.b16 %v6139, %v6131
    %v6900 = vpack.c.b16 %v6140, %v6132
    %v6901 = vpack.c.b16 %v6149, %v6141
    %v6902 = vpack.c.b16 %v6150, %v6142
    %v6903 = vpack.c.b16 %v6151, %v6143
    %v6904 = vpack.c.b16 %v6152, %v6144
    %v6905 = vpack.c.b16 %v6153, %v6145
    %v6906 = vpack.c.b16 %v6154, %v6146
    %v6907 = vpack.c.b16 %v6155, %v6147
    %v6908 = vpack.c.b16 %v6156, %v6148
    %v6909 = vpack.c.b16 %v6165, %v6157
    %v6910 = vpack.c.b16 %v6166, %v6158
    %v6911 = vpack.c.b16 %v6167, %v6159
    %v6912 = vpack.c.b16 %v6168, %v6160
    %v6913 = vpack.c.b16 %v6169, %v6161
    %v6914 = vpack.c.b16 %v6170, %v6162
    %v6915 = vpack.c.b16 %v6171, %v6163
    %v6916 = vpack.c.b16 %v6172, %v6164
    %v6917 = vpack.c.b16 %v6181, %v6173
    %v6918 = vpack.c.b16 %v6182, %v6174
    %v6919 = vpack.c.b16 %v6183, %v6175
    %v6920 = vpack.c.b16 %v6184, %v6176
    %v6921 = vpack.c.b16 %v6185, %v6177
    %v6922 = vpack.c.b16 %v6186, %v6178
    %v6923 = vpack.c.b16 %v6187, %v6179
    %v6924 = vpack.c.b16 %v6188, %v6180
    %v6925 = vpack.c.b16 %v6197, %v6189
    %v6926 = vpack.c.b16 %v6198, %v6190
    %v6927 = vpack.c.b16 %v6199, %v6191
    %v6928 = vpack.c.b16 %v6200, %v6192
    %v6929 = vpack.c.b16 %v6201, %v6193
    %v6930 = vpack.c.b16 %v6202, %v6194
    %v6931 = vpack.c.b16 %v6203, %v6195
    %v6932 = vpack.c.b16 %v6204, %v6196
    %v6933 = vpack.c.b16 %v6213, %v6205
    %v6934 = vpack.c.b16 %v6214, %v6206
    %v6935 = vpack.c.b16 %v6215, %v6207
    %v6936 = vpack.c.b16 %v6216, %v6208
    %v6937 = vpack.c.b16 %v6217, %v6209
    %v6938 = vpack.c.b16 %v6218, %v6210
    %v6939 = vpack.c.b16 %v6219, %v6211
    %v6940 = vpack.c.b16 %v6220, %v6212
    %v6941 = vpack.c.b16 %v6229, %v6221
    %v6942 = vpack.c.b16 %v6230, %v6222
    %v6943 = vpack.c.b16 %v6231, %v6223
    %v6944 = vpack.c.b16 %v6232, %v6224
    %v6945 = vpack.c.b16 %v6233, %v6225
    %v6946 = vpack.c.b16 %v6234, %v6226
    %v6947 = vpack.c.b16 %v6235, %v6227
    %v6948 = vpack.c.b16 %v6236, %v6228
    %v6949 = vpack.c.b16 %v6245, %v6237
    %v6950 = vpack.c.b16 %v6246, %v6238
    %v6951 = vpack.c.b16 %v6247, %v6239
    %v6952 = vpack.c.b16 %v6248, %v6240
    %v6953 = vpack.c.b16 %v6249, %v6241
    %v6954 = vpack.c.b16 %v6250, %v6242
    %v6955 = vpack.c.b16 %v6251, %v6243
    %v6956 = vpack.c.b16 %v6252, %v6244
    %v6957 = vpack.c.b16 %v6261, %v6253
    %v6958 = vpack.c.b16 %v6262, %v6254
    %v6959 = vpack.c.b16 %v6263, %v6255
    %v6960 = vpack.c.b16 %v6264, %v6256
    %v6961 = vpack.c.b16 %v6265, %v6257
    %v6962 = vpack.c.b16 %v6266, %v6258
    %v6963 = vpack.c.b16 %v6267, %v6259
    %v6964 = vpack.c.b16 %v6268, %v6260
    %v6965 = vpack.c.b16 %v6277, %v6269
    %v6966 = vpack.c.b16 %v6278, %v6270
    %v6967 = vpack.c.b16 %v6279, %v6271
    %v6968 = vpack.c.b16 %v6280, %v6272
    %v6969 = vpack.c.b16 %v6281, %v6273
    %v6970 = vpack.c.b16 %v6282, %v6274
    %v6971 = vpack.c.b16 %v6283, %v6275
    %v6972 = vpack.c.b16 %v6284, %v6276
    %v6973 = vpack.c.b16 %v6293, %v6285
    %v6974 = vpack.c.b16 %v6294, %v6286
    %v6975 = vpack.c.b16 %v6295, %v6287
    %v6976 = vpack.c.b16 %v6296, %v6288
    %v6977 = vpack.c.b16 %v6297, %v6289
    %v6978 = vpack.c.b16 %v6298, %v6290
    %v6979 = vpack.c.b16 %v6299, %v6291
    %v6980 = vpack.c.b16 %v6300, %v6292
    %v6981 = vpack.c.b16 %v6309, %v6301
    %v6982 = vpack.c.b16 %v6310, %v6302
    %v6983 = vpack.c.b16 %v6311, %v6303
    %v6984 = vpack.c.b16 %v6312, %v6304
    %v6985 = vpack.c.b16 %v6313, %v6305
    %v6986 = vpack.c.b16 %v6314, %v6306
    %v6987 = vpack.c.b16 %v6315, %v6307
    %v6988 = vpack.c.b16 %v6316, %v6308
    %v6989 = vpack.c.b16 %v6325, %v6317
    %v6990 = vpack.c.b16 %v6326, %v6318
    %v6991 = vpack.c.b16 %v6327, %v6319
    %v6992 = vpack.c.b16 %v6328, %v6320
    %v6993 = vpack.c.b16 %v6329, %v6321
    %v6994 = vpack.c.b16 %v6330, %v6322
    %v6995 = vpack.c.b16 %v6331, %v6323
    %v6996 = vpack.c.b16 %v6332, %v6324
    %v6997 = vpack.c.b16 %v6341, %v6333
    %v6998 = vpack.c.b16 %v6342, %v6334
    %v6999 = vpack.c.b16 %v6343, %v6335
    %v7000 = vpack.c.b16 %v6344, %v6336
    %v7001 = vpack.c.b16 %v6345, %v6337
    %v7002 = vpack.c.b16 %v6346, %v6338
    %v7003 = vpack.c.b16 %v6347, %v6339
    %v7004 = vpack.c.b16 %v6348, %v6340
    %v7005 = vpack.c.b16 %v6357, %v6349
    %v7006 = vpack.c.b16 %v6358, %v6350
    %v7007 = vpack.c.b16 %v6359, %v6351
    %v7008 = vpack.c.b16 %v6360, %v6352
    %v7009 = vpack.c.b16 %v6361, %v6353
    %v7010 = vpack.c.b16 %v6362, %v6354
    %v7011 = vpack.c.b16 %v6363, %v6355
    %v7012 = vpack.c.b16 %v6364, %v6356
    %v7013 = vpack.c.b16 %v6373, %v6365
    %v7014 = vpack.c.b16 %v6374, %v6366
    %v7015 = vpack.c.b16 %v6375, %v6367
    %v7016 = vpack.c.b16 %v6376, %v6368
    %v7017 = vpack.c.b16 %v6377, %v6369
    %v7018 = vpack.c.b16 %v6378, %v6370
    %v7019 = vpack.c.b16 %v6379, %v6371
    %v7020 = vpack.c.b16 %v6380, %v6372
    %v7021 = vpack.c.b16 %v6389, %v6381
    %v7022 = vpack.c.b16 %v6390, %v6382
    %v7023 = vpack.c.b16 %v6391, %v6383
    %v7024 = vpack.c.b16 %v6392, %v6384
    %v7025 = vpack.c.b16 %v6393, %v6385
    %v7026 = vpack.c.b16 %v6394, %v6386
    %v7027 = vpack.c.b16 %v6395, %v6387
    %v7028 = vpack.c.b16 %v6396, %v6388
    %v7029 = vpack.c.b16 %v6405, %v6397
    %v7030 = vpack.c.b16 %v6406, %v6398
    %v7031 = vpack.c.b16 %v6407, %v6399
    %v7032 = vpack.c.b16 %v6408, %v6400
    %v7033 = vpack.c.b16 %v6409, %v6401
    %v7034 = vpack.c.b16 %v6410, %v6402
    %v7035 = vpack.c.b16 %v6411, %v6403
    %v7036 = vpack.c.b16 %v6412, %v6404
    %v7037 = vpack.c.b16 %v6421, %v6413
    %v7038 = vpack.c.b16 %v6422, %v6414
    %v7039 = vpack.c.b16 %v6423, %v6415
    %v7040 = vpack.c.b16 %v6424, %v6416
    %v7041 = vpack.c.b16 %v6425, %v6417
    %v7042 = vpack.c.b16 %v6426, %v6418
    %v7043 = vpack.c.b16 %v6427, %v6419
    %v7044 = vpack.c.b16 %v6428, %v6420
    %v7045 = vpack.c.b16 %v6437, %v6429
    %v7046 = vpack.c.b16 %v6438, %v6430
    %v7047 = vpack.c.b16 %v6439, %v6431
    %v7048 = vpack.c.b16 %v6440, %v6432
    %v7049 = vpack.c.b16 %v6441, %v6433
    %v7050 = vpack.c.b16 %v6442, %v6434
    %v7051 = vpack.c.b16 %v6443, %v6435
    %v7052 = vpack.c.b16 %v6444, %v6436
    %v7053 = vpack.c.b16 %v6453, %v6445
    %v7054 = vpack.c.b16 %v6454, %v6446
    %v7055 = vpack.c.b16 %v6455, %v6447
    %v7056 = vpack.c.b16 %v6456, %v6448
    %v7057 = vpack.c.b16 %v6457, %v6449
    %v7058 = vpack.c.b16 %v6458, %v6450
    %v7059 = vpack.c.b16 %v6459, %v6451
    %v7060 = vpack.c.b16 %v6460, %v6452
    %v7061 = vpack.c.b16 %v6469, %v6461
    %v7062 = vpack.c.b16 %v6470, %v6462
    %v7063 = vpack.c.b16 %v6471, %v6463
    %v7064 = vpack.c.b16 %v6472, %v6464
    %v7065 = vpack.c.b16 %v6473, %v6465
    %v7066 = vpack.c.b16 %v6474, %v6466
    %v7067 = vpack.c.b16 %v6475, %v6467
    %v7068 = vpack.c.b16 %v6476, %v6468
    %v7069 = vpack.c.b16 %v6485, %v6477
    %v7070 = vpack.c.b16 %v6486, %v6478
    %v7071 = vpack.c.b16 %v6487, %v6479
    %v7072 = vpack.c.b16 %v6488, %v6480
    %v7073 = vpack.c.b16 %v6489, %v6481
    %v7074 = vpack.c.b16 %v6490, %v6482
    %v7075 = vpack.c.b16 %v6491, %v6483
    %v7076 = vpack.c.b16 %v6492, %v6484
    %v7077 = vpack.c.b16 %v6501, %v6493
    %v7078 = vpack.c.b16 %v6502, %v6494
    %v7079 = vpack.c.b16 %v6503, %v6495
    %v7080 = vpack.c.b16 %v6504, %v6496
    %v7081 = vpack.c.b16 %v6505, %v6497
    %v7082 = vpack.c.b16 %v6506, %v6498
    %v7083 = vpack.c.b16 %v6507, %v6499
    %v7084 = vpack.c.b16 %v6508, %v6500
    %v7085 = vpack.c.b16 %v6517, %v6509
    %v7086 = vpack.c.b16 %v6518, %v6510
    %v7087 = vpack.c.b16 %v6519, %v6511
    %v7088 = vpack.c.b16 %v6520, %v6512
    %v7089 = vpack.c.b16 %v6521, %v6513
    %v7090 = vpack.c.b16 %v6522, %v6514
    %v7091 = vpack.c.b16 %v6523, %v6515
    %v7092 = vpack.c.b16 %v6524, %v6516
    %v7093 = vpack.c.b16 %v6533, %v6525
    %v7094 = vpack.c.b16 %v6534, %v6526
    %v7095 = vpack.c.b16 %v6535, %v6527
    %v7096 = vpack.c.b16 %v6536, %v6528
    %v7097 = vpack.c.b16 %v6537, %v6529
    %v7098 = vpack.c.b16 %v6538, %v6530
    %v7099 = vpack.c.b16 %v6539, %v6531
    %v7100 = vpack.c.b16 %v6540, %v6532
    %v7101 = vpack.c.b16 %v6549, %v6541
    %v7102 = vpack.c.b16 %v6550, %v6542
    %v7103 = vpack.c.b16 %v6551, %v6543
    %v7104 = vpack.c.b16 %v6552, %v6544
    %v7105 = vpack.c.b16 %v6553, %v6545
    %v7106 = vpack.c.b16 %v6554, %v6546
    %v7107 = vpack.c.b16 %v6555, %v6547
    %v7108 = vpack.c.b16 %v6556, %v6548
    %v7109 = vpack.c.b16 %v6565, %v6557
    %v7110 = vpack.c.b16 %v6566, %v6558
    %v7111 = vpack.c.b16 %v6567, %v6559
    %v7112 = vpack.c.b16 %v6568, %v6560
    %v7113 = vpack.c.b16 %v6569, %v6561
    %v7114 = vpack.c.b16 %v6570, %v6562
    %v7115 = vpack.c.b16 %v6571, %v6563
    %v7116 = vpack.c.b16 %v6572, %v6564
    %v7117 = vpack.c.b16 %v6581, %v6573
    %v7118 = vpack.c.b16 %v6582, %v6574
    %v7119 = vpack.c.b16 %v6583, %v6575
    %v7120 = vpack.c.b16 %v6584, %v6576
    %v7121 = vpack.c.b16 %v6585, %v6577
    %v7122 = vpack.c.b16 %v6586, %v6578
    %v7123 = vpack.c.b16 %v6587, %v6579
    %v7124 = vpack.c.b16 %v6588, %v6580
    %v7125 = vpack.c.b16 %v6597, %v6589
    %v7126 = vpack.c.b16 %v6598, %v6590
    %v7127 = vpack.c.b16 %v6599, %v6591
    %v7128 = vpack.c.b16 %v6600, %v6592
    %v7129 = vpack.c.b16 %v6601, %v6593
    %v7130 = vpack.c.b16 %v6602, %v6594
    %v7131 = vpack.c.b16 %v6603, %v6595
    %v7132 = vpack.c.b16 %v6604, %v6596
    %v7133 = vpack.c.b16 %v6613, %v6605
    %v7134 = vpack.c.b16 %v6614, %v6606
    %v7135 = vpack.c.b16 %v6615, %v6607
    %v7136 = vpack.c.b16 %v6616, %v6608
    %v7137 = vpack.c.b16 %v6617, %v6609
    %v7138 = vpack.c.b16 %v6618, %v6610
    %v7139 = vpack.c.b16 %v6619, %v6611
    %v7140 = vpack.c.b16 %v6620, %v6612
    %v7141 = vpack.c.b16 %v6629, %v6621
    %v7142 = vpack.c.b16 %v6630, %v6622
    %v7143 = vpack.c.b16 %v6631, %v6623
    %v7144 = vpack.c.b16 %v6632, %v6624
    %v7145 = vpack.c.b16 %v6633, %v6625
    %v7146 = vpack.c.b16 %v6634, %v6626
    %v7147 = vpack.c.b16 %v6635, %v6627
    %v7148 = vpack.c.b16 %v6636, %v6628
    %7661 = vmatprep.subr.bf16.mxu0 %v6638
    %7662 = vmatpush1.bf16.msra.mxu0 %v6637
    %7663 = vmatprep.subr.bf16.mxu0 %v6646
    %7664 = vmatpush1.bf16.msra.mxu0 %v6645
    %7665 = vmatprep.subr.bf16.mxu0 %v6654
    %7666 = vmatpush1.bf16.msra.mxu0 %v6653
    %7667 = vmatprep.subr.bf16.mxu0 %v6662
    %7668 = vmatpush1.bf16.msra.mxu0 %v6661
    %7669 = vmatprep.subr.bf16.mxu0 %v6670
    %7670 = vmatpush1.bf16.msra.mxu0 %v6669
    %7671 = vmatprep.subr.bf16.mxu0 %v6678
    %7672 = vmatpush1.bf16.msra.mxu0 %v6677
    %7673 = vmatprep.subr.bf16.mxu0 %v6686
    %7674 = vmatpush1.bf16.msra.mxu0 %v6685
    %7675 = vmatprep.subr.bf16.mxu0 %v6694
    %7676 = vmatpush1.bf16.msra.mxu0 %v6693
    %7677 = vmatprep.subr.bf16.mxu0 %v6702
    %7678 = vmatpush1.bf16.msra.mxu0 %v6701
    %7679 = vmatprep.subr.bf16.mxu0 %v6710
    %7680 = vmatpush1.bf16.msra.mxu0 %v6709
    %7681 = vmatprep.subr.bf16.mxu0 %v6718
    %7682 = vmatpush1.bf16.msra.mxu0 %v6717
    %7683 = vmatprep.subr.bf16.mxu0 %v6726
    %7684 = vmatpush1.bf16.msra.mxu0 %v6725
    %7685 = vmatprep.subr.bf16.mxu0 %v6734
    %7686 = vmatpush1.bf16.msra.mxu0 %v6733
    %7687 = vmatprep.subr.bf16.mxu0 %v6742
    %7688 = vmatpush1.bf16.msra.mxu0 %v6741
    %7689 = vmatprep.subr.bf16.mxu0 %v6750
    %7690 = vmatpush1.bf16.msra.mxu0 %v6749
    %7691 = vmatprep.subr.bf16.mxu0 %v6758
    %7692 = vmatpush1.bf16.msra.mxu0 %v6757
    %7693 = vmatprep.mubr.bf16.mxu0 %v4540
    %7694 = vmatmul.mubr.bf16.gmra.mrb[0].mxu0 %v4539
    %v7695 = vpop.f32.mrb[0].mxu0
    %v7696 = vadd.f32 %v5064, %v7695
    %v7697 = vpop.f32.mrb[0].mxu0
    %v7698 = vadd.f32 %v5068, %v7697
    %v7699 = vpop.f32.mrb[0].mxu0
    %v7700 = vpop.f32.mrb[0].mxu0
    %7701 = vdwg.mxu0
    %7702 = vmatprep.subr.bf16.mxu0 %v6766
    %7703 = vmatpush1.bf16.msra.mxu0 %v6765
    %7704 = vmatprep.subr.bf16.mxu0 %v6774
    %7705 = vmatpush1.bf16.msra.mxu0 %v6773
    %7706 = vmatprep.subr.bf16.mxu0 %v6782
    %7707 = vmatpush1.bf16.msra.mxu0 %v6781
    %7708 = vmatprep.subr.bf16.mxu0 %v6790
    %7709 = vmatpush1.bf16.msra.mxu0 %v6789
    %7710 = vmatprep.subr.bf16.mxu0 %v6798
    %7711 = vmatpush1.bf16.msra.mxu0 %v6797
    %7712 = vmatprep.subr.bf16.mxu0 %v6806
    %7713 = vmatpush1.bf16.msra.mxu0 %v6805
    %7714 = vmatprep.subr.bf16.mxu0 %v6814
    %7715 = vmatpush1.bf16.msra.mxu0 %v6813
    %7716 = vmatprep.subr.bf16.mxu0 %v6822
    %7717 = vmatpush1.bf16.msra.mxu0 %v6821
    %7718 = vmatprep.subr.bf16.mxu0 %v6830
    %7719 = vmatpush1.bf16.msra.mxu0 %v6829
    %7720 = vmatprep.subr.bf16.mxu0 %v6838
    %7721 = vmatpush1.bf16.msra.mxu0 %v6837
    %7722 = vmatprep.subr.bf16.mxu0 %v6846
    %7723 = vmatpush1.bf16.msra.mxu0 %v6845
    %7724 = vmatprep.subr.bf16.mxu0 %v6854
    %7725 = vmatpush1.bf16.msra.mxu0 %v6853
    %7726 = vmatprep.subr.bf16.mxu0 %v6862
    %7727 = vmatpush1.bf16.msra.mxu0 %v6861
    %7728 = vmatprep.subr.bf16.mxu0 %v6870
    %7729 = vmatpush1.bf16.msra.mxu0 %v6869
    %7730 = vmatprep.subr.bf16.mxu0 %v6878
    %7731 = vmatpush1.bf16.msra.mxu0 %v6877
    %7732 = vmatprep.subr.bf16.mxu0 %v6886
    %7733 = vmatpush1.bf16.msra.mxu0 %v6885
    %7734 = vmatprep.mubr.bf16.mxu0 %v4542
    %7735 = vmatmul.mubr.bf16.gmra.mrb[0].mxu0 %v4541
    %v7736 = vpop.f32.mrb[0].mxu0
    %v7737 = vadd.f32 %v7696, %v7736
    %v7738 = vpop.f32.mrb[0].mxu0
    %v7739 = vadd.f32 %v7698, %v7738
    %v7740 = vpop.f32.mrb[0].mxu0
    %v7741 = vpop.f32.mrb[0].mxu0
    %7742 = vdwg.mxu0
    %7743 = vmatprep.subr.bf16.mxu0 %v6894
    %7744 = vmatpush1.bf16.msra.mxu0 %v6893
    %7745 = vmatprep.subr.bf16.mxu0 %v6902
    %7746 = vmatpush1.bf16.msra.mxu0 %v6901
    %7747 = vmatprep.subr.bf16.mxu0 %v6910
    %7748 = vmatpush1.bf16.msra.mxu0 %v6909
    %7749 = vmatprep.subr.bf16.mxu0 %v6918
    %7750 = vmatpush1.bf16.msra.mxu0 %v6917
    %7751 = vmatprep.subr.bf16.mxu0 %v6926
    %7752 = vmatpush1.bf16.msra.mxu0 %v6925
    %7753 = vmatprep.subr.bf16.mxu0 %v6934
    %7754 = vmatpush1.bf16.msra.mxu0 %v6933
    %7755 = vmatprep.subr.bf16.mxu0 %v6942
    %7756 = vmatpush1.bf16.msra.mxu0 %v6941
    %7757 = vmatprep.subr.bf16.mxu0 %v6950
    %7758 = vmatpush1.bf16.msra.mxu0 %v6949
    %7759 = vmatprep.subr.bf16.mxu0 %v6958
    %7760 = vmatpush1.bf16.msra.mxu0 %v6957
    %7761 = vmatprep.subr.bf16.mxu0 %v6966
    %7762 = vmatpush1.bf16.msra.mxu0 %v6965
    %7763 = vmatprep.subr.bf16.mxu0 %v6974
    %7764 = vmatpush1.bf16.msra.mxu0 %v6973
    %7765 = vmatprep.subr.bf16.mxu0 %v6982
    %7766 = vmatpush1.bf16.msra.mxu0 %v6981
    %7767 = vmatprep.subr.bf16.mxu0 %v6990
    %7768 = vmatpush1.bf16.msra.mxu0 %v6989
    %7769 = vmatprep.subr.bf16.mxu0 %v6998
    %7770 = vmatpush1.bf16.msra.mxu0 %v6997
    %7771 = vmatprep.subr.bf16.mxu0 %v7006
    %7772 = vmatpush1.bf16.msra.mxu0 %v7005
    %7773 = vmatprep.subr.bf16.mxu0 %v7014
    %7774 = vmatpush1.bf16.msra.mxu0 %v7013
    %7775 = vmatprep.mubr.bf16.mxu0 %v4544
    %7776 = vmatmul.mubr.bf16.gmra.mrb[0].mxu0 %v4543
    %v7777 = vpop.f32.mrb[0].mxu0
    %v7778 = vadd.f32 %v7737, %v7777
    %v7779 = vpop.f32.mrb[0].mxu0
    %v7780 = vadd.f32 %v7739, %v7779
    %v7781 = vpop.f32.mrb[0].mxu0
    %v7782 = vpop.f32.mrb[0].mxu0
    %7783 = vdwg.mxu0
    %7784 = vmatprep.subr.bf16.mxu0 %v7022
    %7785 = vmatpush1.bf16.msra.mxu0 %v7021
    %7786 = vmatprep.subr.bf16.mxu0 %v7030
    %7787 = vmatpush1.bf16.msra.mxu0 %v7029
    %7788 = vmatprep.subr.bf16.mxu0 %v7038
    %7789 = vmatpush1.bf16.msra.mxu0 %v7037
    %7790 = vmatprep.subr.bf16.mxu0 %v7046
    %7791 = vmatpush1.bf16.msra.mxu0 %v7045
    %7792 = vmatprep.subr.bf16.mxu0 %v7054
    %7793 = vmatpush1.bf16.msra.mxu0 %v7053
    %7794 = vmatprep.subr.bf16.mxu0 %v7062
    %7795 = vmatpush1.bf16.msra.mxu0 %v7061
    %7796 = vmatprep.subr.bf16.mxu0 %v7070
    %7797 = vmatpush1.bf16.msra.mxu0 %v7069
    %7798 = vmatprep.subr.bf16.mxu0 %v7078
    %7799 = vmatpush1.bf16.msra.mxu0 %v7077
    %7800 = vmatprep.subr.bf16.mxu0 %v7086
    %7801 = vmatpush1.bf16.msra.mxu0 %v7085
    %7802 = vmatprep.subr.bf16.mxu0 %v7094
    %7803 = vmatpush1.bf16.msra.mxu0 %v7093
    %7804 = vmatprep.subr.bf16.mxu0 %v7102
    %7805 = vmatpush1.bf16.msra.mxu0 %v7101
    %7806 = vmatprep.subr.bf16.mxu0 %v7110
    %7807 = vmatpush1.bf16.msra.mxu0 %v7109
    %7808 = vmatprep.subr.bf16.mxu0 %v7118
    %7809 = vmatpush1.bf16.msra.mxu0 %v7117
    %7810 = vmatprep.subr.bf16.mxu0 %v7126
    %7811 = vmatpush1.bf16.msra.mxu0 %v7125
    %7812 = vmatprep.subr.bf16.mxu0 %v7134
    %7813 = vmatpush1.bf16.msra.mxu0 %v7133
    %7814 = vmatprep.subr.bf16.mxu0 %v7142
    %7815 = vmatpush1.bf16.msra.mxu0 %v7141
    %7816 = vmatprep.mubr.bf16.mxu0 %v4546
    %7817 = vmatmul.mubr.bf16.gmra.mrb[0].mxu0 %v4545
    %v7818 = vpop.f32.mrb[0].mxu0
    %v7819 = vadd.f32 %v7778, %v7818
    %v7820 = vpop.f32.mrb[0].mxu0
    %v7821 = vadd.f32 %v7780, %v7820
    %v7822 = vpop.f32.mrb[0].mxu0
    %v7823 = vpop.f32.mrb[0].mxu0
    %7824 = vdwg.mxu0
    %7825 = vmatprep.subr.bf16.mxu0 %v6640
    %7826 = vmatpush1.bf16.msra.mxu0 %v6639
    %7827 = vmatprep.subr.bf16.mxu0 %v6648
    %7828 = vmatpush1.bf16.msra.mxu0 %v6647
    %7829 = vmatprep.subr.bf16.mxu0 %v6656
    %7830 = vmatpush1.bf16.msra.mxu0 %v6655
    %7831 = vmatprep.subr.bf16.mxu0 %v6664
    %7832 = vmatpush1.bf16.msra.mxu0 %v6663
    %7833 = vmatprep.subr.bf16.mxu0 %v6672
    %7834 = vmatpush1.bf16.msra.mxu0 %v6671
    %7835 = vmatprep.subr.bf16.mxu0 %v6680
    %7836 = vmatpush1.bf16.msra.mxu0 %v6679
    %7837 = vmatprep.subr.bf16.mxu0 %v6688
    %7838 = vmatpush1.bf16.msra.mxu0 %v6687
    %7839 = vmatprep.subr.bf16.mxu0 %v6696
    %7840 = vmatpush1.bf16.msra.mxu0 %v6695
    %7841 = vmatprep.subr.bf16.mxu0 %v6704
    %7842 = vmatpush1.bf16.msra.mxu0 %v6703
    %7843 = vmatprep.subr.bf16.mxu0 %v6712
    %7844 = vmatpush1.bf16.msra.mxu0 %v6711
    %7845 = vmatprep.subr.bf16.mxu0 %v6720
    %7846 = vmatpush1.bf16.msra.mxu0 %v6719
    %7847 = vmatprep.subr.bf16.mxu0 %v6728
    %7848 = vmatpush1.bf16.msra.mxu0 %v6727
    %7849 = vmatprep.subr.bf16.mxu0 %v6736
    %7850 = vmatpush1.bf16.msra.mxu0 %v6735
    %7851 = vmatprep.subr.bf16.mxu0 %v6744
    %7852 = vmatpush1.bf16.msra.mxu0 %v6743
    %7853 = vmatprep.subr.bf16.mxu0 %v6752
    %7854 = vmatpush1.bf16.msra.mxu0 %v6751
    %7855 = vmatprep.subr.bf16.mxu0 %v6760
    %7856 = vmatpush1.bf16.msra.mxu0 %v6759
    %7857 = vmatprep.mubr.bf16.mxu0 %v4540
    %7858 = vmatmul.mubr.bf16.gmra.mrb[0].mxu0 %v4539
    %v7859 = vpop.f32.mrb[0].mxu0
    %v7860 = vadd.f32 %v5072, %v7859
    %v7861 = vpop.f32.mrb[0].mxu0
    %v7862 = vadd.f32 %v5076, %v7861
    %v7863 = vpop.f32.mrb[0].mxu0
    %v7864 = vpop.f32.mrb[0].mxu0
    %7865 = vdwg.mxu0
    %7866 = vmatprep.subr.bf16.mxu0 %v6768
    %7867 = vmatpush1.bf16.msra.mxu0 %v6767
    %7868 = vmatprep.subr.bf16.mxu0 %v6776
    %7869 = vmatpush1.bf16.msra.mxu0 %v6775
    %7870 = vmatprep.subr.bf16.mxu0 %v6784
    %7871 = vmatpush1.bf16.msra.mxu0 %v6783
    %7872 = vmatprep.subr.bf16.mxu0 %v6792
    %7873 = vmatpush1.bf16.msra.mxu0 %v6791
    %7874 = vmatprep.subr.bf16.mxu0 %v6800
    %7875 = vmatpush1.bf16.msra.mxu0 %v6799
    %7876 = vmatprep.subr.bf16.mxu0 %v6808
    %7877 = vmatpush1.bf16.msra.mxu0 %v6807
    %7878 = vmatprep.subr.bf16.mxu0 %v6816
    %7879 = vmatpush1.bf16.msra.mxu0 %v6815
    %7880 = vmatprep.subr.bf16.mxu0 %v6824
    %7881 = vmatpush1.bf16.msra.mxu0 %v6823
    %7882 = vmatprep.subr.bf16.mxu0 %v6832
    %7883 = vmatpush1.bf16.msra.mxu0 %v6831
    %7884 = vmatprep.subr.bf16.mxu0 %v6840
    %7885 = vmatpush1.bf16.msra.mxu0 %v6839
    %7886 = vmatprep.subr.bf16.mxu0 %v6848
    %7887 = vmatpush1.bf16.msra.mxu0 %v6847
    %7888 = vmatprep.subr.bf16.mxu0 %v6856
    %7889 = vmatpush1.bf16.msra.mxu0 %v6855
    %7890 = vmatprep.subr.bf16.mxu0 %v6864
    %7891 = vmatpush1.bf16.msra.mxu0 %v6863
    %7892 = vmatprep.subr.bf16.mxu0 %v6872
    %7893 = vmatpush1.bf16.msra.mxu0 %v6871
    %7894 = vmatprep.subr.bf16.mxu0 %v6880
    %7895 = vmatpush1.bf16.msra.mxu0 %v6879
    %7896 = vmatprep.subr.bf16.mxu0 %v6888
    %7897 = vmatpush1.bf16.msra.mxu0 %v6887
    %7898 = vmatprep.mubr.bf16.mxu0 %v4542
    %7899 = vmatmul.mubr.bf16.gmra.mrb[0].mxu0 %v4541
    %v7900 = vpop.f32.mrb[0].mxu0
    %v7901 = vadd.f32 %v7860, %v7900
    %v7902 = vpop.f32.mrb[0].mxu0
    %v7903 = vadd.f32 %v7862, %v7902
    %v7904 = vpop.f32.mrb[0].mxu0
    %v7905 = vpop.f32.mrb[0].mxu0
    %7906 = vdwg.mxu0
    %7907 = vmatprep.subr.bf16.mxu0 %v6896
    %7908 = vmatpush1.bf16.msra.mxu0 %v6895
    %7909 = vmatprep.subr.bf16.mxu0 %v6904
    %7910 = vmatpush1.bf16.msra.mxu0 %v6903
    %7911 = vmatprep.subr.bf16.mxu0 %v6912
    %7912 = vmatpush1.bf16.msra.mxu0 %v6911
    %7913 = vmatprep.subr.bf16.mxu0 %v6920
    %7914 = vmatpush1.bf16.msra.mxu0 %v6919
    %7915 = vmatprep.subr.bf16.mxu0 %v6928
    %7916 = vmatpush1.bf16.msra.mxu0 %v6927
    %7917 = vmatprep.subr.bf16.mxu0 %v6936
    %7918 = vmatpush1.bf16.msra.mxu0 %v6935
    %7919 = vmatprep.subr.bf16.mxu0 %v6944
    %7920 = vmatpush1.bf16.msra.mxu0 %v6943
    %7921 = vmatprep.subr.bf16.mxu0 %v6952
    %7922 = vmatpush1.bf16.msra.mxu0 %v6951
    %7923 = vmatprep.subr.bf16.mxu0 %v6960
    %7924 = vmatpush1.bf16.msra.mxu0 %v6959
    %7925 = vmatprep.subr.bf16.mxu0 %v6968
    %7926 = vmatpush1.bf16.msra.mxu0 %v6967
    %7927 = vmatprep.subr.bf16.mxu0 %v6976
    %7928 = vmatpush1.bf16.msra.mxu0 %v6975
    %7929 = vmatprep.subr.bf16.mxu0 %v6984
    %7930 = vmatpush1.bf16.msra.mxu0 %v6983
    %7931 = vmatprep.subr.bf16.mxu0 %v6992
    %7932 = vmatpush1.bf16.msra.mxu0 %v6991
    %7933 = vmatprep.subr.bf16.mxu0 %v7000
    %7934 = vmatpush1.bf16.msra.mxu0 %v6999
    %7935 = vmatprep.subr.bf16.mxu0 %v7008
    %7936 = vmatpush1.bf16.msra.mxu0 %v7007
    %7937 = vmatprep.subr.bf16.mxu0 %v7016
    %7938 = vmatpush1.bf16.msra.mxu0 %v7015
    %7939 = vmatprep.mubr.bf16.mxu0 %v4544
    %7940 = vmatmul.mubr.bf16.gmra.mrb[0].mxu0 %v4543
    %v7941 = vpop.f32.mrb[0].mxu0
    %v7942 = vadd.f32 %v7901, %v7941
    %v7943 = vpop.f32.mrb[0].mxu0
    %v7944 = vadd.f32 %v7903, %v7943
    %v7945 = vpop.f32.mrb[0].mxu0
    %v7946 = vpop.f32.mrb[0].mxu0
    %7947 = vdwg.mxu0
    %7948 = vmatprep.subr.bf16.mxu0 %v7024
    %7949 = vmatpush1.bf16.msra.mxu0 %v7023
    %7950 = vmatprep.subr.bf16.mxu0 %v7032
    %7951 = vmatpush1.bf16.msra.mxu0 %v7031
    %7952 = vmatprep.subr.bf16.mxu0 %v7040
    %7953 = vmatpush1.bf16.msra.mxu0 %v7039
    %7954 = vmatprep.subr.bf16.mxu0 %v7048
    %7955 = vmatpush1.bf16.msra.mxu0 %v7047
    %7956 = vmatprep.subr.bf16.mxu0 %v7056
    %7957 = vmatpush1.bf16.msra.mxu0 %v7055
    %7958 = vmatprep.subr.bf16.mxu0 %v7064
    %7959 = vmatpush1.bf16.msra.mxu0 %v7063
    %7960 = vmatprep.subr.bf16.mxu0 %v7072
    %7961 = vmatpush1.bf16.msra.mxu0 %v7071
    %7962 = vmatprep.subr.bf16.mxu0 %v7080
    %7963 = vmatpush1.bf16.msra.mxu0 %v7079
    %7964 = vmatprep.subr.bf16.mxu0 %v7088
    %7965 = vmatpush1.bf16.msra.mxu0 %v7087
    %7966 = vmatprep.subr.bf16.mxu0 %v7096
    %7967 = vmatpush1.bf16.msra.mxu0 %v7095
    %7968 = vmatprep.subr.bf16.mxu0 %v7104
    %7969 = vmatpush1.bf16.msra.mxu0 %v7103
    %7970 = vmatprep.subr.bf16.mxu0 %v7112
    %7971 = vmatpush1.bf16.msra.mxu0 %v7111
    %7972 = vmatprep.subr.bf16.mxu0 %v7120
    %7973 = vmatpush1.bf16.msra.mxu0 %v7119
    %7974 = vmatprep.subr.bf16.mxu0 %v7128
    %7975 = vmatpush1.bf16.msra.mxu0 %v7127
    %7976 = vmatprep.subr.bf16.mxu0 %v7136
    %7977 = vmatpush1.bf16.msra.mxu0 %v7135
    %7978 = vmatprep.subr.bf16.mxu0 %v7144
    %7979 = vmatpush1.bf16.msra.mxu0 %v7143
    %7980 = vmatprep.mubr.bf16.mxu0 %v4546
    %7981 = vmatmul.mubr.bf16.gmra.mrb[0].mxu0 %v4545
    %v7982 = vpop.f32.mrb[0].mxu0
    %v7983 = vadd.f32 %v7942, %v7982
    %v7984 = vpop.f32.mrb[0].mxu0
    %v7985 = vadd.f32 %v7944, %v7984
    %v7986 = vpop.f32.mrb[0].mxu0
    %v7987 = vpop.f32.mrb[0].mxu0
    %7988 = vdwg.mxu0
    %7989 = vmatprep.subr.bf16.mxu0 %v6642
    %7990 = vmatpush1.bf16.msra.mxu0 %v6641
    %7991 = vmatprep.subr.bf16.mxu0 %v6650
    %7992 = vmatpush1.bf16.msra.mxu0 %v6649
    %7993 = vmatprep.subr.bf16.mxu0 %v6658
    %7994 = vmatpush1.bf16.msra.mxu0 %v6657
    %7995 = vmatprep.subr.bf16.mxu0 %v6666
    %7996 = vmatpush1.bf16.msra.mxu0 %v6665
    %7997 = vmatprep.subr.bf16.mxu0 %v6674
    %7998 = vmatpush1.bf16.msra.mxu0 %v6673
    %7999 = vmatprep.subr.bf16.mxu0 %v6682
    %8000 = vmatpush1.bf16.msra.mxu0 %v6681
    %8001 = vmatprep.subr.bf16.mxu0 %v6690
    %8002 = vmatpush1.bf16.msra.mxu0 %v6689
    %8003 = vmatprep.subr.bf16.mxu0 %v6698
    %8004 = vmatpush1.bf16.msra.mxu0 %v6697
    %8005 = vmatprep.subr.bf16.mxu0 %v6706
    %8006 = vmatpush1.bf16.msra.mxu0 %v6705
    %8007 = vmatprep.subr.bf16.mxu0 %v6714
    %8008 = vmatpush1.bf16.msra.mxu0 %v6713
    %8009 = vmatprep.subr.bf16.mxu0 %v6722
    %8010 = vmatpush1.bf16.msra.mxu0 %v6721
    %8011 = vmatprep.subr.bf16.mxu0 %v6730
    %8012 = vmatpush1.bf16.msra.mxu0 %v6729
    %8013 = vmatprep.subr.bf16.mxu0 %v6738
    %8014 = vmatpush1.bf16.msra.mxu0 %v6737
    %8015 = vmatprep.subr.bf16.mxu0 %v6746
    %8016 = vmatpush1.bf16.msra.mxu0 %v6745
    %8017 = vmatprep.subr.bf16.mxu0 %v6754
    %8018 = vmatpush1.bf16.msra.mxu0 %v6753
    %8019 = vmatprep.subr.bf16.mxu0 %v6762
    %8020 = vmatpush1.bf16.msra.mxu0 %v6761
    %8021 = vmatprep.mubr.bf16.mxu0 %v4540
    %8022 = vmatmul.mubr.bf16.gmra.mrb[0].mxu0 %v4539
    %v8023 = vpop.f32.mrb[0].mxu0
    %v8024 = vadd.f32 %v5080, %v8023
    %v8025 = vpop.f32.mrb[0].mxu0
    %v8026 = vadd.f32 %v5084, %v8025
    %v8027 = vpop.f32.mrb[0].mxu0
    %v8028 = vpop.f32.mrb[0].mxu0
    %8029 = vdwg.mxu0
    %8030 = vmatprep.subr.bf16.mxu0 %v6770
    %8031 = vmatpush1.bf16.msra.mxu0 %v6769
    %8032 = vmatprep.subr.bf16.mxu0 %v6778
    %8033 = vmatpush1.bf16.msra.mxu0 %v6777
    %8034 = vmatprep.subr.bf16.mxu0 %v6786
    %8035 = vmatpush1.bf16.msra.mxu0 %v6785
    %8036 = vmatprep.subr.bf16.mxu0 %v6794
    %8037 = vmatpush1.bf16.msra.mxu0 %v6793
    %8038 = vmatprep.subr.bf16.mxu0 %v6802
    %8039 = vmatpush1.bf16.msra.mxu0 %v6801
    %8040 = vmatprep.subr.bf16.mxu0 %v6810
    %8041 = vmatpush1.bf16.msra.mxu0 %v6809
    %8042 = vmatprep.subr.bf16.mxu0 %v6818
    %8043 = vmatpush1.bf16.msra.mxu0 %v6817
    %8044 = vmatprep.subr.bf16.mxu0 %v6826
    %8045 = vmatpush1.bf16.msra.mxu0 %v6825
    %8046 = vmatprep.subr.bf16.mxu0 %v6834
    %8047 = vmatpush1.bf16.msra.mxu0 %v6833
    %8048 = vmatprep.subr.bf16.mxu0 %v6842
    %8049 = vmatpush1.bf16.msra.mxu0 %v6841
    %8050 = vmatprep.subr.bf16.mxu0 %v6850
    %8051 = vmatpush1.bf16.msra.mxu0 %v6849
    %8052 = vmatprep.subr.bf16.mxu0 %v6858
    %8053 = vmatpush1.bf16.msra.mxu0 %v6857
    %8054 = vmatprep.subr.bf16.mxu0 %v6866
    %8055 = vmatpush1.bf16.msra.mxu0 %v6865
    %8056 = vmatprep.subr.bf16.mxu0 %v6874
    %8057 = vmatpush1.bf16.msra.mxu0 %v6873
    %8058 = vmatprep.subr.bf16.mxu0 %v6882
    %8059 = vmatpush1.bf16.msra.mxu0 %v6881
    %8060 = vmatprep.subr.bf16.mxu0 %v6890
    %8061 = vmatpush1.bf16.msra.mxu0 %v6889
    %8062 = vmatprep.mubr.bf16.mxu0 %v4542
    %8063 = vmatmul.mubr.bf16.gmra.mrb[0].mxu0 %v4541
    %v8064 = vpop.f32.mrb[0].mxu0
    %v8065 = vadd.f32 %v8024, %v8064
    %v8066 = vpop.f32.mrb[0].mxu0
    %v8067 = vadd.f32 %v8026, %v8066
    %v8068 = vpop.f32.mrb[0].mxu0
    %v8069 = vpop.f32.mrb[0].mxu0
    %8070 = vdwg.mxu0
    %8071 = vmatprep.subr.bf16.mxu0 %v6898
    %8072 = vmatpush1.bf16.msra.mxu0 %v6897
    %8073 = vmatprep.subr.bf16.mxu0 %v6906
    %8074 = vmatpush1.bf16.msra.mxu0 %v6905
    %8075 = vmatprep.subr.bf16.mxu0 %v6914
    %8076 = vmatpush1.bf16.msra.mxu0 %v6913
    %8077 = vmatprep.subr.bf16.mxu0 %v6922
    %8078 = vmatpush1.bf16.msra.mxu0 %v6921
    %8079 = vmatprep.subr.bf16.mxu0 %v6930
    %8080 = vmatpush1.bf16.msra.mxu0 %v6929
    %8081 = vmatprep.subr.bf16.mxu0 %v6938
    %8082 = vmatpush1.bf16.msra.mxu0 %v6937
    %8083 = vmatprep.subr.bf16.mxu0 %v6946
    %8084 = vmatpush1.bf16.msra.mxu0 %v6945
    %8085 = vmatprep.subr.bf16.mxu0 %v6954
    %8086 = vmatpush1.bf16.msra.mxu0 %v6953
    %8087 = vmatprep.subr.bf16.mxu0 %v6962
    %8088 = vmatpush1.bf16.msra.mxu0 %v6961
    %8089 = vmatprep.subr.bf16.mxu0 %v6970
    %8090 = vmatpush1.bf16.msra.mxu0 %v6969
    %8091 = vmatprep.subr.bf16.mxu0 %v6978
    %8092 = vmatpush1.bf16.msra.mxu0 %v6977
    %8093 = vmatprep.subr.bf16.mxu0 %v6986
    %8094 = vmatpush1.bf16.msra.mxu0 %v6985
    %8095 = vmatprep.subr.bf16.mxu0 %v6994
    %8096 = vmatpush1.bf16.msra.mxu0 %v6993
    %8097 = vmatprep.subr.bf16.mxu0 %v7002
    %8098 = vmatpush1.bf16.msra.mxu0 %v7001
    %8099 = vmatprep.subr.bf16.mxu0 %v7010
    %8100 = vmatpush1.bf16.msra.mxu0 %v7009
    %8101 = vmatprep.subr.bf16.mxu0 %v7018
    %8102 = vmatpush1.bf16.msra.mxu0 %v7017
    %8103 = vmatprep.mubr.bf16.mxu0 %v4544
    %8104 = vmatmul.mubr.bf16.gmra.mrb[0].mxu0 %v4543
    %v8105 = vpop.f32.mrb[0].mxu0
    %v8106 = vadd.f32 %v8065, %v8105
    %v8107 = vpop.f32.mrb[0].mxu0
    %v8108 = vadd.f32 %v8067, %v8107
    %v8109 = vpop.f32.mrb[0].mxu0
    %v8110 = vpop.f32.mrb[0].mxu0
    %8111 = vdwg.mxu0
    %8112 = vmatprep.subr.bf16.mxu0 %v7026
    %8113 = vmatpush1.bf16.msra.mxu0 %v7025
    %8114 = vmatprep.subr.bf16.mxu0 %v7034
    %8115 = vmatpush1.bf16.msra.mxu0 %v7033
    %8116 = vmatprep.subr.bf16.mxu0 %v7042
    %8117 = vmatpush1.bf16.msra.mxu0 %v7041
    %8118 = vmatprep.subr.bf16.mxu0 %v7050
    %8119 = vmatpush1.bf16.msra.mxu0 %v7049
    %8120 = vmatprep.subr.bf16.mxu0 %v7058
    %8121 = vmatpush1.bf16.msra.mxu0 %v7057
    %8122 = vmatprep.subr.bf16.mxu0 %v7066
    %8123 = vmatpush1.bf16.msra.mxu0 %v7065
    %8124 = vmatprep.subr.bf16.mxu0 %v7074
    %8125 = vmatpush1.bf16.msra.mxu0 %v7073
    %8126 = vmatprep.subr.bf16.mxu0 %v7082
    %8127 = vmatpush1.bf16.msra.mxu0 %v7081
    %8128 = vmatprep.subr.bf16.mxu0 %v7090
    %8129 = vmatpush1.bf16.msra.mxu0 %v7089
    %8130 = vmatprep.subr.bf16.mxu0 %v7098
    %8131 = vmatpush1.bf16.msra.mxu0 %v7097
    %8132 = vmatprep.subr.bf16.mxu0 %v7106
    %8133 = vmatpush1.bf16.msra.mxu0 %v7105
    %8134 = vmatprep.subr.bf16.mxu0 %v7114
    %8135 = vmatpush1.bf16.msra.mxu0 %v7113
    %8136 = vmatprep.subr.bf16.mxu0 %v7122
    %8137 = vmatpush1.bf16.msra.mxu0 %v7121
    %8138 = vmatprep.subr.bf16.mxu0 %v7130
    %8139 = vmatpush1.bf16.msra.mxu0 %v7129
    %8140 = vmatprep.subr.bf16.mxu0 %v7138
    %8141 = vmatpush1.bf16.msra.mxu0 %v7137
    %8142 = vmatprep.subr.bf16.mxu0 %v7146
    %8143 = vmatpush1.bf16.msra.mxu0 %v7145
    %8144 = vmatprep.mubr.bf16.mxu0 %v4546
    %8145 = vmatmul.mubr.bf16.gmra.mrb[0].mxu0 %v4545
    %v8146 = vpop.f32.mrb[0].mxu0
    %v8147 = vadd.f32 %v8106, %v8146
    %v8148 = vpop.f32.mrb[0].mxu0
    %v8149 = vadd.f32 %v8108, %v8148
    %v8150 = vpop.f32.mrb[0].mxu0
    %v8151 = vpop.f32.mrb[0].mxu0
    %8152 = vdwg.mxu0
    %8153 = vmatprep.subr.bf16.mxu0 %v6644
    %8154 = vmatpush1.bf16.msra.mxu0 %v6643
    %8155 = vmatprep.subr.bf16.mxu0 %v6652
    %8156 = vmatpush1.bf16.msra.mxu0 %v6651
    %8157 = vmatprep.subr.bf16.mxu0 %v6660
    %8158 = vmatpush1.bf16.msra.mxu0 %v6659
    %8159 = vmatprep.subr.bf16.mxu0 %v6668
    %8160 = vmatpush1.bf16.msra.mxu0 %v6667
    %8161 = vmatprep.subr.bf16.mxu0 %v6676
    %8162 = vmatpush1.bf16.msra.mxu0 %v6675
    %8163 = vmatprep.subr.bf16.mxu0 %v6684
    %8164 = vmatpush1.bf16.msra.mxu0 %v6683
    %8165 = vmatprep.subr.bf16.mxu0 %v6692
    %8166 = vmatpush1.bf16.msra.mxu0 %v6691
    %8167 = vmatprep.subr.bf16.mxu0 %v6700
    %8168 = vmatpush1.bf16.msra.mxu0 %v6699
    %8169 = vmatprep.subr.bf16.mxu0 %v6708
    %8170 = vmatpush1.bf16.msra.mxu0 %v6707
    %8171 = vmatprep.subr.bf16.mxu0 %v6716
    %8172 = vmatpush1.bf16.msra.mxu0 %v6715
    %8173 = vmatprep.subr.bf16.mxu0 %v6724
    %8174 = vmatpush1.bf16.msra.mxu0 %v6723
    %8175 = vmatprep.subr.bf16.mxu0 %v6732
    %8176 = vmatpush1.bf16.msra.mxu0 %v6731
    %8177 = vmatprep.subr.bf16.mxu0 %v6740
    %8178 = vmatpush1.bf16.msra.mxu0 %v6739
    %8179 = vmatprep.subr.bf16.mxu0 %v6748
    %8180 = vmatpush1.bf16.msra.mxu0 %v6747
    %8181 = vmatprep.subr.bf16.mxu0 %v6756
    %8182 = vmatpush1.bf16.msra.mxu0 %v6755
    %8183 = vmatprep.subr.bf16.mxu0 %v6764
    %8184 = vmatpush1.bf16.msra.mxu0 %v6763
    %8185 = vmatprep.mubr.bf16.mxu0 %v4540
    %8186 = vmatmul.mubr.bf16.gmra.mrb[0].mxu0 %v4539
    %v8187 = vpop.f32.mrb[0].mxu0
    %v8188 = vadd.f32 %v5088, %v8187
    %v8189 = vpop.f32.mrb[0].mxu0
    %v8190 = vadd.f32 %v5092, %v8189
    %v8191 = vpop.f32.mrb[0].mxu0
    %v8192 = vpop.f32.mrb[0].mxu0
    %8193 = vdwg.mxu0
    %8194 = vmatprep.subr.bf16.mxu0 %v6772
    %8195 = vmatpush1.bf16.msra.mxu0 %v6771
    %8196 = vmatprep.subr.bf16.mxu0 %v6780
    %8197 = vmatpush1.bf16.msra.mxu0 %v6779
    %8198 = vmatprep.subr.bf16.mxu0 %v6788
    %8199 = vmatpush1.bf16.msra.mxu0 %v6787
    %8200 = vmatprep.subr.bf16.mxu0 %v6796
    %8201 = vmatpush1.bf16.msra.mxu0 %v6795
    %8202 = vmatprep.subr.bf16.mxu0 %v6804
    %8203 = vmatpush1.bf16.msra.mxu0 %v6803
    %8204 = vmatprep.subr.bf16.mxu0 %v6812
    %8205 = vmatpush1.bf16.msra.mxu0 %v6811
    %8206 = vmatprep.subr.bf16.mxu0 %v6820
    %8207 = vmatpush1.bf16.msra.mxu0 %v6819
    %8208 = vmatprep.subr.bf16.mxu0 %v6828
    %8209 = vmatpush1.bf16.msra.mxu0 %v6827
    %8210 = vmatprep.subr.bf16.mxu0 %v6836
    %8211 = vmatpush1.bf16.msra.mxu0 %v6835
    %8212 = vmatprep.subr.bf16.mxu0 %v6844
    %8213 = vmatpush1.bf16.msra.mxu0 %v6843
    %8214 = vmatprep.subr.bf16.mxu0 %v6852
    %8215 = vmatpush1.bf16.msra.mxu0 %v6851
    %8216 = vmatprep.subr.bf16.mxu0 %v6860
    %8217 = vmatpush1.bf16.msra.mxu0 %v6859
    %8218 = vmatprep.subr.bf16.mxu0 %v6868
    %8219 = vmatpush1.bf16.msra.mxu0 %v6867
    %8220 = vmatprep.subr.bf16.mxu0 %v6876
    %8221 = vmatpush1.bf16.msra.mxu0 %v6875
    %8222 = vmatprep.subr.bf16.mxu0 %v6884
    %8223 = vmatpush1.bf16.msra.mxu0 %v6883
    %8224 = vmatprep.subr.bf16.mxu0 %v6892
    %8225 = vmatpush1.bf16.msra.mxu0 %v6891
    %8226 = vmatprep.mubr.bf16.mxu0 %v4542
    %8227 = vmatmul.mubr.bf16.gmra.mrb[0].mxu0 %v4541
    %v8228 = vpop.f32.mrb[0].mxu0
    %v8229 = vadd.f32 %v8188, %v8228
    %v8230 = vpop.f32.mrb[0].mxu0
    %v8231 = vadd.f32 %v8190, %v8230
    %v8232 = vpop.f32.mrb[0].mxu0
    %v8233 = vpop.f32.mrb[0].mxu0
    %8234 = vdwg.mxu0
    %8235 = vmatprep.subr.bf16.mxu0 %v6900
    %8236 = vmatpush1.bf16.msra.mxu0 %v6899
    %8237 = vmatprep.subr.bf16.mxu0 %v6908
    %8238 = vmatpush1.bf16.msra.mxu0 %v6907
    %8239 = vmatprep.subr.bf16.mxu0 %v6916
    %8240 = vmatpush1.bf16.msra.mxu0 %v6915
    %8241 = vmatprep.subr.bf16.mxu0 %v6924
    %8242 = vmatpush1.bf16.msra.mxu0 %v6923
    %8243 = vmatprep.subr.bf16.mxu0 %v6932
    %8244 = vmatpush1.bf16.msra.mxu0 %v6931
    %8245 = vmatprep.subr.bf16.mxu0 %v6940
    %8246 = vmatpush1.bf16.msra.mxu0 %v6939
    %8247 = vmatprep.subr.bf16.mxu0 %v6948
    %8248 = vmatpush1.bf16.msra.mxu0 %v6947
    %8249 = vmatprep.subr.bf16.mxu0 %v6956
    %8250 = vmatpush1.bf16.msra.mxu0 %v6955
    %8251 = vmatprep.subr.bf16.mxu0 %v6964
    %8252 = vmatpush1.bf16.msra.mxu0 %v6963
    %8253 = vmatprep.subr.bf16.mxu0 %v6972
    %8254 = vmatpush1.bf16.msra.mxu0 %v6971
    %8255 = vmatprep.subr.bf16.mxu0 %v6980
    %8256 = vmatpush1.bf16.msra.mxu0 %v6979
    %8257 = vmatprep.subr.bf16.mxu0 %v6988
    %8258 = vmatpush1.bf16.msra.mxu0 %v6987
    %8259 = vmatprep.subr.bf16.mxu0 %v6996
    %8260 = vmatpush1.bf16.msra.mxu0 %v6995
    %8261 = vmatprep.subr.bf16.mxu0 %v7004
    %8262 = vmatpush1.bf16.msra.mxu0 %v7003
    %8263 = vmatprep.subr.bf16.mxu0 %v7012
    %8264 = vmatpush1.bf16.msra.mxu0 %v7011
    %8265 = vmatprep.subr.bf16.mxu0 %v7020
    %8266 = vmatpush1.bf16.msra.mxu0 %v7019
    %8267 = vmatprep.mubr.bf16.mxu0 %v4544
    %8268 = vmatmul.mubr.bf16.gmra.mrb[0].mxu0 %v4543
    %v8269 = vpop.f32.mrb[0].mxu0
    %v8270 = vadd.f32 %v8229, %v8269
    %v8271 = vpop.f32.mrb[0].mxu0
    %v8272 = vadd.f32 %v8231, %v8271
    %v8273 = vpop.f32.mrb[0].mxu0
    %v8274 = vpop.f32.mrb[0].mxu0
    %8275 = vdwg.mxu0
    %8276 = vmatprep.subr.bf16.mxu0 %v7028
    %8277 = vmatpush1.bf16.msra.mxu0 %v7027
    %8278 = vmatprep.subr.bf16.mxu0 %v7036
    %8279 = vmatpush1.bf16.msra.mxu0 %v7035
    %8280 = vmatprep.subr.bf16.mxu0 %v7044
    %8281 = vmatpush1.bf16.msra.mxu0 %v7043
    %8282 = vmatprep.subr.bf16.mxu0 %v7052
    %8283 = vmatpush1.bf16.msra.mxu0 %v7051
    %8284 = vmatprep.subr.bf16.mxu0 %v7060
    %8285 = vmatpush1.bf16.msra.mxu0 %v7059
    %8286 = vmatprep.subr.bf16.mxu0 %v7068
    %8287 = vmatpush1.bf16.msra.mxu0 %v7067
    %8288 = vmatprep.subr.bf16.mxu0 %v7076
    %8289 = vmatpush1.bf16.msra.mxu0 %v7075
    %8290 = vmatprep.subr.bf16.mxu0 %v7084
    %8291 = vmatpush1.bf16.msra.mxu0 %v7083
    %8292 = vmatprep.subr.bf16.mxu0 %v7092
    %8293 = vmatpush1.bf16.msra.mxu0 %v7091
    %8294 = vmatprep.subr.bf16.mxu0 %v7100
    %8295 = vmatpush1.bf16.msra.mxu0 %v7099
    %8296 = vmatprep.subr.bf16.mxu0 %v7108
    %8297 = vmatpush1.bf16.msra.mxu0 %v7107
    %8298 = vmatprep.subr.bf16.mxu0 %v7116
    %8299 = vmatpush1.bf16.msra.mxu0 %v7115
    %8300 = vmatprep.subr.bf16.mxu0 %v7124
    %8301 = vmatpush1.bf16.msra.mxu0 %v7123
    %8302 = vmatprep.subr.bf16.mxu0 %v7132
    %8303 = vmatpush1.bf16.msra.mxu0 %v7131
    %8304 = vmatprep.subr.bf16.mxu0 %v7140
    %8305 = vmatpush1.bf16.msra.mxu0 %v7139
    %8306 = vmatprep.subr.bf16.mxu0 %v7148
    %8307 = vmatpush1.bf16.msra.mxu0 %v7147
    %8308 = vmatprep.mubr.bf16.mxu0 %v4546
    %8309 = vmatmul.mubr.bf16.gmra.mrb[0].mxu0 %v4545
    %v8310 = vpop.f32.mrb[0].mxu0
    %v8311 = vadd.f32 %v8270, %v8310
    %v8312 = vpop.f32.mrb[0].mxu0
    %v8313 = vadd.f32 %v8272, %v8312
    %v8314 = vpop.f32.mrb[0].mxu0
    %v8315 = vpop.f32.mrb[0].mxu0
    %8316 = vdwg.mxu0
    %vm8317 = vcmp.gt.f32.partialorder %v7819, 0.0
    %vm8318 = vcmp.gt.f32.partialorder %v7821, 0.0
    %vm8319 = vcmp.gt.f32.partialorder %v7983, 0.0
    %vm8320 = vcmp.gt.f32.partialorder %v7985, 0.0
    %vm8321 = vcmp.gt.f32.partialorder %v8147, 0.0
    %vm8322 = vcmp.gt.f32.partialorder %v8149, 0.0
    %vm8323 = vcmp.gt.f32.partialorder %v8311, 0.0
    %vm8324 = vcmp.gt.f32.partialorder %v8313, 0.0
    %v8325 = vmul.f32 %v7819, 0.01
    %v8326 = vmul.f32 %v7821, 0.01
    %v8327 = vmul.f32 %v7983, 0.01
    %v8328 = vmul.f32 %v7985, 0.01
    %v8329 = vmul.f32 %v8147, 0.01
    %v8330 = vmul.f32 %v8149, 0.01
    %v8331 = vmul.f32 %v8311, 0.01
    %v8332 = vmul.f32 %v8313, 0.01
    %v8333 = vsel %vm8317, %v7819, %v8325
    %v8334 = vsel %vm8318, %v7821, %v8326
    %v8335 = vsel %vm8319, %v7983, %v8327
    %v8336 = vsel %vm8320, %v7985, %v8328
    %v8337 = vsel %vm8321, %v8147, %v8329
    %v8338 = vsel %vm8322, %v8149, %v8330
    %v8339 = vsel %vm8323, %v8311, %v8331
    %v8340 = vsel %vm8324, %v8313, %v8332
    %v8341 = vld [vmem:[#allocation13] sm:$0xff]
    %v8343 = vlaneseq
    %v8344 = vshrl.u32 %v8343, 7
    %v8345 = vsub.s32 0, %v8344
    %v8346 = vrot.slane %v8341, %v8345
    %v8347 = vlaneseq
    %v8348 = vshrl.u32 %v8347, 7
    %v8349 = vsub.s32 1, %v8348
    %v8350 = vrot.slane %v8341, %v8349
    %v8351 = vlaneseq
    %v8352 = vshrl.u32 %v8351, 7
    %v8353 = vsub.s32 2, %v8352
    %v8354 = vrot.slane %v8341, %v8353
    %v8355 = vlaneseq
    %v8356 = vshrl.u32 %v8355, 7
    %v8357 = vsub.s32 3, %v8356
    %v8358 = vrot.slane %v8341, %v8357
    %v8359 = vlaneseq
    %v8360 = vshrl.u32 %v8359, 7
    %v8361 = vsub.s32 4, %v8360
    %v8362 = vrot.slane %v8341, %v8361
    %v8363 = vlaneseq
    %v8364 = vshrl.u32 %v8363, 7
    %v8365 = vsub.s32 5, %v8364
    %v8366 = vrot.slane %v8341, %v8365
    %v8367 = vlaneseq
    %v8368 = vshrl.u32 %v8367, 7
    %v8369 = vsub.s32 6, %v8368
    %v8370 = vrot.slane %v8341, %v8369
    %v8371 = vlaneseq
    %v8372 = vshrl.u32 %v8371, 7
    %v8373 = vsub.s32 7, %v8372
    %v8374 = vrot.slane %v8341, %v8373
    %v8383 = vmul.f32 %v8333, %v8346
    %v8384 = vmul.f32 %v8334, %v8350
    %v8385 = vmul.f32 %v8335, %v8354
    %v8386 = vmul.f32 %v8336, %v8358
    %v8387 = vmul.f32 %v8337, %v8362
    %v8388 = vmul.f32 %v8338, %v8366
    %v8389 = vmul.f32 %v8339, %v8370
    %v8390 = vmul.f32 %v8340, %v8374
    %v8391 = vadd.f32 %v8383, %v8384
    %v8392 = vadd.f32 %v8391, %v8385
    %v8393 = vadd.f32 %v8392, %v8386
    %v8394 = vadd.f32 %v8393, %v8387
    %v8395 = vadd.f32 %v8394, %v8388
    %v8396 = vadd.f32 %v8395, %v8389
    %v8397 = vadd.f32 %v8396, %v8390
    %8398 = vadd.xlane.f32.xlu0 %v8397
    %v8399 = vpop.xlane.xlu0 %8398
    %v8400 = vld [vmem:[#allocation2] sm:$0x1]
    %v8402 = vlaneseq
    %v8403 = vshrl.u32 %v8402, 7
    %v8404 = vsub.s32 0, %v8403
    %v8405 = vrot.slane %v8400, %v8404
    %v8407 = vadd.f32 %v8399, %v8405
    %vm8408 = vcmask 7168
    %8409 = vst.msk [vmem:[%s9] sm:$0xff] %vm8408, %v8407
    // Predicated region
    $region66: #{discriminator_forward.1} parent=1 // pred_check
      _
    $region67: #{discriminator_forward.1} parent=1 // pred_check_branch
      %8411 = sbr.rel (0) target = $region69
    $region68: #{discriminator_forward.1} parent=1 // pred_region
      _
    $region69: #{discriminator_forward.1} parent=1 // pred_fallthru
      _
    // Predicated region
    $region70: #{discriminator_forward.1} parent=1 // pred_check
      _
    $region71: #{discriminator_forward.1} parent=1 // pred_check_branch
      %8413 = sbr.rel (0) target = $region73
    $region72: #{discriminator_forward.1} parent=1 // pred_region
      _
    $region73: #{discriminator_forward.1} parent=1 // pred_fallthru
      _
    %8414 = vsyncpa [#allocation4], 1
    %8415 = vsyncpa [#allocation6], 1
    %8416 = vsyncpa [#allocation9], 1
    %8417 = vsyncpa [#allocation12], 1

</llo_original>
